<compile_context>
chip_gen: v7x
topology: tpu7x:2x2x1
jax: 0.10.0
libtpu: 0.0.40
codegen_flags: <defaults>
</compile_context>

<pallas_src>
import jax
import jax.numpy as jnp
from jax.experimental import pallas as pl
from jax.experimental.pallas import tpu as pltpu

INPUT_SIZE = 10            # spatial size implied by the PyTorch module
H1 = INPUT_SIZE - 2        # 8   (after 3x3 valid conv)
P = H1 * H1                # 64  output positions per channel
FLAT = 4 * P               # 256 flattened conv features
HID = 256
OUT = P                    # 64
C_IN = 2
C_MID = 4

# Batch tile: must be a multiple of 128 whenever the grid has more than one
# step (lane-dim BlockSpec rule).  128 keeps every op lane-dense, matches the
# v5e MXU geometry and yields grid >= 2 (both v7x TensorCores) once B >= 256.
# 256 is equally fine on v6e / v7x.
MAX_BATCH_TILE = 128


# ----------------------------- fused kernel ---------------------------------
def _fused_kernel(x_ref, w1_ref, b1_ref, w2_ref, b2_ref,
                  l1w_ref, l1b_ref, l2w_ref, l2b_ref, l3w_ref, l3b_ref,
                  o_ref, pad_ref, flat_ref):
    BB = x_ref.shape[-1]
    f32 = jnp.float32

    # ---- 'same'-padding buffer for conv2: zero ONLY the 1-wide border ------
    zrow = jnp.zeros((C_MID, 1, INPUT_SIZE, BB), f32)
    zcol = jnp.zeros((C_MID, INPUT_SIZE, 1, BB), f32)
    pad_ref[:, 0:1, :, :] = zrow
    pad_ref[:, INPUT_SIZE - 1:INPUT_SIZE, :, :] = zrow
    pad_ref[:, :, 0:1, :] = zcol
    pad_ref[:, :, INPUT_SIZE - 1:INPUT_SIZE, :] = zcol

    # ---- conv1: 3x3 valid, 2 -> 4, ReLU (copy-free broadcast-MAC) ----------
    # x is (Cin, H, W, B); every term is a full-lane (8, 8, BB) slab.
    for co in range(C_MID):
        acc = jnp.zeros((H1, H1, BB), f32)
        for ci in range(C_IN):
            for kh in range(3):
                for kw in range(3):
                    w = w1_ref[co * (C_IN * 9) + ci * 9 + kh * 3 + kw]
                    acc = acc + w * x_ref[ci, kh:kh + H1, kw:kw + H1, :]
        # write ReLU'd conv1 output straight into the padded scratch interior
        pad_ref[co, 1:1 + H1, 1:1 + H1, :] = jnp.maximum(acc + b1_ref[co], 0.0)

    # ---- conv2: 3x3 'same', 4 -> 4, ReLU; flatten in torch (C,H,W) order ---
    for co in range(C_MID):
        acc = jnp.zeros((H1, H1, BB), f32)
        for ci in range(C_MID):
            for kh in range(3):
                for kw in range(3):
                    w = w2_ref[co * (C_MID * 9) + ci * 9 + kh * 3 + kw]
                    acc = acc + w * pad_ref[ci, kh:kh + H1, kw:kw + H1, :]
        h = jnp.maximum(acc + b2_ref[co], 0.0)           # (H1, H1, BB)
        for i in range(H1):                              # lane-dense (8, BB) rows
            r0 = co * P + i * H1
            flat_ref[r0:r0 + H1, :] = h[i]

    # ---- 3-layer MLP on the MXU: (out,in) @ (features,batch) ---------------
    # bf16 weights & activations, f32 accumulation / bias / ReLU.
    z = flat_ref[...].astype(jnp.bfloat16)                                  # (256, BB)
    a = jnp.dot(l1w_ref[...], z, preferred_element_type=f32) + l1b_ref[...]
    z = jnp.maximum(a, 0.0).astype(jnp.bfloat16)
    a = jnp.dot(l2w_ref[...], z, preferred_element_type=f32) + l2b_ref[...]
    z = jnp.maximum(a, 0.0).astype(jnp.bfloat16)
    o_ref[...] = jnp.dot(l3w_ref[...], z, preferred_element_type=f32) + l3b_ref[...]


# ------------------------------- wrapper ------------------------------------
def prepare_params(params):
    """One-time re-layout of torch-style parameters (hoisted off the hot path)."""
    (w1, b1, w2, b2, lw1, lb1, lw2, lb2, lw3, lb3) = params
    f32, bf16 = jnp.float32, jnp.bfloat16
    # conv weights flattened (co, ci, kh, kw) row-major -> 1-D SMEM tables
    w1f = w1.astype(f32).reshape(-1)       # (72,)
    w2f = w2.astype(f32).reshape(-1)       # (144,)
    b1f = b1.astype(f32)                   # (4,)
    b2f = b2.astype(f32)                   # (4,)
    # torch Linear stores (out, in) which is exactly what (features, batch)
    # activations need -> NO transpose; cast weights to bf16 for the MXU.
    l1w = lw1.astype(bf16)                 # (256, 256)
    l2w = lw2.astype(bf16)                 # (256, 256)
    l3w = lw3.astype(bf16)                 # (64, 256)
    l1b = lb1.astype(f32).reshape(HID, 1)
    l2b = lb2.astype(f32).reshape(HID, 1)
    l3b = lb3.astype(f32).reshape(OUT, 1)
    return (w1f, b1f, w2f, b2f, l1w, l1b, l2w, l2b, l3w, l3b)


def cnn_forward(x_nchw, prepared, max_batch_tile=MAX_BATCH_TILE):
    (w1f, b1f, w2f, b2f, l1w, l1b, l2w, l2b, l3w, l3b) = prepared
    B = x_nchw.shape[0]

    # Batch goes to the minor (lane) dimension: (Cin, H, W, B).
    x = jnp.transpose(x_nchw.astype(jnp.float32), (1, 2, 3, 0))

    if B <= max_batch_tile:
        BB = Bp = B                        # single tile: no padded-batch waste
    else:
        BB = max_batch_tile                # multiple of 128 (lane-dim rule)
        Bp = ((B + BB - 1) // BB) * BB
        if Bp != B:
            x = jnp.pad(x, ((0, 0), (0, 0), (0, 0), (0, Bp - B)))
    grid = (Bp // BB,)

    const = dict(pipeline_mode=pl.Buffered(1))   # weights never change across grid
    smem = pl.BlockSpec(memory_space=pltpu.MemorySpace.SMEM)

    flops = Bp * (2 * P * C_MID * (C_IN * 9) + 2 * P * C_MID * (C_MID * 9)
                  + 2 * FLAT * HID + 2 * HID * HID + 2 * HID * OUT)
    bytes_accessed = (x.size * 4 + Bp * OUT * 4
                      + (l1w.size + l2w.size + l3w.size) * 2
                      + (2 * HID + OUT) * 4 + (w1f.size + w2f.size + 8) * 4)

    out = pl.pallas_call(
        _fused_kernel,
        out_shape=jax.ShapeDtypeStruct((OUT, Bp), jnp.float32),
        grid=grid,
        in_specs=[
            pl.BlockSpec((C_IN, INPUT_SIZE, INPUT_SIZE, BB), lambda i: (0, 0, 0, i)),
            smem, smem, smem, smem,                                   # conv w/b tables
            pl.BlockSpec((HID, FLAT), lambda i: (0, 0), **const),     # l1w (bf16)
            pl.BlockSpec((HID, 1), lambda i: (0, 0), **const),        # l1b
            pl.BlockSpec((HID, HID), lambda i: (0, 0), **const),      # l2w (bf16)
            pl.BlockSpec((HID, 1), lambda i: (0, 0), **const),        # l2b
            pl.BlockSpec((OUT, HID), lambda i: (0, 0), **const),      # l3w (bf16)
            pl.BlockSpec((OUT, 1), lambda i: (0, 0), **const),        # l3b
        ],
        out_specs=pl.BlockSpec((OUT, BB), lambda i: (0, i)),
        scratch_shapes=[
            pltpu.VMEM((C_MID, INPUT_SIZE, INPUT_SIZE, BB), jnp.float32),  # padded h1
            pltpu.VMEM((FLAT, BB), jnp.float32),                           # flat acts
        ],
        compiler_params=pltpu.CompilerParams(
            dimension_semantics=("parallel",),
            vmem_limit_bytes=40 * 1024 * 1024),
        cost_estimate=pl.CostEstimate(flops=int(flops), transcendentals=0,
                                      bytes_accessed=int(bytes_accessed)),
    )(x, w1f, b1f, w2f, b2f, l1w, l1b, l2w, l2b, l3w, l3b)

    return out[:, :B].T                     # (B, 64): one tiny transpose outside


def init_params(key):
    ks = jax.random.split(key, 10)

    def u(k, shape, scale):
        return jax.random.uniform(k, shape, jnp.float32, -1.0, 1.0) * scale

    w1 = u(ks[0], (C_MID, C_IN, 3, 3), 0.2)
    b1 = u(ks[1], (C_MID,), 0.2)
    w2 = u(ks[2], (C_MID, C_MID, 3, 3), 0.2)
    b2 = u(ks[3], (C_MID,), 0.2)
    lw1 = u(ks[4], (HID, FLAT), 0.06)       # torch Linear layout: (out, in)
    lb1 = u(ks[5], (HID,), 0.06)
    lw2 = u(ks[6], (HID, HID), 0.06)
    lb2 = u(ks[7], (HID,), 0.06)
    lw3 = u(ks[8], (OUT, HID), 0.06)
    lb3 = u(ks[9], (OUT,), 0.06)
    return (w1, b1, w2, b2, lw1, lb1, lw2, lb2, lw3, lb3)


if __name__ == "__main__":
    key = jax.random.PRNGKey(0)
    k_x, k_p = jax.random.split(key)

    B = 2
    x = jax.random.normal(k_x, (B, C_IN, INPUT_SIZE, INPUT_SIZE), jnp.float32)  # NCHW
    params = init_params(k_p)
    prepared = prepare_params(params)       # one-time weight re-layout (not per call)

    fwd = jax.jit(cnn_forward)
    out = fwd(x, prepared)
    jax.block_until_ready(out)
    assert out.shape == (B, OUT) and out.dtype == jnp.float32
    assert bool(jnp.all(jnp.isfinite(out)))
    print("KERNEL_OK")
</pallas_src>

<mosaic_0001>
module attributes {stable_mosaic.version = 11 : i64} {
  func.func @_fused_kernel(%arg0: i32, %arg1: memref<2x10x10x2xf32, #tpu.memory_space<vmem>>, %arg2: memref<72xf32, #tpu.memory_space<smem>>, %arg3: memref<4xf32, #tpu.memory_space<smem>>, %arg4: memref<144xf32, #tpu.memory_space<smem>>, %arg5: memref<4xf32, #tpu.memory_space<smem>>, %arg6: memref<256x256xbf16, #tpu.memory_space<vmem>>, %arg7: memref<256x1xf32, #tpu.memory_space<vmem>>, %arg8: memref<256x256xbf16, #tpu.memory_space<vmem>>, %arg9: memref<256x1xf32, #tpu.memory_space<vmem>>, %arg10: memref<64x256xbf16, #tpu.memory_space<vmem>>, %arg11: memref<64x1xf32, #tpu.memory_space<vmem>>, %arg12: memref<64x2xf32, #tpu.memory_space<vmem>>, %arg13: memref<4x10x10x2xf32, #tpu.memory_space<vmem>>, %arg14: memref<256x2xf32, #tpu.memory_space<vmem>>) attributes {dimension_semantics = [#tpu.dimension_semantics<parallel>], iteration_bounds = array<i64: 1>, scalar_prefetch = 0 : i64, scratch_operands = 2 : i64, tpu.core_type = #tpu.core_type<tc>, window_params = [{transform_indices = @transform_0, window_bounds = array<i64: 2, 10, 10, 2>}, {transform_indices = @transform_1, window_bounds = array<i64: 72>}, {transform_indices = @transform_2, window_bounds = array<i64: 4>}, {transform_indices = @transform_3, window_bounds = array<i64: 144>}, {transform_indices = @transform_4, window_bounds = array<i64: 4>}, {pipeline_mode = #tpu.pipeline_mode<synchronous>, transform_indices = @transform_5, window_bounds = array<i64: 256, 256>}, {pipeline_mode = #tpu.pipeline_mode<synchronous>, transform_indices = @transform_6, window_bounds = array<i64: 256, 1>}, {pipeline_mode = #tpu.pipeline_mode<synchronous>, transform_indices = @transform_7, window_bounds = array<i64: 256, 256>}, {pipeline_mode = #tpu.pipeline_mode<synchronous>, transform_indices = @transform_8, window_bounds = array<i64: 256, 1>}, {pipeline_mode = #tpu.pipeline_mode<synchronous>, transform_indices = @transform_9, window_bounds = array<i64: 64, 256>}, {pipeline_mode = #tpu.pipeline_mode<synchronous>, transform_indices = @transform_10, window_bounds = array<i64: 64, 1>}, {transform_indices = @transform_11, window_bounds = array<i64: 64, 2>}]} {
    %cst = arith.constant 0.000000e+00 : f32
    %0 = vector.broadcast %cst : f32 to vector<4x1x10x2xf32>
    %cst_0 = arith.constant 0.000000e+00 : f32
    %1 = vector.broadcast %cst_0 : f32 to vector<4x10x1x2xf32>
    %c0 = arith.constant 0 : index
    %c0_1 = arith.constant 0 : index
    %c0_2 = arith.constant 0 : index
    %c0_3 = arith.constant 0 : index
    %2 = vector.load %arg13[%c0, %c0_1, %c0_2, %c0_3] : memref<4x10x10x2xf32, #tpu.memory_space<vmem>>, vector<4x1x10x2xf32>
    tpu.vector_store %arg13[%c0, %c0_1, %c0_2, %c0_3], %0 {strides = array<i32>} : memref<4x10x10x2xf32, #tpu.memory_space<vmem>>, vector<4x1x10x2xf32>,
    %c0_4 = arith.constant 0 : index
    %c9 = arith.constant 9 : index
    %c0_5 = arith.constant 0 : index
    %c0_6 = arith.constant 0 : index
    %3 = vector.load %arg13[%c0_4, %c9, %c0_5, %c0_6] : memref<4x10x10x2xf32, #tpu.memory_space<vmem>>, vector<4x1x10x2xf32>
    tpu.vector_store %arg13[%c0_4, %c9, %c0_5, %c0_6], %0 {strides = array<i32>} : memref<4x10x10x2xf32, #tpu.memory_space<vmem>>, vector<4x1x10x2xf32>,
    %c0_7 = arith.constant 0 : index
    %c0_8 = arith.constant 0 : index
    %c0_9 = arith.constant 0 : index
    %c0_10 = arith.constant 0 : index
    %4 = vector.load %arg13[%c0_7, %c0_8, %c0_9, %c0_10] : memref<4x10x10x2xf32, #tpu.memory_space<vmem>>, vector<4x10x1x2xf32>
    tpu.vector_store %arg13[%c0_7, %c0_8, %c0_9, %c0_10], %1 {strides = array<i32>} : memref<4x10x10x2xf32, #tpu.memory_space<vmem>>, vector<4x10x1x2xf32>,
    %c0_11 = arith.constant 0 : index
    %c0_12 = arith.constant 0 : index
    %c9_13 = arith.constant 9 : index
    %c0_14 = arith.constant 0 : index
    %5 = vector.load %arg13[%c0_11, %c0_12, %c9_13, %c0_14] : memref<4x10x10x2xf32, #tpu.memory_space<vmem>>, vector<4x10x1x2xf32>
    tpu.vector_store %arg13[%c0_11, %c0_12, %c9_13, %c0_14], %1 {strides = array<i32>} : memref<4x10x10x2xf32, #tpu.memory_space<vmem>>, vector<4x10x1x2xf32>,
    %cst_15 = arith.constant 0.000000e+00 : f32
    %6 = vector.broadcast %cst_15 : f32 to vector<8x8x2xf32>
    %c0_16 = arith.constant 0 : index
    %7 = memref.load %arg2[%c0_16] : memref<72xf32, #tpu.memory_space<smem>>
    %c0_17 = arith.constant 0 : index
    %c0_18 = arith.constant 0 : index
    %c0_19 = arith.constant 0 : index
    %c0_20 = arith.constant 0 : index
    %8 = vector.load %arg1[%c0_17, %c0_18, %c0_19, %c0_20] : memref<2x10x10x2xf32, #tpu.memory_space<vmem>>, vector<1x8x8x2xf32>
    %9 = vector.shape_cast %8 : vector<1x8x8x2xf32> to vector<8x8x2xf32>
    %10 = vector.broadcast %7 : f32 to vector<8x8x2xf32>
    %11 = arith.mulf %10, %9 : vector<8x8x2xf32>
    %12 = arith.addf %6, %11 : vector<8x8x2xf32>
    %c1 = arith.constant 1 : index
    %13 = memref.load %arg2[%c1] : memref<72xf32, #tpu.memory_space<smem>>
    %c0_21 = arith.constant 0 : index
    %c0_22 = arith.constant 0 : index
    %c1_23 = arith.constant 1 : index
    %c0_24 = arith.constant 0 : index
    %14 = vector.load %arg1[%c0_21, %c0_22, %c1_23, %c0_24] : memref<2x10x10x2xf32, #tpu.memory_space<vmem>>, vector<1x8x8x2xf32>
    %15 = vector.shape_cast %14 : vector<1x8x8x2xf32> to vector<8x8x2xf32>
    %16 = vector.broadcast %13 : f32 to vector<8x8x2xf32>
    %17 = arith.mulf %16, %15 : vector<8x8x2xf32>
    %18 = arith.addf %12, %17 : vector<8x8x2xf32>
    %c2 = arith.constant 2 : index
    %19 = memref.load %arg2[%c2] : memref<72xf32, #tpu.memory_space<smem>>
    %c0_25 = arith.constant 0 : index
    %c0_26 = arith.constant 0 : index
    %c2_27 = arith.constant 2 : index
    %c0_28 = arith.constant 0 : index
    %20 = vector.load %arg1[%c0_25, %c0_26, %c2_27, %c0_28] : memref<2x10x10x2xf32, #tpu.memory_space<vmem>>, vector<1x8x8x2xf32>
    %21 = vector.shape_cast %20 : vector<1x8x8x2xf32> to vector<8x8x2xf32>
    %22 = vector.broadcast %19 : f32 to vector<8x8x2xf32>
    %23 = arith.mulf %22, %21 : vector<8x8x2xf32>
    %24 = arith.addf %18, %23 : vector<8x8x2xf32>
    %c3 = arith.constant 3 : index
    %25 = memref.load %arg2[%c3] : memref<72xf32, #tpu.memory_space<smem>>
    %c0_29 = arith.constant 0 : index
    %c1_30 = arith.constant 1 : index
    %c0_31 = arith.constant 0 : index
    %c0_32 = arith.constant 0 : index
    %26 = vector.load %arg1[%c0_29, %c1_30, %c0_31, %c0_32] : memref<2x10x10x2xf32, #tpu.memory_space<vmem>>, vector<1x8x8x2xf32>
    %27 = vector.shape_cast %26 : vector<1x8x8x2xf32> to vector<8x8x2xf32>
    %28 = vector.broadcast %25 : f32 to vector<8x8x2xf32>
    %29 = arith.mulf %28, %27 : vector<8x8x2xf32>
    %30 = arith.addf %24, %29 : vector<8x8x2xf32>
    %c4 = arith.constant 4 : index
    %31 = memref.load %arg2[%c4] : memref<72xf32, #tpu.memory_space<smem>>
    %c0_33 = arith.constant 0 : index
    %c1_34 = arith.constant 1 : index
    %c1_35 = arith.constant 1 : index
    %c0_36 = arith.constant 0 : index
    %32 = vector.load %arg1[%c0_33, %c1_34, %c1_35, %c0_36] : memref<2x10x10x2xf32, #tpu.memory_space<vmem>>, vector<1x8x8x2xf32>
    %33 = vector.shape_cast %32 : vector<1x8x8x2xf32> to vector<8x8x2xf32>
    %34 = vector.broadcast %31 : f32 to vector<8x8x2xf32>
    %35 = arith.mulf %34, %33 : vector<8x8x2xf32>
    %36 = arith.addf %30, %35 : vector<8x8x2xf32>
    %c5 = arith.constant 5 : index
    %37 = memref.load %arg2[%c5] : memref<72xf32, #tpu.memory_space<smem>>
    %c0_37 = arith.constant 0 : index
    %c1_38 = arith.constant 1 : index
    %c2_39 = arith.constant 2 : index
    %c0_40 = arith.constant 0 : index
    %38 = vector.load %arg1[%c0_37, %c1_38, %c2_39, %c0_40] : memref<2x10x10x2xf32, #tpu.memory_space<vmem>>, vector<1x8x8x2xf32>
    %39 = vector.shape_cast %38 : vector<1x8x8x2xf32> to vector<8x8x2xf32>
    %40 = vector.broadcast %37 : f32 to vector<8x8x2xf32>
    %41 = arith.mulf %40, %39 : vector<8x8x2xf32>
    %42 = arith.addf %36, %41 : vector<8x8x2xf32>
    %c6 = arith.constant 6 : index
    %43 = memref.load %arg2[%c6] : memref<72xf32, #tpu.memory_space<smem>>
    %c0_41 = arith.constant 0 : index
    %c2_42 = arith.constant 2 : index
    %c0_43 = arith.constant 0 : index
    %c0_44 = arith.constant 0 : index
    %44 = vector.load %arg1[%c0_41, %c2_42, %c0_43, %c0_44] : memref<2x10x10x2xf32, #tpu.memory_space<vmem>>, vector<1x8x8x2xf32>
    %45 = vector.shape_cast %44 : vector<1x8x8x2xf32> to vector<8x8x2xf32>
    %46 = vector.broadcast %43 : f32 to vector<8x8x2xf32>
    %47 = arith.mulf %46, %45 : vector<8x8x2xf32>
    %48 = arith.addf %42, %47 : vector<8x8x2xf32>
    %c7 = arith.constant 7 : index
    %49 = memref.load %arg2[%c7] : memref<72xf32, #tpu.memory_space<smem>>
    %c0_45 = arith.constant 0 : index
    %c2_46 = arith.constant 2 : index
    %c1_47 = arith.constant 1 : index
    %c0_48 = arith.constant 0 : index
    %50 = vector.load %arg1[%c0_45, %c2_46, %c1_47, %c0_48] : memref<2x10x10x2xf32, #tpu.memory_space<vmem>>, vector<1x8x8x2xf32>
    %51 = vector.shape_cast %50 : vector<1x8x8x2xf32> to vector<8x8x2xf32>
    %52 = vector.broadcast %49 : f32 to vector<8x8x2xf32>
    %53 = arith.mulf %52, %51 : vector<8x8x2xf32>
    %54 = arith.addf %48, %53 : vector<8x8x2xf32>
    %c8 = arith.constant 8 : index
    %55 = memref.load %arg2[%c8] : memref<72xf32, #tpu.memory_space<smem>>
    %c0_49 = arith.constant 0 : index
    %c2_50 = arith.constant 2 : index
    %c2_51 = arith.constant 2 : index
    %c0_52 = arith.constant 0 : index
    %56 = vector.load %arg1[%c0_49, %c2_50, %c2_51, %c0_52] : memref<2x10x10x2xf32, #tpu.memory_space<vmem>>, vector<1x8x8x2xf32>
    %57 = vector.shape_cast %56 : vector<1x8x8x2xf32> to vector<8x8x2xf32>
    %58 = vector.broadcast %55 : f32 to vector<8x8x2xf32>
    %59 = arith.mulf %58, %57 : vector<8x8x2xf32>
    %60 = arith.addf %54, %59 : vector<8x8x2xf32>
    %c9_53 = arith.constant 9 : index
    %61 = memref.load %arg2[%c9_53] : memref<72xf32, #tpu.memory_space<smem>>
    %c1_54 = arith.constant 1 : index
    %c0_55 = arith.constant 0 : index
    %c0_56 = arith.constant 0 : index
    %c0_57 = arith.constant 0 : index
    %62 = vector.load %arg1[%c1_54, %c0_55, %c0_56, %c0_57] : memref<2x10x10x2xf32, #tpu.memory_space<vmem>>, vector<1x8x8x2xf32>
    %63 = vector.shape_cast %62 : vector<1x8x8x2xf32> to vector<8x8x2xf32>
    %64 = vector.broadcast %61 : f32 to vector<8x8x2xf32>
    %65 = arith.mulf %64, %63 : vector<8x8x2xf32>
    %66 = arith.addf %60, %65 : vector<8x8x2xf32>
    %c10 = arith.constant 10 : index
    %67 = memref.load %arg2[%c10] : memref<72xf32, #tpu.memory_space<smem>>
    %c1_58 = arith.constant 1 : index
    %c0_59 = arith.constant 0 : index
    %c1_60 = arith.constant 1 : index
    %c0_61 = arith.constant 0 : index
    %68 = vector.load %arg1[%c1_58, %c0_59, %c1_60, %c0_61] : memref<2x10x10x2xf32, #tpu.memory_space<vmem>>, vector<1x8x8x2xf32>
    %69 = vector.shape_cast %68 : vector<1x8x8x2xf32> to vector<8x8x2xf32>
    %70 = vector.broadcast %67 : f32 to vector<8x8x2xf32>
    %71 = arith.mulf %70, %69 : vector<8x8x2xf32>
    %72 = arith.addf %66, %71 : vector<8x8x2xf32>
    %c11 = arith.constant 11 : index
    %73 = memref.load %arg2[%c11] : memref<72xf32, #tpu.memory_space<smem>>
    %c1_62 = arith.constant 1 : index
    %c0_63 = arith.constant 0 : index
    %c2_64 = arith.constant 2 : index
    %c0_65 = arith.constant 0 : index
    %74 = vector.load %arg1[%c1_62, %c0_63, %c2_64, %c0_65] : memref<2x10x10x2xf32, #tpu.memory_space<vmem>>, vector<1x8x8x2xf32>
    %75 = vector.shape_cast %74 : vector<1x8x8x2xf32> to vector<8x8x2xf32>
    %76 = vector.broadcast %73 : f32 to vector<8x8x2xf32>
    %77 = arith.mulf %76, %75 : vector<8x8x2xf32>
    %78 = arith.addf %72, %77 : vector<8x8x2xf32>
    %c12 = arith.constant 12 : index
    %79 = memref.load %arg2[%c12] : memref<72xf32, #tpu.memory_space<smem>>
    %c1_66 = arith.constant 1 : index
    %c1_67 = arith.constant 1 : index
    %c0_68 = arith.constant 0 : index
    %c0_69 = arith.constant 0 : index
    %80 = vector.load %arg1[%c1_66, %c1_67, %c0_68, %c0_69] : memref<2x10x10x2xf32, #tpu.memory_space<vmem>>, vector<1x8x8x2xf32>
    %81 = vector.shape_cast %80 : vector<1x8x8x2xf32> to vector<8x8x2xf32>
    %82 = vector.broadcast %79 : f32 to vector<8x8x2xf32>
    %83 = arith.mulf %82, %81 : vector<8x8x2xf32>
    %84 = arith.addf %78, %83 : vector<8x8x2xf32>
    %c13 = arith.constant 13 : index
    %85 = memref.load %arg2[%c13] : memref<72xf32, #tpu.memory_space<smem>>
    %c1_70 = arith.constant 1 : index
    %c1_71 = arith.constant 1 : index
    %c1_72 = arith.constant 1 : index
    %c0_73 = arith.constant 0 : index
    %86 = vector.load %arg1[%c1_70, %c1_71, %c1_72, %c0_73] : memref<2x10x10x2xf32, #tpu.memory_space<vmem>>, vector<1x8x8x2xf32>
    %87 = vector.shape_cast %86 : vector<1x8x8x2xf32> to vector<8x8x2xf32>
    %88 = vector.broadcast %85 : f32 to vector<8x8x2xf32>
    %89 = arith.mulf %88, %87 : vector<8x8x2xf32>
    %90 = arith.addf %84, %89 : vector<8x8x2xf32>
    %c14 = arith.constant 14 : index
    %91 = memref.load %arg2[%c14] : memref<72xf32, #tpu.memory_space<smem>>
    %c1_74 = arith.constant 1 : index
    %c1_75 = arith.constant 1 : index
    %c2_76 = arith.constant 2 : index
    %c0_77 = arith.constant 0 : index
    %92 = vector.load %arg1[%c1_74, %c1_75, %c2_76, %c0_77] : memref<2x10x10x2xf32, #tpu.memory_space<vmem>>, vector<1x8x8x2xf32>
    %93 = vector.shape_cast %92 : vector<1x8x8x2xf32> to vector<8x8x2xf32>
    %94 = vector.broadcast %91 : f32 to vector<8x8x2xf32>
    %95 = arith.mulf %94, %93 : vector<8x8x2xf32>
    %96 = arith.addf %90, %95 : vector<8x8x2xf32>
    %c15 = arith.constant 15 : index
    %97 = memref.load %arg2[%c15] : memref<72xf32, #tpu.memory_space<smem>>
    %c1_78 = arith.constant 1 : index
    %c2_79 = arith.constant 2 : index
    %c0_80 = arith.constant 0 : index
    %c0_81 = arith.constant 0 : index
    %98 = vector.load %arg1[%c1_78, %c2_79, %c0_80, %c0_81] : memref<2x10x10x2xf32, #tpu.memory_space<vmem>>, vector<1x8x8x2xf32>
    %99 = vector.shape_cast %98 : vector<1x8x8x2xf32> to vector<8x8x2xf32>
    %100 = vector.broadcast %97 : f32 to vector<8x8x2xf32>
    %101 = arith.mulf %100, %99 : vector<8x8x2xf32>
    %102 = arith.addf %96, %101 : vector<8x8x2xf32>
    %c16 = arith.constant 16 : index
    %103 = memref.load %arg2[%c16] : memref<72xf32, #tpu.memory_space<smem>>
    %c1_82 = arith.constant 1 : index
    %c2_83 = arith.constant 2 : index
    %c1_84 = arith.constant 1 : index
    %c0_85 = arith.constant 0 : index
    %104 = vector.load %arg1[%c1_82, %c2_83, %c1_84, %c0_85] : memref<2x10x10x2xf32, #tpu.memory_space<vmem>>, vector<1x8x8x2xf32>
    %105 = vector.shape_cast %104 : vector<1x8x8x2xf32> to vector<8x8x2xf32>
    %106 = vector.broadcast %103 : f32 to vector<8x8x2xf32>
    %107 = arith.mulf %106, %105 : vector<8x8x2xf32>
    %108 = arith.addf %102, %107 : vector<8x8x2xf32>
    %c17 = arith.constant 17 : index
    %109 = memref.load %arg2[%c17] : memref<72xf32, #tpu.memory_space<smem>>
    %c1_86 = arith.constant 1 : index
    %c2_87 = arith.constant 2 : index
    %c2_88 = arith.constant 2 : index
    %c0_89 = arith.constant 0 : index
    %110 = vector.load %arg1[%c1_86, %c2_87, %c2_88, %c0_89] : memref<2x10x10x2xf32, #tpu.memory_space<vmem>>, vector<1x8x8x2xf32>
    %111 = vector.shape_cast %110 : vector<1x8x8x2xf32> to vector<8x8x2xf32>
    %112 = vector.broadcast %109 : f32 to vector<8x8x2xf32>
    %113 = arith.mulf %112, %111 : vector<8x8x2xf32>
    %114 = arith.addf %108, %113 : vector<8x8x2xf32>
    %c0_90 = arith.constant 0 : index
    %115 = memref.load %arg3[%c0_90] : memref<4xf32, #tpu.memory_space<smem>>
    %116 = vector.broadcast %115 : f32 to vector<8x8x2xf32>
    %117 = arith.addf %114, %116 : vector<8x8x2xf32>
    %cst_91 = arith.constant 0.000000e+00 : f32
    %118 = vector.broadcast %cst_91 : f32 to vector<8x8x2xf32>
    %119 = arith.maximumf %117, %118 : vector<8x8x2xf32>
    %c0_92 = arith.constant 0 : index
    %c1_93 = arith.constant 1 : index
    %c1_94 = arith.constant 1 : index
    %c0_95 = arith.constant 0 : index
    %120 = vector.load %arg13[%c0_92, %c1_93, %c1_94, %c0_95] : memref<4x10x10x2xf32, #tpu.memory_space<vmem>>, vector<1x8x8x2xf32>
    %121 = vector.shape_cast %120 : vector<1x8x8x2xf32> to vector<8x8x2xf32>
    %122 = vector.shape_cast %119 : vector<8x8x2xf32> to vector<1x8x8x2xf32>
    tpu.vector_store %arg13[%c0_92, %c1_93, %c1_94, %c0_95], %122 {strides = array<i32>} : memref<4x10x10x2xf32, #tpu.memory_space<vmem>>, vector<1x8x8x2xf32>,
    %cst_96 = arith.constant 0.000000e+00 : f32
    %123 = vector.broadcast %cst_96 : f32 to vector<8x8x2xf32>
    %c18 = arith.constant 18 : index
    %124 = memref.load %arg2[%c18] : memref<72xf32, #tpu.memory_space<smem>>
    %c0_97 = arith.constant 0 : index
    %c0_98 = arith.constant 0 : index
    %c0_99 = arith.constant 0 : index
    %c0_100 = arith.constant 0 : index
    %125 = vector.load %arg1[%c0_97, %c0_98, %c0_99, %c0_100] : memref<2x10x10x2xf32, #tpu.memory_space<vmem>>, vector<1x8x8x2xf32>
    %126 = vector.shape_cast %125 : vector<1x8x8x2xf32> to vector<8x8x2xf32>
    %127 = vector.broadcast %124 : f32 to vector<8x8x2xf32>
    %128 = arith.mulf %127, %126 : vector<8x8x2xf32>
    %129 = arith.addf %123, %128 : vector<8x8x2xf32>
    %c19 = arith.constant 19 : index
    %130 = memref.load %arg2[%c19] : memref<72xf32, #tpu.memory_space<smem>>
    %c0_101 = arith.constant 0 : index
    %c0_102 = arith.constant 0 : index
    %c1_103 = arith.constant 1 : index
    %c0_104 = arith.constant 0 : index
    %131 = vector.load %arg1[%c0_101, %c0_102, %c1_103, %c0_104] : memref<2x10x10x2xf32, #tpu.memory_space<vmem>>, vector<1x8x8x2xf32>
    %132 = vector.shape_cast %131 : vector<1x8x8x2xf32> to vector<8x8x2xf32>
    %133 = vector.broadcast %130 : f32 to vector<8x8x2xf32>
    %134 = arith.mulf %133, %132 : vector<8x8x2xf32>
    %135 = arith.addf %129, %134 : vector<8x8x2xf32>
    %c20 = arith.constant 20 : index
    %136 = memref.load %arg2[%c20] : memref<72xf32, #tpu.memory_space<smem>>
    %c0_105 = arith.constant 0 : index
    %c0_106 = arith.constant 0 : index
    %c2_107 = arith.constant 2 : index
    %c0_108 = arith.constant 0 : index
    %137 = vector.load %arg1[%c0_105, %c0_106, %c2_107, %c0_108] : memref<2x10x10x2xf32, #tpu.memory_space<vmem>>, vector<1x8x8x2xf32>
    %138 = vector.shape_cast %137 : vector<1x8x8x2xf32> to vector<8x8x2xf32>
    %139 = vector.broadcast %136 : f32 to vector<8x8x2xf32>
    %140 = arith.mulf %139, %138 : vector<8x8x2xf32>
    %141 = arith.addf %135, %140 : vector<8x8x2xf32>
    %c21 = arith.constant 21 : index
    %142 = memref.load %arg2[%c21] : memref<72xf32, #tpu.memory_space<smem>>
    %c0_109 = arith.constant 0 : index
    %c1_110 = arith.constant 1 : index
    %c0_111 = arith.constant 0 : index
    %c0_112 = arith.constant 0 : index
    %143 = vector.load %arg1[%c0_109, %c1_110, %c0_111, %c0_112] : memref<2x10x10x2xf32, #tpu.memory_space<vmem>>, vector<1x8x8x2xf32>
    %144 = vector.shape_cast %143 : vector<1x8x8x2xf32> to vector<8x8x2xf32>
    %145 = vector.broadcast %142 : f32 to vector<8x8x2xf32>
    %146 = arith.mulf %145, %144 : vector<8x8x2xf32>
    %147 = arith.addf %141, %146 : vector<8x8x2xf32>
    %c22 = arith.constant 22 : index
    %148 = memref.load %arg2[%c22] : memref<72xf32, #tpu.memory_space<smem>>
    %c0_113 = arith.constant 0 : index
    %c1_114 = arith.constant 1 : index
    %c1_115 = arith.constant 1 : index
    %c0_116 = arith.constant 0 : index
    %149 = vector.load %arg1[%c0_113, %c1_114, %c1_115, %c0_116] : memref<2x10x10x2xf32, #tpu.memory_space<vmem>>, vector<1x8x8x2xf32>
    %150 = vector.shape_cast %149 : vector<1x8x8x2xf32> to vector<8x8x2xf32>
    %151 = vector.broadcast %148 : f32 to vector<8x8x2xf32>
    %152 = arith.mulf %151, %150 : vector<8x8x2xf32>
    %153 = arith.addf %147, %152 : vector<8x8x2xf32>
    %c23 = arith.constant 23 : index
    %154 = memref.load %arg2[%c23] : memref<72xf32, #tpu.memory_space<smem>>
    %c0_117 = arith.constant 0 : index
    %c1_118 = arith.constant 1 : index
    %c2_119 = arith.constant 2 : index
    %c0_120 = arith.constant 0 : index
    %155 = vector.load %arg1[%c0_117, %c1_118, %c2_119, %c0_120] : memref<2x10x10x2xf32, #tpu.memory_space<vmem>>, vector<1x8x8x2xf32>
    %156 = vector.shape_cast %155 : vector<1x8x8x2xf32> to vector<8x8x2xf32>
    %157 = vector.broadcast %154 : f32 to vector<8x8x2xf32>
    %158 = arith.mulf %157, %156 : vector<8x8x2xf32>
    %159 = arith.addf %153, %158 : vector<8x8x2xf32>
    %c24 = arith.constant 24 : index
    %160 = memref.load %arg2[%c24] : memref<72xf32, #tpu.memory_space<smem>>
    %c0_121 = arith.constant 0 : index
    %c2_122 = arith.constant 2 : index
    %c0_123 = arith.constant 0 : index
    %c0_124 = arith.constant 0 : index
    %161 = vector.load %arg1[%c0_121, %c2_122, %c0_123, %c0_124] : memref<2x10x10x2xf32, #tpu.memory_space<vmem>>, vector<1x8x8x2xf32>
    %162 = vector.shape_cast %161 : vector<1x8x8x2xf32> to vector<8x8x2xf32>
    %163 = vector.broadcast %160 : f32 to vector<8x8x2xf32>
    %164 = arith.mulf %163, %162 : vector<8x8x2xf32>
    %165 = arith.addf %159, %164 : vector<8x8x2xf32>
    %c25 = arith.constant 25 : index
    %166 = memref.load %arg2[%c25] : memref<72xf32, #tpu.memory_space<smem>>
    %c0_125 = arith.constant 0 : index
    %c2_126 = arith.constant 2 : index
    %c1_127 = arith.constant 1 : index
    %c0_128 = arith.constant 0 : index
    %167 = vector.load %arg1[%c0_125, %c2_126, %c1_127, %c0_128] : memref<2x10x10x2xf32, #tpu.memory_space<vmem>>, vector<1x8x8x2xf32>
    %168 = vector.shape_cast %167 : vector<1x8x8x2xf32> to vector<8x8x2xf32>
    %169 = vector.broadcast %166 : f32 to vector<8x8x2xf32>
    %170 = arith.mulf %169, %168 : vector<8x8x2xf32>
    %171 = arith.addf %165, %170 : vector<8x8x2xf32>
    %c26 = arith.constant 26 : index
    %172 = memref.load %arg2[%c26] : memref<72xf32, #tpu.memory_space<smem>>
    %c0_129 = arith.constant 0 : index
    %c2_130 = arith.constant 2 : index
    %c2_131 = arith.constant 2 : index
    %c0_132 = arith.constant 0 : index
    %173 = vector.load %arg1[%c0_129, %c2_130, %c2_131, %c0_132] : memref<2x10x10x2xf32, #tpu.memory_space<vmem>>, vector<1x8x8x2xf32>
    %174 = vector.shape_cast %173 : vector<1x8x8x2xf32> to vector<8x8x2xf32>
    %175 = vector.broadcast %172 : f32 to vector<8x8x2xf32>
    %176 = arith.mulf %175, %174 : vector<8x8x2xf32>
    %177 = arith.addf %171, %176 : vector<8x8x2xf32>
    %c27 = arith.constant 27 : index
    %178 = memref.load %arg2[%c27] : memref<72xf32, #tpu.memory_space<smem>>
    %c1_133 = arith.constant 1 : index
    %c0_134 = arith.constant 0 : index
    %c0_135 = arith.constant 0 : index
    %c0_136 = arith.constant 0 : index
    %179 = vector.load %arg1[%c1_133, %c0_134, %c0_135, %c0_136] : memref<2x10x10x2xf32, #tpu.memory_space<vmem>>, vector<1x8x8x2xf32>
    %180 = vector.shape_cast %179 : vector<1x8x8x2xf32> to vector<8x8x2xf32>
    %181 = vector.broadcast %178 : f32 to vector<8x8x2xf32>
    %182 = arith.mulf %181, %180 : vector<8x8x2xf32>
    %183 = arith.addf %177, %182 : vector<8x8x2xf32>
    %c28 = arith.constant 28 : index
    %184 = memref.load %arg2[%c28] : memref<72xf32, #tpu.memory_space<smem>>
    %c1_137 = arith.constant 1 : index
    %c0_138 = arith.constant 0 : index
    %c1_139 = arith.constant 1 : index
    %c0_140 = arith.constant 0 : index
    %185 = vector.load %arg1[%c1_137, %c0_138, %c1_139, %c0_140] : memref<2x10x10x2xf32, #tpu.memory_space<vmem>>, vector<1x8x8x2xf32>
    %186 = vector.shape_cast %185 : vector<1x8x8x2xf32> to vector<8x8x2xf32>
    %187 = vector.broadcast %184 : f32 to vector<8x8x2xf32>
    %188 = arith.mulf %187, %186 : vector<8x8x2xf32>
    %189 = arith.addf %183, %188 : vector<8x8x2xf32>
    %c29 = arith.constant 29 : index
    %190 = memref.load %arg2[%c29] : memref<72xf32, #tpu.memory_space<smem>>
    %c1_141 = arith.constant 1 : index
    %c0_142 = arith.constant 0 : index
    %c2_143 = arith.constant 2 : index
    %c0_144 = arith.constant 0 : index
    %191 = vector.load %arg1[%c1_141, %c0_142, %c2_143, %c0_144] : memref<2x10x10x2xf32, #tpu.memory_space<vmem>>, vector<1x8x8x2xf32>
    %192 = vector.shape_cast %191 : vector<1x8x8x2xf32> to vector<8x8x2xf32>
    %193 = vector.broadcast %190 : f32 to vector<8x8x2xf32>
    %194 = arith.mulf %193, %192 : vector<8x8x2xf32>
    %195 = arith.addf %189, %194 : vector<8x8x2xf32>
    %c30 = arith.constant 30 : index
    %196 = memref.load %arg2[%c30] : memref<72xf32, #tpu.memory_space<smem>>
    %c1_145 = arith.constant 1 : index
    %c1_146 = arith.constant 1 : index
    %c0_147 = arith.constant 0 : index
    %c0_148 = arith.constant 0 : index
    %197 = vector.load %arg1[%c1_145, %c1_146, %c0_147, %c0_148] : memref<2x10x10x2xf32, #tpu.memory_space<vmem>>, vector<1x8x8x2xf32>
    %198 = vector.shape_cast %197 : vector<1x8x8x2xf32> to vector<8x8x2xf32>
    %199 = vector.broadcast %196 : f32 to vector<8x8x2xf32>
    %200 = arith.mulf %199, %198 : vector<8x8x2xf32>
    %201 = arith.addf %195, %200 : vector<8x8x2xf32>
    %c31 = arith.constant 31 : index
    %202 = memref.load %arg2[%c31] : memref<72xf32, #tpu.memory_space<smem>>
    %c1_149 = arith.constant 1 : index
    %c1_150 = arith.constant 1 : index
    %c1_151 = arith.constant 1 : index
    %c0_152 = arith.constant 0 : index
    %203 = vector.load %arg1[%c1_149, %c1_150, %c1_151, %c0_152] : memref<2x10x10x2xf32, #tpu.memory_space<vmem>>, vector<1x8x8x2xf32>
    %204 = vector.shape_cast %203 : vector<1x8x8x2xf32> to vector<8x8x2xf32>
    %205 = vector.broadcast %202 : f32 to vector<8x8x2xf32>
    %206 = arith.mulf %205, %204 : vector<8x8x2xf32>
    %207 = arith.addf %201, %206 : vector<8x8x2xf32>
    %c32 = arith.constant 32 : index
    %208 = memref.load %arg2[%c32] : memref<72xf32, #tpu.memory_space<smem>>
    %c1_153 = arith.constant 1 : index
    %c1_154 = arith.constant 1 : index
    %c2_155 = arith.constant 2 : index
    %c0_156 = arith.constant 0 : index
    %209 = vector.load %arg1[%c1_153, %c1_154, %c2_155, %c0_156] : memref<2x10x10x2xf32, #tpu.memory_space<vmem>>, vector<1x8x8x2xf32>
    %210 = vector.shape_cast %209 : vector<1x8x8x2xf32> to vector<8x8x2xf32>
    %211 = vector.broadcast %208 : f32 to vector<8x8x2xf32>
    %212 = arith.mulf %211, %210 : vector<8x8x2xf32>
    %213 = arith.addf %207, %212 : vector<8x8x2xf32>
    %c33 = arith.constant 33 : index
    %214 = memref.load %arg2[%c33] : memref<72xf32, #tpu.memory_space<smem>>
    %c1_157 = arith.constant 1 : index
    %c2_158 = arith.constant 2 : index
    %c0_159 = arith.constant 0 : index
    %c0_160 = arith.constant 0 : index
    %215 = vector.load %arg1[%c1_157, %c2_158, %c0_159, %c0_160] : memref<2x10x10x2xf32, #tpu.memory_space<vmem>>, vector<1x8x8x2xf32>
    %216 = vector.shape_cast %215 : vector<1x8x8x2xf32> to vector<8x8x2xf32>
    %217 = vector.broadcast %214 : f32 to vector<8x8x2xf32>
    %218 = arith.mulf %217, %216 : vector<8x8x2xf32>
    %219 = arith.addf %213, %218 : vector<8x8x2xf32>
    %c34 = arith.constant 34 : index
    %220 = memref.load %arg2[%c34] : memref<72xf32, #tpu.memory_space<smem>>
    %c1_161 = arith.constant 1 : index
    %c2_162 = arith.constant 2 : index
    %c1_163 = arith.constant 1 : index
    %c0_164 = arith.constant 0 : index
    %221 = vector.load %arg1[%c1_161, %c2_162, %c1_163, %c0_164] : memref<2x10x10x2xf32, #tpu.memory_space<vmem>>, vector<1x8x8x2xf32>
    %222 = vector.shape_cast %221 : vector<1x8x8x2xf32> to vector<8x8x2xf32>
    %223 = vector.broadcast %220 : f32 to vector<8x8x2xf32>
    %224 = arith.mulf %223, %222 : vector<8x8x2xf32>
    %225 = arith.addf %219, %224 : vector<8x8x2xf32>
    %c35 = arith.constant 35 : index
    %226 = memref.load %arg2[%c35] : memref<72xf32, #tpu.memory_space<smem>>
    %c1_165 = arith.constant 1 : index
    %c2_166 = arith.constant 2 : index
    %c2_167 = arith.constant 2 : index
    %c0_168 = arith.constant 0 : index
    %227 = vector.load %arg1[%c1_165, %c2_166, %c2_167, %c0_168] : memref<2x10x10x2xf32, #tpu.memory_space<vmem>>, vector<1x8x8x2xf32>
    %228 = vector.shape_cast %227 : vector<1x8x8x2xf32> to vector<8x8x2xf32>
    %229 = vector.broadcast %226 : f32 to vector<8x8x2xf32>
    %230 = arith.mulf %229, %228 : vector<8x8x2xf32>
    %231 = arith.addf %225, %230 : vector<8x8x2xf32>
    %c1_169 = arith.constant 1 : index
    %232 = memref.load %arg3[%c1_169] : memref<4xf32, #tpu.memory_space<smem>>
    %233 = vector.broadcast %232 : f32 to vector<8x8x2xf32>
    %234 = arith.addf %231, %233 : vector<8x8x2xf32>
    %cst_170 = arith.constant 0.000000e+00 : f32
    %235 = vector.broadcast %cst_170 : f32 to vector<8x8x2xf32>
    %236 = arith.maximumf %234, %235 : vector<8x8x2xf32>
    %c1_171 = arith.constant 1 : index
    %c1_172 = arith.constant 1 : index
    %c1_173 = arith.constant 1 : index
    %c0_174 = arith.constant 0 : index
    %237 = vector.load %arg13[%c1_171, %c1_172, %c1_173, %c0_174] : memref<4x10x10x2xf32, #tpu.memory_space<vmem>>, vector<1x8x8x2xf32>
    %238 = vector.shape_cast %237 : vector<1x8x8x2xf32> to vector<8x8x2xf32>
    %239 = vector.shape_cast %236 : vector<8x8x2xf32> to vector<1x8x8x2xf32>
    tpu.vector_store %arg13[%c1_171, %c1_172, %c1_173, %c0_174], %239 {strides = array<i32>} : memref<4x10x10x2xf32, #tpu.memory_space<vmem>>, vector<1x8x8x2xf32>,
    %cst_175 = arith.constant 0.000000e+00 : f32
    %240 = vector.broadcast %cst_175 : f32 to vector<8x8x2xf32>
    %c36 = arith.constant 36 : index
    %241 = memref.load %arg2[%c36] : memref<72xf32, #tpu.memory_space<smem>>
    %c0_176 = arith.constant 0 : index
    %c0_177 = arith.constant 0 : index
    %c0_178 = arith.constant 0 : index
    %c0_179 = arith.constant 0 : index
    %242 = vector.load %arg1[%c0_176, %c0_177, %c0_178, %c0_179] : memref<2x10x10x2xf32, #tpu.memory_space<vmem>>, vector<1x8x8x2xf32>
    %243 = vector.shape_cast %242 : vector<1x8x8x2xf32> to vector<8x8x2xf32>
    %244 = vector.broadcast %241 : f32 to vector<8x8x2xf32>
    %245 = arith.mulf %244, %243 : vector<8x8x2xf32>
    %246 = arith.addf %240, %245 : vector<8x8x2xf32>
    %c37 = arith.constant 37 : index
    %247 = memref.load %arg2[%c37] : memref<72xf32, #tpu.memory_space<smem>>
    %c0_180 = arith.constant 0 : index
    %c0_181 = arith.constant 0 : index
    %c1_182 = arith.constant 1 : index
    %c0_183 = arith.constant 0 : index
    %248 = vector.load %arg1[%c0_180, %c0_181, %c1_182, %c0_183] : memref<2x10x10x2xf32, #tpu.memory_space<vmem>>, vector<1x8x8x2xf32>
    %249 = vector.shape_cast %248 : vector<1x8x8x2xf32> to vector<8x8x2xf32>
    %250 = vector.broadcast %247 : f32 to vector<8x8x2xf32>
    %251 = arith.mulf %250, %249 : vector<8x8x2xf32>
    %252 = arith.addf %246, %251 : vector<8x8x2xf32>
    %c38 = arith.constant 38 : index
    %253 = memref.load %arg2[%c38] : memref<72xf32, #tpu.memory_space<smem>>
    %c0_184 = arith.constant 0 : index
    %c0_185 = arith.constant 0 : index
    %c2_186 = arith.constant 2 : index
    %c0_187 = arith.constant 0 : index
    %254 = vector.load %arg1[%c0_184, %c0_185, %c2_186, %c0_187] : memref<2x10x10x2xf32, #tpu.memory_space<vmem>>, vector<1x8x8x2xf32>
    %255 = vector.shape_cast %254 : vector<1x8x8x2xf32> to vector<8x8x2xf32>
    %256 = vector.broadcast %253 : f32 to vector<8x8x2xf32>
    %257 = arith.mulf %256, %255 : vector<8x8x2xf32>
    %258 = arith.addf %252, %257 : vector<8x8x2xf32>
    %c39 = arith.constant 39 : index
    %259 = memref.load %arg2[%c39] : memref<72xf32, #tpu.memory_space<smem>>
    %c0_188 = arith.constant 0 : index
    %c1_189 = arith.constant 1 : index
    %c0_190 = arith.constant 0 : index
    %c0_191 = arith.constant 0 : index
    %260 = vector.load %arg1[%c0_188, %c1_189, %c0_190, %c0_191] : memref<2x10x10x2xf32, #tpu.memory_space<vmem>>, vector<1x8x8x2xf32>
    %261 = vector.shape_cast %260 : vector<1x8x8x2xf32> to vector<8x8x2xf32>
    %262 = vector.broadcast %259 : f32 to vector<8x8x2xf32>
    %263 = arith.mulf %262, %261 : vector<8x8x2xf32>
    %264 = arith.addf %258, %263 : vector<8x8x2xf32>
    %c40 = arith.constant 40 : index
    %265 = memref.load %arg2[%c40] : memref<72xf32, #tpu.memory_space<smem>>
    %c0_192 = arith.constant 0 : index
    %c1_193 = arith.constant 1 : index
    %c1_194 = arith.constant 1 : index
    %c0_195 = arith.constant 0 : index
    %266 = vector.load %arg1[%c0_192, %c1_193, %c1_194, %c0_195] : memref<2x10x10x2xf32, #tpu.memory_space<vmem>>, vector<1x8x8x2xf32>
    %267 = vector.shape_cast %266 : vector<1x8x8x2xf32> to vector<8x8x2xf32>
    %268 = vector.broadcast %265 : f32 to vector<8x8x2xf32>
    %269 = arith.mulf %268, %267 : vector<8x8x2xf32>
    %270 = arith.addf %264, %269 : vector<8x8x2xf32>
    %c41 = arith.constant 41 : index
    %271 = memref.load %arg2[%c41] : memref<72xf32, #tpu.memory_space<smem>>
    %c0_196 = arith.constant 0 : index
    %c1_197 = arith.constant 1 : index
    %c2_198 = arith.constant 2 : index
    %c0_199 = arith.constant 0 : index
    %272 = vector.load %arg1[%c0_196, %c1_197, %c2_198, %c0_199] : memref<2x10x10x2xf32, #tpu.memory_space<vmem>>, vector<1x8x8x2xf32>
    %273 = vector.shape_cast %272 : vector<1x8x8x2xf32> to vector<8x8x2xf32>
    %274 = vector.broadcast %271 : f32 to vector<8x8x2xf32>
    %275 = arith.mulf %274, %273 : vector<8x8x2xf32>
    %276 = arith.addf %270, %275 : vector<8x8x2xf32>
    %c42 = arith.constant 42 : index
    %277 = memref.load %arg2[%c42] : memref<72xf32, #tpu.memory_space<smem>>
    %c0_200 = arith.constant 0 : index
    %c2_201 = arith.constant 2 : index
    %c0_202 = arith.constant 0 : index
    %c0_203 = arith.constant 0 : index
    %278 = vector.load %arg1[%c0_200, %c2_201, %c0_202, %c0_203] : memref<2x10x10x2xf32, #tpu.memory_space<vmem>>, vector<1x8x8x2xf32>
    %279 = vector.shape_cast %278 : vector<1x8x8x2xf32> to vector<8x8x2xf32>
    %280 = vector.broadcast %277 : f32 to vector<8x8x2xf32>
    %281 = arith.mulf %280, %279 : vector<8x8x2xf32>
    %282 = arith.addf %276, %281 : vector<8x8x2xf32>
    %c43 = arith.constant 43 : index
    %283 = memref.load %arg2[%c43] : memref<72xf32, #tpu.memory_space<smem>>
    %c0_204 = arith.constant 0 : index
    %c2_205 = arith.constant 2 : index
    %c1_206 = arith.constant 1 : index
    %c0_207 = arith.constant 0 : index
    %284 = vector.load %arg1[%c0_204, %c2_205, %c1_206, %c0_207] : memref<2x10x10x2xf32, #tpu.memory_space<vmem>>, vector<1x8x8x2xf32>
    %285 = vector.shape_cast %284 : vector<1x8x8x2xf32> to vector<8x8x2xf32>
    %286 = vector.broadcast %283 : f32 to vector<8x8x2xf32>
    %287 = arith.mulf %286, %285 : vector<8x8x2xf32>
    %288 = arith.addf %282, %287 : vector<8x8x2xf32>
    %c44 = arith.constant 44 : index
    %289 = memref.load %arg2[%c44] : memref<72xf32, #tpu.memory_space<smem>>
    %c0_208 = arith.constant 0 : index
    %c2_209 = arith.constant 2 : index
    %c2_210 = arith.constant 2 : index
    %c0_211 = arith.constant 0 : index
    %290 = vector.load %arg1[%c0_208, %c2_209, %c2_210, %c0_211] : memref<2x10x10x2xf32, #tpu.memory_space<vmem>>, vector<1x8x8x2xf32>
    %291 = vector.shape_cast %290 : vector<1x8x8x2xf32> to vector<8x8x2xf32>
    %292 = vector.broadcast %289 : f32 to vector<8x8x2xf32>
    %293 = arith.mulf %292, %291 : vector<8x8x2xf32>
    %294 = arith.addf %288, %293 : vector<8x8x2xf32>
    %c45 = arith.constant 45 : index
    %295 = memref.load %arg2[%c45] : memref<72xf32, #tpu.memory_space<smem>>
    %c1_212 = arith.constant 1 : index
    %c0_213 = arith.constant 0 : index
    %c0_214 = arith.constant 0 : index
    %c0_215 = arith.constant 0 : index
    %296 = vector.load %arg1[%c1_212, %c0_213, %c0_214, %c0_215] : memref<2x10x10x2xf32, #tpu.memory_space<vmem>>, vector<1x8x8x2xf32>
    %297 = vector.shape_cast %296 : vector<1x8x8x2xf32> to vector<8x8x2xf32>
    %298 = vector.broadcast %295 : f32 to vector<8x8x2xf32>
    %299 = arith.mulf %298, %297 : vector<8x8x2xf32>
    %300 = arith.addf %294, %299 : vector<8x8x2xf32>
    %c46 = arith.constant 46 : index
    %301 = memref.load %arg2[%c46] : memref<72xf32, #tpu.memory_space<smem>>
    %c1_216 = arith.constant 1 : index
    %c0_217 = arith.constant 0 : index
    %c1_218 = arith.constant 1 : index
    %c0_219 = arith.constant 0 : index
    %302 = vector.load %arg1[%c1_216, %c0_217, %c1_218, %c0_219] : memref<2x10x10x2xf32, #tpu.memory_space<vmem>>, vector<1x8x8x2xf32>
    %303 = vector.shape_cast %302 : vector<1x8x8x2xf32> to vector<8x8x2xf32>
    %304 = vector.broadcast %301 : f32 to vector<8x8x2xf32>
    %305 = arith.mulf %304, %303 : vector<8x8x2xf32>
    %306 = arith.addf %300, %305 : vector<8x8x2xf32>
    %c47 = arith.constant 47 : index
    %307 = memref.load %arg2[%c47] : memref<72xf32, #tpu.memory_space<smem>>
    %c1_220 = arith.constant 1 : index
    %c0_221 = arith.constant 0 : index
    %c2_222 = arith.constant 2 : index
    %c0_223 = arith.constant 0 : index
    %308 = vector.load %arg1[%c1_220, %c0_221, %c2_222, %c0_223] : memref<2x10x10x2xf32, #tpu.memory_space<vmem>>, vector<1x8x8x2xf32>
    %309 = vector.shape_cast %308 : vector<1x8x8x2xf32> to vector<8x8x2xf32>
    %310 = vector.broadcast %307 : f32 to vector<8x8x2xf32>
    %311 = arith.mulf %310, %309 : vector<8x8x2xf32>
    %312 = arith.addf %306, %311 : vector<8x8x2xf32>
    %c48 = arith.constant 48 : index
    %313 = memref.load %arg2[%c48] : memref<72xf32, #tpu.memory_space<smem>>
    %c1_224 = arith.constant 1 : index
    %c1_225 = arith.constant 1 : index
    %c0_226 = arith.constant 0 : index
    %c0_227 = arith.constant 0 : index
    %314 = vector.load %arg1[%c1_224, %c1_225, %c0_226, %c0_227] : memref<2x10x10x2xf32, #tpu.memory_space<vmem>>, vector<1x8x8x2xf32>
    %315 = vector.shape_cast %314 : vector<1x8x8x2xf32> to vector<8x8x2xf32>
    %316 = vector.broadcast %313 : f32 to vector<8x8x2xf32>
    %317 = arith.mulf %316, %315 : vector<8x8x2xf32>
    %318 = arith.addf %312, %317 : vector<8x8x2xf32>
    %c49 = arith.constant 49 : index
    %319 = memref.load %arg2[%c49] : memref<72xf32, #tpu.memory_space<smem>>
    %c1_228 = arith.constant 1 : index
    %c1_229 = arith.constant 1 : index
    %c1_230 = arith.constant 1 : index
    %c0_231 = arith.constant 0 : index
    %320 = vector.load %arg1[%c1_228, %c1_229, %c1_230, %c0_231] : memref<2x10x10x2xf32, #tpu.memory_space<vmem>>, vector<1x8x8x2xf32>
    %321 = vector.shape_cast %320 : vector<1x8x8x2xf32> to vector<8x8x2xf32>
    %322 = vector.broadcast %319 : f32 to vector<8x8x2xf32>
    %323 = arith.mulf %322, %321 : vector<8x8x2xf32>
    %324 = arith.addf %318, %323 : vector<8x8x2xf32>
    %c50 = arith.constant 50 : index
    %325 = memref.load %arg2[%c50] : memref<72xf32, #tpu.memory_space<smem>>
    %c1_232 = arith.constant 1 : index
    %c1_233 = arith.constant 1 : index
    %c2_234 = arith.constant 2 : index
    %c0_235 = arith.constant 0 : index
    %326 = vector.load %arg1[%c1_232, %c1_233, %c2_234, %c0_235] : memref<2x10x10x2xf32, #tpu.memory_space<vmem>>, vector<1x8x8x2xf32>
    %327 = vector.shape_cast %326 : vector<1x8x8x2xf32> to vector<8x8x2xf32>
    %328 = vector.broadcast %325 : f32 to vector<8x8x2xf32>
    %329 = arith.mulf %328, %327 : vector<8x8x2xf32>
    %330 = arith.addf %324, %329 : vector<8x8x2xf32>
    %c51 = arith.constant 51 : index
    %331 = memref.load %arg2[%c51] : memref<72xf32, #tpu.memory_space<smem>>
    %c1_236 = arith.constant 1 : index
    %c2_237 = arith.constant 2 : index
    %c0_238 = arith.constant 0 : index
    %c0_239 = arith.constant 0 : index
    %332 = vector.load %arg1[%c1_236, %c2_237, %c0_238, %c0_239] : memref<2x10x10x2xf32, #tpu.memory_space<vmem>>, vector<1x8x8x2xf32>
    %333 = vector.shape_cast %332 : vector<1x8x8x2xf32> to vector<8x8x2xf32>
    %334 = vector.broadcast %331 : f32 to vector<8x8x2xf32>
    %335 = arith.mulf %334, %333 : vector<8x8x2xf32>
    %336 = arith.addf %330, %335 : vector<8x8x2xf32>
    %c52 = arith.constant 52 : index
    %337 = memref.load %arg2[%c52] : memref<72xf32, #tpu.memory_space<smem>>
    %c1_240 = arith.constant 1 : index
    %c2_241 = arith.constant 2 : index
    %c1_242 = arith.constant 1 : index
    %c0_243 = arith.constant 0 : index
    %338 = vector.load %arg1[%c1_240, %c2_241, %c1_242, %c0_243] : memref<2x10x10x2xf32, #tpu.memory_space<vmem>>, vector<1x8x8x2xf32>
    %339 = vector.shape_cast %338 : vector<1x8x8x2xf32> to vector<8x8x2xf32>
    %340 = vector.broadcast %337 : f32 to vector<8x8x2xf32>
    %341 = arith.mulf %340, %339 : vector<8x8x2xf32>
    %342 = arith.addf %336, %341 : vector<8x8x2xf32>
    %c53 = arith.constant 53 : index
    %343 = memref.load %arg2[%c53] : memref<72xf32, #tpu.memory_space<smem>>
    %c1_244 = arith.constant 1 : index
    %c2_245 = arith.constant 2 : index
    %c2_246 = arith.constant 2 : index
    %c0_247 = arith.constant 0 : index
    %344 = vector.load %arg1[%c1_244, %c2_245, %c2_246, %c0_247] : memref<2x10x10x2xf32, #tpu.memory_space<vmem>>, vector<1x8x8x2xf32>
    %345 = vector.shape_cast %344 : vector<1x8x8x2xf32> to vector<8x8x2xf32>
    %346 = vector.broadcast %343 : f32 to vector<8x8x2xf32>
    %347 = arith.mulf %346, %345 : vector<8x8x2xf32>
    %348 = arith.addf %342, %347 : vector<8x8x2xf32>
    %c2_248 = arith.constant 2 : index
    %349 = memref.load %arg3[%c2_248] : memref<4xf32, #tpu.memory_space<smem>>
    %350 = vector.broadcast %349 : f32 to vector<8x8x2xf32>
    %351 = arith.addf %348, %350 : vector<8x8x2xf32>
    %cst_249 = arith.constant 0.000000e+00 : f32
    %352 = vector.broadcast %cst_249 : f32 to vector<8x8x2xf32>
    %353 = arith.maximumf %351, %352 : vector<8x8x2xf32>
    %c2_250 = arith.constant 2 : index
    %c1_251 = arith.constant 1 : index
    %c1_252 = arith.constant 1 : index
    %c0_253 = arith.constant 0 : index
    %354 = vector.load %arg13[%c2_250, %c1_251, %c1_252, %c0_253] : memref<4x10x10x2xf32, #tpu.memory_space<vmem>>, vector<1x8x8x2xf32>
    %355 = vector.shape_cast %354 : vector<1x8x8x2xf32> to vector<8x8x2xf32>
    %356 = vector.shape_cast %353 : vector<8x8x2xf32> to vector<1x8x8x2xf32>
    tpu.vector_store %arg13[%c2_250, %c1_251, %c1_252, %c0_253], %356 {strides = array<i32>} : memref<4x10x10x2xf32, #tpu.memory_space<vmem>>, vector<1x8x8x2xf32>,
    %cst_254 = arith.constant 0.000000e+00 : f32
    %357 = vector.broadcast %cst_254 : f32 to vector<8x8x2xf32>
    %c54 = arith.constant 54 : index
    %358 = memref.load %arg2[%c54] : memref<72xf32, #tpu.memory_space<smem>>
    %c0_255 = arith.constant 0 : index
    %c0_256 = arith.constant 0 : index
    %c0_257 = arith.constant 0 : index
    %c0_258 = arith.constant 0 : index
    %359 = vector.load %arg1[%c0_255, %c0_256, %c0_257, %c0_258] : memref<2x10x10x2xf32, #tpu.memory_space<vmem>>, vector<1x8x8x2xf32>
    %360 = vector.shape_cast %359 : vector<1x8x8x2xf32> to vector<8x8x2xf32>
    %361 = vector.broadcast %358 : f32 to vector<8x8x2xf32>
    %362 = arith.mulf %361, %360 : vector<8x8x2xf32>
    %363 = arith.addf %357, %362 : vector<8x8x2xf32>
    %c55 = arith.constant 55 : index
    %364 = memref.load %arg2[%c55] : memref<72xf32, #tpu.memory_space<smem>>
    %c0_259 = arith.constant 0 : index
    %c0_260 = arith.constant 0 : index
    %c1_261 = arith.constant 1 : index
    %c0_262 = arith.constant 0 : index
    %365 = vector.load %arg1[%c0_259, %c0_260, %c1_261, %c0_262] : memref<2x10x10x2xf32, #tpu.memory_space<vmem>>, vector<1x8x8x2xf32>
    %366 = vector.shape_cast %365 : vector<1x8x8x2xf32> to vector<8x8x2xf32>
    %367 = vector.broadcast %364 : f32 to vector<8x8x2xf32>
    %368 = arith.mulf %367, %366 : vector<8x8x2xf32>
    %369 = arith.addf %363, %368 : vector<8x8x2xf32>
    %c56 = arith.constant 56 : index
    %370 = memref.load %arg2[%c56] : memref<72xf32, #tpu.memory_space<smem>>
    %c0_263 = arith.constant 0 : index
    %c0_264 = arith.constant 0 : index
    %c2_265 = arith.constant 2 : index
    %c0_266 = arith.constant 0 : index
    %371 = vector.load %arg1[%c0_263, %c0_264, %c2_265, %c0_266] : memref<2x10x10x2xf32, #tpu.memory_space<vmem>>, vector<1x8x8x2xf32>
    %372 = vector.shape_cast %371 : vector<1x8x8x2xf32> to vector<8x8x2xf32>
    %373 = vector.broadcast %370 : f32 to vector<8x8x2xf32>
    %374 = arith.mulf %373, %372 : vector<8x8x2xf32>
    %375 = arith.addf %369, %374 : vector<8x8x2xf32>
    %c57 = arith.constant 57 : index
    %376 = memref.load %arg2[%c57] : memref<72xf32, #tpu.memory_space<smem>>
    %c0_267 = arith.constant 0 : index
    %c1_268 = arith.constant 1 : index
    %c0_269 = arith.constant 0 : index
    %c0_270 = arith.constant 0 : index
    %377 = vector.load %arg1[%c0_267, %c1_268, %c0_269, %c0_270] : memref<2x10x10x2xf32, #tpu.memory_space<vmem>>, vector<1x8x8x2xf32>
    %378 = vector.shape_cast %377 : vector<1x8x8x2xf32> to vector<8x8x2xf32>
    %379 = vector.broadcast %376 : f32 to vector<8x8x2xf32>
    %380 = arith.mulf %379, %378 : vector<8x8x2xf32>
    %381 = arith.addf %375, %380 : vector<8x8x2xf32>
    %c58 = arith.constant 58 : index
    %382 = memref.load %arg2[%c58] : memref<72xf32, #tpu.memory_space<smem>>
    %c0_271 = arith.constant 0 : index
    %c1_272 = arith.constant 1 : index
    %c1_273 = arith.constant 1 : index
    %c0_274 = arith.constant 0 : index
    %383 = vector.load %arg1[%c0_271, %c1_272, %c1_273, %c0_274] : memref<2x10x10x2xf32, #tpu.memory_space<vmem>>, vector<1x8x8x2xf32>
    %384 = vector.shape_cast %383 : vector<1x8x8x2xf32> to vector<8x8x2xf32>
    %385 = vector.broadcast %382 : f32 to vector<8x8x2xf32>
    %386 = arith.mulf %385, %384 : vector<8x8x2xf32>
    %387 = arith.addf %381, %386 : vector<8x8x2xf32>
    %c59 = arith.constant 59 : index
    %388 = memref.load %arg2[%c59] : memref<72xf32, #tpu.memory_space<smem>>
    %c0_275 = arith.constant 0 : index
    %c1_276 = arith.constant 1 : index
    %c2_277 = arith.constant 2 : index
    %c0_278 = arith.constant 0 : index
    %389 = vector.load %arg1[%c0_275, %c1_276, %c2_277, %c0_278] : memref<2x10x10x2xf32, #tpu.memory_space<vmem>>, vector<1x8x8x2xf32>
    %390 = vector.shape_cast %389 : vector<1x8x8x2xf32> to vector<8x8x2xf32>
    %391 = vector.broadcast %388 : f32 to vector<8x8x2xf32>
    %392 = arith.mulf %391, %390 : vector<8x8x2xf32>
    %393 = arith.addf %387, %392 : vector<8x8x2xf32>
    %c60 = arith.constant 60 : index
    %394 = memref.load %arg2[%c60] : memref<72xf32, #tpu.memory_space<smem>>
    %c0_279 = arith.constant 0 : index
    %c2_280 = arith.constant 2 : index
    %c0_281 = arith.constant 0 : index
    %c0_282 = arith.constant 0 : index
    %395 = vector.load %arg1[%c0_279, %c2_280, %c0_281, %c0_282] : memref<2x10x10x2xf32, #tpu.memory_space<vmem>>, vector<1x8x8x2xf32>
    %396 = vector.shape_cast %395 : vector<1x8x8x2xf32> to vector<8x8x2xf32>
    %397 = vector.broadcast %394 : f32 to vector<8x8x2xf32>
    %398 = arith.mulf %397, %396 : vector<8x8x2xf32>
    %399 = arith.addf %393, %398 : vector<8x8x2xf32>
    %c61 = arith.constant 61 : index
    %400 = memref.load %arg2[%c61] : memref<72xf32, #tpu.memory_space<smem>>
    %c0_283 = arith.constant 0 : index
    %c2_284 = arith.constant 2 : index
    %c1_285 = arith.constant 1 : index
    %c0_286 = arith.constant 0 : index
    %401 = vector.load %arg1[%c0_283, %c2_284, %c1_285, %c0_286] : memref<2x10x10x2xf32, #tpu.memory_space<vmem>>, vector<1x8x8x2xf32>
    %402 = vector.shape_cast %401 : vector<1x8x8x2xf32> to vector<8x8x2xf32>
    %403 = vector.broadcast %400 : f32 to vector<8x8x2xf32>
    %404 = arith.mulf %403, %402 : vector<8x8x2xf32>
    %405 = arith.addf %399, %404 : vector<8x8x2xf32>
    %c62 = arith.constant 62 : index
    %406 = memref.load %arg2[%c62] : memref<72xf32, #tpu.memory_space<smem>>
    %c0_287 = arith.constant 0 : index
    %c2_288 = arith.constant 2 : index
    %c2_289 = arith.constant 2 : index
    %c0_290 = arith.constant 0 : index
    %407 = vector.load %arg1[%c0_287, %c2_288, %c2_289, %c0_290] : memref<2x10x10x2xf32, #tpu.memory_space<vmem>>, vector<1x8x8x2xf32>
    %408 = vector.shape_cast %407 : vector<1x8x8x2xf32> to vector<8x8x2xf32>
    %409 = vector.broadcast %406 : f32 to vector<8x8x2xf32>
    %410 = arith.mulf %409, %408 : vector<8x8x2xf32>
    %411 = arith.addf %405, %410 : vector<8x8x2xf32>
    %c63 = arith.constant 63 : index
    %412 = memref.load %arg2[%c63] : memref<72xf32, #tpu.memory_space<smem>>
    %c1_291 = arith.constant 1 : index
    %c0_292 = arith.constant 0 : index
    %c0_293 = arith.constant 0 : index
    %c0_294 = arith.constant 0 : index
    %413 = vector.load %arg1[%c1_291, %c0_292, %c0_293, %c0_294] : memref<2x10x10x2xf32, #tpu.memory_space<vmem>>, vector<1x8x8x2xf32>
    %414 = vector.shape_cast %413 : vector<1x8x8x2xf32> to vector<8x8x2xf32>
    %415 = vector.broadcast %412 : f32 to vector<8x8x2xf32>
    %416 = arith.mulf %415, %414 : vector<8x8x2xf32>
    %417 = arith.addf %411, %416 : vector<8x8x2xf32>
    %c64 = arith.constant 64 : index
    %418 = memref.load %arg2[%c64] : memref<72xf32, #tpu.memory_space<smem>>
    %c1_295 = arith.constant 1 : index
    %c0_296 = arith.constant 0 : index
    %c1_297 = arith.constant 1 : index
    %c0_298 = arith.constant 0 : index
    %419 = vector.load %arg1[%c1_295, %c0_296, %c1_297, %c0_298] : memref<2x10x10x2xf32, #tpu.memory_space<vmem>>, vector<1x8x8x2xf32>
    %420 = vector.shape_cast %419 : vector<1x8x8x2xf32> to vector<8x8x2xf32>
    %421 = vector.broadcast %418 : f32 to vector<8x8x2xf32>
    %422 = arith.mulf %421, %420 : vector<8x8x2xf32>
    %423 = arith.addf %417, %422 : vector<8x8x2xf32>
    %c65 = arith.constant 65 : index
    %424 = memref.load %arg2[%c65] : memref<72xf32, #tpu.memory_space<smem>>
    %c1_299 = arith.constant 1 : index
    %c0_300 = arith.constant 0 : index
    %c2_301 = arith.constant 2 : index
    %c0_302 = arith.constant 0 : index
    %425 = vector.load %arg1[%c1_299, %c0_300, %c2_301, %c0_302] : memref<2x10x10x2xf32, #tpu.memory_space<vmem>>, vector<1x8x8x2xf32>
    %426 = vector.shape_cast %425 : vector<1x8x8x2xf32> to vector<8x8x2xf32>
    %427 = vector.broadcast %424 : f32 to vector<8x8x2xf32>
    %428 = arith.mulf %427, %426 : vector<8x8x2xf32>
    %429 = arith.addf %423, %428 : vector<8x8x2xf32>
    %c66 = arith.constant 66 : index
    %430 = memref.load %arg2[%c66] : memref<72xf32, #tpu.memory_space<smem>>
    %c1_303 = arith.constant 1 : index
    %c1_304 = arith.constant 1 : index
    %c0_305 = arith.constant 0 : index
    %c0_306 = arith.constant 0 : index
    %431 = vector.load %arg1[%c1_303, %c1_304, %c0_305, %c0_306] : memref<2x10x10x2xf32, #tpu.memory_space<vmem>>, vector<1x8x8x2xf32>
    %432 = vector.shape_cast %431 : vector<1x8x8x2xf32> to vector<8x8x2xf32>
    %433 = vector.broadcast %430 : f32 to vector<8x8x2xf32>
    %434 = arith.mulf %433, %432 : vector<8x8x2xf32>
    %435 = arith.addf %429, %434 : vector<8x8x2xf32>
    %c67 = arith.constant 67 : index
    %436 = memref.load %arg2[%c67] : memref<72xf32, #tpu.memory_space<smem>>
    %c1_307 = arith.constant 1 : index
    %c1_308 = arith.constant 1 : index
    %c1_309 = arith.constant 1 : index
    %c0_310 = arith.constant 0 : index
    %437 = vector.load %arg1[%c1_307, %c1_308, %c1_309, %c0_310] : memref<2x10x10x2xf32, #tpu.memory_space<vmem>>, vector<1x8x8x2xf32>
    %438 = vector.shape_cast %437 : vector<1x8x8x2xf32> to vector<8x8x2xf32>
    %439 = vector.broadcast %436 : f32 to vector<8x8x2xf32>
    %440 = arith.mulf %439, %438 : vector<8x8x2xf32>
    %441 = arith.addf %435, %440 : vector<8x8x2xf32>
    %c68 = arith.constant 68 : index
    %442 = memref.load %arg2[%c68] : memref<72xf32, #tpu.memory_space<smem>>
    %c1_311 = arith.constant 1 : index
    %c1_312 = arith.constant 1 : index
    %c2_313 = arith.constant 2 : index
    %c0_314 = arith.constant 0 : index
    %443 = vector.load %arg1[%c1_311, %c1_312, %c2_313, %c0_314] : memref<2x10x10x2xf32, #tpu.memory_space<vmem>>, vector<1x8x8x2xf32>
    %444 = vector.shape_cast %443 : vector<1x8x8x2xf32> to vector<8x8x2xf32>
    %445 = vector.broadcast %442 : f32 to vector<8x8x2xf32>
    %446 = arith.mulf %445, %444 : vector<8x8x2xf32>
    %447 = arith.addf %441, %446 : vector<8x8x2xf32>
    %c69 = arith.constant 69 : index
    %448 = memref.load %arg2[%c69] : memref<72xf32, #tpu.memory_space<smem>>
    %c1_315 = arith.constant 1 : index
    %c2_316 = arith.constant 2 : index
    %c0_317 = arith.constant 0 : index
    %c0_318 = arith.constant 0 : index
    %449 = vector.load %arg1[%c1_315, %c2_316, %c0_317, %c0_318] : memref<2x10x10x2xf32, #tpu.memory_space<vmem>>, vector<1x8x8x2xf32>
    %450 = vector.shape_cast %449 : vector<1x8x8x2xf32> to vector<8x8x2xf32>
    %451 = vector.broadcast %448 : f32 to vector<8x8x2xf32>
    %452 = arith.mulf %451, %450 : vector<8x8x2xf32>
    %453 = arith.addf %447, %452 : vector<8x8x2xf32>
    %c70 = arith.constant 70 : index
    %454 = memref.load %arg2[%c70] : memref<72xf32, #tpu.memory_space<smem>>
    %c1_319 = arith.constant 1 : index
    %c2_320 = arith.constant 2 : index
    %c1_321 = arith.constant 1 : index
    %c0_322 = arith.constant 0 : index
    %455 = vector.load %arg1[%c1_319, %c2_320, %c1_321, %c0_322] : memref<2x10x10x2xf32, #tpu.memory_space<vmem>>, vector<1x8x8x2xf32>
    %456 = vector.shape_cast %455 : vector<1x8x8x2xf32> to vector<8x8x2xf32>
    %457 = vector.broadcast %454 : f32 to vector<8x8x2xf32>
    %458 = arith.mulf %457, %456 : vector<8x8x2xf32>
    %459 = arith.addf %453, %458 : vector<8x8x2xf32>
    %c71 = arith.constant 71 : index
    %460 = memref.load %arg2[%c71] : memref<72xf32, #tpu.memory_space<smem>>
    %c1_323 = arith.constant 1 : index
    %c2_324 = arith.constant 2 : index
    %c2_325 = arith.constant 2 : index
    %c0_326 = arith.constant 0 : index
    %461 = vector.load %arg1[%c1_323, %c2_324, %c2_325, %c0_326] : memref<2x10x10x2xf32, #tpu.memory_space<vmem>>, vector<1x8x8x2xf32>
    %462 = vector.shape_cast %461 : vector<1x8x8x2xf32> to vector<8x8x2xf32>
    %463 = vector.broadcast %460 : f32 to vector<8x8x2xf32>
    %464 = arith.mulf %463, %462 : vector<8x8x2xf32>
    %465 = arith.addf %459, %464 : vector<8x8x2xf32>
    %c3_327 = arith.constant 3 : index
    %466 = memref.load %arg3[%c3_327] : memref<4xf32, #tpu.memory_space<smem>>
    %467 = vector.broadcast %466 : f32 to vector<8x8x2xf32>
    %468 = arith.addf %465, %467 : vector<8x8x2xf32>
    %cst_328 = arith.constant 0.000000e+00 : f32
    %469 = vector.broadcast %cst_328 : f32 to vector<8x8x2xf32>
    %470 = arith.maximumf %468, %469 : vector<8x8x2xf32>
    %c3_329 = arith.constant 3 : index
    %c1_330 = arith.constant 1 : index
    %c1_331 = arith.constant 1 : index
    %c0_332 = arith.constant 0 : index
    %471 = vector.load %arg13[%c3_329, %c1_330, %c1_331, %c0_332] : memref<4x10x10x2xf32, #tpu.memory_space<vmem>>, vector<1x8x8x2xf32>
    %472 = vector.shape_cast %471 : vector<1x8x8x2xf32> to vector<8x8x2xf32>
    %473 = vector.shape_cast %470 : vector<8x8x2xf32> to vector<1x8x8x2xf32>
    tpu.vector_store %arg13[%c3_329, %c1_330, %c1_331, %c0_332], %473 {strides = array<i32>} : memref<4x10x10x2xf32, #tpu.memory_space<vmem>>, vector<1x8x8x2xf32>,
    %cst_333 = arith.constant 0.000000e+00 : f32
    %474 = vector.broadcast %cst_333 : f32 to vector<8x8x2xf32>
    %c0_334 = arith.constant 0 : index
    %475 = memref.load %arg4[%c0_334] : memref<144xf32, #tpu.memory_space<smem>>
    %c0_335 = arith.constant 0 : index
    %c0_336 = arith.constant 0 : index
    %c0_337 = arith.constant 0 : index
    %c0_338 = arith.constant 0 : index
    %476 = vector.load %arg13[%c0_335, %c0_336, %c0_337, %c0_338] : memref<4x10x10x2xf32, #tpu.memory_space<vmem>>, vector<1x8x8x2xf32>
    %477 = vector.shape_cast %476 : vector<1x8x8x2xf32> to vector<8x8x2xf32>
    %478 = vector.broadcast %475 : f32 to vector<8x8x2xf32>
    %479 = arith.mulf %478, %477 : vector<8x8x2xf32>
    %480 = arith.addf %474, %479 : vector<8x8x2xf32>
    %c1_339 = arith.constant 1 : index
    %481 = memref.load %arg4[%c1_339] : memref<144xf32, #tpu.memory_space<smem>>
    %c0_340 = arith.constant 0 : index
    %c0_341 = arith.constant 0 : index
    %c1_342 = arith.constant 1 : index
    %c0_343 = arith.constant 0 : index
    %482 = vector.load %arg13[%c0_340, %c0_341, %c1_342, %c0_343] : memref<4x10x10x2xf32, #tpu.memory_space<vmem>>, vector<1x8x8x2xf32>
    %483 = vector.shape_cast %482 : vector<1x8x8x2xf32> to vector<8x8x2xf32>
    %484 = vector.broadcast %481 : f32 to vector<8x8x2xf32>
    %485 = arith.mulf %484, %483 : vector<8x8x2xf32>
    %486 = arith.addf %480, %485 : vector<8x8x2xf32>
    %c2_344 = arith.constant 2 : index
    %487 = memref.load %arg4[%c2_344] : memref<144xf32, #tpu.memory_space<smem>>
    %c0_345 = arith.constant 0 : index
    %c0_346 = arith.constant 0 : index
    %c2_347 = arith.constant 2 : index
    %c0_348 = arith.constant 0 : index
    %488 = vector.load %arg13[%c0_345, %c0_346, %c2_347, %c0_348] : memref<4x10x10x2xf32, #tpu.memory_space<vmem>>, vector<1x8x8x2xf32>
    %489 = vector.shape_cast %488 : vector<1x8x8x2xf32> to vector<8x8x2xf32>
    %490 = vector.broadcast %487 : f32 to vector<8x8x2xf32>
    %491 = arith.mulf %490, %489 : vector<8x8x2xf32>
    %492 = arith.addf %486, %491 : vector<8x8x2xf32>
    %c3_349 = arith.constant 3 : index
    %493 = memref.load %arg4[%c3_349] : memref<144xf32, #tpu.memory_space<smem>>
    %c0_350 = arith.constant 0 : index
    %c1_351 = arith.constant 1 : index
    %c0_352 = arith.constant 0 : index
    %c0_353 = arith.constant 0 : index
    %494 = vector.load %arg13[%c0_350, %c1_351, %c0_352, %c0_353] : memref<4x10x10x2xf32, #tpu.memory_space<vmem>>, vector<1x8x8x2xf32>
    %495 = vector.shape_cast %494 : vector<1x8x8x2xf32> to vector<8x8x2xf32>
    %496 = vector.broadcast %493 : f32 to vector<8x8x2xf32>
    %497 = arith.mulf %496, %495 : vector<8x8x2xf32>
    %498 = arith.addf %492, %497 : vector<8x8x2xf32>
    %c4_354 = arith.constant 4 : index
    %499 = memref.load %arg4[%c4_354] : memref<144xf32, #tpu.memory_space<smem>>
    %c0_355 = arith.constant 0 : index
    %c1_356 = arith.constant 1 : index
    %c1_357 = arith.constant 1 : index
    %c0_358 = arith.constant 0 : index
    %500 = vector.load %arg13[%c0_355, %c1_356, %c1_357, %c0_358] : memref<4x10x10x2xf32, #tpu.memory_space<vmem>>, vector<1x8x8x2xf32>
    %501 = vector.shape_cast %500 : vector<1x8x8x2xf32> to vector<8x8x2xf32>
    %502 = vector.broadcast %499 : f32 to vector<8x8x2xf32>
    %503 = arith.mulf %502, %501 : vector<8x8x2xf32>
    %504 = arith.addf %498, %503 : vector<8x8x2xf32>
    %c5_359 = arith.constant 5 : index
    %505 = memref.load %arg4[%c5_359] : memref<144xf32, #tpu.memory_space<smem>>
    %c0_360 = arith.constant 0 : index
    %c1_361 = arith.constant 1 : index
    %c2_362 = arith.constant 2 : index
    %c0_363 = arith.constant 0 : index
    %506 = vector.load %arg13[%c0_360, %c1_361, %c2_362, %c0_363] : memref<4x10x10x2xf32, #tpu.memory_space<vmem>>, vector<1x8x8x2xf32>
    %507 = vector.shape_cast %506 : vector<1x8x8x2xf32> to vector<8x8x2xf32>
    %508 = vector.broadcast %505 : f32 to vector<8x8x2xf32>
    %509 = arith.mulf %508, %507 : vector<8x8x2xf32>
    %510 = arith.addf %504, %509 : vector<8x8x2xf32>
    %c6_364 = arith.constant 6 : index
    %511 = memref.load %arg4[%c6_364] : memref<144xf32, #tpu.memory_space<smem>>
    %c0_365 = arith.constant 0 : index
    %c2_366 = arith.constant 2 : index
    %c0_367 = arith.constant 0 : index
    %c0_368 = arith.constant 0 : index
    %512 = vector.load %arg13[%c0_365, %c2_366, %c0_367, %c0_368] : memref<4x10x10x2xf32, #tpu.memory_space<vmem>>, vector<1x8x8x2xf32>
    %513 = vector.shape_cast %512 : vector<1x8x8x2xf32> to vector<8x8x2xf32>
    %514 = vector.broadcast %511 : f32 to vector<8x8x2xf32>
    %515 = arith.mulf %514, %513 : vector<8x8x2xf32>
    %516 = arith.addf %510, %515 : vector<8x8x2xf32>
    %c7_369 = arith.constant 7 : index
    %517 = memref.load %arg4[%c7_369] : memref<144xf32, #tpu.memory_space<smem>>
    %c0_370 = arith.constant 0 : index
    %c2_371 = arith.constant 2 : index
    %c1_372 = arith.constant 1 : index
    %c0_373 = arith.constant 0 : index
    %518 = vector.load %arg13[%c0_370, %c2_371, %c1_372, %c0_373] : memref<4x10x10x2xf32, #tpu.memory_space<vmem>>, vector<1x8x8x2xf32>
    %519 = vector.shape_cast %518 : vector<1x8x8x2xf32> to vector<8x8x2xf32>
    %520 = vector.broadcast %517 : f32 to vector<8x8x2xf32>
    %521 = arith.mulf %520, %519 : vector<8x8x2xf32>
    %522 = arith.addf %516, %521 : vector<8x8x2xf32>
    %c8_374 = arith.constant 8 : index
    %523 = memref.load %arg4[%c8_374] : memref<144xf32, #tpu.memory_space<smem>>
    %c0_375 = arith.constant 0 : index
    %c2_376 = arith.constant 2 : index
    %c2_377 = arith.constant 2 : index
    %c0_378 = arith.constant 0 : index
    %524 = vector.load %arg13[%c0_375, %c2_376, %c2_377, %c0_378] : memref<4x10x10x2xf32, #tpu.memory_space<vmem>>, vector<1x8x8x2xf32>
    %525 = vector.shape_cast %524 : vector<1x8x8x2xf32> to vector<8x8x2xf32>
    %526 = vector.broadcast %523 : f32 to vector<8x8x2xf32>
    %527 = arith.mulf %526, %525 : vector<8x8x2xf32>
    %528 = arith.addf %522, %527 : vector<8x8x2xf32>
    %c9_379 = arith.constant 9 : index
    %529 = memref.load %arg4[%c9_379] : memref<144xf32, #tpu.memory_space<smem>>
    %c1_380 = arith.constant 1 : index
    %c0_381 = arith.constant 0 : index
    %c0_382 = arith.constant 0 : index
    %c0_383 = arith.constant 0 : index
    %530 = vector.load %arg13[%c1_380, %c0_381, %c0_382, %c0_383] : memref<4x10x10x2xf32, #tpu.memory_space<vmem>>, vector<1x8x8x2xf32>
    %531 = vector.shape_cast %530 : vector<1x8x8x2xf32> to vector<8x8x2xf32>
    %532 = vector.broadcast %529 : f32 to vector<8x8x2xf32>
    %533 = arith.mulf %532, %531 : vector<8x8x2xf32>
    %534 = arith.addf %528, %533 : vector<8x8x2xf32>
    %c10_384 = arith.constant 10 : index
    %535 = memref.load %arg4[%c10_384] : memref<144xf32, #tpu.memory_space<smem>>
    %c1_385 = arith.constant 1 : index
    %c0_386 = arith.constant 0 : index
    %c1_387 = arith.constant 1 : index
    %c0_388 = arith.constant 0 : index
    %536 = vector.load %arg13[%c1_385, %c0_386, %c1_387, %c0_388] : memref<4x10x10x2xf32, #tpu.memory_space<vmem>>, vector<1x8x8x2xf32>
    %537 = vector.shape_cast %536 : vector<1x8x8x2xf32> to vector<8x8x2xf32>
    %538 = vector.broadcast %535 : f32 to vector<8x8x2xf32>
    %539 = arith.mulf %538, %537 : vector<8x8x2xf32>
    %540 = arith.addf %534, %539 : vector<8x8x2xf32>
    %c11_389 = arith.constant 11 : index
    %541 = memref.load %arg4[%c11_389] : memref<144xf32, #tpu.memory_space<smem>>
    %c1_390 = arith.constant 1 : index
    %c0_391 = arith.constant 0 : index
    %c2_392 = arith.constant 2 : index
    %c0_393 = arith.constant 0 : index
    %542 = vector.load %arg13[%c1_390, %c0_391, %c2_392, %c0_393] : memref<4x10x10x2xf32, #tpu.memory_space<vmem>>, vector<1x8x8x2xf32>
    %543 = vector.shape_cast %542 : vector<1x8x8x2xf32> to vector<8x8x2xf32>
    %544 = vector.broadcast %541 : f32 to vector<8x8x2xf32>
    %545 = arith.mulf %544, %543 : vector<8x8x2xf32>
    %546 = arith.addf %540, %545 : vector<8x8x2xf32>
    %c12_394 = arith.constant 12 : index
    %547 = memref.load %arg4[%c12_394] : memref<144xf32, #tpu.memory_space<smem>>
    %c1_395 = arith.constant 1 : index
    %c1_396 = arith.constant 1 : index
    %c0_397 = arith.constant 0 : index
    %c0_398 = arith.constant 0 : index
    %548 = vector.load %arg13[%c1_395, %c1_396, %c0_397, %c0_398] : memref<4x10x10x2xf32, #tpu.memory_space<vmem>>, vector<1x8x8x2xf32>
    %549 = vector.shape_cast %548 : vector<1x8x8x2xf32> to vector<8x8x2xf32>
    %550 = vector.broadcast %547 : f32 to vector<8x8x2xf32>
    %551 = arith.mulf %550, %549 : vector<8x8x2xf32>
    %552 = arith.addf %546, %551 : vector<8x8x2xf32>
    %c13_399 = arith.constant 13 : index
    %553 = memref.load %arg4[%c13_399] : memref<144xf32, #tpu.memory_space<smem>>
    %c1_400 = arith.constant 1 : index
    %c1_401 = arith.constant 1 : index
    %c1_402 = arith.constant 1 : index
    %c0_403 = arith.constant 0 : index
    %554 = vector.load %arg13[%c1_400, %c1_401, %c1_402, %c0_403] : memref<4x10x10x2xf32, #tpu.memory_space<vmem>>, vector<1x8x8x2xf32>
    %555 = vector.shape_cast %554 : vector<1x8x8x2xf32> to vector<8x8x2xf32>
    %556 = vector.broadcast %553 : f32 to vector<8x8x2xf32>
    %557 = arith.mulf %556, %555 : vector<8x8x2xf32>
    %558 = arith.addf %552, %557 : vector<8x8x2xf32>
    %c14_404 = arith.constant 14 : index
    %559 = memref.load %arg4[%c14_404] : memref<144xf32, #tpu.memory_space<smem>>
    %c1_405 = arith.constant 1 : index
    %c1_406 = arith.constant 1 : index
    %c2_407 = arith.constant 2 : index
    %c0_408 = arith.constant 0 : index
    %560 = vector.load %arg13[%c1_405, %c1_406, %c2_407, %c0_408] : memref<4x10x10x2xf32, #tpu.memory_space<vmem>>, vector<1x8x8x2xf32>
    %561 = vector.shape_cast %560 : vector<1x8x8x2xf32> to vector<8x8x2xf32>
    %562 = vector.broadcast %559 : f32 to vector<8x8x2xf32>
    %563 = arith.mulf %562, %561 : vector<8x8x2xf32>
    %564 = arith.addf %558, %563 : vector<8x8x2xf32>
    %c15_409 = arith.constant 15 : index
    %565 = memref.load %arg4[%c15_409] : memref<144xf32, #tpu.memory_space<smem>>
    %c1_410 = arith.constant 1 : index
    %c2_411 = arith.constant 2 : index
    %c0_412 = arith.constant 0 : index
    %c0_413 = arith.constant 0 : index
    %566 = vector.load %arg13[%c1_410, %c2_411, %c0_412, %c0_413] : memref<4x10x10x2xf32, #tpu.memory_space<vmem>>, vector<1x8x8x2xf32>
    %567 = vector.shape_cast %566 : vector<1x8x8x2xf32> to vector<8x8x2xf32>
    %568 = vector.broadcast %565 : f32 to vector<8x8x2xf32>
    %569 = arith.mulf %568, %567 : vector<8x8x2xf32>
    %570 = arith.addf %564, %569 : vector<8x8x2xf32>
    %c16_414 = arith.constant 16 : index
    %571 = memref.load %arg4[%c16_414] : memref<144xf32, #tpu.memory_space<smem>>
    %c1_415 = arith.constant 1 : index
    %c2_416 = arith.constant 2 : index
    %c1_417 = arith.constant 1 : index
    %c0_418 = arith.constant 0 : index
    %572 = vector.load %arg13[%c1_415, %c2_416, %c1_417, %c0_418] : memref<4x10x10x2xf32, #tpu.memory_space<vmem>>, vector<1x8x8x2xf32>
    %573 = vector.shape_cast %572 : vector<1x8x8x2xf32> to vector<8x8x2xf32>
    %574 = vector.broadcast %571 : f32 to vector<8x8x2xf32>
    %575 = arith.mulf %574, %573 : vector<8x8x2xf32>
    %576 = arith.addf %570, %575 : vector<8x8x2xf32>
    %c17_419 = arith.constant 17 : index
    %577 = memref.load %arg4[%c17_419] : memref<144xf32, #tpu.memory_space<smem>>
    %c1_420 = arith.constant 1 : index
    %c2_421 = arith.constant 2 : index
    %c2_422 = arith.constant 2 : index
    %c0_423 = arith.constant 0 : index
    %578 = vector.load %arg13[%c1_420, %c2_421, %c2_422, %c0_423] : memref<4x10x10x2xf32, #tpu.memory_space<vmem>>, vector<1x8x8x2xf32>
    %579 = vector.shape_cast %578 : vector<1x8x8x2xf32> to vector<8x8x2xf32>
    %580 = vector.broadcast %577 : f32 to vector<8x8x2xf32>
    %581 = arith.mulf %580, %579 : vector<8x8x2xf32>
    %582 = arith.addf %576, %581 : vector<8x8x2xf32>
    %c18_424 = arith.constant 18 : index
    %583 = memref.load %arg4[%c18_424] : memref<144xf32, #tpu.memory_space<smem>>
    %c2_425 = arith.constant 2 : index
    %c0_426 = arith.constant 0 : index
    %c0_427 = arith.constant 0 : index
    %c0_428 = arith.constant 0 : index
    %584 = vector.load %arg13[%c2_425, %c0_426, %c0_427, %c0_428] : memref<4x10x10x2xf32, #tpu.memory_space<vmem>>, vector<1x8x8x2xf32>
    %585 = vector.shape_cast %584 : vector<1x8x8x2xf32> to vector<8x8x2xf32>
    %586 = vector.broadcast %583 : f32 to vector<8x8x2xf32>
    %587 = arith.mulf %586, %585 : vector<8x8x2xf32>
    %588 = arith.addf %582, %587 : vector<8x8x2xf32>
    %c19_429 = arith.constant 19 : index
    %589 = memref.load %arg4[%c19_429] : memref<144xf32, #tpu.memory_space<smem>>
    %c2_430 = arith.constant 2 : index
    %c0_431 = arith.constant 0 : index
    %c1_432 = arith.constant 1 : index
    %c0_433 = arith.constant 0 : index
    %590 = vector.load %arg13[%c2_430, %c0_431, %c1_432, %c0_433] : memref<4x10x10x2xf32, #tpu.memory_space<vmem>>, vector<1x8x8x2xf32>
    %591 = vector.shape_cast %590 : vector<1x8x8x2xf32> to vector<8x8x2xf32>
    %592 = vector.broadcast %589 : f32 to vector<8x8x2xf32>
    %593 = arith.mulf %592, %591 : vector<8x8x2xf32>
    %594 = arith.addf %588, %593 : vector<8x8x2xf32>
    %c20_434 = arith.constant 20 : index
    %595 = memref.load %arg4[%c20_434] : memref<144xf32, #tpu.memory_space<smem>>
    %c2_435 = arith.constant 2 : index
    %c0_436 = arith.constant 0 : index
    %c2_437 = arith.constant 2 : index
    %c0_438 = arith.constant 0 : index
    %596 = vector.load %arg13[%c2_435, %c0_436, %c2_437, %c0_438] : memref<4x10x10x2xf32, #tpu.memory_space<vmem>>, vector<1x8x8x2xf32>
    %597 = vector.shape_cast %596 : vector<1x8x8x2xf32> to vector<8x8x2xf32>
    %598 = vector.broadcast %595 : f32 to vector<8x8x2xf32>
    %599 = arith.mulf %598, %597 : vector<8x8x2xf32>
    %600 = arith.addf %594, %599 : vector<8x8x2xf32>
    %c21_439 = arith.constant 21 : index
    %601 = memref.load %arg4[%c21_439] : memref<144xf32, #tpu.memory_space<smem>>
    %c2_440 = arith.constant 2 : index
    %c1_441 = arith.constant 1 : index
    %c0_442 = arith.constant 0 : index
    %c0_443 = arith.constant 0 : index
    %602 = vector.load %arg13[%c2_440, %c1_441, %c0_442, %c0_443] : memref<4x10x10x2xf32, #tpu.memory_space<vmem>>, vector<1x8x8x2xf32>
    %603 = vector.shape_cast %602 : vector<1x8x8x2xf32> to vector<8x8x2xf32>
    %604 = vector.broadcast %601 : f32 to vector<8x8x2xf32>
    %605 = arith.mulf %604, %603 : vector<8x8x2xf32>
    %606 = arith.addf %600, %605 : vector<8x8x2xf32>
    %c22_444 = arith.constant 22 : index
    %607 = memref.load %arg4[%c22_444] : memref<144xf32, #tpu.memory_space<smem>>
    %c2_445 = arith.constant 2 : index
    %c1_446 = arith.constant 1 : index
    %c1_447 = arith.constant 1 : index
    %c0_448 = arith.constant 0 : index
    %608 = vector.load %arg13[%c2_445, %c1_446, %c1_447, %c0_448] : memref<4x10x10x2xf32, #tpu.memory_space<vmem>>, vector<1x8x8x2xf32>
    %609 = vector.shape_cast %608 : vector<1x8x8x2xf32> to vector<8x8x2xf32>
    %610 = vector.broadcast %607 : f32 to vector<8x8x2xf32>
    %611 = arith.mulf %610, %609 : vector<8x8x2xf32>
    %612 = arith.addf %606, %611 : vector<8x8x2xf32>
    %c23_449 = arith.constant 23 : index
    %613 = memref.load %arg4[%c23_449] : memref<144xf32, #tpu.memory_space<smem>>
    %c2_450 = arith.constant 2 : index
    %c1_451 = arith.constant 1 : index
    %c2_452 = arith.constant 2 : index
    %c0_453 = arith.constant 0 : index
    %614 = vector.load %arg13[%c2_450, %c1_451, %c2_452, %c0_453] : memref<4x10x10x2xf32, #tpu.memory_space<vmem>>, vector<1x8x8x2xf32>
    %615 = vector.shape_cast %614 : vector<1x8x8x2xf32> to vector<8x8x2xf32>
    %616 = vector.broadcast %613 : f32 to vector<8x8x2xf32>
    %617 = arith.mulf %616, %615 : vector<8x8x2xf32>
    %618 = arith.addf %612, %617 : vector<8x8x2xf32>
    %c24_454 = arith.constant 24 : index
    %619 = memref.load %arg4[%c24_454] : memref<144xf32, #tpu.memory_space<smem>>
    %c2_455 = arith.constant 2 : index
    %c2_456 = arith.constant 2 : index
    %c0_457 = arith.constant 0 : index
    %c0_458 = arith.constant 0 : index
    %620 = vector.load %arg13[%c2_455, %c2_456, %c0_457, %c0_458] : memref<4x10x10x2xf32, #tpu.memory_space<vmem>>, vector<1x8x8x2xf32>
    %621 = vector.shape_cast %620 : vector<1x8x8x2xf32> to vector<8x8x2xf32>
    %622 = vector.broadcast %619 : f32 to vector<8x8x2xf32>
    %623 = arith.mulf %622, %621 : vector<8x8x2xf32>
    %624 = arith.addf %618, %623 : vector<8x8x2xf32>
    %c25_459 = arith.constant 25 : index
    %625 = memref.load %arg4[%c25_459] : memref<144xf32, #tpu.memory_space<smem>>
    %c2_460 = arith.constant 2 : index
    %c2_461 = arith.constant 2 : index
    %c1_462 = arith.constant 1 : index
    %c0_463 = arith.constant 0 : index
    %626 = vector.load %arg13[%c2_460, %c2_461, %c1_462, %c0_463] : memref<4x10x10x2xf32, #tpu.memory_space<vmem>>, vector<1x8x8x2xf32>
    %627 = vector.shape_cast %626 : vector<1x8x8x2xf32> to vector<8x8x2xf32>
    %628 = vector.broadcast %625 : f32 to vector<8x8x2xf32>
    %629 = arith.mulf %628, %627 : vector<8x8x2xf32>
    %630 = arith.addf %624, %629 : vector<8x8x2xf32>
    %c26_464 = arith.constant 26 : index
    %631 = memref.load %arg4[%c26_464] : memref<144xf32, #tpu.memory_space<smem>>
    %c2_465 = arith.constant 2 : index
    %c2_466 = arith.constant 2 : index
    %c2_467 = arith.constant 2 : index
    %c0_468 = arith.constant 0 : index
    %632 = vector.load %arg13[%c2_465, %c2_466, %c2_467, %c0_468] : memref<4x10x10x2xf32, #tpu.memory_space<vmem>>, vector<1x8x8x2xf32>
    %633 = vector.shape_cast %632 : vector<1x8x8x2xf32> to vector<8x8x2xf32>
    %634 = vector.broadcast %631 : f32 to vector<8x8x2xf32>
    %635 = arith.mulf %634, %633 : vector<8x8x2xf32>
    %636 = arith.addf %630, %635 : vector<8x8x2xf32>
    %c27_469 = arith.constant 27 : index
    %637 = memref.load %arg4[%c27_469] : memref<144xf32, #tpu.memory_space<smem>>
    %c3_470 = arith.constant 3 : index
    %c0_471 = arith.constant 0 : index
    %c0_472 = arith.constant 0 : index
    %c0_473 = arith.constant 0 : index
    %638 = vector.load %arg13[%c3_470, %c0_471, %c0_472, %c0_473] : memref<4x10x10x2xf32, #tpu.memory_space<vmem>>, vector<1x8x8x2xf32>
    %639 = vector.shape_cast %638 : vector<1x8x8x2xf32> to vector<8x8x2xf32>
    %640 = vector.broadcast %637 : f32 to vector<8x8x2xf32>
    %641 = arith.mulf %640, %639 : vector<8x8x2xf32>
    %642 = arith.addf %636, %641 : vector<8x8x2xf32>
    %c28_474 = arith.constant 28 : index
    %643 = memref.load %arg4[%c28_474] : memref<144xf32, #tpu.memory_space<smem>>
    %c3_475 = arith.constant 3 : index
    %c0_476 = arith.constant 0 : index
    %c1_477 = arith.constant 1 : index
    %c0_478 = arith.constant 0 : index
    %644 = vector.load %arg13[%c3_475, %c0_476, %c1_477, %c0_478] : memref<4x10x10x2xf32, #tpu.memory_space<vmem>>, vector<1x8x8x2xf32>
    %645 = vector.shape_cast %644 : vector<1x8x8x2xf32> to vector<8x8x2xf32>
    %646 = vector.broadcast %643 : f32 to vector<8x8x2xf32>
    %647 = arith.mulf %646, %645 : vector<8x8x2xf32>
    %648 = arith.addf %642, %647 : vector<8x8x2xf32>
    %c29_479 = arith.constant 29 : index
    %649 = memref.load %arg4[%c29_479] : memref<144xf32, #tpu.memory_space<smem>>
    %c3_480 = arith.constant 3 : index
    %c0_481 = arith.constant 0 : index
    %c2_482 = arith.constant 2 : index
    %c0_483 = arith.constant 0 : index
    %650 = vector.load %arg13[%c3_480, %c0_481, %c2_482, %c0_483] : memref<4x10x10x2xf32, #tpu.memory_space<vmem>>, vector<1x8x8x2xf32>
    %651 = vector.shape_cast %650 : vector<1x8x8x2xf32> to vector<8x8x2xf32>
    %652 = vector.broadcast %649 : f32 to vector<8x8x2xf32>
    %653 = arith.mulf %652, %651 : vector<8x8x2xf32>
    %654 = arith.addf %648, %653 : vector<8x8x2xf32>
    %c30_484 = arith.constant 30 : index
    %655 = memref.load %arg4[%c30_484] : memref<144xf32, #tpu.memory_space<smem>>
    %c3_485 = arith.constant 3 : index
    %c1_486 = arith.constant 1 : index
    %c0_487 = arith.constant 0 : index
    %c0_488 = arith.constant 0 : index
    %656 = vector.load %arg13[%c3_485, %c1_486, %c0_487, %c0_488] : memref<4x10x10x2xf32, #tpu.memory_space<vmem>>, vector<1x8x8x2xf32>
    %657 = vector.shape_cast %656 : vector<1x8x8x2xf32> to vector<8x8x2xf32>
    %658 = vector.broadcast %655 : f32 to vector<8x8x2xf32>
    %659 = arith.mulf %658, %657 : vector<8x8x2xf32>
    %660 = arith.addf %654, %659 : vector<8x8x2xf32>
    %c31_489 = arith.constant 31 : index
    %661 = memref.load %arg4[%c31_489] : memref<144xf32, #tpu.memory_space<smem>>
    %c3_490 = arith.constant 3 : index
    %c1_491 = arith.constant 1 : index
    %c1_492 = arith.constant 1 : index
    %c0_493 = arith.constant 0 : index
    %662 = vector.load %arg13[%c3_490, %c1_491, %c1_492, %c0_493] : memref<4x10x10x2xf32, #tpu.memory_space<vmem>>, vector<1x8x8x2xf32>
    %663 = vector.shape_cast %662 : vector<1x8x8x2xf32> to vector<8x8x2xf32>
    %664 = vector.broadcast %661 : f32 to vector<8x8x2xf32>
    %665 = arith.mulf %664, %663 : vector<8x8x2xf32>
    %666 = arith.addf %660, %665 : vector<8x8x2xf32>
    %c32_494 = arith.constant 32 : index
    %667 = memref.load %arg4[%c32_494] : memref<144xf32, #tpu.memory_space<smem>>
    %c3_495 = arith.constant 3 : index
    %c1_496 = arith.constant 1 : index
    %c2_497 = arith.constant 2 : index
    %c0_498 = arith.constant 0 : index
    %668 = vector.load %arg13[%c3_495, %c1_496, %c2_497, %c0_498] : memref<4x10x10x2xf32, #tpu.memory_space<vmem>>, vector<1x8x8x2xf32>
    %669 = vector.shape_cast %668 : vector<1x8x8x2xf32> to vector<8x8x2xf32>
    %670 = vector.broadcast %667 : f32 to vector<8x8x2xf32>
    %671 = arith.mulf %670, %669 : vector<8x8x2xf32>
    %672 = arith.addf %666, %671 : vector<8x8x2xf32>
    %c33_499 = arith.constant 33 : index
    %673 = memref.load %arg4[%c33_499] : memref<144xf32, #tpu.memory_space<smem>>
    %c3_500 = arith.constant 3 : index
    %c2_501 = arith.constant 2 : index
    %c0_502 = arith.constant 0 : index
    %c0_503 = arith.constant 0 : index
    %674 = vector.load %arg13[%c3_500, %c2_501, %c0_502, %c0_503] : memref<4x10x10x2xf32, #tpu.memory_space<vmem>>, vector<1x8x8x2xf32>
    %675 = vector.shape_cast %674 : vector<1x8x8x2xf32> to vector<8x8x2xf32>
    %676 = vector.broadcast %673 : f32 to vector<8x8x2xf32>
    %677 = arith.mulf %676, %675 : vector<8x8x2xf32>
    %678 = arith.addf %672, %677 : vector<8x8x2xf32>
    %c34_504 = arith.constant 34 : index
    %679 = memref.load %arg4[%c34_504] : memref<144xf32, #tpu.memory_space<smem>>
    %c3_505 = arith.constant 3 : index
    %c2_506 = arith.constant 2 : index
    %c1_507 = arith.constant 1 : index
    %c0_508 = arith.constant 0 : index
    %680 = vector.load %arg13[%c3_505, %c2_506, %c1_507, %c0_508] : memref<4x10x10x2xf32, #tpu.memory_space<vmem>>, vector<1x8x8x2xf32>
    %681 = vector.shape_cast %680 : vector<1x8x8x2xf32> to vector<8x8x2xf32>
    %682 = vector.broadcast %679 : f32 to vector<8x8x2xf32>
    %683 = arith.mulf %682, %681 : vector<8x8x2xf32>
    %684 = arith.addf %678, %683 : vector<8x8x2xf32>
    %c35_509 = arith.constant 35 : index
    %685 = memref.load %arg4[%c35_509] : memref<144xf32, #tpu.memory_space<smem>>
    %c3_510 = arith.constant 3 : index
    %c2_511 = arith.constant 2 : index
    %c2_512 = arith.constant 2 : index
    %c0_513 = arith.constant 0 : index
    %686 = vector.load %arg13[%c3_510, %c2_511, %c2_512, %c0_513] : memref<4x10x10x2xf32, #tpu.memory_space<vmem>>, vector<1x8x8x2xf32>
    %687 = vector.shape_cast %686 : vector<1x8x8x2xf32> to vector<8x8x2xf32>
    %688 = vector.broadcast %685 : f32 to vector<8x8x2xf32>
    %689 = arith.mulf %688, %687 : vector<8x8x2xf32>
    %690 = arith.addf %684, %689 : vector<8x8x2xf32>
    %c0_514 = arith.constant 0 : index
    %691 = memref.load %arg5[%c0_514] : memref<4xf32, #tpu.memory_space<smem>>
    %692 = vector.broadcast %691 : f32 to vector<8x8x2xf32>
    %693 = arith.addf %690, %692 : vector<8x8x2xf32>
    %cst_515 = arith.constant 0.000000e+00 : f32
    %694 = vector.broadcast %cst_515 : f32 to vector<8x8x2xf32>
    %695 = arith.maximumf %693, %694 : vector<8x8x2xf32>
    %696 = vector.extract_strided_slice %695 {offsets = [0, 0, 0], sizes = [1, 8, 2], strides = [1, 1, 1]} : vector<8x8x2xf32> to vector<1x8x2xf32>
    %697 = vector.shape_cast %696 : vector<1x8x2xf32> to vector<8x2xf32>
    %c0_516 = arith.constant 0 : index
    %c0_517 = arith.constant 0 : index
    %698 = vector.load %arg14[%c0_516, %c0_517] : memref<256x2xf32, #tpu.memory_space<vmem>>, vector<8x2xf32>
    tpu.vector_store %arg14[%c0_516, %c0_517], %697 {strides = array<i32>} : memref<256x2xf32, #tpu.memory_space<vmem>>, vector<8x2xf32>,
    %699 = vector.extract_strided_slice %695 {offsets = [1, 0, 0], sizes = [1, 8, 2], strides = [1, 1, 1]} : vector<8x8x2xf32> to vector<1x8x2xf32>
    %700 = vector.shape_cast %699 : vector<1x8x2xf32> to vector<8x2xf32>
    %c8_518 = arith.constant 8 : index
    %c0_519 = arith.constant 0 : index
    %701 = vector.load %arg14[%c8_518, %c0_519] : memref<256x2xf32, #tpu.memory_space<vmem>>, vector<8x2xf32>
    tpu.vector_store %arg14[%c8_518, %c0_519], %700 {strides = array<i32>} : memref<256x2xf32, #tpu.memory_space<vmem>>, vector<8x2xf32>,
    %702 = vector.extract_strided_slice %695 {offsets = [2, 0, 0], sizes = [1, 8, 2], strides = [1, 1, 1]} : vector<8x8x2xf32> to vector<1x8x2xf32>
    %703 = vector.shape_cast %702 : vector<1x8x2xf32> to vector<8x2xf32>
    %c16_520 = arith.constant 16 : index
    %c0_521 = arith.constant 0 : index
    %704 = vector.load %arg14[%c16_520, %c0_521] : memref<256x2xf32, #tpu.memory_space<vmem>>, vector<8x2xf32>
    tpu.vector_store %arg14[%c16_520, %c0_521], %703 {strides = array<i32>} : memref<256x2xf32, #tpu.memory_space<vmem>>, vector<8x2xf32>,
    %705 = vector.extract_strided_slice %695 {offsets = [3, 0, 0], sizes = [1, 8, 2], strides = [1, 1, 1]} : vector<8x8x2xf32> to vector<1x8x2xf32>
    %706 = vector.shape_cast %705 : vector<1x8x2xf32> to vector<8x2xf32>
    %c24_522 = arith.constant 24 : index
    %c0_523 = arith.constant 0 : index
    %707 = vector.load %arg14[%c24_522, %c0_523] : memref<256x2xf32, #tpu.memory_space<vmem>>, vector<8x2xf32>
    tpu.vector_store %arg14[%c24_522, %c0_523], %706 {strides = array<i32>} : memref<256x2xf32, #tpu.memory_space<vmem>>, vector<8x2xf32>,
    %708 = vector.extract_strided_slice %695 {offsets = [4, 0, 0], sizes = [1, 8, 2], strides = [1, 1, 1]} : vector<8x8x2xf32> to vector<1x8x2xf32>
    %709 = vector.shape_cast %708 : vector<1x8x2xf32> to vector<8x2xf32>
    %c32_524 = arith.constant 32 : index
    %c0_525 = arith.constant 0 : index
    %710 = vector.load %arg14[%c32_524, %c0_525] : memref<256x2xf32, #tpu.memory_space<vmem>>, vector<8x2xf32>
    tpu.vector_store %arg14[%c32_524, %c0_525], %709 {strides = array<i32>} : memref<256x2xf32, #tpu.memory_space<vmem>>, vector<8x2xf32>,
    %711 = vector.extract_strided_slice %695 {offsets = [5, 0, 0], sizes = [1, 8, 2], strides = [1, 1, 1]} : vector<8x8x2xf32> to vector<1x8x2xf32>
    %712 = vector.shape_cast %711 : vector<1x8x2xf32> to vector<8x2xf32>
    %c40_526 = arith.constant 40 : index
    %c0_527 = arith.constant 0 : index
    %713 = vector.load %arg14[%c40_526, %c0_527] : memref<256x2xf32, #tpu.memory_space<vmem>>, vector<8x2xf32>
    tpu.vector_store %arg14[%c40_526, %c0_527], %712 {strides = array<i32>} : memref<256x2xf32, #tpu.memory_space<vmem>>, vector<8x2xf32>,
    %714 = vector.extract_strided_slice %695 {offsets = [6, 0, 0], sizes = [1, 8, 2], strides = [1, 1, 1]} : vector<8x8x2xf32> to vector<1x8x2xf32>
    %715 = vector.shape_cast %714 : vector<1x8x2xf32> to vector<8x2xf32>
    %c48_528 = arith.constant 48 : index
    %c0_529 = arith.constant 0 : index
    %716 = vector.load %arg14[%c48_528, %c0_529] : memref<256x2xf32, #tpu.memory_space<vmem>>, vector<8x2xf32>
    tpu.vector_store %arg14[%c48_528, %c0_529], %715 {strides = array<i32>} : memref<256x2xf32, #tpu.memory_space<vmem>>, vector<8x2xf32>,
    %717 = vector.extract_strided_slice %695 {offsets = [7, 0, 0], sizes = [1, 8, 2], strides = [1, 1, 1]} : vector<8x8x2xf32> to vector<1x8x2xf32>
    %718 = vector.shape_cast %717 : vector<1x8x2xf32> to vector<8x2xf32>
    %c56_530 = arith.constant 56 : index
    %c0_531 = arith.constant 0 : index
    %719 = vector.load %arg14[%c56_530, %c0_531] : memref<256x2xf32, #tpu.memory_space<vmem>>, vector<8x2xf32>
    tpu.vector_store %arg14[%c56_530, %c0_531], %718 {strides = array<i32>} : memref<256x2xf32, #tpu.memory_space<vmem>>, vector<8x2xf32>,
    %cst_532 = arith.constant 0.000000e+00 : f32
    %720 = vector.broadcast %cst_532 : f32 to vector<8x8x2xf32>
    %c36_533 = arith.constant 36 : index
    %721 = memref.load %arg4[%c36_533] : memref<144xf32, #tpu.memory_space<smem>>
    %c0_534 = arith.constant 0 : index
    %c0_535 = arith.constant 0 : index
    %c0_536 = arith.constant 0 : index
    %c0_537 = arith.constant 0 : index
    %722 = vector.load %arg13[%c0_534, %c0_535, %c0_536, %c0_537] : memref<4x10x10x2xf32, #tpu.memory_space<vmem>>, vector<1x8x8x2xf32>
    %723 = vector.shape_cast %722 : vector<1x8x8x2xf32> to vector<8x8x2xf32>
    %724 = vector.broadcast %721 : f32 to vector<8x8x2xf32>
    %725 = arith.mulf %724, %723 : vector<8x8x2xf32>
    %726 = arith.addf %720, %725 : vector<8x8x2xf32>
    %c37_538 = arith.constant 37 : index
    %727 = memref.load %arg4[%c37_538] : memref<144xf32, #tpu.memory_space<smem>>
    %c0_539 = arith.constant 0 : index
    %c0_540 = arith.constant 0 : index
    %c1_541 = arith.constant 1 : index
    %c0_542 = arith.constant 0 : index
    %728 = vector.load %arg13[%c0_539, %c0_540, %c1_541, %c0_542] : memref<4x10x10x2xf32, #tpu.memory_space<vmem>>, vector<1x8x8x2xf32>
    %729 = vector.shape_cast %728 : vector<1x8x8x2xf32> to vector<8x8x2xf32>
    %730 = vector.broadcast %727 : f32 to vector<8x8x2xf32>
    %731 = arith.mulf %730, %729 : vector<8x8x2xf32>
    %732 = arith.addf %726, %731 : vector<8x8x2xf32>
    %c38_543 = arith.constant 38 : index
    %733 = memref.load %arg4[%c38_543] : memref<144xf32, #tpu.memory_space<smem>>
    %c0_544 = arith.constant 0 : index
    %c0_545 = arith.constant 0 : index
    %c2_546 = arith.constant 2 : index
    %c0_547 = arith.constant 0 : index
    %734 = vector.load %arg13[%c0_544, %c0_545, %c2_546, %c0_547] : memref<4x10x10x2xf32, #tpu.memory_space<vmem>>, vector<1x8x8x2xf32>
    %735 = vector.shape_cast %734 : vector<1x8x8x2xf32> to vector<8x8x2xf32>
    %736 = vector.broadcast %733 : f32 to vector<8x8x2xf32>
    %737 = arith.mulf %736, %735 : vector<8x8x2xf32>
    %738 = arith.addf %732, %737 : vector<8x8x2xf32>
    %c39_548 = arith.constant 39 : index
    %739 = memref.load %arg4[%c39_548] : memref<144xf32, #tpu.memory_space<smem>>
    %c0_549 = arith.constant 0 : index
    %c1_550 = arith.constant 1 : index
    %c0_551 = arith.constant 0 : index
    %c0_552 = arith.constant 0 : index
    %740 = vector.load %arg13[%c0_549, %c1_550, %c0_551, %c0_552] : memref<4x10x10x2xf32, #tpu.memory_space<vmem>>, vector<1x8x8x2xf32>
    %741 = vector.shape_cast %740 : vector<1x8x8x2xf32> to vector<8x8x2xf32>
    %742 = vector.broadcast %739 : f32 to vector<8x8x2xf32>
    %743 = arith.mulf %742, %741 : vector<8x8x2xf32>
    %744 = arith.addf %738, %743 : vector<8x8x2xf32>
    %c40_553 = arith.constant 40 : index
    %745 = memref.load %arg4[%c40_553] : memref<144xf32, #tpu.memory_space<smem>>
    %c0_554 = arith.constant 0 : index
    %c1_555 = arith.constant 1 : index
    %c1_556 = arith.constant 1 : index
    %c0_557 = arith.constant 0 : index
    %746 = vector.load %arg13[%c0_554, %c1_555, %c1_556, %c0_557] : memref<4x10x10x2xf32, #tpu.memory_space<vmem>>, vector<1x8x8x2xf32>
    %747 = vector.shape_cast %746 : vector<1x8x8x2xf32> to vector<8x8x2xf32>
    %748 = vector.broadcast %745 : f32 to vector<8x8x2xf32>
    %749 = arith.mulf %748, %747 : vector<8x8x2xf32>
    %750 = arith.addf %744, %749 : vector<8x8x2xf32>
    %c41_558 = arith.constant 41 : index
    %751 = memref.load %arg4[%c41_558] : memref<144xf32, #tpu.memory_space<smem>>
    %c0_559 = arith.constant 0 : index
    %c1_560 = arith.constant 1 : index
    %c2_561 = arith.constant 2 : index
    %c0_562 = arith.constant 0 : index
    %752 = vector.load %arg13[%c0_559, %c1_560, %c2_561, %c0_562] : memref<4x10x10x2xf32, #tpu.memory_space<vmem>>, vector<1x8x8x2xf32>
    %753 = vector.shape_cast %752 : vector<1x8x8x2xf32> to vector<8x8x2xf32>
    %754 = vector.broadcast %751 : f32 to vector<8x8x2xf32>
    %755 = arith.mulf %754, %753 : vector<8x8x2xf32>
    %756 = arith.addf %750, %755 : vector<8x8x2xf32>
    %c42_563 = arith.constant 42 : index
    %757 = memref.load %arg4[%c42_563] : memref<144xf32, #tpu.memory_space<smem>>
    %c0_564 = arith.constant 0 : index
    %c2_565 = arith.constant 2 : index
    %c0_566 = arith.constant 0 : index
    %c0_567 = arith.constant 0 : index
    %758 = vector.load %arg13[%c0_564, %c2_565, %c0_566, %c0_567] : memref<4x10x10x2xf32, #tpu.memory_space<vmem>>, vector<1x8x8x2xf32>
    %759 = vector.shape_cast %758 : vector<1x8x8x2xf32> to vector<8x8x2xf32>
    %760 = vector.broadcast %757 : f32 to vector<8x8x2xf32>
    %761 = arith.mulf %760, %759 : vector<8x8x2xf32>
    %762 = arith.addf %756, %761 : vector<8x8x2xf32>
    %c43_568 = arith.constant 43 : index
    %763 = memref.load %arg4[%c43_568] : memref<144xf32, #tpu.memory_space<smem>>
    %c0_569 = arith.constant 0 : index
    %c2_570 = arith.constant 2 : index
    %c1_571 = arith.constant 1 : index
    %c0_572 = arith.constant 0 : index
    %764 = vector.load %arg13[%c0_569, %c2_570, %c1_571, %c0_572] : memref<4x10x10x2xf32, #tpu.memory_space<vmem>>, vector<1x8x8x2xf32>
    %765 = vector.shape_cast %764 : vector<1x8x8x2xf32> to vector<8x8x2xf32>
    %766 = vector.broadcast %763 : f32 to vector<8x8x2xf32>
    %767 = arith.mulf %766, %765 : vector<8x8x2xf32>
    %768 = arith.addf %762, %767 : vector<8x8x2xf32>
    %c44_573 = arith.constant 44 : index
    %769 = memref.load %arg4[%c44_573] : memref<144xf32, #tpu.memory_space<smem>>
    %c0_574 = arith.constant 0 : index
    %c2_575 = arith.constant 2 : index
    %c2_576 = arith.constant 2 : index
    %c0_577 = arith.constant 0 : index
    %770 = vector.load %arg13[%c0_574, %c2_575, %c2_576, %c0_577] : memref<4x10x10x2xf32, #tpu.memory_space<vmem>>, vector<1x8x8x2xf32>
    %771 = vector.shape_cast %770 : vector<1x8x8x2xf32> to vector<8x8x2xf32>
    %772 = vector.broadcast %769 : f32 to vector<8x8x2xf32>
    %773 = arith.mulf %772, %771 : vector<8x8x2xf32>
    %774 = arith.addf %768, %773 : vector<8x8x2xf32>
    %c45_578 = arith.constant 45 : index
    %775 = memref.load %arg4[%c45_578] : memref<144xf32, #tpu.memory_space<smem>>
    %c1_579 = arith.constant 1 : index
    %c0_580 = arith.constant 0 : index
    %c0_581 = arith.constant 0 : index
    %c0_582 = arith.constant 0 : index
    %776 = vector.load %arg13[%c1_579, %c0_580, %c0_581, %c0_582] : memref<4x10x10x2xf32, #tpu.memory_space<vmem>>, vector<1x8x8x2xf32>
    %777 = vector.shape_cast %776 : vector<1x8x8x2xf32> to vector<8x8x2xf32>
    %778 = vector.broadcast %775 : f32 to vector<8x8x2xf32>
    %779 = arith.mulf %778, %777 : vector<8x8x2xf32>
    %780 = arith.addf %774, %779 : vector<8x8x2xf32>
    %c46_583 = arith.constant 46 : index
    %781 = memref.load %arg4[%c46_583] : memref<144xf32, #tpu.memory_space<smem>>
    %c1_584 = arith.constant 1 : index
    %c0_585 = arith.constant 0 : index
    %c1_586 = arith.constant 1 : index
    %c0_587 = arith.constant 0 : index
    %782 = vector.load %arg13[%c1_584, %c0_585, %c1_586, %c0_587] : memref<4x10x10x2xf32, #tpu.memory_space<vmem>>, vector<1x8x8x2xf32>
    %783 = vector.shape_cast %782 : vector<1x8x8x2xf32> to vector<8x8x2xf32>
    %784 = vector.broadcast %781 : f32 to vector<8x8x2xf32>
    %785 = arith.mulf %784, %783 : vector<8x8x2xf32>
    %786 = arith.addf %780, %785 : vector<8x8x2xf32>
    %c47_588 = arith.constant 47 : index
    %787 = memref.load %arg4[%c47_588] : memref<144xf32, #tpu.memory_space<smem>>
    %c1_589 = arith.constant 1 : index
    %c0_590 = arith.constant 0 : index
    %c2_591 = arith.constant 2 : index
    %c0_592 = arith.constant 0 : index
    %788 = vector.load %arg13[%c1_589, %c0_590, %c2_591, %c0_592] : memref<4x10x10x2xf32, #tpu.memory_space<vmem>>, vector<1x8x8x2xf32>
    %789 = vector.shape_cast %788 : vector<1x8x8x2xf32> to vector<8x8x2xf32>
    %790 = vector.broadcast %787 : f32 to vector<8x8x2xf32>
    %791 = arith.mulf %790, %789 : vector<8x8x2xf32>
    %792 = arith.addf %786, %791 : vector<8x8x2xf32>
    %c48_593 = arith.constant 48 : index
    %793 = memref.load %arg4[%c48_593] : memref<144xf32, #tpu.memory_space<smem>>
    %c1_594 = arith.constant 1 : index
    %c1_595 = arith.constant 1 : index
    %c0_596 = arith.constant 0 : index
    %c0_597 = arith.constant 0 : index
    %794 = vector.load %arg13[%c1_594, %c1_595, %c0_596, %c0_597] : memref<4x10x10x2xf32, #tpu.memory_space<vmem>>, vector<1x8x8x2xf32>
    %795 = vector.shape_cast %794 : vector<1x8x8x2xf32> to vector<8x8x2xf32>
    %796 = vector.broadcast %793 : f32 to vector<8x8x2xf32>
    %797 = arith.mulf %796, %795 : vector<8x8x2xf32>
    %798 = arith.addf %792, %797 : vector<8x8x2xf32>
    %c49_598 = arith.constant 49 : index
    %799 = memref.load %arg4[%c49_598] : memref<144xf32, #tpu.memory_space<smem>>
    %c1_599 = arith.constant 1 : index
    %c1_600 = arith.constant 1 : index
    %c1_601 = arith.constant 1 : index
    %c0_602 = arith.constant 0 : index
    %800 = vector.load %arg13[%c1_599, %c1_600, %c1_601, %c0_602] : memref<4x10x10x2xf32, #tpu.memory_space<vmem>>, vector<1x8x8x2xf32>
    %801 = vector.shape_cast %800 : vector<1x8x8x2xf32> to vector<8x8x2xf32>
    %802 = vector.broadcast %799 : f32 to vector<8x8x2xf32>
    %803 = arith.mulf %802, %801 : vector<8x8x2xf32>
    %804 = arith.addf %798, %803 : vector<8x8x2xf32>
    %c50_603 = arith.constant 50 : index
    %805 = memref.load %arg4[%c50_603] : memref<144xf32, #tpu.memory_space<smem>>
    %c1_604 = arith.constant 1 : index
    %c1_605 = arith.constant 1 : index
    %c2_606 = arith.constant 2 : index
    %c0_607 = arith.constant 0 : index
    %806 = vector.load %arg13[%c1_604, %c1_605, %c2_606, %c0_607] : memref<4x10x10x2xf32, #tpu.memory_space<vmem>>, vector<1x8x8x2xf32>
    %807 = vector.shape_cast %806 : vector<1x8x8x2xf32> to vector<8x8x2xf32>
    %808 = vector.broadcast %805 : f32 to vector<8x8x2xf32>
    %809 = arith.mulf %808, %807 : vector<8x8x2xf32>
    %810 = arith.addf %804, %809 : vector<8x8x2xf32>
    %c51_608 = arith.constant 51 : index
    %811 = memref.load %arg4[%c51_608] : memref<144xf32, #tpu.memory_space<smem>>
    %c1_609 = arith.constant 1 : index
    %c2_610 = arith.constant 2 : index
    %c0_611 = arith.constant 0 : index
    %c0_612 = arith.constant 0 : index
    %812 = vector.load %arg13[%c1_609, %c2_610, %c0_611, %c0_612] : memref<4x10x10x2xf32, #tpu.memory_space<vmem>>, vector<1x8x8x2xf32>
    %813 = vector.shape_cast %812 : vector<1x8x8x2xf32> to vector<8x8x2xf32>
    %814 = vector.broadcast %811 : f32 to vector<8x8x2xf32>
    %815 = arith.mulf %814, %813 : vector<8x8x2xf32>
    %816 = arith.addf %810, %815 : vector<8x8x2xf32>
    %c52_613 = arith.constant 52 : index
    %817 = memref.load %arg4[%c52_613] : memref<144xf32, #tpu.memory_space<smem>>
    %c1_614 = arith.constant 1 : index
    %c2_615 = arith.constant 2 : index
    %c1_616 = arith.constant 1 : index
    %c0_617 = arith.constant 0 : index
    %818 = vector.load %arg13[%c1_614, %c2_615, %c1_616, %c0_617] : memref<4x10x10x2xf32, #tpu.memory_space<vmem>>, vector<1x8x8x2xf32>
    %819 = vector.shape_cast %818 : vector<1x8x8x2xf32> to vector<8x8x2xf32>
    %820 = vector.broadcast %817 : f32 to vector<8x8x2xf32>
    %821 = arith.mulf %820, %819 : vector<8x8x2xf32>
    %822 = arith.addf %816, %821 : vector<8x8x2xf32>
    %c53_618 = arith.constant 53 : index
    %823 = memref.load %arg4[%c53_618] : memref<144xf32, #tpu.memory_space<smem>>
    %c1_619 = arith.constant 1 : index
    %c2_620 = arith.constant 2 : index
    %c2_621 = arith.constant 2 : index
    %c0_622 = arith.constant 0 : index
    %824 = vector.load %arg13[%c1_619, %c2_620, %c2_621, %c0_622] : memref<4x10x10x2xf32, #tpu.memory_space<vmem>>, vector<1x8x8x2xf32>
    %825 = vector.shape_cast %824 : vector<1x8x8x2xf32> to vector<8x8x2xf32>
    %826 = vector.broadcast %823 : f32 to vector<8x8x2xf32>
    %827 = arith.mulf %826, %825 : vector<8x8x2xf32>
    %828 = arith.addf %822, %827 : vector<8x8x2xf32>
    %c54_623 = arith.constant 54 : index
    %829 = memref.load %arg4[%c54_623] : memref<144xf32, #tpu.memory_space<smem>>
    %c2_624 = arith.constant 2 : index
    %c0_625 = arith.constant 0 : index
    %c0_626 = arith.constant 0 : index
    %c0_627 = arith.constant 0 : index
    %830 = vector.load %arg13[%c2_624, %c0_625, %c0_626, %c0_627] : memref<4x10x10x2xf32, #tpu.memory_space<vmem>>, vector<1x8x8x2xf32>
    %831 = vector.shape_cast %830 : vector<1x8x8x2xf32> to vector<8x8x2xf32>
    %832 = vector.broadcast %829 : f32 to vector<8x8x2xf32>
    %833 = arith.mulf %832, %831 : vector<8x8x2xf32>
    %834 = arith.addf %828, %833 : vector<8x8x2xf32>
    %c55_628 = arith.constant 55 : index
    %835 = memref.load %arg4[%c55_628] : memref<144xf32, #tpu.memory_space<smem>>
    %c2_629 = arith.constant 2 : index
    %c0_630 = arith.constant 0 : index
    %c1_631 = arith.constant 1 : index
    %c0_632 = arith.constant 0 : index
    %836 = vector.load %arg13[%c2_629, %c0_630, %c1_631, %c0_632] : memref<4x10x10x2xf32, #tpu.memory_space<vmem>>, vector<1x8x8x2xf32>
    %837 = vector.shape_cast %836 : vector<1x8x8x2xf32> to vector<8x8x2xf32>
    %838 = vector.broadcast %835 : f32 to vector<8x8x2xf32>
    %839 = arith.mulf %838, %837 : vector<8x8x2xf32>
    %840 = arith.addf %834, %839 : vector<8x8x2xf32>
    %c56_633 = arith.constant 56 : index
    %841 = memref.load %arg4[%c56_633] : memref<144xf32, #tpu.memory_space<smem>>
    %c2_634 = arith.constant 2 : index
    %c0_635 = arith.constant 0 : index
    %c2_636 = arith.constant 2 : index
    %c0_637 = arith.constant 0 : index
    %842 = vector.load %arg13[%c2_634, %c0_635, %c2_636, %c0_637] : memref<4x10x10x2xf32, #tpu.memory_space<vmem>>, vector<1x8x8x2xf32>
    %843 = vector.shape_cast %842 : vector<1x8x8x2xf32> to vector<8x8x2xf32>
    %844 = vector.broadcast %841 : f32 to vector<8x8x2xf32>
    %845 = arith.mulf %844, %843 : vector<8x8x2xf32>
    %846 = arith.addf %840, %845 : vector<8x8x2xf32>
    %c57_638 = arith.constant 57 : index
    %847 = memref.load %arg4[%c57_638] : memref<144xf32, #tpu.memory_space<smem>>
    %c2_639 = arith.constant 2 : index
    %c1_640 = arith.constant 1 : index
    %c0_641 = arith.constant 0 : index
    %c0_642 = arith.constant 0 : index
    %848 = vector.load %arg13[%c2_639, %c1_640, %c0_641, %c0_642] : memref<4x10x10x2xf32, #tpu.memory_space<vmem>>, vector<1x8x8x2xf32>
    %849 = vector.shape_cast %848 : vector<1x8x8x2xf32> to vector<8x8x2xf32>
    %850 = vector.broadcast %847 : f32 to vector<8x8x2xf32>
    %851 = arith.mulf %850, %849 : vector<8x8x2xf32>
    %852 = arith.addf %846, %851 : vector<8x8x2xf32>
    %c58_643 = arith.constant 58 : index
    %853 = memref.load %arg4[%c58_643] : memref<144xf32, #tpu.memory_space<smem>>
    %c2_644 = arith.constant 2 : index
    %c1_645 = arith.constant 1 : index
    %c1_646 = arith.constant 1 : index
    %c0_647 = arith.constant 0 : index
    %854 = vector.load %arg13[%c2_644, %c1_645, %c1_646, %c0_647] : memref<4x10x10x2xf32, #tpu.memory_space<vmem>>, vector<1x8x8x2xf32>
    %855 = vector.shape_cast %854 : vector<1x8x8x2xf32> to vector<8x8x2xf32>
    %856 = vector.broadcast %853 : f32 to vector<8x8x2xf32>
    %857 = arith.mulf %856, %855 : vector<8x8x2xf32>
    %858 = arith.addf %852, %857 : vector<8x8x2xf32>
    %c59_648 = arith.constant 59 : index
    %859 = memref.load %arg4[%c59_648] : memref<144xf32, #tpu.memory_space<smem>>
    %c2_649 = arith.constant 2 : index
    %c1_650 = arith.constant 1 : index
    %c2_651 = arith.constant 2 : index
    %c0_652 = arith.constant 0 : index
    %860 = vector.load %arg13[%c2_649, %c1_650, %c2_651, %c0_652] : memref<4x10x10x2xf32, #tpu.memory_space<vmem>>, vector<1x8x8x2xf32>
    %861 = vector.shape_cast %860 : vector<1x8x8x2xf32> to vector<8x8x2xf32>
    %862 = vector.broadcast %859 : f32 to vector<8x8x2xf32>
    %863 = arith.mulf %862, %861 : vector<8x8x2xf32>
    %864 = arith.addf %858, %863 : vector<8x8x2xf32>
    %c60_653 = arith.constant 60 : index
    %865 = memref.load %arg4[%c60_653] : memref<144xf32, #tpu.memory_space<smem>>
    %c2_654 = arith.constant 2 : index
    %c2_655 = arith.constant 2 : index
    %c0_656 = arith.constant 0 : index
    %c0_657 = arith.constant 0 : index
    %866 = vector.load %arg13[%c2_654, %c2_655, %c0_656, %c0_657] : memref<4x10x10x2xf32, #tpu.memory_space<vmem>>, vector<1x8x8x2xf32>
    %867 = vector.shape_cast %866 : vector<1x8x8x2xf32> to vector<8x8x2xf32>
    %868 = vector.broadcast %865 : f32 to vector<8x8x2xf32>
    %869 = arith.mulf %868, %867 : vector<8x8x2xf32>
    %870 = arith.addf %864, %869 : vector<8x8x2xf32>
    %c61_658 = arith.constant 61 : index
    %871 = memref.load %arg4[%c61_658] : memref<144xf32, #tpu.memory_space<smem>>
    %c2_659 = arith.constant 2 : index
    %c2_660 = arith.constant 2 : index
    %c1_661 = arith.constant 1 : index
    %c0_662 = arith.constant 0 : index
    %872 = vector.load %arg13[%c2_659, %c2_660, %c1_661, %c0_662] : memref<4x10x10x2xf32, #tpu.memory_space<vmem>>, vector<1x8x8x2xf32>
    %873 = vector.shape_cast %872 : vector<1x8x8x2xf32> to vector<8x8x2xf32>
    %874 = vector.broadcast %871 : f32 to vector<8x8x2xf32>
    %875 = arith.mulf %874, %873 : vector<8x8x2xf32>
    %876 = arith.addf %870, %875 : vector<8x8x2xf32>
    %c62_663 = arith.constant 62 : index
    %877 = memref.load %arg4[%c62_663] : memref<144xf32, #tpu.memory_space<smem>>
    %c2_664 = arith.constant 2 : index
    %c2_665 = arith.constant 2 : index
    %c2_666 = arith.constant 2 : index
    %c0_667 = arith.constant 0 : index
    %878 = vector.load %arg13[%c2_664, %c2_665, %c2_666, %c0_667] : memref<4x10x10x2xf32, #tpu.memory_space<vmem>>, vector<1x8x8x2xf32>
    %879 = vector.shape_cast %878 : vector<1x8x8x2xf32> to vector<8x8x2xf32>
    %880 = vector.broadcast %877 : f32 to vector<8x8x2xf32>
    %881 = arith.mulf %880, %879 : vector<8x8x2xf32>
    %882 = arith.addf %876, %881 : vector<8x8x2xf32>
    %c63_668 = arith.constant 63 : index
    %883 = memref.load %arg4[%c63_668] : memref<144xf32, #tpu.memory_space<smem>>
    %c3_669 = arith.constant 3 : index
    %c0_670 = arith.constant 0 : index
    %c0_671 = arith.constant 0 : index
    %c0_672 = arith.constant 0 : index
    %884 = vector.load %arg13[%c3_669, %c0_670, %c0_671, %c0_672] : memref<4x10x10x2xf32, #tpu.memory_space<vmem>>, vector<1x8x8x2xf32>
    %885 = vector.shape_cast %884 : vector<1x8x8x2xf32> to vector<8x8x2xf32>
    %886 = vector.broadcast %883 : f32 to vector<8x8x2xf32>
    %887 = arith.mulf %886, %885 : vector<8x8x2xf32>
    %888 = arith.addf %882, %887 : vector<8x8x2xf32>
    %c64_673 = arith.constant 64 : index
    %889 = memref.load %arg4[%c64_673] : memref<144xf32, #tpu.memory_space<smem>>
    %c3_674 = arith.constant 3 : index
    %c0_675 = arith.constant 0 : index
    %c1_676 = arith.constant 1 : index
    %c0_677 = arith.constant 0 : index
    %890 = vector.load %arg13[%c3_674, %c0_675, %c1_676, %c0_677] : memref<4x10x10x2xf32, #tpu.memory_space<vmem>>, vector<1x8x8x2xf32>
    %891 = vector.shape_cast %890 : vector<1x8x8x2xf32> to vector<8x8x2xf32>
    %892 = vector.broadcast %889 : f32 to vector<8x8x2xf32>
    %893 = arith.mulf %892, %891 : vector<8x8x2xf32>
    %894 = arith.addf %888, %893 : vector<8x8x2xf32>
    %c65_678 = arith.constant 65 : index
    %895 = memref.load %arg4[%c65_678] : memref<144xf32, #tpu.memory_space<smem>>
    %c3_679 = arith.constant 3 : index
    %c0_680 = arith.constant 0 : index
    %c2_681 = arith.constant 2 : index
    %c0_682 = arith.constant 0 : index
    %896 = vector.load %arg13[%c3_679, %c0_680, %c2_681, %c0_682] : memref<4x10x10x2xf32, #tpu.memory_space<vmem>>, vector<1x8x8x2xf32>
    %897 = vector.shape_cast %896 : vector<1x8x8x2xf32> to vector<8x8x2xf32>
    %898 = vector.broadcast %895 : f32 to vector<8x8x2xf32>
    %899 = arith.mulf %898, %897 : vector<8x8x2xf32>
    %900 = arith.addf %894, %899 : vector<8x8x2xf32>
    %c66_683 = arith.constant 66 : index
    %901 = memref.load %arg4[%c66_683] : memref<144xf32, #tpu.memory_space<smem>>
    %c3_684 = arith.constant 3 : index
    %c1_685 = arith.constant 1 : index
    %c0_686 = arith.constant 0 : index
    %c0_687 = arith.constant 0 : index
    %902 = vector.load %arg13[%c3_684, %c1_685, %c0_686, %c0_687] : memref<4x10x10x2xf32, #tpu.memory_space<vmem>>, vector<1x8x8x2xf32>
    %903 = vector.shape_cast %902 : vector<1x8x8x2xf32> to vector<8x8x2xf32>
    %904 = vector.broadcast %901 : f32 to vector<8x8x2xf32>
    %905 = arith.mulf %904, %903 : vector<8x8x2xf32>
    %906 = arith.addf %900, %905 : vector<8x8x2xf32>
    %c67_688 = arith.constant 67 : index
    %907 = memref.load %arg4[%c67_688] : memref<144xf32, #tpu.memory_space<smem>>
    %c3_689 = arith.constant 3 : index
    %c1_690 = arith.constant 1 : index
    %c1_691 = arith.constant 1 : index
    %c0_692 = arith.constant 0 : index
    %908 = vector.load %arg13[%c3_689, %c1_690, %c1_691, %c0_692] : memref<4x10x10x2xf32, #tpu.memory_space<vmem>>, vector<1x8x8x2xf32>
    %909 = vector.shape_cast %908 : vector<1x8x8x2xf32> to vector<8x8x2xf32>
    %910 = vector.broadcast %907 : f32 to vector<8x8x2xf32>
    %911 = arith.mulf %910, %909 : vector<8x8x2xf32>
    %912 = arith.addf %906, %911 : vector<8x8x2xf32>
    %c68_693 = arith.constant 68 : index
    %913 = memref.load %arg4[%c68_693] : memref<144xf32, #tpu.memory_space<smem>>
    %c3_694 = arith.constant 3 : index
    %c1_695 = arith.constant 1 : index
    %c2_696 = arith.constant 2 : index
    %c0_697 = arith.constant 0 : index
    %914 = vector.load %arg13[%c3_694, %c1_695, %c2_696, %c0_697] : memref<4x10x10x2xf32, #tpu.memory_space<vmem>>, vector<1x8x8x2xf32>
    %915 = vector.shape_cast %914 : vector<1x8x8x2xf32> to vector<8x8x2xf32>
    %916 = vector.broadcast %913 : f32 to vector<8x8x2xf32>
    %917 = arith.mulf %916, %915 : vector<8x8x2xf32>
    %918 = arith.addf %912, %917 : vector<8x8x2xf32>
    %c69_698 = arith.constant 69 : index
    %919 = memref.load %arg4[%c69_698] : memref<144xf32, #tpu.memory_space<smem>>
    %c3_699 = arith.constant 3 : index
    %c2_700 = arith.constant 2 : index
    %c0_701 = arith.constant 0 : index
    %c0_702 = arith.constant 0 : index
    %920 = vector.load %arg13[%c3_699, %c2_700, %c0_701, %c0_702] : memref<4x10x10x2xf32, #tpu.memory_space<vmem>>, vector<1x8x8x2xf32>
    %921 = vector.shape_cast %920 : vector<1x8x8x2xf32> to vector<8x8x2xf32>
    %922 = vector.broadcast %919 : f32 to vector<8x8x2xf32>
    %923 = arith.mulf %922, %921 : vector<8x8x2xf32>
    %924 = arith.addf %918, %923 : vector<8x8x2xf32>
    %c70_703 = arith.constant 70 : index
    %925 = memref.load %arg4[%c70_703] : memref<144xf32, #tpu.memory_space<smem>>
    %c3_704 = arith.constant 3 : index
    %c2_705 = arith.constant 2 : index
    %c1_706 = arith.constant 1 : index
    %c0_707 = arith.constant 0 : index
    %926 = vector.load %arg13[%c3_704, %c2_705, %c1_706, %c0_707] : memref<4x10x10x2xf32, #tpu.memory_space<vmem>>, vector<1x8x8x2xf32>
    %927 = vector.shape_cast %926 : vector<1x8x8x2xf32> to vector<8x8x2xf32>
    %928 = vector.broadcast %925 : f32 to vector<8x8x2xf32>
    %929 = arith.mulf %928, %927 : vector<8x8x2xf32>
    %930 = arith.addf %924, %929 : vector<8x8x2xf32>
    %c71_708 = arith.constant 71 : index
    %931 = memref.load %arg4[%c71_708] : memref<144xf32, #tpu.memory_space<smem>>
    %c3_709 = arith.constant 3 : index
    %c2_710 = arith.constant 2 : index
    %c2_711 = arith.constant 2 : index
    %c0_712 = arith.constant 0 : index
    %932 = vector.load %arg13[%c3_709, %c2_710, %c2_711, %c0_712] : memref<4x10x10x2xf32, #tpu.memory_space<vmem>>, vector<1x8x8x2xf32>
    %933 = vector.shape_cast %932 : vector<1x8x8x2xf32> to vector<8x8x2xf32>
    %934 = vector.broadcast %931 : f32 to vector<8x8x2xf32>
    %935 = arith.mulf %934, %933 : vector<8x8x2xf32>
    %936 = arith.addf %930, %935 : vector<8x8x2xf32>
    %c1_713 = arith.constant 1 : index
    %937 = memref.load %arg5[%c1_713] : memref<4xf32, #tpu.memory_space<smem>>
    %938 = vector.broadcast %937 : f32 to vector<8x8x2xf32>
    %939 = arith.addf %936, %938 : vector<8x8x2xf32>
    %cst_714 = arith.constant 0.000000e+00 : f32
    %940 = vector.broadcast %cst_714 : f32 to vector<8x8x2xf32>
    %941 = arith.maximumf %939, %940 : vector<8x8x2xf32>
    %942 = vector.extract_strided_slice %941 {offsets = [0, 0, 0], sizes = [1, 8, 2], strides = [1, 1, 1]} : vector<8x8x2xf32> to vector<1x8x2xf32>
    %943 = vector.shape_cast %942 : vector<1x8x2xf32> to vector<8x2xf32>
    %c64_715 = arith.constant 64 : index
    %c0_716 = arith.constant 0 : index
    %944 = vector.load %arg14[%c64_715, %c0_716] : memref<256x2xf32, #tpu.memory_space<vmem>>, vector<8x2xf32>
    tpu.vector_store %arg14[%c64_715, %c0_716], %943 {strides = array<i32>} : memref<256x2xf32, #tpu.memory_space<vmem>>, vector<8x2xf32>,
    %945 = vector.extract_strided_slice %941 {offsets = [1, 0, 0], sizes = [1, 8, 2], strides = [1, 1, 1]} : vector<8x8x2xf32> to vector<1x8x2xf32>
    %946 = vector.shape_cast %945 : vector<1x8x2xf32> to vector<8x2xf32>
    %c72 = arith.constant 72 : index
    %c0_717 = arith.constant 0 : index
    %947 = vector.load %arg14[%c72, %c0_717] : memref<256x2xf32, #tpu.memory_space<vmem>>, vector<8x2xf32>
    tpu.vector_store %arg14[%c72, %c0_717], %946 {strides = array<i32>} : memref<256x2xf32, #tpu.memory_space<vmem>>, vector<8x2xf32>,
    %948 = vector.extract_strided_slice %941 {offsets = [2, 0, 0], sizes = [1, 8, 2], strides = [1, 1, 1]} : vector<8x8x2xf32> to vector<1x8x2xf32>
    %949 = vector.shape_cast %948 : vector<1x8x2xf32> to vector<8x2xf32>
    %c80 = arith.constant 80 : index
    %c0_718 = arith.constant 0 : index
    %950 = vector.load %arg14[%c80, %c0_718] : memref<256x2xf32, #tpu.memory_space<vmem>>, vector<8x2xf32>
    tpu.vector_store %arg14[%c80, %c0_718], %949 {strides = array<i32>} : memref<256x2xf32, #tpu.memory_space<vmem>>, vector<8x2xf32>,
    %951 = vector.extract_strided_slice %941 {offsets = [3, 0, 0], sizes = [1, 8, 2], strides = [1, 1, 1]} : vector<8x8x2xf32> to vector<1x8x2xf32>
    %952 = vector.shape_cast %951 : vector<1x8x2xf32> to vector<8x2xf32>
    %c88 = arith.constant 88 : index
    %c0_719 = arith.constant 0 : index
    %953 = vector.load %arg14[%c88, %c0_719] : memref<256x2xf32, #tpu.memory_space<vmem>>, vector<8x2xf32>
    tpu.vector_store %arg14[%c88, %c0_719], %952 {strides = array<i32>} : memref<256x2xf32, #tpu.memory_space<vmem>>, vector<8x2xf32>,
    %954 = vector.extract_strided_slice %941 {offsets = [4, 0, 0], sizes = [1, 8, 2], strides = [1, 1, 1]} : vector<8x8x2xf32> to vector<1x8x2xf32>
    %955 = vector.shape_cast %954 : vector<1x8x2xf32> to vector<8x2xf32>
    %c96 = arith.constant 96 : index
    %c0_720 = arith.constant 0 : index
    %956 = vector.load %arg14[%c96, %c0_720] : memref<256x2xf32, #tpu.memory_space<vmem>>, vector<8x2xf32>
    tpu.vector_store %arg14[%c96, %c0_720], %955 {strides = array<i32>} : memref<256x2xf32, #tpu.memory_space<vmem>>, vector<8x2xf32>,
    %957 = vector.extract_strided_slice %941 {offsets = [5, 0, 0], sizes = [1, 8, 2], strides = [1, 1, 1]} : vector<8x8x2xf32> to vector<1x8x2xf32>
    %958 = vector.shape_cast %957 : vector<1x8x2xf32> to vector<8x2xf32>
    %c104 = arith.constant 104 : index
    %c0_721 = arith.constant 0 : index
    %959 = vector.load %arg14[%c104, %c0_721] : memref<256x2xf32, #tpu.memory_space<vmem>>, vector<8x2xf32>
    tpu.vector_store %arg14[%c104, %c0_721], %958 {strides = array<i32>} : memref<256x2xf32, #tpu.memory_space<vmem>>, vector<8x2xf32>,
    %960 = vector.extract_strided_slice %941 {offsets = [6, 0, 0], sizes = [1, 8, 2], strides = [1, 1, 1]} : vector<8x8x2xf32> to vector<1x8x2xf32>
    %961 = vector.shape_cast %960 : vector<1x8x2xf32> to vector<8x2xf32>
    %c112 = arith.constant 112 : index
    %c0_722 = arith.constant 0 : index
    %962 = vector.load %arg14[%c112, %c0_722] : memref<256x2xf32, #tpu.memory_space<vmem>>, vector<8x2xf32>
    tpu.vector_store %arg14[%c112, %c0_722], %961 {strides = array<i32>} : memref<256x2xf32, #tpu.memory_space<vmem>>, vector<8x2xf32>,
    %963 = vector.extract_strided_slice %941 {offsets = [7, 0, 0], sizes = [1, 8, 2], strides = [1, 1, 1]} : vector<8x8x2xf32> to vector<1x8x2xf32>
    %964 = vector.shape_cast %963 : vector<1x8x2xf32> to vector<8x2xf32>
    %c120 = arith.constant 120 : index
    %c0_723 = arith.constant 0 : index
    %965 = vector.load %arg14[%c120, %c0_723] : memref<256x2xf32, #tpu.memory_space<vmem>>, vector<8x2xf32>
    tpu.vector_store %arg14[%c120, %c0_723], %964 {strides = array<i32>} : memref<256x2xf32, #tpu.memory_space<vmem>>, vector<8x2xf32>,
    %cst_724 = arith.constant 0.000000e+00 : f32
    %966 = vector.broadcast %cst_724 : f32 to vector<8x8x2xf32>
    %c72_725 = arith.constant 72 : index
    %967 = memref.load %arg4[%c72_725] : memref<144xf32, #tpu.memory_space<smem>>
    %c0_726 = arith.constant 0 : index
    %c0_727 = arith.constant 0 : index
    %c0_728 = arith.constant 0 : index
    %c0_729 = arith.constant 0 : index
    %968 = vector.load %arg13[%c0_726, %c0_727, %c0_728, %c0_729] : memref<4x10x10x2xf32, #tpu.memory_space<vmem>>, vector<1x8x8x2xf32>
    %969 = vector.shape_cast %968 : vector<1x8x8x2xf32> to vector<8x8x2xf32>
    %970 = vector.broadcast %967 : f32 to vector<8x8x2xf32>
    %971 = arith.mulf %970, %969 : vector<8x8x2xf32>
    %972 = arith.addf %966, %971 : vector<8x8x2xf32>
    %c73 = arith.constant 73 : index
    %973 = memref.load %arg4[%c73] : memref<144xf32, #tpu.memory_space<smem>>
    %c0_730 = arith.constant 0 : index
    %c0_731 = arith.constant 0 : index
    %c1_732 = arith.constant 1 : index
    %c0_733 = arith.constant 0 : index
    %974 = vector.load %arg13[%c0_730, %c0_731, %c1_732, %c0_733] : memref<4x10x10x2xf32, #tpu.memory_space<vmem>>, vector<1x8x8x2xf32>
    %975 = vector.shape_cast %974 : vector<1x8x8x2xf32> to vector<8x8x2xf32>
    %976 = vector.broadcast %973 : f32 to vector<8x8x2xf32>
    %977 = arith.mulf %976, %975 : vector<8x8x2xf32>
    %978 = arith.addf %972, %977 : vector<8x8x2xf32>
    %c74 = arith.constant 74 : index
    %979 = memref.load %arg4[%c74] : memref<144xf32, #tpu.memory_space<smem>>
    %c0_734 = arith.constant 0 : index
    %c0_735 = arith.constant 0 : index
    %c2_736 = arith.constant 2 : index
    %c0_737 = arith.constant 0 : index
    %980 = vector.load %arg13[%c0_734, %c0_735, %c2_736, %c0_737] : memref<4x10x10x2xf32, #tpu.memory_space<vmem>>, vector<1x8x8x2xf32>
    %981 = vector.shape_cast %980 : vector<1x8x8x2xf32> to vector<8x8x2xf32>
    %982 = vector.broadcast %979 : f32 to vector<8x8x2xf32>
    %983 = arith.mulf %982, %981 : vector<8x8x2xf32>
    %984 = arith.addf %978, %983 : vector<8x8x2xf32>
    %c75 = arith.constant 75 : index
    %985 = memref.load %arg4[%c75] : memref<144xf32, #tpu.memory_space<smem>>
    %c0_738 = arith.constant 0 : index
    %c1_739 = arith.constant 1 : index
    %c0_740 = arith.constant 0 : index
    %c0_741 = arith.constant 0 : index
    %986 = vector.load %arg13[%c0_738, %c1_739, %c0_740, %c0_741] : memref<4x10x10x2xf32, #tpu.memory_space<vmem>>, vector<1x8x8x2xf32>
    %987 = vector.shape_cast %986 : vector<1x8x8x2xf32> to vector<8x8x2xf32>
    %988 = vector.broadcast %985 : f32 to vector<8x8x2xf32>
    %989 = arith.mulf %988, %987 : vector<8x8x2xf32>
    %990 = arith.addf %984, %989 : vector<8x8x2xf32>
    %c76 = arith.constant 76 : index
    %991 = memref.load %arg4[%c76] : memref<144xf32, #tpu.memory_space<smem>>
    %c0_742 = arith.constant 0 : index
    %c1_743 = arith.constant 1 : index
    %c1_744 = arith.constant 1 : index
    %c0_745 = arith.constant 0 : index
    %992 = vector.load %arg13[%c0_742, %c1_743, %c1_744, %c0_745] : memref<4x10x10x2xf32, #tpu.memory_space<vmem>>, vector<1x8x8x2xf32>
    %993 = vector.shape_cast %992 : vector<1x8x8x2xf32> to vector<8x8x2xf32>
    %994 = vector.broadcast %991 : f32 to vector<8x8x2xf32>
    %995 = arith.mulf %994, %993 : vector<8x8x2xf32>
    %996 = arith.addf %990, %995 : vector<8x8x2xf32>
    %c77 = arith.constant 77 : index
    %997 = memref.load %arg4[%c77] : memref<144xf32, #tpu.memory_space<smem>>
    %c0_746 = arith.constant 0 : index
    %c1_747 = arith.constant 1 : index
    %c2_748 = arith.constant 2 : index
    %c0_749 = arith.constant 0 : index
    %998 = vector.load %arg13[%c0_746, %c1_747, %c2_748, %c0_749] : memref<4x10x10x2xf32, #tpu.memory_space<vmem>>, vector<1x8x8x2xf32>
    %999 = vector.shape_cast %998 : vector<1x8x8x2xf32> to vector<8x8x2xf32>
    %1000 = vector.broadcast %997 : f32 to vector<8x8x2xf32>
    %1001 = arith.mulf %1000, %999 : vector<8x8x2xf32>
    %1002 = arith.addf %996, %1001 : vector<8x8x2xf32>
    %c78 = arith.constant 78 : index
    %1003 = memref.load %arg4[%c78] : memref<144xf32, #tpu.memory_space<smem>>
    %c0_750 = arith.constant 0 : index
    %c2_751 = arith.constant 2 : index
    %c0_752 = arith.constant 0 : index
    %c0_753 = arith.constant 0 : index
    %1004 = vector.load %arg13[%c0_750, %c2_751, %c0_752, %c0_753] : memref<4x10x10x2xf32, #tpu.memory_space<vmem>>, vector<1x8x8x2xf32>
    %1005 = vector.shape_cast %1004 : vector<1x8x8x2xf32> to vector<8x8x2xf32>
    %1006 = vector.broadcast %1003 : f32 to vector<8x8x2xf32>
    %1007 = arith.mulf %1006, %1005 : vector<8x8x2xf32>
    %1008 = arith.addf %1002, %1007 : vector<8x8x2xf32>
    %c79 = arith.constant 79 : index
    %1009 = memref.load %arg4[%c79] : memref<144xf32, #tpu.memory_space<smem>>
    %c0_754 = arith.constant 0 : index
    %c2_755 = arith.constant 2 : index
    %c1_756 = arith.constant 1 : index
    %c0_757 = arith.constant 0 : index
    %1010 = vector.load %arg13[%c0_754, %c2_755, %c1_756, %c0_757] : memref<4x10x10x2xf32, #tpu.memory_space<vmem>>, vector<1x8x8x2xf32>
    %1011 = vector.shape_cast %1010 : vector<1x8x8x2xf32> to vector<8x8x2xf32>
    %1012 = vector.broadcast %1009 : f32 to vector<8x8x2xf32>
    %1013 = arith.mulf %1012, %1011 : vector<8x8x2xf32>
    %1014 = arith.addf %1008, %1013 : vector<8x8x2xf32>
    %c80_758 = arith.constant 80 : index
    %1015 = memref.load %arg4[%c80_758] : memref<144xf32, #tpu.memory_space<smem>>
    %c0_759 = arith.constant 0 : index
    %c2_760 = arith.constant 2 : index
    %c2_761 = arith.constant 2 : index
    %c0_762 = arith.constant 0 : index
    %1016 = vector.load %arg13[%c0_759, %c2_760, %c2_761, %c0_762] : memref<4x10x10x2xf32, #tpu.memory_space<vmem>>, vector<1x8x8x2xf32>
    %1017 = vector.shape_cast %1016 : vector<1x8x8x2xf32> to vector<8x8x2xf32>
    %1018 = vector.broadcast %1015 : f32 to vector<8x8x2xf32>
    %1019 = arith.mulf %1018, %1017 : vector<8x8x2xf32>
    %1020 = arith.addf %1014, %1019 : vector<8x8x2xf32>
    %c81 = arith.constant 81 : index
    %1021 = memref.load %arg4[%c81] : memref<144xf32, #tpu.memory_space<smem>>
    %c1_763 = arith.constant 1 : index
    %c0_764 = arith.constant 0 : index
    %c0_765 = arith.constant 0 : index
    %c0_766 = arith.constant 0 : index
    %1022 = vector.load %arg13[%c1_763, %c0_764, %c0_765, %c0_766] : memref<4x10x10x2xf32, #tpu.memory_space<vmem>>, vector<1x8x8x2xf32>
    %1023 = vector.shape_cast %1022 : vector<1x8x8x2xf32> to vector<8x8x2xf32>
    %1024 = vector.broadcast %1021 : f32 to vector<8x8x2xf32>
    %1025 = arith.mulf %1024, %1023 : vector<8x8x2xf32>
    %1026 = arith.addf %1020, %1025 : vector<8x8x2xf32>
    %c82 = arith.constant 82 : index
    %1027 = memref.load %arg4[%c82] : memref<144xf32, #tpu.memory_space<smem>>
    %c1_767 = arith.constant 1 : index
    %c0_768 = arith.constant 0 : index
    %c1_769 = arith.constant 1 : index
    %c0_770 = arith.constant 0 : index
    %1028 = vector.load %arg13[%c1_767, %c0_768, %c1_769, %c0_770] : memref<4x10x10x2xf32, #tpu.memory_space<vmem>>, vector<1x8x8x2xf32>
    %1029 = vector.shape_cast %1028 : vector<1x8x8x2xf32> to vector<8x8x2xf32>
    %1030 = vector.broadcast %1027 : f32 to vector<8x8x2xf32>
    %1031 = arith.mulf %1030, %1029 : vector<8x8x2xf32>
    %1032 = arith.addf %1026, %1031 : vector<8x8x2xf32>
    %c83 = arith.constant 83 : index
    %1033 = memref.load %arg4[%c83] : memref<144xf32, #tpu.memory_space<smem>>
    %c1_771 = arith.constant 1 : index
    %c0_772 = arith.constant 0 : index
    %c2_773 = arith.constant 2 : index
    %c0_774 = arith.constant 0 : index
    %1034 = vector.load %arg13[%c1_771, %c0_772, %c2_773, %c0_774] : memref<4x10x10x2xf32, #tpu.memory_space<vmem>>, vector<1x8x8x2xf32>
    %1035 = vector.shape_cast %1034 : vector<1x8x8x2xf32> to vector<8x8x2xf32>
    %1036 = vector.broadcast %1033 : f32 to vector<8x8x2xf32>
    %1037 = arith.mulf %1036, %1035 : vector<8x8x2xf32>
    %1038 = arith.addf %1032, %1037 : vector<8x8x2xf32>
    %c84 = arith.constant 84 : index
    %1039 = memref.load %arg4[%c84] : memref<144xf32, #tpu.memory_space<smem>>
    %c1_775 = arith.constant 1 : index
    %c1_776 = arith.constant 1 : index
    %c0_777 = arith.constant 0 : index
    %c0_778 = arith.constant 0 : index
    %1040 = vector.load %arg13[%c1_775, %c1_776, %c0_777, %c0_778] : memref<4x10x10x2xf32, #tpu.memory_space<vmem>>, vector<1x8x8x2xf32>
    %1041 = vector.shape_cast %1040 : vector<1x8x8x2xf32> to vector<8x8x2xf32>
    %1042 = vector.broadcast %1039 : f32 to vector<8x8x2xf32>
    %1043 = arith.mulf %1042, %1041 : vector<8x8x2xf32>
    %1044 = arith.addf %1038, %1043 : vector<8x8x2xf32>
    %c85 = arith.constant 85 : index
    %1045 = memref.load %arg4[%c85] : memref<144xf32, #tpu.memory_space<smem>>
    %c1_779 = arith.constant 1 : index
    %c1_780 = arith.constant 1 : index
    %c1_781 = arith.constant 1 : index
    %c0_782 = arith.constant 0 : index
    %1046 = vector.load %arg13[%c1_779, %c1_780, %c1_781, %c0_782] : memref<4x10x10x2xf32, #tpu.memory_space<vmem>>, vector<1x8x8x2xf32>
    %1047 = vector.shape_cast %1046 : vector<1x8x8x2xf32> to vector<8x8x2xf32>
    %1048 = vector.broadcast %1045 : f32 to vector<8x8x2xf32>
    %1049 = arith.mulf %1048, %1047 : vector<8x8x2xf32>
    %1050 = arith.addf %1044, %1049 : vector<8x8x2xf32>
    %c86 = arith.constant 86 : index
    %1051 = memref.load %arg4[%c86] : memref<144xf32, #tpu.memory_space<smem>>
    %c1_783 = arith.constant 1 : index
    %c1_784 = arith.constant 1 : index
    %c2_785 = arith.constant 2 : index
    %c0_786 = arith.constant 0 : index
    %1052 = vector.load %arg13[%c1_783, %c1_784, %c2_785, %c0_786] : memref<4x10x10x2xf32, #tpu.memory_space<vmem>>, vector<1x8x8x2xf32>
    %1053 = vector.shape_cast %1052 : vector<1x8x8x2xf32> to vector<8x8x2xf32>
    %1054 = vector.broadcast %1051 : f32 to vector<8x8x2xf32>
    %1055 = arith.mulf %1054, %1053 : vector<8x8x2xf32>
    %1056 = arith.addf %1050, %1055 : vector<8x8x2xf32>
    %c87 = arith.constant 87 : index
    %1057 = memref.load %arg4[%c87] : memref<144xf32, #tpu.memory_space<smem>>
    %c1_787 = arith.constant 1 : index
    %c2_788 = arith.constant 2 : index
    %c0_789 = arith.constant 0 : index
    %c0_790 = arith.constant 0 : index
    %1058 = vector.load %arg13[%c1_787, %c2_788, %c0_789, %c0_790] : memref<4x10x10x2xf32, #tpu.memory_space<vmem>>, vector<1x8x8x2xf32>
    %1059 = vector.shape_cast %1058 : vector<1x8x8x2xf32> to vector<8x8x2xf32>
    %1060 = vector.broadcast %1057 : f32 to vector<8x8x2xf32>
    %1061 = arith.mulf %1060, %1059 : vector<8x8x2xf32>
    %1062 = arith.addf %1056, %1061 : vector<8x8x2xf32>
    %c88_791 = arith.constant 88 : index
    %1063 = memref.load %arg4[%c88_791] : memref<144xf32, #tpu.memory_space<smem>>
    %c1_792 = arith.constant 1 : index
    %c2_793 = arith.constant 2 : index
    %c1_794 = arith.constant 1 : index
    %c0_795 = arith.constant 0 : index
    %1064 = vector.load %arg13[%c1_792, %c2_793, %c1_794, %c0_795] : memref<4x10x10x2xf32, #tpu.memory_space<vmem>>, vector<1x8x8x2xf32>
    %1065 = vector.shape_cast %1064 : vector<1x8x8x2xf32> to vector<8x8x2xf32>
    %1066 = vector.broadcast %1063 : f32 to vector<8x8x2xf32>
    %1067 = arith.mulf %1066, %1065 : vector<8x8x2xf32>
    %1068 = arith.addf %1062, %1067 : vector<8x8x2xf32>
    %c89 = arith.constant 89 : index
    %1069 = memref.load %arg4[%c89] : memref<144xf32, #tpu.memory_space<smem>>
    %c1_796 = arith.constant 1 : index
    %c2_797 = arith.constant 2 : index
    %c2_798 = arith.constant 2 : index
    %c0_799 = arith.constant 0 : index
    %1070 = vector.load %arg13[%c1_796, %c2_797, %c2_798, %c0_799] : memref<4x10x10x2xf32, #tpu.memory_space<vmem>>, vector<1x8x8x2xf32>
    %1071 = vector.shape_cast %1070 : vector<1x8x8x2xf32> to vector<8x8x2xf32>
    %1072 = vector.broadcast %1069 : f32 to vector<8x8x2xf32>
    %1073 = arith.mulf %1072, %1071 : vector<8x8x2xf32>
    %1074 = arith.addf %1068, %1073 : vector<8x8x2xf32>
    %c90 = arith.constant 90 : index
    %1075 = memref.load %arg4[%c90] : memref<144xf32, #tpu.memory_space<smem>>
    %c2_800 = arith.constant 2 : index
    %c0_801 = arith.constant 0 : index
    %c0_802 = arith.constant 0 : index
    %c0_803 = arith.constant 0 : index
    %1076 = vector.load %arg13[%c2_800, %c0_801, %c0_802, %c0_803] : memref<4x10x10x2xf32, #tpu.memory_space<vmem>>, vector<1x8x8x2xf32>
    %1077 = vector.shape_cast %1076 : vector<1x8x8x2xf32> to vector<8x8x2xf32>
    %1078 = vector.broadcast %1075 : f32 to vector<8x8x2xf32>
    %1079 = arith.mulf %1078, %1077 : vector<8x8x2xf32>
    %1080 = arith.addf %1074, %1079 : vector<8x8x2xf32>
    %c91 = arith.constant 91 : index
    %1081 = memref.load %arg4[%c91] : memref<144xf32, #tpu.memory_space<smem>>
    %c2_804 = arith.constant 2 : index
    %c0_805 = arith.constant 0 : index
    %c1_806 = arith.constant 1 : index
    %c0_807 = arith.constant 0 : index
    %1082 = vector.load %arg13[%c2_804, %c0_805, %c1_806, %c0_807] : memref<4x10x10x2xf32, #tpu.memory_space<vmem>>, vector<1x8x8x2xf32>
    %1083 = vector.shape_cast %1082 : vector<1x8x8x2xf32> to vector<8x8x2xf32>
    %1084 = vector.broadcast %1081 : f32 to vector<8x8x2xf32>
    %1085 = arith.mulf %1084, %1083 : vector<8x8x2xf32>
    %1086 = arith.addf %1080, %1085 : vector<8x8x2xf32>
    %c92 = arith.constant 92 : index
    %1087 = memref.load %arg4[%c92] : memref<144xf32, #tpu.memory_space<smem>>
    %c2_808 = arith.constant 2 : index
    %c0_809 = arith.constant 0 : index
    %c2_810 = arith.constant 2 : index
    %c0_811 = arith.constant 0 : index
    %1088 = vector.load %arg13[%c2_808, %c0_809, %c2_810, %c0_811] : memref<4x10x10x2xf32, #tpu.memory_space<vmem>>, vector<1x8x8x2xf32>
    %1089 = vector.shape_cast %1088 : vector<1x8x8x2xf32> to vector<8x8x2xf32>
    %1090 = vector.broadcast %1087 : f32 to vector<8x8x2xf32>
    %1091 = arith.mulf %1090, %1089 : vector<8x8x2xf32>
    %1092 = arith.addf %1086, %1091 : vector<8x8x2xf32>
    %c93 = arith.constant 93 : index
    %1093 = memref.load %arg4[%c93] : memref<144xf32, #tpu.memory_space<smem>>
    %c2_812 = arith.constant 2 : index
    %c1_813 = arith.constant 1 : index
    %c0_814 = arith.constant 0 : index
    %c0_815 = arith.constant 0 : index
    %1094 = vector.load %arg13[%c2_812, %c1_813, %c0_814, %c0_815] : memref<4x10x10x2xf32, #tpu.memory_space<vmem>>, vector<1x8x8x2xf32>
    %1095 = vector.shape_cast %1094 : vector<1x8x8x2xf32> to vector<8x8x2xf32>
    %1096 = vector.broadcast %1093 : f32 to vector<8x8x2xf32>
    %1097 = arith.mulf %1096, %1095 : vector<8x8x2xf32>
    %1098 = arith.addf %1092, %1097 : vector<8x8x2xf32>
    %c94 = arith.constant 94 : index
    %1099 = memref.load %arg4[%c94] : memref<144xf32, #tpu.memory_space<smem>>
    %c2_816 = arith.constant 2 : index
    %c1_817 = arith.constant 1 : index
    %c1_818 = arith.constant 1 : index
    %c0_819 = arith.constant 0 : index
    %1100 = vector.load %arg13[%c2_816, %c1_817, %c1_818, %c0_819] : memref<4x10x10x2xf32, #tpu.memory_space<vmem>>, vector<1x8x8x2xf32>
    %1101 = vector.shape_cast %1100 : vector<1x8x8x2xf32> to vector<8x8x2xf32>
    %1102 = vector.broadcast %1099 : f32 to vector<8x8x2xf32>
    %1103 = arith.mulf %1102, %1101 : vector<8x8x2xf32>
    %1104 = arith.addf %1098, %1103 : vector<8x8x2xf32>
    %c95 = arith.constant 95 : index
    %1105 = memref.load %arg4[%c95] : memref<144xf32, #tpu.memory_space<smem>>
    %c2_820 = arith.constant 2 : index
    %c1_821 = arith.constant 1 : index
    %c2_822 = arith.constant 2 : index
    %c0_823 = arith.constant 0 : index
    %1106 = vector.load %arg13[%c2_820, %c1_821, %c2_822, %c0_823] : memref<4x10x10x2xf32, #tpu.memory_space<vmem>>, vector<1x8x8x2xf32>
    %1107 = vector.shape_cast %1106 : vector<1x8x8x2xf32> to vector<8x8x2xf32>
    %1108 = vector.broadcast %1105 : f32 to vector<8x8x2xf32>
    %1109 = arith.mulf %1108, %1107 : vector<8x8x2xf32>
    %1110 = arith.addf %1104, %1109 : vector<8x8x2xf32>
    %c96_824 = arith.constant 96 : index
    %1111 = memref.load %arg4[%c96_824] : memref<144xf32, #tpu.memory_space<smem>>
    %c2_825 = arith.constant 2 : index
    %c2_826 = arith.constant 2 : index
    %c0_827 = arith.constant 0 : index
    %c0_828 = arith.constant 0 : index
    %1112 = vector.load %arg13[%c2_825, %c2_826, %c0_827, %c0_828] : memref<4x10x10x2xf32, #tpu.memory_space<vmem>>, vector<1x8x8x2xf32>
    %1113 = vector.shape_cast %1112 : vector<1x8x8x2xf32> to vector<8x8x2xf32>
    %1114 = vector.broadcast %1111 : f32 to vector<8x8x2xf32>
    %1115 = arith.mulf %1114, %1113 : vector<8x8x2xf32>
    %1116 = arith.addf %1110, %1115 : vector<8x8x2xf32>
    %c97 = arith.constant 97 : index
    %1117 = memref.load %arg4[%c97] : memref<144xf32, #tpu.memory_space<smem>>
    %c2_829 = arith.constant 2 : index
    %c2_830 = arith.constant 2 : index
    %c1_831 = arith.constant 1 : index
    %c0_832 = arith.constant 0 : index
    %1118 = vector.load %arg13[%c2_829, %c2_830, %c1_831, %c0_832] : memref<4x10x10x2xf32, #tpu.memory_space<vmem>>, vector<1x8x8x2xf32>
    %1119 = vector.shape_cast %1118 : vector<1x8x8x2xf32> to vector<8x8x2xf32>
    %1120 = vector.broadcast %1117 : f32 to vector<8x8x2xf32>
    %1121 = arith.mulf %1120, %1119 : vector<8x8x2xf32>
    %1122 = arith.addf %1116, %1121 : vector<8x8x2xf32>
    %c98 = arith.constant 98 : index
    %1123 = memref.load %arg4[%c98] : memref<144xf32, #tpu.memory_space<smem>>
    %c2_833 = arith.constant 2 : index
    %c2_834 = arith.constant 2 : index
    %c2_835 = arith.constant 2 : index
    %c0_836 = arith.constant 0 : index
    %1124 = vector.load %arg13[%c2_833, %c2_834, %c2_835, %c0_836] : memref<4x10x10x2xf32, #tpu.memory_space<vmem>>, vector<1x8x8x2xf32>
    %1125 = vector.shape_cast %1124 : vector<1x8x8x2xf32> to vector<8x8x2xf32>
    %1126 = vector.broadcast %1123 : f32 to vector<8x8x2xf32>
    %1127 = arith.mulf %1126, %1125 : vector<8x8x2xf32>
    %1128 = arith.addf %1122, %1127 : vector<8x8x2xf32>
    %c99 = arith.constant 99 : index
    %1129 = memref.load %arg4[%c99] : memref<144xf32, #tpu.memory_space<smem>>
    %c3_837 = arith.constant 3 : index
    %c0_838 = arith.constant 0 : index
    %c0_839 = arith.constant 0 : index
    %c0_840 = arith.constant 0 : index
    %1130 = vector.load %arg13[%c3_837, %c0_838, %c0_839, %c0_840] : memref<4x10x10x2xf32, #tpu.memory_space<vmem>>, vector<1x8x8x2xf32>
    %1131 = vector.shape_cast %1130 : vector<1x8x8x2xf32> to vector<8x8x2xf32>
    %1132 = vector.broadcast %1129 : f32 to vector<8x8x2xf32>
    %1133 = arith.mulf %1132, %1131 : vector<8x8x2xf32>
    %1134 = arith.addf %1128, %1133 : vector<8x8x2xf32>
    %c100 = arith.constant 100 : index
    %1135 = memref.load %arg4[%c100] : memref<144xf32, #tpu.memory_space<smem>>
    %c3_841 = arith.constant 3 : index
    %c0_842 = arith.constant 0 : index
    %c1_843 = arith.constant 1 : index
    %c0_844 = arith.constant 0 : index
    %1136 = vector.load %arg13[%c3_841, %c0_842, %c1_843, %c0_844] : memref<4x10x10x2xf32, #tpu.memory_space<vmem>>, vector<1x8x8x2xf32>
    %1137 = vector.shape_cast %1136 : vector<1x8x8x2xf32> to vector<8x8x2xf32>
    %1138 = vector.broadcast %1135 : f32 to vector<8x8x2xf32>
    %1139 = arith.mulf %1138, %1137 : vector<8x8x2xf32>
    %1140 = arith.addf %1134, %1139 : vector<8x8x2xf32>
    %c101 = arith.constant 101 : index
    %1141 = memref.load %arg4[%c101] : memref<144xf32, #tpu.memory_space<smem>>
    %c3_845 = arith.constant 3 : index
    %c0_846 = arith.constant 0 : index
    %c2_847 = arith.constant 2 : index
    %c0_848 = arith.constant 0 : index
    %1142 = vector.load %arg13[%c3_845, %c0_846, %c2_847, %c0_848] : memref<4x10x10x2xf32, #tpu.memory_space<vmem>>, vector<1x8x8x2xf32>
    %1143 = vector.shape_cast %1142 : vector<1x8x8x2xf32> to vector<8x8x2xf32>
    %1144 = vector.broadcast %1141 : f32 to vector<8x8x2xf32>
    %1145 = arith.mulf %1144, %1143 : vector<8x8x2xf32>
    %1146 = arith.addf %1140, %1145 : vector<8x8x2xf32>
    %c102 = arith.constant 102 : index
    %1147 = memref.load %arg4[%c102] : memref<144xf32, #tpu.memory_space<smem>>
    %c3_849 = arith.constant 3 : index
    %c1_850 = arith.constant 1 : index
    %c0_851 = arith.constant 0 : index
    %c0_852 = arith.constant 0 : index
    %1148 = vector.load %arg13[%c3_849, %c1_850, %c0_851, %c0_852] : memref<4x10x10x2xf32, #tpu.memory_space<vmem>>, vector<1x8x8x2xf32>
    %1149 = vector.shape_cast %1148 : vector<1x8x8x2xf32> to vector<8x8x2xf32>
    %1150 = vector.broadcast %1147 : f32 to vector<8x8x2xf32>
    %1151 = arith.mulf %1150, %1149 : vector<8x8x2xf32>
    %1152 = arith.addf %1146, %1151 : vector<8x8x2xf32>
    %c103 = arith.constant 103 : index
    %1153 = memref.load %arg4[%c103] : memref<144xf32, #tpu.memory_space<smem>>
    %c3_853 = arith.constant 3 : index
    %c1_854 = arith.constant 1 : index
    %c1_855 = arith.constant 1 : index
    %c0_856 = arith.constant 0 : index
    %1154 = vector.load %arg13[%c3_853, %c1_854, %c1_855, %c0_856] : memref<4x10x10x2xf32, #tpu.memory_space<vmem>>, vector<1x8x8x2xf32>
    %1155 = vector.shape_cast %1154 : vector<1x8x8x2xf32> to vector<8x8x2xf32>
    %1156 = vector.broadcast %1153 : f32 to vector<8x8x2xf32>
    %1157 = arith.mulf %1156, %1155 : vector<8x8x2xf32>
    %1158 = arith.addf %1152, %1157 : vector<8x8x2xf32>
    %c104_857 = arith.constant 104 : index
    %1159 = memref.load %arg4[%c104_857] : memref<144xf32, #tpu.memory_space<smem>>
    %c3_858 = arith.constant 3 : index
    %c1_859 = arith.constant 1 : index
    %c2_860 = arith.constant 2 : index
    %c0_861 = arith.constant 0 : index
    %1160 = vector.load %arg13[%c3_858, %c1_859, %c2_860, %c0_861] : memref<4x10x10x2xf32, #tpu.memory_space<vmem>>, vector<1x8x8x2xf32>
    %1161 = vector.shape_cast %1160 : vector<1x8x8x2xf32> to vector<8x8x2xf32>
    %1162 = vector.broadcast %1159 : f32 to vector<8x8x2xf32>
    %1163 = arith.mulf %1162, %1161 : vector<8x8x2xf32>
    %1164 = arith.addf %1158, %1163 : vector<8x8x2xf32>
    %c105 = arith.constant 105 : index
    %1165 = memref.load %arg4[%c105] : memref<144xf32, #tpu.memory_space<smem>>
    %c3_862 = arith.constant 3 : index
    %c2_863 = arith.constant 2 : index
    %c0_864 = arith.constant 0 : index
    %c0_865 = arith.constant 0 : index
    %1166 = vector.load %arg13[%c3_862, %c2_863, %c0_864, %c0_865] : memref<4x10x10x2xf32, #tpu.memory_space<vmem>>, vector<1x8x8x2xf32>
    %1167 = vector.shape_cast %1166 : vector<1x8x8x2xf32> to vector<8x8x2xf32>
    %1168 = vector.broadcast %1165 : f32 to vector<8x8x2xf32>
    %1169 = arith.mulf %1168, %1167 : vector<8x8x2xf32>
    %1170 = arith.addf %1164, %1169 : vector<8x8x2xf32>
    %c106 = arith.constant 106 : index
    %1171 = memref.load %arg4[%c106] : memref<144xf32, #tpu.memory_space<smem>>
    %c3_866 = arith.constant 3 : index
    %c2_867 = arith.constant 2 : index
    %c1_868 = arith.constant 1 : index
    %c0_869 = arith.constant 0 : index
    %1172 = vector.load %arg13[%c3_866, %c2_867, %c1_868, %c0_869] : memref<4x10x10x2xf32, #tpu.memory_space<vmem>>, vector<1x8x8x2xf32>
    %1173 = vector.shape_cast %1172 : vector<1x8x8x2xf32> to vector<8x8x2xf32>
    %1174 = vector.broadcast %1171 : f32 to vector<8x8x2xf32>
    %1175 = arith.mulf %1174, %1173 : vector<8x8x2xf32>
    %1176 = arith.addf %1170, %1175 : vector<8x8x2xf32>
    %c107 = arith.constant 107 : index
    %1177 = memref.load %arg4[%c107] : memref<144xf32, #tpu.memory_space<smem>>
    %c3_870 = arith.constant 3 : index
    %c2_871 = arith.constant 2 : index
    %c2_872 = arith.constant 2 : index
    %c0_873 = arith.constant 0 : index
    %1178 = vector.load %arg13[%c3_870, %c2_871, %c2_872, %c0_873] : memref<4x10x10x2xf32, #tpu.memory_space<vmem>>, vector<1x8x8x2xf32>
    %1179 = vector.shape_cast %1178 : vector<1x8x8x2xf32> to vector<8x8x2xf32>
    %1180 = vector.broadcast %1177 : f32 to vector<8x8x2xf32>
    %1181 = arith.mulf %1180, %1179 : vector<8x8x2xf32>
    %1182 = arith.addf %1176, %1181 : vector<8x8x2xf32>
    %c2_874 = arith.constant 2 : index
    %1183 = memref.load %arg5[%c2_874] : memref<4xf32, #tpu.memory_space<smem>>
    %1184 = vector.broadcast %1183 : f32 to vector<8x8x2xf32>
    %1185 = arith.addf %1182, %1184 : vector<8x8x2xf32>
    %cst_875 = arith.constant 0.000000e+00 : f32
    %1186 = vector.broadcast %cst_875 : f32 to vector<8x8x2xf32>
    %1187 = arith.maximumf %1185, %1186 : vector<8x8x2xf32>
    %1188 = vector.extract_strided_slice %1187 {offsets = [0, 0, 0], sizes = [1, 8, 2], strides = [1, 1, 1]} : vector<8x8x2xf32> to vector<1x8x2xf32>
    %1189 = vector.shape_cast %1188 : vector<1x8x2xf32> to vector<8x2xf32>
    %c128 = arith.constant 128 : index
    %c0_876 = arith.constant 0 : index
    %1190 = vector.load %arg14[%c128, %c0_876] : memref<256x2xf32, #tpu.memory_space<vmem>>, vector<8x2xf32>
    tpu.vector_store %arg14[%c128, %c0_876], %1189 {strides = array<i32>} : memref<256x2xf32, #tpu.memory_space<vmem>>, vector<8x2xf32>,
    %1191 = vector.extract_strided_slice %1187 {offsets = [1, 0, 0], sizes = [1, 8, 2], strides = [1, 1, 1]} : vector<8x8x2xf32> to vector<1x8x2xf32>
    %1192 = vector.shape_cast %1191 : vector<1x8x2xf32> to vector<8x2xf32>
    %c136 = arith.constant 136 : index
    %c0_877 = arith.constant 0 : index
    %1193 = vector.load %arg14[%c136, %c0_877] : memref<256x2xf32, #tpu.memory_space<vmem>>, vector<8x2xf32>
    tpu.vector_store %arg14[%c136, %c0_877], %1192 {strides = array<i32>} : memref<256x2xf32, #tpu.memory_space<vmem>>, vector<8x2xf32>,
    %1194 = vector.extract_strided_slice %1187 {offsets = [2, 0, 0], sizes = [1, 8, 2], strides = [1, 1, 1]} : vector<8x8x2xf32> to vector<1x8x2xf32>
    %1195 = vector.shape_cast %1194 : vector<1x8x2xf32> to vector<8x2xf32>
    %c144 = arith.constant 144 : index
    %c0_878 = arith.constant 0 : index
    %1196 = vector.load %arg14[%c144, %c0_878] : memref<256x2xf32, #tpu.memory_space<vmem>>, vector<8x2xf32>
    tpu.vector_store %arg14[%c144, %c0_878], %1195 {strides = array<i32>} : memref<256x2xf32, #tpu.memory_space<vmem>>, vector<8x2xf32>,
    %1197 = vector.extract_strided_slice %1187 {offsets = [3, 0, 0], sizes = [1, 8, 2], strides = [1, 1, 1]} : vector<8x8x2xf32> to vector<1x8x2xf32>
    %1198 = vector.shape_cast %1197 : vector<1x8x2xf32> to vector<8x2xf32>
    %c152 = arith.constant 152 : index
    %c0_879 = arith.constant 0 : index
    %1199 = vector.load %arg14[%c152, %c0_879] : memref<256x2xf32, #tpu.memory_space<vmem>>, vector<8x2xf32>
    tpu.vector_store %arg14[%c152, %c0_879], %1198 {strides = array<i32>} : memref<256x2xf32, #tpu.memory_space<vmem>>, vector<8x2xf32>,
    %1200 = vector.extract_strided_slice %1187 {offsets = [4, 0, 0], sizes = [1, 8, 2], strides = [1, 1, 1]} : vector<8x8x2xf32> to vector<1x8x2xf32>
    %1201 = vector.shape_cast %1200 : vector<1x8x2xf32> to vector<8x2xf32>
    %c160 = arith.constant 160 : index
    %c0_880 = arith.constant 0 : index
    %1202 = vector.load %arg14[%c160, %c0_880] : memref<256x2xf32, #tpu.memory_space<vmem>>, vector<8x2xf32>
    tpu.vector_store %arg14[%c160, %c0_880], %1201 {strides = array<i32>} : memref<256x2xf32, #tpu.memory_space<vmem>>, vector<8x2xf32>,
    %1203 = vector.extract_strided_slice %1187 {offsets = [5, 0, 0], sizes = [1, 8, 2], strides = [1, 1, 1]} : vector<8x8x2xf32> to vector<1x8x2xf32>
    %1204 = vector.shape_cast %1203 : vector<1x8x2xf32> to vector<8x2xf32>
    %c168 = arith.constant 168 : index
    %c0_881 = arith.constant 0 : index
    %1205 = vector.load %arg14[%c168, %c0_881] : memref<256x2xf32, #tpu.memory_space<vmem>>, vector<8x2xf32>
    tpu.vector_store %arg14[%c168, %c0_881], %1204 {strides = array<i32>} : memref<256x2xf32, #tpu.memory_space<vmem>>, vector<8x2xf32>,
    %1206 = vector.extract_strided_slice %1187 {offsets = [6, 0, 0], sizes = [1, 8, 2], strides = [1, 1, 1]} : vector<8x8x2xf32> to vector<1x8x2xf32>
    %1207 = vector.shape_cast %1206 : vector<1x8x2xf32> to vector<8x2xf32>
    %c176 = arith.constant 176 : index
    %c0_882 = arith.constant 0 : index
    %1208 = vector.load %arg14[%c176, %c0_882] : memref<256x2xf32, #tpu.memory_space<vmem>>, vector<8x2xf32>
    tpu.vector_store %arg14[%c176, %c0_882], %1207 {strides = array<i32>} : memref<256x2xf32, #tpu.memory_space<vmem>>, vector<8x2xf32>,
    %1209 = vector.extract_strided_slice %1187 {offsets = [7, 0, 0], sizes = [1, 8, 2], strides = [1, 1, 1]} : vector<8x8x2xf32> to vector<1x8x2xf32>
    %1210 = vector.shape_cast %1209 : vector<1x8x2xf32> to vector<8x2xf32>
    %c184 = arith.constant 184 : index
    %c0_883 = arith.constant 0 : index
    %1211 = vector.load %arg14[%c184, %c0_883] : memref<256x2xf32, #tpu.memory_space<vmem>>, vector<8x2xf32>
    tpu.vector_store %arg14[%c184, %c0_883], %1210 {strides = array<i32>} : memref<256x2xf32, #tpu.memory_space<vmem>>, vector<8x2xf32>,
    %cst_884 = arith.constant 0.000000e+00 : f32
    %1212 = vector.broadcast %cst_884 : f32 to vector<8x8x2xf32>
    %c108 = arith.constant 108 : index
    %1213 = memref.load %arg4[%c108] : memref<144xf32, #tpu.memory_space<smem>>
    %c0_885 = arith.constant 0 : index
    %c0_886 = arith.constant 0 : index
    %c0_887 = arith.constant 0 : index
    %c0_888 = arith.constant 0 : index
    %1214 = vector.load %arg13[%c0_885, %c0_886, %c0_887, %c0_888] : memref<4x10x10x2xf32, #tpu.memory_space<vmem>>, vector<1x8x8x2xf32>
    %1215 = vector.shape_cast %1214 : vector<1x8x8x2xf32> to vector<8x8x2xf32>
    %1216 = vector.broadcast %1213 : f32 to vector<8x8x2xf32>
    %1217 = arith.mulf %1216, %1215 : vector<8x8x2xf32>
    %1218 = arith.addf %1212, %1217 : vector<8x8x2xf32>
    %c109 = arith.constant 109 : index
    %1219 = memref.load %arg4[%c109] : memref<144xf32, #tpu.memory_space<smem>>
    %c0_889 = arith.constant 0 : index
    %c0_890 = arith.constant 0 : index
    %c1_891 = arith.constant 1 : index
    %c0_892 = arith.constant 0 : index
    %1220 = vector.load %arg13[%c0_889, %c0_890, %c1_891, %c0_892] : memref<4x10x10x2xf32, #tpu.memory_space<vmem>>, vector<1x8x8x2xf32>
    %1221 = vector.shape_cast %1220 : vector<1x8x8x2xf32> to vector<8x8x2xf32>
    %1222 = vector.broadcast %1219 : f32 to vector<8x8x2xf32>
    %1223 = arith.mulf %1222, %1221 : vector<8x8x2xf32>
    %1224 = arith.addf %1218, %1223 : vector<8x8x2xf32>
    %c110 = arith.constant 110 : index
    %1225 = memref.load %arg4[%c110] : memref<144xf32, #tpu.memory_space<smem>>
    %c0_893 = arith.constant 0 : index
    %c0_894 = arith.constant 0 : index
    %c2_895 = arith.constant 2 : index
    %c0_896 = arith.constant 0 : index
    %1226 = vector.load %arg13[%c0_893, %c0_894, %c2_895, %c0_896] : memref<4x10x10x2xf32, #tpu.memory_space<vmem>>, vector<1x8x8x2xf32>
    %1227 = vector.shape_cast %1226 : vector<1x8x8x2xf32> to vector<8x8x2xf32>
    %1228 = vector.broadcast %1225 : f32 to vector<8x8x2xf32>
    %1229 = arith.mulf %1228, %1227 : vector<8x8x2xf32>
    %1230 = arith.addf %1224, %1229 : vector<8x8x2xf32>
    %c111 = arith.constant 111 : index
    %1231 = memref.load %arg4[%c111] : memref<144xf32, #tpu.memory_space<smem>>
    %c0_897 = arith.constant 0 : index
    %c1_898 = arith.constant 1 : index
    %c0_899 = arith.constant 0 : index
    %c0_900 = arith.constant 0 : index
    %1232 = vector.load %arg13[%c0_897, %c1_898, %c0_899, %c0_900] : memref<4x10x10x2xf32, #tpu.memory_space<vmem>>, vector<1x8x8x2xf32>
    %1233 = vector.shape_cast %1232 : vector<1x8x8x2xf32> to vector<8x8x2xf32>
    %1234 = vector.broadcast %1231 : f32 to vector<8x8x2xf32>
    %1235 = arith.mulf %1234, %1233 : vector<8x8x2xf32>
    %1236 = arith.addf %1230, %1235 : vector<8x8x2xf32>
    %c112_901 = arith.constant 112 : index
    %1237 = memref.load %arg4[%c112_901] : memref<144xf32, #tpu.memory_space<smem>>
    %c0_902 = arith.constant 0 : index
    %c1_903 = arith.constant 1 : index
    %c1_904 = arith.constant 1 : index
    %c0_905 = arith.constant 0 : index
    %1238 = vector.load %arg13[%c0_902, %c1_903, %c1_904, %c0_905] : memref<4x10x10x2xf32, #tpu.memory_space<vmem>>, vector<1x8x8x2xf32>
    %1239 = vector.shape_cast %1238 : vector<1x8x8x2xf32> to vector<8x8x2xf32>
    %1240 = vector.broadcast %1237 : f32 to vector<8x8x2xf32>
    %1241 = arith.mulf %1240, %1239 : vector<8x8x2xf32>
    %1242 = arith.addf %1236, %1241 : vector<8x8x2xf32>
    %c113 = arith.constant 113 : index
    %1243 = memref.load %arg4[%c113] : memref<144xf32, #tpu.memory_space<smem>>
    %c0_906 = arith.constant 0 : index
    %c1_907 = arith.constant 1 : index
    %c2_908 = arith.constant 2 : index
    %c0_909 = arith.constant 0 : index
    %1244 = vector.load %arg13[%c0_906, %c1_907, %c2_908, %c0_909] : memref<4x10x10x2xf32, #tpu.memory_space<vmem>>, vector<1x8x8x2xf32>
    %1245 = vector.shape_cast %1244 : vector<1x8x8x2xf32> to vector<8x8x2xf32>
    %1246 = vector.broadcast %1243 : f32 to vector<8x8x2xf32>
    %1247 = arith.mulf %1246, %1245 : vector<8x8x2xf32>
    %1248 = arith.addf %1242, %1247 : vector<8x8x2xf32>
    %c114 = arith.constant 114 : index
    %1249 = memref.load %arg4[%c114] : memref<144xf32, #tpu.memory_space<smem>>
    %c0_910 = arith.constant 0 : index
    %c2_911 = arith.constant 2 : index
    %c0_912 = arith.constant 0 : index
    %c0_913 = arith.constant 0 : index
    %1250 = vector.load %arg13[%c0_910, %c2_911, %c0_912, %c0_913] : memref<4x10x10x2xf32, #tpu.memory_space<vmem>>, vector<1x8x8x2xf32>
    %1251 = vector.shape_cast %1250 : vector<1x8x8x2xf32> to vector<8x8x2xf32>
    %1252 = vector.broadcast %1249 : f32 to vector<8x8x2xf32>
    %1253 = arith.mulf %1252, %1251 : vector<8x8x2xf32>
    %1254 = arith.addf %1248, %1253 : vector<8x8x2xf32>
    %c115 = arith.constant 115 : index
    %1255 = memref.load %arg4[%c115] : memref<144xf32, #tpu.memory_space<smem>>
    %c0_914 = arith.constant 0 : index
    %c2_915 = arith.constant 2 : index
    %c1_916 = arith.constant 1 : index
    %c0_917 = arith.constant 0 : index
    %1256 = vector.load %arg13[%c0_914, %c2_915, %c1_916, %c0_917] : memref<4x10x10x2xf32, #tpu.memory_space<vmem>>, vector<1x8x8x2xf32>
    %1257 = vector.shape_cast %1256 : vector<1x8x8x2xf32> to vector<8x8x2xf32>
    %1258 = vector.broadcast %1255 : f32 to vector<8x8x2xf32>
    %1259 = arith.mulf %1258, %1257 : vector<8x8x2xf32>
    %1260 = arith.addf %1254, %1259 : vector<8x8x2xf32>
    %c116 = arith.constant 116 : index
    %1261 = memref.load %arg4[%c116] : memref<144xf32, #tpu.memory_space<smem>>
    %c0_918 = arith.constant 0 : index
    %c2_919 = arith.constant 2 : index
    %c2_920 = arith.constant 2 : index
    %c0_921 = arith.constant 0 : index
    %1262 = vector.load %arg13[%c0_918, %c2_919, %c2_920, %c0_921] : memref<4x10x10x2xf32, #tpu.memory_space<vmem>>, vector<1x8x8x2xf32>
    %1263 = vector.shape_cast %1262 : vector<1x8x8x2xf32> to vector<8x8x2xf32>
    %1264 = vector.broadcast %1261 : f32 to vector<8x8x2xf32>
    %1265 = arith.mulf %1264, %1263 : vector<8x8x2xf32>
    %1266 = arith.addf %1260, %1265 : vector<8x8x2xf32>
    %c117 = arith.constant 117 : index
    %1267 = memref.load %arg4[%c117] : memref<144xf32, #tpu.memory_space<smem>>
    %c1_922 = arith.constant 1 : index
    %c0_923 = arith.constant 0 : index
    %c0_924 = arith.constant 0 : index
    %c0_925 = arith.constant 0 : index
    %1268 = vector.load %arg13[%c1_922, %c0_923, %c0_924, %c0_925] : memref<4x10x10x2xf32, #tpu.memory_space<vmem>>, vector<1x8x8x2xf32>
    %1269 = vector.shape_cast %1268 : vector<1x8x8x2xf32> to vector<8x8x2xf32>
    %1270 = vector.broadcast %1267 : f32 to vector<8x8x2xf32>
    %1271 = arith.mulf %1270, %1269 : vector<8x8x2xf32>
    %1272 = arith.addf %1266, %1271 : vector<8x8x2xf32>
    %c118 = arith.constant 118 : index
    %1273 = memref.load %arg4[%c118] : memref<144xf32, #tpu.memory_space<smem>>
    %c1_926 = arith.constant 1 : index
    %c0_927 = arith.constant 0 : index
    %c1_928 = arith.constant 1 : index
    %c0_929 = arith.constant 0 : index
    %1274 = vector.load %arg13[%c1_926, %c0_927, %c1_928, %c0_929] : memref<4x10x10x2xf32, #tpu.memory_space<vmem>>, vector<1x8x8x2xf32>
    %1275 = vector.shape_cast %1274 : vector<1x8x8x2xf32> to vector<8x8x2xf32>
    %1276 = vector.broadcast %1273 : f32 to vector<8x8x2xf32>
    %1277 = arith.mulf %1276, %1275 : vector<8x8x2xf32>
    %1278 = arith.addf %1272, %1277 : vector<8x8x2xf32>
    %c119 = arith.constant 119 : index
    %1279 = memref.load %arg4[%c119] : memref<144xf32, #tpu.memory_space<smem>>
    %c1_930 = arith.constant 1 : index
    %c0_931 = arith.constant 0 : index
    %c2_932 = arith.constant 2 : index
    %c0_933 = arith.constant 0 : index
    %1280 = vector.load %arg13[%c1_930, %c0_931, %c2_932, %c0_933] : memref<4x10x10x2xf32, #tpu.memory_space<vmem>>, vector<1x8x8x2xf32>
    %1281 = vector.shape_cast %1280 : vector<1x8x8x2xf32> to vector<8x8x2xf32>
    %1282 = vector.broadcast %1279 : f32 to vector<8x8x2xf32>
    %1283 = arith.mulf %1282, %1281 : vector<8x8x2xf32>
    %1284 = arith.addf %1278, %1283 : vector<8x8x2xf32>
    %c120_934 = arith.constant 120 : index
    %1285 = memref.load %arg4[%c120_934] : memref<144xf32, #tpu.memory_space<smem>>
    %c1_935 = arith.constant 1 : index
    %c1_936 = arith.constant 1 : index
    %c0_937 = arith.constant 0 : index
    %c0_938 = arith.constant 0 : index
    %1286 = vector.load %arg13[%c1_935, %c1_936, %c0_937, %c0_938] : memref<4x10x10x2xf32, #tpu.memory_space<vmem>>, vector<1x8x8x2xf32>
    %1287 = vector.shape_cast %1286 : vector<1x8x8x2xf32> to vector<8x8x2xf32>
    %1288 = vector.broadcast %1285 : f32 to vector<8x8x2xf32>
    %1289 = arith.mulf %1288, %1287 : vector<8x8x2xf32>
    %1290 = arith.addf %1284, %1289 : vector<8x8x2xf32>
    %c121 = arith.constant 121 : index
    %1291 = memref.load %arg4[%c121] : memref<144xf32, #tpu.memory_space<smem>>
    %c1_939 = arith.constant 1 : index
    %c1_940 = arith.constant 1 : index
    %c1_941 = arith.constant 1 : index
    %c0_942 = arith.constant 0 : index
    %1292 = vector.load %arg13[%c1_939, %c1_940, %c1_941, %c0_942] : memref<4x10x10x2xf32, #tpu.memory_space<vmem>>, vector<1x8x8x2xf32>
    %1293 = vector.shape_cast %1292 : vector<1x8x8x2xf32> to vector<8x8x2xf32>
    %1294 = vector.broadcast %1291 : f32 to vector<8x8x2xf32>
    %1295 = arith.mulf %1294, %1293 : vector<8x8x2xf32>
    %1296 = arith.addf %1290, %1295 : vector<8x8x2xf32>
    %c122 = arith.constant 122 : index
    %1297 = memref.load %arg4[%c122] : memref<144xf32, #tpu.memory_space<smem>>
    %c1_943 = arith.constant 1 : index
    %c1_944 = arith.constant 1 : index
    %c2_945 = arith.constant 2 : index
    %c0_946 = arith.constant 0 : index
    %1298 = vector.load %arg13[%c1_943, %c1_944, %c2_945, %c0_946] : memref<4x10x10x2xf32, #tpu.memory_space<vmem>>, vector<1x8x8x2xf32>
    %1299 = vector.shape_cast %1298 : vector<1x8x8x2xf32> to vector<8x8x2xf32>
    %1300 = vector.broadcast %1297 : f32 to vector<8x8x2xf32>
    %1301 = arith.mulf %1300, %1299 : vector<8x8x2xf32>
    %1302 = arith.addf %1296, %1301 : vector<8x8x2xf32>
    %c123 = arith.constant 123 : index
    %1303 = memref.load %arg4[%c123] : memref<144xf32, #tpu.memory_space<smem>>
    %c1_947 = arith.constant 1 : index
    %c2_948 = arith.constant 2 : index
    %c0_949 = arith.constant 0 : index
    %c0_950 = arith.constant 0 : index
    %1304 = vector.load %arg13[%c1_947, %c2_948, %c0_949, %c0_950] : memref<4x10x10x2xf32, #tpu.memory_space<vmem>>, vector<1x8x8x2xf32>
    %1305 = vector.shape_cast %1304 : vector<1x8x8x2xf32> to vector<8x8x2xf32>
    %1306 = vector.broadcast %1303 : f32 to vector<8x8x2xf32>
    %1307 = arith.mulf %1306, %1305 : vector<8x8x2xf32>
    %1308 = arith.addf %1302, %1307 : vector<8x8x2xf32>
    %c124 = arith.constant 124 : index
    %1309 = memref.load %arg4[%c124] : memref<144xf32, #tpu.memory_space<smem>>
    %c1_951 = arith.constant 1 : index
    %c2_952 = arith.constant 2 : index
    %c1_953 = arith.constant 1 : index
    %c0_954 = arith.constant 0 : index
    %1310 = vector.load %arg13[%c1_951, %c2_952, %c1_953, %c0_954] : memref<4x10x10x2xf32, #tpu.memory_space<vmem>>, vector<1x8x8x2xf32>
    %1311 = vector.shape_cast %1310 : vector<1x8x8x2xf32> to vector<8x8x2xf32>
    %1312 = vector.broadcast %1309 : f32 to vector<8x8x2xf32>
    %1313 = arith.mulf %1312, %1311 : vector<8x8x2xf32>
    %1314 = arith.addf %1308, %1313 : vector<8x8x2xf32>
    %c125 = arith.constant 125 : index
    %1315 = memref.load %arg4[%c125] : memref<144xf32, #tpu.memory_space<smem>>
    %c1_955 = arith.constant 1 : index
    %c2_956 = arith.constant 2 : index
    %c2_957 = arith.constant 2 : index
    %c0_958 = arith.constant 0 : index
    %1316 = vector.load %arg13[%c1_955, %c2_956, %c2_957, %c0_958] : memref<4x10x10x2xf32, #tpu.memory_space<vmem>>, vector<1x8x8x2xf32>
    %1317 = vector.shape_cast %1316 : vector<1x8x8x2xf32> to vector<8x8x2xf32>
    %1318 = vector.broadcast %1315 : f32 to vector<8x8x2xf32>
    %1319 = arith.mulf %1318, %1317 : vector<8x8x2xf32>
    %1320 = arith.addf %1314, %1319 : vector<8x8x2xf32>
    %c126 = arith.constant 126 : index
    %1321 = memref.load %arg4[%c126] : memref<144xf32, #tpu.memory_space<smem>>
    %c2_959 = arith.constant 2 : index
    %c0_960 = arith.constant 0 : index
    %c0_961 = arith.constant 0 : index
    %c0_962 = arith.constant 0 : index
    %1322 = vector.load %arg13[%c2_959, %c0_960, %c0_961, %c0_962] : memref<4x10x10x2xf32, #tpu.memory_space<vmem>>, vector<1x8x8x2xf32>
    %1323 = vector.shape_cast %1322 : vector<1x8x8x2xf32> to vector<8x8x2xf32>
    %1324 = vector.broadcast %1321 : f32 to vector<8x8x2xf32>
    %1325 = arith.mulf %1324, %1323 : vector<8x8x2xf32>
    %1326 = arith.addf %1320, %1325 : vector<8x8x2xf32>
    %c127 = arith.constant 127 : index
    %1327 = memref.load %arg4[%c127] : memref<144xf32, #tpu.memory_space<smem>>
    %c2_963 = arith.constant 2 : index
    %c0_964 = arith.constant 0 : index
    %c1_965 = arith.constant 1 : index
    %c0_966 = arith.constant 0 : index
    %1328 = vector.load %arg13[%c2_963, %c0_964, %c1_965, %c0_966] : memref<4x10x10x2xf32, #tpu.memory_space<vmem>>, vector<1x8x8x2xf32>
    %1329 = vector.shape_cast %1328 : vector<1x8x8x2xf32> to vector<8x8x2xf32>
    %1330 = vector.broadcast %1327 : f32 to vector<8x8x2xf32>
    %1331 = arith.mulf %1330, %1329 : vector<8x8x2xf32>
    %1332 = arith.addf %1326, %1331 : vector<8x8x2xf32>
    %c128_967 = arith.constant 128 : index
    %1333 = memref.load %arg4[%c128_967] : memref<144xf32, #tpu.memory_space<smem>>
    %c2_968 = arith.constant 2 : index
    %c0_969 = arith.constant 0 : index
    %c2_970 = arith.constant 2 : index
    %c0_971 = arith.constant 0 : index
    %1334 = vector.load %arg13[%c2_968, %c0_969, %c2_970, %c0_971] : memref<4x10x10x2xf32, #tpu.memory_space<vmem>>, vector<1x8x8x2xf32>
    %1335 = vector.shape_cast %1334 : vector<1x8x8x2xf32> to vector<8x8x2xf32>
    %1336 = vector.broadcast %1333 : f32 to vector<8x8x2xf32>
    %1337 = arith.mulf %1336, %1335 : vector<8x8x2xf32>
    %1338 = arith.addf %1332, %1337 : vector<8x8x2xf32>
    %c129 = arith.constant 129 : index
    %1339 = memref.load %arg4[%c129] : memref<144xf32, #tpu.memory_space<smem>>
    %c2_972 = arith.constant 2 : index
    %c1_973 = arith.constant 1 : index
    %c0_974 = arith.constant 0 : index
    %c0_975 = arith.constant 0 : index
    %1340 = vector.load %arg13[%c2_972, %c1_973, %c0_974, %c0_975] : memref<4x10x10x2xf32, #tpu.memory_space<vmem>>, vector<1x8x8x2xf32>
    %1341 = vector.shape_cast %1340 : vector<1x8x8x2xf32> to vector<8x8x2xf32>
    %1342 = vector.broadcast %1339 : f32 to vector<8x8x2xf32>
    %1343 = arith.mulf %1342, %1341 : vector<8x8x2xf32>
    %1344 = arith.addf %1338, %1343 : vector<8x8x2xf32>
    %c130 = arith.constant 130 : index
    %1345 = memref.load %arg4[%c130] : memref<144xf32, #tpu.memory_space<smem>>
    %c2_976 = arith.constant 2 : index
    %c1_977 = arith.constant 1 : index
    %c1_978 = arith.constant 1 : index
    %c0_979 = arith.constant 0 : index
    %1346 = vector.load %arg13[%c2_976, %c1_977, %c1_978, %c0_979] : memref<4x10x10x2xf32, #tpu.memory_space<vmem>>, vector<1x8x8x2xf32>
    %1347 = vector.shape_cast %1346 : vector<1x8x8x2xf32> to vector<8x8x2xf32>
    %1348 = vector.broadcast %1345 : f32 to vector<8x8x2xf32>
    %1349 = arith.mulf %1348, %1347 : vector<8x8x2xf32>
    %1350 = arith.addf %1344, %1349 : vector<8x8x2xf32>
    %c131 = arith.constant 131 : index
    %1351 = memref.load %arg4[%c131] : memref<144xf32, #tpu.memory_space<smem>>
    %c2_980 = arith.constant 2 : index
    %c1_981 = arith.constant 1 : index
    %c2_982 = arith.constant 2 : index
    %c0_983 = arith.constant 0 : index
    %1352 = vector.load %arg13[%c2_980, %c1_981, %c2_982, %c0_983] : memref<4x10x10x2xf32, #tpu.memory_space<vmem>>, vector<1x8x8x2xf32>
    %1353 = vector.shape_cast %1352 : vector<1x8x8x2xf32> to vector<8x8x2xf32>
    %1354 = vector.broadcast %1351 : f32 to vector<8x8x2xf32>
    %1355 = arith.mulf %1354, %1353 : vector<8x8x2xf32>
    %1356 = arith.addf %1350, %1355 : vector<8x8x2xf32>
    %c132 = arith.constant 132 : index
    %1357 = memref.load %arg4[%c132] : memref<144xf32, #tpu.memory_space<smem>>
    %c2_984 = arith.constant 2 : index
    %c2_985 = arith.constant 2 : index
    %c0_986 = arith.constant 0 : index
    %c0_987 = arith.constant 0 : index
    %1358 = vector.load %arg13[%c2_984, %c2_985, %c0_986, %c0_987] : memref<4x10x10x2xf32, #tpu.memory_space<vmem>>, vector<1x8x8x2xf32>
    %1359 = vector.shape_cast %1358 : vector<1x8x8x2xf32> to vector<8x8x2xf32>
    %1360 = vector.broadcast %1357 : f32 to vector<8x8x2xf32>
    %1361 = arith.mulf %1360, %1359 : vector<8x8x2xf32>
    %1362 = arith.addf %1356, %1361 : vector<8x8x2xf32>
    %c133 = arith.constant 133 : index
    %1363 = memref.load %arg4[%c133] : memref<144xf32, #tpu.memory_space<smem>>
    %c2_988 = arith.constant 2 : index
    %c2_989 = arith.constant 2 : index
    %c1_990 = arith.constant 1 : index
    %c0_991 = arith.constant 0 : index
    %1364 = vector.load %arg13[%c2_988, %c2_989, %c1_990, %c0_991] : memref<4x10x10x2xf32, #tpu.memory_space<vmem>>, vector<1x8x8x2xf32>
    %1365 = vector.shape_cast %1364 : vector<1x8x8x2xf32> to vector<8x8x2xf32>
    %1366 = vector.broadcast %1363 : f32 to vector<8x8x2xf32>
    %1367 = arith.mulf %1366, %1365 : vector<8x8x2xf32>
    %1368 = arith.addf %1362, %1367 : vector<8x8x2xf32>
    %c134 = arith.constant 134 : index
    %1369 = memref.load %arg4[%c134] : memref<144xf32, #tpu.memory_space<smem>>
    %c2_992 = arith.constant 2 : index
    %c2_993 = arith.constant 2 : index
    %c2_994 = arith.constant 2 : index
    %c0_995 = arith.constant 0 : index
    %1370 = vector.load %arg13[%c2_992, %c2_993, %c2_994, %c0_995] : memref<4x10x10x2xf32, #tpu.memory_space<vmem>>, vector<1x8x8x2xf32>
    %1371 = vector.shape_cast %1370 : vector<1x8x8x2xf32> to vector<8x8x2xf32>
    %1372 = vector.broadcast %1369 : f32 to vector<8x8x2xf32>
    %1373 = arith.mulf %1372, %1371 : vector<8x8x2xf32>
    %1374 = arith.addf %1368, %1373 : vector<8x8x2xf32>
    %c135 = arith.constant 135 : index
    %1375 = memref.load %arg4[%c135] : memref<144xf32, #tpu.memory_space<smem>>
    %c3_996 = arith.constant 3 : index
    %c0_997 = arith.constant 0 : index
    %c0_998 = arith.constant 0 : index
    %c0_999 = arith.constant 0 : index
    %1376 = vector.load %arg13[%c3_996, %c0_997, %c0_998, %c0_999] : memref<4x10x10x2xf32, #tpu.memory_space<vmem>>, vector<1x8x8x2xf32>
    %1377 = vector.shape_cast %1376 : vector<1x8x8x2xf32> to vector<8x8x2xf32>
    %1378 = vector.broadcast %1375 : f32 to vector<8x8x2xf32>
    %1379 = arith.mulf %1378, %1377 : vector<8x8x2xf32>
    %1380 = arith.addf %1374, %1379 : vector<8x8x2xf32>
    %c136_1000 = arith.constant 136 : index
    %1381 = memref.load %arg4[%c136_1000] : memref<144xf32, #tpu.memory_space<smem>>
    %c3_1001 = arith.constant 3 : index
    %c0_1002 = arith.constant 0 : index
    %c1_1003 = arith.constant 1 : index
    %c0_1004 = arith.constant 0 : index
    %1382 = vector.load %arg13[%c3_1001, %c0_1002, %c1_1003, %c0_1004] : memref<4x10x10x2xf32, #tpu.memory_space<vmem>>, vector<1x8x8x2xf32>
    %1383 = vector.shape_cast %1382 : vector<1x8x8x2xf32> to vector<8x8x2xf32>
    %1384 = vector.broadcast %1381 : f32 to vector<8x8x2xf32>
    %1385 = arith.mulf %1384, %1383 : vector<8x8x2xf32>
    %1386 = arith.addf %1380, %1385 : vector<8x8x2xf32>
    %c137 = arith.constant 137 : index
    %1387 = memref.load %arg4[%c137] : memref<144xf32, #tpu.memory_space<smem>>
    %c3_1005 = arith.constant 3 : index
    %c0_1006 = arith.constant 0 : index
    %c2_1007 = arith.constant 2 : index
    %c0_1008 = arith.constant 0 : index
    %1388 = vector.load %arg13[%c3_1005, %c0_1006, %c2_1007, %c0_1008] : memref<4x10x10x2xf32, #tpu.memory_space<vmem>>, vector<1x8x8x2xf32>
    %1389 = vector.shape_cast %1388 : vector<1x8x8x2xf32> to vector<8x8x2xf32>
    %1390 = vector.broadcast %1387 : f32 to vector<8x8x2xf32>
    %1391 = arith.mulf %1390, %1389 : vector<8x8x2xf32>
    %1392 = arith.addf %1386, %1391 : vector<8x8x2xf32>
    %c138 = arith.constant 138 : index
    %1393 = memref.load %arg4[%c138] : memref<144xf32, #tpu.memory_space<smem>>
    %c3_1009 = arith.constant 3 : index
    %c1_1010 = arith.constant 1 : index
    %c0_1011 = arith.constant 0 : index
    %c0_1012 = arith.constant 0 : index
    %1394 = vector.load %arg13[%c3_1009, %c1_1010, %c0_1011, %c0_1012] : memref<4x10x10x2xf32, #tpu.memory_space<vmem>>, vector<1x8x8x2xf32>
    %1395 = vector.shape_cast %1394 : vector<1x8x8x2xf32> to vector<8x8x2xf32>
    %1396 = vector.broadcast %1393 : f32 to vector<8x8x2xf32>
    %1397 = arith.mulf %1396, %1395 : vector<8x8x2xf32>
    %1398 = arith.addf %1392, %1397 : vector<8x8x2xf32>
    %c139 = arith.constant 139 : index
    %1399 = memref.load %arg4[%c139] : memref<144xf32, #tpu.memory_space<smem>>
    %c3_1013 = arith.constant 3 : index
    %c1_1014 = arith.constant 1 : index
    %c1_1015 = arith.constant 1 : index
    %c0_1016 = arith.constant 0 : index
    %1400 = vector.load %arg13[%c3_1013, %c1_1014, %c1_1015, %c0_1016] : memref<4x10x10x2xf32, #tpu.memory_space<vmem>>, vector<1x8x8x2xf32>
    %1401 = vector.shape_cast %1400 : vector<1x8x8x2xf32> to vector<8x8x2xf32>
    %1402 = vector.broadcast %1399 : f32 to vector<8x8x2xf32>
    %1403 = arith.mulf %1402, %1401 : vector<8x8x2xf32>
    %1404 = arith.addf %1398, %1403 : vector<8x8x2xf32>
    %c140 = arith.constant 140 : index
    %1405 = memref.load %arg4[%c140] : memref<144xf32, #tpu.memory_space<smem>>
    %c3_1017 = arith.constant 3 : index
    %c1_1018 = arith.constant 1 : index
    %c2_1019 = arith.constant 2 : index
    %c0_1020 = arith.constant 0 : index
    %1406 = vector.load %arg13[%c3_1017, %c1_1018, %c2_1019, %c0_1020] : memref<4x10x10x2xf32, #tpu.memory_space<vmem>>, vector<1x8x8x2xf32>
    %1407 = vector.shape_cast %1406 : vector<1x8x8x2xf32> to vector<8x8x2xf32>
    %1408 = vector.broadcast %1405 : f32 to vector<8x8x2xf32>
    %1409 = arith.mulf %1408, %1407 : vector<8x8x2xf32>
    %1410 = arith.addf %1404, %1409 : vector<8x8x2xf32>
    %c141 = arith.constant 141 : index
    %1411 = memref.load %arg4[%c141] : memref<144xf32, #tpu.memory_space<smem>>
    %c3_1021 = arith.constant 3 : index
    %c2_1022 = arith.constant 2 : index
    %c0_1023 = arith.constant 0 : index
    %c0_1024 = arith.constant 0 : index
    %1412 = vector.load %arg13[%c3_1021, %c2_1022, %c0_1023, %c0_1024] : memref<4x10x10x2xf32, #tpu.memory_space<vmem>>, vector<1x8x8x2xf32>
    %1413 = vector.shape_cast %1412 : vector<1x8x8x2xf32> to vector<8x8x2xf32>
    %1414 = vector.broadcast %1411 : f32 to vector<8x8x2xf32>
    %1415 = arith.mulf %1414, %1413 : vector<8x8x2xf32>
    %1416 = arith.addf %1410, %1415 : vector<8x8x2xf32>
    %c142 = arith.constant 142 : index
    %1417 = memref.load %arg4[%c142] : memref<144xf32, #tpu.memory_space<smem>>
    %c3_1025 = arith.constant 3 : index
    %c2_1026 = arith.constant 2 : index
    %c1_1027 = arith.constant 1 : index
    %c0_1028 = arith.constant 0 : index
    %1418 = vector.load %arg13[%c3_1025, %c2_1026, %c1_1027, %c0_1028] : memref<4x10x10x2xf32, #tpu.memory_space<vmem>>, vector<1x8x8x2xf32>
    %1419 = vector.shape_cast %1418 : vector<1x8x8x2xf32> to vector<8x8x2xf32>
    %1420 = vector.broadcast %1417 : f32 to vector<8x8x2xf32>
    %1421 = arith.mulf %1420, %1419 : vector<8x8x2xf32>
    %1422 = arith.addf %1416, %1421 : vector<8x8x2xf32>
    %c143 = arith.constant 143 : index
    %1423 = memref.load %arg4[%c143] : memref<144xf32, #tpu.memory_space<smem>>
    %c3_1029 = arith.constant 3 : index
    %c2_1030 = arith.constant 2 : index
    %c2_1031 = arith.constant 2 : index
    %c0_1032 = arith.constant 0 : index
    %1424 = vector.load %arg13[%c3_1029, %c2_1030, %c2_1031, %c0_1032] : memref<4x10x10x2xf32, #tpu.memory_space<vmem>>, vector<1x8x8x2xf32>
    %1425 = vector.shape_cast %1424 : vector<1x8x8x2xf32> to vector<8x8x2xf32>
    %1426 = vector.broadcast %1423 : f32 to vector<8x8x2xf32>
    %1427 = arith.mulf %1426, %1425 : vector<8x8x2xf32>
    %1428 = arith.addf %1422, %1427 : vector<8x8x2xf32>
    %c3_1033 = arith.constant 3 : index
    %1429 = memref.load %arg5[%c3_1033] : memref<4xf32, #tpu.memory_space<smem>>
    %1430 = vector.broadcast %1429 : f32 to vector<8x8x2xf32>
    %1431 = arith.addf %1428, %1430 : vector<8x8x2xf32>
    %cst_1034 = arith.constant 0.000000e+00 : f32
    %1432 = vector.broadcast %cst_1034 : f32 to vector<8x8x2xf32>
    %1433 = arith.maximumf %1431, %1432 : vector<8x8x2xf32>
    %1434 = vector.extract_strided_slice %1433 {offsets = [0, 0, 0], sizes = [1, 8, 2], strides = [1, 1, 1]} : vector<8x8x2xf32> to vector<1x8x2xf32>
    %1435 = vector.shape_cast %1434 : vector<1x8x2xf32> to vector<8x2xf32>
    %c192 = arith.constant 192 : index
    %c0_1035 = arith.constant 0 : index
    %1436 = vector.load %arg14[%c192, %c0_1035] : memref<256x2xf32, #tpu.memory_space<vmem>>, vector<8x2xf32>
    tpu.vector_store %arg14[%c192, %c0_1035], %1435 {strides = array<i32>} : memref<256x2xf32, #tpu.memory_space<vmem>>, vector<8x2xf32>,
    %1437 = vector.extract_strided_slice %1433 {offsets = [1, 0, 0], sizes = [1, 8, 2], strides = [1, 1, 1]} : vector<8x8x2xf32> to vector<1x8x2xf32>
    %1438 = vector.shape_cast %1437 : vector<1x8x2xf32> to vector<8x2xf32>
    %c200 = arith.constant 200 : index
    %c0_1036 = arith.constant 0 : index
    %1439 = vector.load %arg14[%c200, %c0_1036] : memref<256x2xf32, #tpu.memory_space<vmem>>, vector<8x2xf32>
    tpu.vector_store %arg14[%c200, %c0_1036], %1438 {strides = array<i32>} : memref<256x2xf32, #tpu.memory_space<vmem>>, vector<8x2xf32>,
    %1440 = vector.extract_strided_slice %1433 {offsets = [2, 0, 0], sizes = [1, 8, 2], strides = [1, 1, 1]} : vector<8x8x2xf32> to vector<1x8x2xf32>
    %1441 = vector.shape_cast %1440 : vector<1x8x2xf32> to vector<8x2xf32>
    %c208 = arith.constant 208 : index
    %c0_1037 = arith.constant 0 : index
    %1442 = vector.load %arg14[%c208, %c0_1037] : memref<256x2xf32, #tpu.memory_space<vmem>>, vector<8x2xf32>
    tpu.vector_store %arg14[%c208, %c0_1037], %1441 {strides = array<i32>} : memref<256x2xf32, #tpu.memory_space<vmem>>, vector<8x2xf32>,
    %1443 = vector.extract_strided_slice %1433 {offsets = [3, 0, 0], sizes = [1, 8, 2], strides = [1, 1, 1]} : vector<8x8x2xf32> to vector<1x8x2xf32>
    %1444 = vector.shape_cast %1443 : vector<1x8x2xf32> to vector<8x2xf32>
    %c216 = arith.constant 216 : index
    %c0_1038 = arith.constant 0 : index
    %1445 = vector.load %arg14[%c216, %c0_1038] : memref<256x2xf32, #tpu.memory_space<vmem>>, vector<8x2xf32>
    tpu.vector_store %arg14[%c216, %c0_1038], %1444 {strides = array<i32>} : memref<256x2xf32, #tpu.memory_space<vmem>>, vector<8x2xf32>,
    %1446 = vector.extract_strided_slice %1433 {offsets = [4, 0, 0], sizes = [1, 8, 2], strides = [1, 1, 1]} : vector<8x8x2xf32> to vector<1x8x2xf32>
    %1447 = vector.shape_cast %1446 : vector<1x8x2xf32> to vector<8x2xf32>
    %c224 = arith.constant 224 : index
    %c0_1039 = arith.constant 0 : index
    %1448 = vector.load %arg14[%c224, %c0_1039] : memref<256x2xf32, #tpu.memory_space<vmem>>, vector<8x2xf32>
    tpu.vector_store %arg14[%c224, %c0_1039], %1447 {strides = array<i32>} : memref<256x2xf32, #tpu.memory_space<vmem>>, vector<8x2xf32>,
    %1449 = vector.extract_strided_slice %1433 {offsets = [5, 0, 0], sizes = [1, 8, 2], strides = [1, 1, 1]} : vector<8x8x2xf32> to vector<1x8x2xf32>
    %1450 = vector.shape_cast %1449 : vector<1x8x2xf32> to vector<8x2xf32>
    %c232 = arith.constant 232 : index
    %c0_1040 = arith.constant 0 : index
    %1451 = vector.load %arg14[%c232, %c0_1040] : memref<256x2xf32, #tpu.memory_space<vmem>>, vector<8x2xf32>
    tpu.vector_store %arg14[%c232, %c0_1040], %1450 {strides = array<i32>} : memref<256x2xf32, #tpu.memory_space<vmem>>, vector<8x2xf32>,
    %1452 = vector.extract_strided_slice %1433 {offsets = [6, 0, 0], sizes = [1, 8, 2], strides = [1, 1, 1]} : vector<8x8x2xf32> to vector<1x8x2xf32>
    %1453 = vector.shape_cast %1452 : vector<1x8x2xf32> to vector<8x2xf32>
    %c240 = arith.constant 240 : index
    %c0_1041 = arith.constant 0 : index
    %1454 = vector.load %arg14[%c240, %c0_1041] : memref<256x2xf32, #tpu.memory_space<vmem>>, vector<8x2xf32>
    tpu.vector_store %arg14[%c240, %c0_1041], %1453 {strides = array<i32>} : memref<256x2xf32, #tpu.memory_space<vmem>>, vector<8x2xf32>,
    %1455 = vector.extract_strided_slice %1433 {offsets = [7, 0, 0], sizes = [1, 8, 2], strides = [1, 1, 1]} : vector<8x8x2xf32> to vector<1x8x2xf32>
    %1456 = vector.shape_cast %1455 : vector<1x8x2xf32> to vector<8x2xf32>
    %c248 = arith.constant 248 : index
    %c0_1042 = arith.constant 0 : index
    %1457 = vector.load %arg14[%c248, %c0_1042] : memref<256x2xf32, #tpu.memory_space<vmem>>, vector<8x2xf32>
    tpu.vector_store %arg14[%c248, %c0_1042], %1456 {strides = array<i32>} : memref<256x2xf32, #tpu.memory_space<vmem>>, vector<8x2xf32>,
    %c0_1043 = arith.constant 0 : index
    %c0_1044 = arith.constant 0 : index
    %1458 = vector.load %arg14[%c0_1043, %c0_1044] : memref<256x2xf32, #tpu.memory_space<vmem>>, vector<256x2xf32>
    %1459 = arith.truncf %1458 : vector<256x2xf32> to vector<256x2xbf16>
    %c0_1045 = arith.constant 0 : index
    %c0_1046 = arith.constant 0 : index
    %1460 = vector.load %arg6[%c0_1045, %c0_1046] : memref<256x256xbf16, #tpu.memory_space<vmem>>, vector<256x256xbf16>
    %cst_1047 = arith.constant dense<0.000000e+00> : vector<256x2xf32>
    %1461 = tpu.matmul %1460, %1459, %cst_1047 {dimension_numbers = #tpu.dot_dimension_numbers<[1], [0], [0], [1], [0, 0, 1, 1], [], []>} : vector<256x256xbf16>, vector<256x2xbf16>, vector<256x2xf32> -> vector<256x2xf32>
    %c0_1048 = arith.constant 0 : index
    %c0_1049 = arith.constant 0 : index
    %1462 = vector.load %arg7[%c0_1048, %c0_1049] : memref<256x1xf32, #tpu.memory_space<vmem>>, vector<256x1xf32>
    %1463 = vector.broadcast %1462 : vector<256x1xf32> to vector<256x2xf32>
    %1464 = arith.addf %1461, %1463 : vector<256x2xf32>
    %cst_1050 = arith.constant 0.000000e+00 : f32
    %1465 = vector.broadcast %cst_1050 : f32 to vector<256x2xf32>
    %1466 = arith.maximumf %1464, %1465 : vector<256x2xf32>
    %1467 = arith.truncf %1466 : vector<256x2xf32> to vector<256x2xbf16>
    %c0_1051 = arith.constant 0 : index
    %c0_1052 = arith.constant 0 : index
    %1468 = vector.load %arg8[%c0_1051, %c0_1052] : memref<256x256xbf16, #tpu.memory_space<vmem>>, vector<256x256xbf16>
    %cst_1053 = arith.constant dense<0.000000e+00> : vector<256x2xf32>
    %1469 = tpu.matmul %1468, %1467, %cst_1053 {dimension_numbers = #tpu.dot_dimension_numbers<[1], [0], [0], [1], [0, 0, 1, 1], [], []>} : vector<256x256xbf16>, vector<256x2xbf16>, vector<256x2xf32> -> vector<256x2xf32>
    %c0_1054 = arith.constant 0 : index
    %c0_1055 = arith.constant 0 : index
    %1470 = vector.load %arg9[%c0_1054, %c0_1055] : memref<256x1xf32, #tpu.memory_space<vmem>>, vector<256x1xf32>
    %1471 = vector.broadcast %1470 : vector<256x1xf32> to vector<256x2xf32>
    %1472 = arith.addf %1469, %1471 : vector<256x2xf32>
    %cst_1056 = arith.constant 0.000000e+00 : f32
    %1473 = vector.broadcast %cst_1056 : f32 to vector<256x2xf32>
    %1474 = arith.maximumf %1472, %1473 : vector<256x2xf32>
    %1475 = arith.truncf %1474 : vector<256x2xf32> to vector<256x2xbf16>
    %c0_1057 = arith.constant 0 : index
    %c0_1058 = arith.constant 0 : index
    %1476 = vector.load %arg10[%c0_1057, %c0_1058] : memref<64x256xbf16, #tpu.memory_space<vmem>>, vector<64x256xbf16>
    %cst_1059 = arith.constant dense<0.000000e+00> : vector<64x2xf32>
    %1477 = tpu.matmul %1476, %1475, %cst_1059 {dimension_numbers = #tpu.dot_dimension_numbers<[1], [0], [0], [1], [0, 0, 1, 1], [], []>} : vector<64x256xbf16>, vector<256x2xbf16>, vector<64x2xf32> -> vector<64x2xf32>
    %c0_1060 = arith.constant 0 : index
    %c0_1061 = arith.constant 0 : index
    %1478 = vector.load %arg11[%c0_1060, %c0_1061] : memref<64x1xf32, #tpu.memory_space<vmem>>, vector<64x1xf32>
    %1479 = vector.broadcast %1478 : vector<64x1xf32> to vector<64x2xf32>
    %1480 = arith.addf %1477, %1479 : vector<64x2xf32>
    %c0_1062 = arith.constant 0 : index
    %c0_1063 = arith.constant 0 : index
    %1481 = vector.load %arg12[%c0_1062, %c0_1063] : memref<64x2xf32, #tpu.memory_space<vmem>>, vector<64x2xf32>
    tpu.vector_store %arg12[%c0_1062, %c0_1063], %1480 {strides = array<i32>} : memref<64x2xf32, #tpu.memory_space<vmem>>, vector<64x2xf32>,
    return
  }
  func.func @transform_0(%arg0: i32) -> (i32, i32, i32, i32) {
    %c0_i32 = arith.constant 0 : i32
    %c0_i32_0 = arith.constant 0 : i32
    %c0_i32_1 = arith.constant 0 : i32
    %c0_i32_2 = arith.constant 0 : i32
    return %c0_i32, %c0_i32_0, %c0_i32_1, %arg0 : i32, i32, i32, i32
  }
  func.func @transform_1(%arg0: i32) -> i32 {
    %c0_i32 = arith.constant 0 : i32
    %c0_i32_0 = arith.constant 0 : i32
    return %c0_i32 : i32
  }
  func.func @transform_2(%arg0: i32) -> i32 {
    %c0_i32 = arith.constant 0 : i32
    %c0_i32_0 = arith.constant 0 : i32
    return %c0_i32 : i32
  }
  func.func @transform_3(%arg0: i32) -> i32 {
    %c0_i32 = arith.constant 0 : i32
    %c0_i32_0 = arith.constant 0 : i32
    return %c0_i32 : i32
  }
  func.func @transform_4(%arg0: i32) -> i32 {
    %c0_i32 = arith.constant 0 : i32
    %c0_i32_0 = arith.constant 0 : i32
    return %c0_i32 : i32
  }
  func.func @transform_5(%arg0: i32) -> (i32, i32) {
    %c0_i32 = arith.constant 0 : i32
    %c0_i32_0 = arith.constant 0 : i32
    %c0_i32_1 = arith.constant 0 : i32
    return %c0_i32, %c0_i32_0 : i32, i32
  }
  func.func @transform_6(%arg0: i32) -> (i32, i32) {
    %c0_i32 = arith.constant 0 : i32
    %c0_i32_0 = arith.constant 0 : i32
    %c0_i32_1 = arith.constant 0 : i32
    return %c0_i32, %c0_i32_0 : i32, i32
  }
  func.func @transform_7(%arg0: i32) -> (i32, i32) {
    %c0_i32 = arith.constant 0 : i32
    %c0_i32_0 = arith.constant 0 : i32
    %c0_i32_1 = arith.constant 0 : i32
    return %c0_i32, %c0_i32_0 : i32, i32
  }
  func.func @transform_8(%arg0: i32) -> (i32, i32) {
    %c0_i32 = arith.constant 0 : i32
    %c0_i32_0 = arith.constant 0 : i32
    %c0_i32_1 = arith.constant 0 : i32
    return %c0_i32, %c0_i32_0 : i32, i32
  }
  func.func @transform_9(%arg0: i32) -> (i32, i32) {
    %c0_i32 = arith.constant 0 : i32
    %c0_i32_0 = arith.constant 0 : i32
    %c0_i32_1 = arith.constant 0 : i32
    return %c0_i32, %c0_i32_0 : i32, i32
  }
  func.func @transform_10(%arg0: i32) -> (i32, i32) {
    %c0_i32 = arith.constant 0 : i32
    %c0_i32_0 = arith.constant 0 : i32
    %c0_i32_1 = arith.constant 0 : i32
    return %c0_i32, %c0_i32_0 : i32, i32
  }
  func.func @transform_11(%arg0: i32) -> (i32, i32) {
    %c0_i32 = arith.constant 0 : i32
    %c0_i32_0 = arith.constant 0 : i32
    return %c0_i32, %arg0 : i32, i32
  }
}

</mosaic_0001>

<llo_original>
// kernel: cnn_forward.1
$region0: #{cnn_forward.1}
  #allocation0 [shape = 'u32[]', space=smem, size = 0x4, offset = 0x4, fixed_abs, tag = 'smem constant byte address 0x4 - core index']
  #allocation1 [shape = 'u32[144,128]{1,0:T(1,128)}', space=vmem, size = 0x12000, scoped, tag = 'internal scratch']
  #allocation2 [shape = 'f32[4,10,10,2]{3,2,1,0:T(8,128)}', space=vmem, size = 0x50000, scoped, tag = 'scratch operand']
  #allocation3 [shape = 'f32[256,2]{1,0:T(8,128)}', space=vmem, size = 0x20000, scoped, tag = 'scratch operand']
  %s0 = inlined_call_operand.vmem [shape: f32[2,10,10,2], index: 0, kind: input, shape index: {}]
  %s1 = inlined_call_operand.vmem [shape: f32[72], index: 1, kind: input, shape index: {}]
  %s2 = inlined_call_operand.vmem [shape: f32[4], index: 2, kind: input, shape index: {}]
  %s3 = inlined_call_operand.vmem [shape: f32[144], index: 3, kind: input, shape index: {}]
  %s4 = inlined_call_operand.vmem [shape: f32[4], index: 4, kind: input, shape index: {}]
  %s5 = inlined_call_operand.vmem [shape: bf16[256,256], index: 5, kind: input, shape index: {}]
  %s6 = inlined_call_operand.vmem [shape: f32[256,1], index: 6, kind: input, shape index: {}]
  %s7 = inlined_call_operand.vmem [shape: bf16[256,256], index: 7, kind: input, shape index: {}]
  %s8 = inlined_call_operand.vmem [shape: f32[256,1], index: 8, kind: input, shape index: {}]
  %s9 = inlined_call_operand.vmem [shape: bf16[64,256], index: 9, kind: input, shape index: {}]
  %s10 = inlined_call_operand.vmem [shape: f32[64,1], index: 10, kind: input, shape index: {}]
  %s11 = inlined_call_operand.vmem [shape: f32[64,2], index: 11, kind: output, shape index: {}]
  %s12 = sld [smem:[#allocation0]]
  $region70: #{cnn_forward.1} parent=0
    _
  %s14 = ssub.s32 1, %s12
  %s15 = scalar_select 0, %s14, %s12
  $region1: #{cnn_forward.1} parent=0
    #allocation4 [shape = 'u8[512]{0}', space=smem, size = 0x200, scoped, tag = 'input window, operand 1, single buffered']
    #allocation5 [shape = 's32[1]{0}', space=sflag, size = 0x4, scoped, tag = 'scoped memory for cnn_forward.1']
    #allocation6 [shape = 'u8[512]{0}', space=smem, size = 0x200, scoped, tag = 'input window, operand 2, single buffered']
    #allocation7 [shape = 's32[1]{0}', space=sflag, size = 0x4, scoped, tag = 'scoped memory for cnn_forward.1']
    #allocation8 [shape = 'u8[1024]{0}', space=smem, size = 0x400, scoped, tag = 'input window, operand 3, single buffered']
    #allocation9 [shape = 'u8[512]{0}', space=smem, size = 0x200, scoped, tag = 'input window, operand 4, single buffered']
    #allocation10 [shape = 's32[1]{0}', space=sflag, size = 0x4, scoped, tag = 'scoped memory for cnn_forward.1']
    %16 = vsyncpa [#allocation5], 0
    %17 = vsyncpa [#allocation7], 0
    %18 = vsyncpa [#allocation10], 0
    // Predicated region
    $region2: #{cnn_forward.1} parent=1 // pred_check
      _
    $region3: #{cnn_forward.1} parent=1 // pred_check_branch
      %20 = sbr.rel (0) target = $region5
    $region4: #{cnn_forward.1} parent=1 // pred_region
      _
    $region5: #{cnn_forward.1} parent=1 // pred_fallthru
      _
    // Predicated region
    $region6: #{cnn_forward.1} parent=1 // pred_check
      _
    $region7: #{cnn_forward.1} parent=1 // pred_check_branch
      %22 = sbr.rel (0) target = $region9
    $region8: #{cnn_forward.1} parent=1 // pred_region
      %s24 = ssub.s32 16, 16
      %25 = vsyncadd [#allocation5], %s24
      %s27 = sshll.u32 %s1, 4
      %s28 = int_to_ptr.vmem [resolvable:$true] %s27
      %30 = dma.vmem_to_smem %s28, 16, [#allocation4], [#allocation5]
    $region9: #{cnn_forward.1} parent=1 // pred_fallthru
      _
    // Predicated region
    $region10: #{cnn_forward.1} parent=1 // pred_check
      _
    $region11: #{cnn_forward.1} parent=1 // pred_check_branch
      %32 = sbr.rel (0) target = $region13
    $region12: #{cnn_forward.1} parent=1 // pred_region
      %s34 = ssub.s32 16, 16
      %35 = vsyncadd [#allocation7], %s34
      %s37 = sshll.u32 %s2, 4
      %s38 = int_to_ptr.vmem [resolvable:$true] %s37
      %40 = dma.vmem_to_smem %s38, 16, [#allocation6], [#allocation7]
    $region13: #{cnn_forward.1} parent=1 // pred_fallthru
      _
    // Predicated region
    $region14: #{cnn_forward.1} parent=1 // pred_check
      _
    $region15: #{cnn_forward.1} parent=1 // pred_check_branch
      %42 = sbr.rel (0) target = $region17
    $region16: #{cnn_forward.1} parent=1 // pred_region
      %s44 = ssub.s32 32, 32
      %45 = vsyncadd [#allocation7], %s44
      %s47 = sshll.u32 %s3, 4
      %s48 = int_to_ptr.vmem [resolvable:$true] %s47
      %50 = dma.vmem_to_smem %s48, 32, [#allocation8], [#allocation7]
    $region17: #{cnn_forward.1} parent=1 // pred_fallthru
      _
    // Predicated region
    $region18: #{cnn_forward.1} parent=1 // pred_check
      _
    $region19: #{cnn_forward.1} parent=1 // pred_check_branch
      %52 = sbr.rel (0) target = $region21
    $region20: #{cnn_forward.1} parent=1 // pred_region
      %s54 = ssub.s32 16, 16
      %55 = vsyncadd [#allocation10], %s54
      %s57 = sshll.u32 %s4, 4
      %s58 = int_to_ptr.vmem [resolvable:$true] %s57
      %60 = dma.vmem_to_smem %s58, 16, [#allocation9], [#allocation10]
    $region21: #{cnn_forward.1} parent=1 // pred_fallthru
      _
    // Predicated region
    $region22: #{cnn_forward.1} parent=1 // pred_check
      _
    $region23: #{cnn_forward.1} parent=1 // pred_check_branch
      %62 = sbr.rel (0) target = $region25
    $region24: #{cnn_forward.1} parent=1 // pred_region
      _
    $region25: #{cnn_forward.1} parent=1 // pred_fallthru
      _
    // Predicated region
    $region26: #{cnn_forward.1} parent=1 // pred_check
      _
    $region27: #{cnn_forward.1} parent=1 // pred_check_branch
      %64 = sbr.rel (0) target = $region29
    $region28: #{cnn_forward.1} parent=1 // pred_region
      _
    $region29: #{cnn_forward.1} parent=1 // pred_fallthru
      _
    // Predicated region
    $region30: #{cnn_forward.1} parent=1 // pred_check
      _
    $region31: #{cnn_forward.1} parent=1 // pred_check_branch
      %66 = sbr.rel (0) target = $region33
    $region32: #{cnn_forward.1} parent=1 // pred_region
      _
    $region33: #{cnn_forward.1} parent=1 // pred_fallthru
      _
    // Predicated region
    $region34: #{cnn_forward.1} parent=1 // pred_check
      _
    $region35: #{cnn_forward.1} parent=1 // pred_check_branch
      %68 = sbr.rel (0) target = $region37
    $region36: #{cnn_forward.1} parent=1 // pred_region
      _
    $region37: #{cnn_forward.1} parent=1 // pred_fallthru
      _
    // Predicated region
    $region38: #{cnn_forward.1} parent=1 // pred_check
      _
    $region39: #{cnn_forward.1} parent=1 // pred_check_branch
      %70 = sbr.rel (0) target = $region41
    $region40: #{cnn_forward.1} parent=1 // pred_region
      _
    $region41: #{cnn_forward.1} parent=1 // pred_fallthru
      _
    // Predicated region
    $region42: #{cnn_forward.1} parent=1 // pred_check
      _
    $region43: #{cnn_forward.1} parent=1 // pred_check_branch
      %72 = sbr.rel (0) target = $region45
    $region44: #{cnn_forward.1} parent=1 // pred_region
      _
    $region45: #{cnn_forward.1} parent=1 // pred_fallthru
      _
    // Predicated region
    $region46: #{cnn_forward.1} parent=1 // pred_check
      _
    $region47: #{cnn_forward.1} parent=1 // pred_check_branch
      %74 = sbr.rel (0) target = $region49
    $region48: #{cnn_forward.1} parent=1 // pred_region
      %75 = dma.done [#allocation5], 16
    $region49: #{cnn_forward.1} parent=1 // pred_fallthru
      _
    // Predicated region
    $region50: #{cnn_forward.1} parent=1 // pred_check
      _
    $region51: #{cnn_forward.1} parent=1 // pred_check_branch
      %77 = sbr.rel (0) target = $region53
    $region52: #{cnn_forward.1} parent=1 // pred_region
      %78 = dma.done [#allocation7], 16
    $region53: #{cnn_forward.1} parent=1 // pred_fallthru
      _
    // Predicated region
    $region54: #{cnn_forward.1} parent=1 // pred_check
      _
    $region55: #{cnn_forward.1} parent=1 // pred_check_branch
      %80 = sbr.rel (0) target = $region57
    $region56: #{cnn_forward.1} parent=1 // pred_region
      %81 = dma.done [#allocation7], 32
    $region57: #{cnn_forward.1} parent=1 // pred_fallthru
      _
    // Predicated region
    $region58: #{cnn_forward.1} parent=1 // pred_check
      _
    $region59: #{cnn_forward.1} parent=1 // pred_check_branch
      %83 = sbr.rel (0) target = $region61
    $region60: #{cnn_forward.1} parent=1 // pred_region
      %84 = dma.done [#allocation10], 16
    $region61: #{cnn_forward.1} parent=1 // pred_fallthru
      _
    %85 = sfence
    %vm87 = vcmask 15360
    %88 = vst.msk [vmem:[#allocation2] sm:$0xff] %vm87, 0.0
    %vm89 = vcmask 9216
    %90 = vst.msk [vmem:[#allocation2 + $0x8] sm:$0x3] %vm89, 0.0
    %91 = vst.msk [vmem:[#allocation2 + $0xa0] sm:$0xff] %vm87, 0.0
    %92 = vst.msk [vmem:[#allocation2 + $0xa8] sm:$0x3] %vm89, 0.0
    %93 = vst.msk [vmem:[#allocation2 + $0x140] sm:$0xff] %vm87, 0.0
    %94 = vst.msk [vmem:[#allocation2 + $0x148] sm:$0x3] %vm89, 0.0
    %95 = vst.msk [vmem:[#allocation2 + $0x1e0] sm:$0xff] %vm87, 0.0
    %96 = vst.msk [vmem:[#allocation2 + $0x1e8] sm:$0x3] %vm89, 0.0
    %s97 = scalar_lea.vmem [#allocation2], 144
    %98 = vst.msk [vmem:[%s97] sm:$0xff] %vm87, 0.0
    %99 = vst.msk [vmem:[%s97 + $0x8] sm:$0x3] %vm89, 0.0
    %100 = vst.msk [vmem:[%s97 + $0xa0] sm:$0xff] %vm87, 0.0
    %101 = vst.msk [vmem:[%s97 + $0xa8] sm:$0x3] %vm89, 0.0
    %102 = vst.msk [vmem:[%s97 + $0x140] sm:$0xff] %vm87, 0.0
    %103 = vst.msk [vmem:[%s97 + $0x148] sm:$0x3] %vm89, 0.0
    %104 = vst.msk [vmem:[%s97 + $0x1e0] sm:$0xff] %vm87, 0.0
    %105 = vst.msk [vmem:[%s97 + $0x1e8] sm:$0x3] %vm89, 0.0
    %vm106 = vcmask 8192
    %107 = vst.msk [vmem:[#allocation2] sm:$0x1] %vm106, 0.0
    %108 = vst.msk [vmem:[#allocation2 + $0x10] sm:$0x1] %vm106, 0.0
    %109 = vst.msk [vmem:[#allocation2 + $0x20] sm:$0x1] %vm106, 0.0
    %110 = vst.msk [vmem:[#allocation2 + $0x30] sm:$0x1] %vm106, 0.0
    %111 = vst.msk [vmem:[#allocation2 + $0x40] sm:$0x1] %vm106, 0.0
    %112 = vst.msk [vmem:[#allocation2 + $0x50] sm:$0x1] %vm106, 0.0
    %113 = vst.msk [vmem:[#allocation2 + $0x60] sm:$0x1] %vm106, 0.0
    %114 = vst.msk [vmem:[#allocation2 + $0x70] sm:$0x1] %vm106, 0.0
    %115 = vst.msk [vmem:[#allocation2 + $0x80] sm:$0x1] %vm106, 0.0
    %116 = vst.msk [vmem:[#allocation2 + $0x90] sm:$0x1] %vm106, 0.0
    %117 = vst.msk [vmem:[#allocation2 + $0xa0] sm:$0x1] %vm106, 0.0
    %118 = vst.msk [vmem:[#allocation2 + $0xb0] sm:$0x1] %vm106, 0.0
    %119 = vst.msk [vmem:[#allocation2 + $0xc0] sm:$0x1] %vm106, 0.0
    %120 = vst.msk [vmem:[#allocation2 + $0xd0] sm:$0x1] %vm106, 0.0
    %121 = vst.msk [vmem:[#allocation2 + $0xe0] sm:$0x1] %vm106, 0.0
    %122 = vst.msk [vmem:[#allocation2 + $0xf0] sm:$0x1] %vm106, 0.0
    %123 = vst.msk [vmem:[#allocation2 + $0x100] sm:$0x1] %vm106, 0.0
    %124 = vst.msk [vmem:[#allocation2 + $0x110] sm:$0x1] %vm106, 0.0
    %125 = vst.msk [vmem:[#allocation2 + $0x120] sm:$0x1] %vm106, 0.0
    %126 = vst.msk [vmem:[#allocation2 + $0x130] sm:$0x1] %vm106, 0.0
    %127 = vst.msk [vmem:[#allocation2 + $0x140] sm:$0x1] %vm106, 0.0
    %128 = vst.msk [vmem:[#allocation2 + $0x150] sm:$0x1] %vm106, 0.0
    %129 = vst.msk [vmem:[#allocation2 + $0x160] sm:$0x1] %vm106, 0.0
    %130 = vst.msk [vmem:[#allocation2 + $0x170] sm:$0x1] %vm106, 0.0
    %131 = vst.msk [vmem:[#allocation2 + $0x180] sm:$0x1] %vm106, 0.0
    %132 = vst.msk [vmem:[#allocation2 + $0x190] sm:$0x1] %vm106, 0.0
    %133 = vst.msk [vmem:[#allocation2 + $0x1a0] sm:$0x1] %vm106, 0.0
    %134 = vst.msk [vmem:[#allocation2 + $0x1b0] sm:$0x1] %vm106, 0.0
    %135 = vst.msk [vmem:[#allocation2 + $0x1c0] sm:$0x1] %vm106, 0.0
    %136 = vst.msk [vmem:[#allocation2 + $0x1d0] sm:$0x1] %vm106, 0.0
    %137 = vst.msk [vmem:[#allocation2 + $0x1e0] sm:$0x1] %vm106, 0.0
    %138 = vst.msk [vmem:[#allocation2 + $0x1f0] sm:$0x1] %vm106, 0.0
    %139 = vst.msk [vmem:[#allocation2 + $0x200] sm:$0x1] %vm106, 0.0
    %140 = vst.msk [vmem:[#allocation2 + $0x210] sm:$0x1] %vm106, 0.0
    %141 = vst.msk [vmem:[#allocation2 + $0x220] sm:$0x1] %vm106, 0.0
    %142 = vst.msk [vmem:[#allocation2 + $0x230] sm:$0x1] %vm106, 0.0
    %143 = vst.msk [vmem:[#allocation2 + $0x240] sm:$0x1] %vm106, 0.0
    %144 = vst.msk [vmem:[#allocation2 + $0x250] sm:$0x1] %vm106, 0.0
    %145 = vst.msk [vmem:[#allocation2 + $0x260] sm:$0x1] %vm106, 0.0
    %146 = vst.msk [vmem:[#allocation2 + $0x270] sm:$0x1] %vm106, 0.0
    %147 = vst.msk [vmem:[#allocation2 + $0x9] sm:$0x1] %vm106, 0.0
    %148 = vst.msk [vmem:[#allocation2 + $0x19] sm:$0x1] %vm106, 0.0
    %149 = vst.msk [vmem:[#allocation2 + $0x29] sm:$0x1] %vm106, 0.0
    %150 = vst.msk [vmem:[#allocation2 + $0x39] sm:$0x1] %vm106, 0.0
    %151 = vst.msk [vmem:[#allocation2 + $0x49] sm:$0x1] %vm106, 0.0
    %152 = vst.msk [vmem:[#allocation2 + $0x59] sm:$0x1] %vm106, 0.0
    %153 = vst.msk [vmem:[#allocation2 + $0x69] sm:$0x1] %vm106, 0.0
    %154 = vst.msk [vmem:[#allocation2 + $0x79] sm:$0x1] %vm106, 0.0
    %155 = vst.msk [vmem:[#allocation2 + $0x89] sm:$0x1] %vm106, 0.0
    %156 = vst.msk [vmem:[#allocation2 + $0x99] sm:$0x1] %vm106, 0.0
    %157 = vst.msk [vmem:[#allocation2 + $0xa9] sm:$0x1] %vm106, 0.0
    %158 = vst.msk [vmem:[#allocation2 + $0xb9] sm:$0x1] %vm106, 0.0
    %159 = vst.msk [vmem:[#allocation2 + $0xc9] sm:$0x1] %vm106, 0.0
    %160 = vst.msk [vmem:[#allocation2 + $0xd9] sm:$0x1] %vm106, 0.0
    %161 = vst.msk [vmem:[#allocation2 + $0xe9] sm:$0x1] %vm106, 0.0
    %162 = vst.msk [vmem:[#allocation2 + $0xf9] sm:$0x1] %vm106, 0.0
    %163 = vst.msk [vmem:[#allocation2 + $0x109] sm:$0x1] %vm106, 0.0
    %164 = vst.msk [vmem:[#allocation2 + $0x119] sm:$0x1] %vm106, 0.0
    %165 = vst.msk [vmem:[#allocation2 + $0x129] sm:$0x1] %vm106, 0.0
    %166 = vst.msk [vmem:[#allocation2 + $0x139] sm:$0x1] %vm106, 0.0
    %167 = vst.msk [vmem:[#allocation2 + $0x149] sm:$0x1] %vm106, 0.0
    %168 = vst.msk [vmem:[#allocation2 + $0x159] sm:$0x1] %vm106, 0.0
    %169 = vst.msk [vmem:[#allocation2 + $0x169] sm:$0x1] %vm106, 0.0
    %170 = vst.msk [vmem:[#allocation2 + $0x179] sm:$0x1] %vm106, 0.0
    %171 = vst.msk [vmem:[#allocation2 + $0x189] sm:$0x1] %vm106, 0.0
    %172 = vst.msk [vmem:[#allocation2 + $0x199] sm:$0x1] %vm106, 0.0
    %173 = vst.msk [vmem:[#allocation2 + $0x1a9] sm:$0x1] %vm106, 0.0
    %174 = vst.msk [vmem:[#allocation2 + $0x1b9] sm:$0x1] %vm106, 0.0
    %175 = vst.msk [vmem:[#allocation2 + $0x1c9] sm:$0x1] %vm106, 0.0
    %176 = vst.msk [vmem:[#allocation2 + $0x1d9] sm:$0x1] %vm106, 0.0
    %177 = vst.msk [vmem:[#allocation2 + $0x1e9] sm:$0x1] %vm106, 0.0
    %178 = vst.msk [vmem:[#allocation2 + $0x1f9] sm:$0x1] %vm106, 0.0
    %179 = vst.msk [vmem:[#allocation2 + $0x209] sm:$0x1] %vm106, 0.0
    %180 = vst.msk [vmem:[#allocation2 + $0x219] sm:$0x1] %vm106, 0.0
    %181 = vst.msk [vmem:[#allocation2 + $0x229] sm:$0x1] %vm106, 0.0
    %182 = vst.msk [vmem:[#allocation2 + $0x239] sm:$0x1] %vm106, 0.0
    %183 = vst.msk [vmem:[#allocation2 + $0x249] sm:$0x1] %vm106, 0.0
    %184 = vst.msk [vmem:[#allocation2 + $0x259] sm:$0x1] %vm106, 0.0
    %185 = vst.msk [vmem:[#allocation2 + $0x269] sm:$0x1] %vm106, 0.0
    %186 = vst.msk [vmem:[#allocation2 + $0x279] sm:$0x1] %vm106, 0.0
    %s187 = sld [smem:[#allocation4]]
    %v188 = vld [vmem:[%s0] sm:$0xff]
    %v189 = vld [vmem:[%s0 + $0x10] sm:$0xff]
    %v190 = vld [vmem:[%s0 + $0x20] sm:$0xff]
    %v191 = vld [vmem:[%s0 + $0x30] sm:$0xff]
    %v192 = vld [vmem:[%s0 + $0x40] sm:$0xff]
    %v193 = vld [vmem:[%s0 + $0x50] sm:$0xff]
    %v194 = vld [vmem:[%s0 + $0x60] sm:$0xff]
    %v195 = vld [vmem:[%s0 + $0x70] sm:$0xff]
    %v196 = vstv %s187
    %v197 = vmul.f32 %v196, %v188
    %v198 = vmul.f32 %v196, %v189
    %v199 = vmul.f32 %v196, %v190
    %v200 = vmul.f32 %v196, %v191
    %v201 = vmul.f32 %v196, %v192
    %v202 = vmul.f32 %v196, %v193
    %v203 = vmul.f32 %v196, %v194
    %v204 = vmul.f32 %v196, %v195
    %v205 = vadd.f32 %v197, 0.0
    %v206 = vadd.f32 %v198, 0.0
    %v207 = vadd.f32 %v199, 0.0
    %v208 = vadd.f32 %v200, 0.0
    %v209 = vadd.f32 %v201, 0.0
    %v210 = vadd.f32 %v202, 0.0
    %v211 = vadd.f32 %v203, 0.0
    %v212 = vadd.f32 %v204, 0.0
    %s213 = sld [smem:[#allocation4 + $0x1]]
    %v214 = vld [vmem:[%s0 + $0x1] sm:$0xff]
    %v215 = vld [vmem:[%s0 + $0x11] sm:$0xff]
    %v216 = vld [vmem:[%s0 + $0x21] sm:$0xff]
    %v217 = vld [vmem:[%s0 + $0x31] sm:$0xff]
    %v218 = vld [vmem:[%s0 + $0x41] sm:$0xff]
    %v219 = vld [vmem:[%s0 + $0x51] sm:$0xff]
    %v220 = vld [vmem:[%s0 + $0x61] sm:$0xff]
    %v221 = vld [vmem:[%s0 + $0x71] sm:$0xff]
    %v222 = vstv %s213
    %v223 = vmul.f32 %v222, %v214
    %v224 = vmul.f32 %v222, %v215
    %v225 = vmul.f32 %v222, %v216
    %v226 = vmul.f32 %v222, %v217
    %v227 = vmul.f32 %v222, %v218
    %v228 = vmul.f32 %v222, %v219
    %v229 = vmul.f32 %v222, %v220
    %v230 = vmul.f32 %v222, %v221
    %v231 = vadd.f32 %v205, %v223
    %v232 = vadd.f32 %v206, %v224
    %v233 = vadd.f32 %v207, %v225
    %v234 = vadd.f32 %v208, %v226
    %v235 = vadd.f32 %v209, %v227
    %v236 = vadd.f32 %v210, %v228
    %v237 = vadd.f32 %v211, %v229
    %v238 = vadd.f32 %v212, %v230
    %s239 = sld [smem:[#allocation4 + $0x2]]
    %v240 = vld [vmem:[%s0 + $0x2] sm:$0xff]
    %v241 = vld [vmem:[%s0 + $0x12] sm:$0xff]
    %v242 = vld [vmem:[%s0 + $0x22] sm:$0xff]
    %v243 = vld [vmem:[%s0 + $0x32] sm:$0xff]
    %v244 = vld [vmem:[%s0 + $0x42] sm:$0xff]
    %v245 = vld [vmem:[%s0 + $0x52] sm:$0xff]
    %v246 = vld [vmem:[%s0 + $0x62] sm:$0xff]
    %v247 = vld [vmem:[%s0 + $0x72] sm:$0xff]
    %v248 = vstv %s239
    %v249 = vmul.f32 %v248, %v240
    %v250 = vmul.f32 %v248, %v241
    %v251 = vmul.f32 %v248, %v242
    %v252 = vmul.f32 %v248, %v243
    %v253 = vmul.f32 %v248, %v244
    %v254 = vmul.f32 %v248, %v245
    %v255 = vmul.f32 %v248, %v246
    %v256 = vmul.f32 %v248, %v247
    %v257 = vadd.f32 %v231, %v249
    %v258 = vadd.f32 %v232, %v250
    %v259 = vadd.f32 %v233, %v251
    %v260 = vadd.f32 %v234, %v252
    %v261 = vadd.f32 %v235, %v253
    %v262 = vadd.f32 %v236, %v254
    %v263 = vadd.f32 %v237, %v255
    %v264 = vadd.f32 %v238, %v256
    %s265 = sld [smem:[#allocation4 + $0x3]]
    %s266 = scalar_lea.vmem %s0, 16
    %v267 = vld [vmem:[%s266] sm:$0xff]
    %v268 = vld [vmem:[%s266 + $0x10] sm:$0xff]
    %v269 = vld [vmem:[%s266 + $0x20] sm:$0xff]
    %v270 = vld [vmem:[%s266 + $0x30] sm:$0xff]
    %v271 = vld [vmem:[%s266 + $0x40] sm:$0xff]
    %v272 = vld [vmem:[%s266 + $0x50] sm:$0xff]
    %v273 = vld [vmem:[%s266 + $0x60] sm:$0xff]
    %v274 = vld [vmem:[%s266 + $0x70] sm:$0xff]
    %v275 = vstv %s265
    %v276 = vmul.f32 %v275, %v267
    %v277 = vmul.f32 %v275, %v268
    %v278 = vmul.f32 %v275, %v269
    %v279 = vmul.f32 %v275, %v270
    %v280 = vmul.f32 %v275, %v271
    %v281 = vmul.f32 %v275, %v272
    %v282 = vmul.f32 %v275, %v273
    %v283 = vmul.f32 %v275, %v274
    %v284 = vadd.f32 %v257, %v276
    %v285 = vadd.f32 %v258, %v277
    %v286 = vadd.f32 %v259, %v278
    %v287 = vadd.f32 %v260, %v279
    %v288 = vadd.f32 %v261, %v280
    %v289 = vadd.f32 %v262, %v281
    %v290 = vadd.f32 %v263, %v282
    %v291 = vadd.f32 %v264, %v283
    %s292 = sld [smem:[#allocation4 + $0x4]]
    %v293 = vld [vmem:[%s266 + $0x1] sm:$0xff]
    %v294 = vld [vmem:[%s266 + $0x11] sm:$0xff]
    %v295 = vld [vmem:[%s266 + $0x21] sm:$0xff]
    %v296 = vld [vmem:[%s266 + $0x31] sm:$0xff]
    %v297 = vld [vmem:[%s266 + $0x41] sm:$0xff]
    %v298 = vld [vmem:[%s266 + $0x51] sm:$0xff]
    %v299 = vld [vmem:[%s266 + $0x61] sm:$0xff]
    %v300 = vld [vmem:[%s266 + $0x71] sm:$0xff]
    %v301 = vstv %s292
    %v302 = vmul.f32 %v301, %v293
    %v303 = vmul.f32 %v301, %v294
    %v304 = vmul.f32 %v301, %v295
    %v305 = vmul.f32 %v301, %v296
    %v306 = vmul.f32 %v301, %v297
    %v307 = vmul.f32 %v301, %v298
    %v308 = vmul.f32 %v301, %v299
    %v309 = vmul.f32 %v301, %v300
    %v310 = vadd.f32 %v284, %v302
    %v311 = vadd.f32 %v285, %v303
    %v312 = vadd.f32 %v286, %v304
    %v313 = vadd.f32 %v287, %v305
    %v314 = vadd.f32 %v288, %v306
    %v315 = vadd.f32 %v289, %v307
    %v316 = vadd.f32 %v290, %v308
    %v317 = vadd.f32 %v291, %v309
    %s318 = sld [smem:[#allocation4 + $0x5]]
    %v319 = vld [vmem:[%s266 + $0x2] sm:$0xff]
    %v320 = vld [vmem:[%s266 + $0x12] sm:$0xff]
    %v321 = vld [vmem:[%s266 + $0x22] sm:$0xff]
    %v322 = vld [vmem:[%s266 + $0x32] sm:$0xff]
    %v323 = vld [vmem:[%s266 + $0x42] sm:$0xff]
    %v324 = vld [vmem:[%s266 + $0x52] sm:$0xff]
    %v325 = vld [vmem:[%s266 + $0x62] sm:$0xff]
    %v326 = vld [vmem:[%s266 + $0x72] sm:$0xff]
    %v327 = vstv %s318
    %v328 = vmul.f32 %v327, %v319
    %v329 = vmul.f32 %v327, %v320
    %v330 = vmul.f32 %v327, %v321
    %v331 = vmul.f32 %v327, %v322
    %v332 = vmul.f32 %v327, %v323
    %v333 = vmul.f32 %v327, %v324
    %v334 = vmul.f32 %v327, %v325
    %v335 = vmul.f32 %v327, %v326
    %v336 = vadd.f32 %v310, %v328
    %v337 = vadd.f32 %v311, %v329
    %v338 = vadd.f32 %v312, %v330
    %v339 = vadd.f32 %v313, %v331
    %v340 = vadd.f32 %v314, %v332
    %v341 = vadd.f32 %v315, %v333
    %v342 = vadd.f32 %v316, %v334
    %v343 = vadd.f32 %v317, %v335
    %s344 = sld [smem:[#allocation4 + $0x6]]
    %s345 = scalar_lea.vmem %s0, 32
    %v346 = vld [vmem:[%s345] sm:$0xff]
    %v347 = vld [vmem:[%s345 + $0x10] sm:$0xff]
    %v348 = vld [vmem:[%s345 + $0x20] sm:$0xff]
    %v349 = vld [vmem:[%s345 + $0x30] sm:$0xff]
    %v350 = vld [vmem:[%s345 + $0x40] sm:$0xff]
    %v351 = vld [vmem:[%s345 + $0x50] sm:$0xff]
    %v352 = vld [vmem:[%s345 + $0x60] sm:$0xff]
    %v353 = vld [vmem:[%s345 + $0x70] sm:$0xff]
    %v354 = vstv %s344
    %v355 = vmul.f32 %v354, %v346
    %v356 = vmul.f32 %v354, %v347
    %v357 = vmul.f32 %v354, %v348
    %v358 = vmul.f32 %v354, %v349
    %v359 = vmul.f32 %v354, %v350
    %v360 = vmul.f32 %v354, %v351
    %v361 = vmul.f32 %v354, %v352
    %v362 = vmul.f32 %v354, %v353
    %v363 = vadd.f32 %v336, %v355
    %v364 = vadd.f32 %v337, %v356
    %v365 = vadd.f32 %v338, %v357
    %v366 = vadd.f32 %v339, %v358
    %v367 = vadd.f32 %v340, %v359
    %v368 = vadd.f32 %v341, %v360
    %v369 = vadd.f32 %v342, %v361
    %v370 = vadd.f32 %v343, %v362
    %s371 = sld [smem:[#allocation4 + $0x7]]
    %v372 = vld [vmem:[%s345 + $0x1] sm:$0xff]
    %v373 = vld [vmem:[%s345 + $0x11] sm:$0xff]
    %v374 = vld [vmem:[%s345 + $0x21] sm:$0xff]
    %v375 = vld [vmem:[%s345 + $0x31] sm:$0xff]
    %v376 = vld [vmem:[%s345 + $0x41] sm:$0xff]
    %v377 = vld [vmem:[%s345 + $0x51] sm:$0xff]
    %v378 = vld [vmem:[%s345 + $0x61] sm:$0xff]
    %v379 = vld [vmem:[%s345 + $0x71] sm:$0xff]
    %v380 = vstv %s371
    %v381 = vmul.f32 %v380, %v372
    %v382 = vmul.f32 %v380, %v373
    %v383 = vmul.f32 %v380, %v374
    %v384 = vmul.f32 %v380, %v375
    %v385 = vmul.f32 %v380, %v376
    %v386 = vmul.f32 %v380, %v377
    %v387 = vmul.f32 %v380, %v378
    %v388 = vmul.f32 %v380, %v379
    %v389 = vadd.f32 %v363, %v381
    %v390 = vadd.f32 %v364, %v382
    %v391 = vadd.f32 %v365, %v383
    %v392 = vadd.f32 %v366, %v384
    %v393 = vadd.f32 %v367, %v385
    %v394 = vadd.f32 %v368, %v386
    %v395 = vadd.f32 %v369, %v387
    %v396 = vadd.f32 %v370, %v388
    %s397 = sld [smem:[#allocation4 + $0x8]]
    %v398 = vld [vmem:[%s345 + $0x2] sm:$0xff]
    %v399 = vld [vmem:[%s345 + $0x12] sm:$0xff]
    %v400 = vld [vmem:[%s345 + $0x22] sm:$0xff]
    %v401 = vld [vmem:[%s345 + $0x32] sm:$0xff]
    %v402 = vld [vmem:[%s345 + $0x42] sm:$0xff]
    %v403 = vld [vmem:[%s345 + $0x52] sm:$0xff]
    %v404 = vld [vmem:[%s345 + $0x62] sm:$0xff]
    %v405 = vld [vmem:[%s345 + $0x72] sm:$0xff]
    %v406 = vstv %s397
    %v407 = vmul.f32 %v406, %v398
    %v408 = vmul.f32 %v406, %v399
    %v409 = vmul.f32 %v406, %v400
    %v410 = vmul.f32 %v406, %v401
    %v411 = vmul.f32 %v406, %v402
    %v412 = vmul.f32 %v406, %v403
    %v413 = vmul.f32 %v406, %v404
    %v414 = vmul.f32 %v406, %v405
    %v415 = vadd.f32 %v389, %v407
    %v416 = vadd.f32 %v390, %v408
    %v417 = vadd.f32 %v391, %v409
    %v418 = vadd.f32 %v392, %v410
    %v419 = vadd.f32 %v393, %v411
    %v420 = vadd.f32 %v394, %v412
    %v421 = vadd.f32 %v395, %v413
    %v422 = vadd.f32 %v396, %v414
    %s423 = sld [smem:[#allocation4 + $0x9]]
    %s424 = scalar_lea.vmem %s0, 160
    %v425 = vld [vmem:[%s424] sm:$0xff]
    %v426 = vld [vmem:[%s424 + $0x10] sm:$0xff]
    %v427 = vld [vmem:[%s424 + $0x20] sm:$0xff]
    %v428 = vld [vmem:[%s424 + $0x30] sm:$0xff]
    %v429 = vld [vmem:[%s424 + $0x40] sm:$0xff]
    %v430 = vld [vmem:[%s424 + $0x50] sm:$0xff]
    %v431 = vld [vmem:[%s424 + $0x60] sm:$0xff]
    %v432 = vld [vmem:[%s424 + $0x70] sm:$0xff]
    %v433 = vstv %s423
    %v434 = vmul.f32 %v433, %v425
    %v435 = vmul.f32 %v433, %v426
    %v436 = vmul.f32 %v433, %v427
    %v437 = vmul.f32 %v433, %v428
    %v438 = vmul.f32 %v433, %v429
    %v439 = vmul.f32 %v433, %v430
    %v440 = vmul.f32 %v433, %v431
    %v441 = vmul.f32 %v433, %v432
    %v442 = vadd.f32 %v415, %v434
    %v443 = vadd.f32 %v416, %v435
    %v444 = vadd.f32 %v417, %v436
    %v445 = vadd.f32 %v418, %v437
    %v446 = vadd.f32 %v419, %v438
    %v447 = vadd.f32 %v420, %v439
    %v448 = vadd.f32 %v421, %v440
    %v449 = vadd.f32 %v422, %v441
    %s450 = sld [smem:[#allocation4 + $0xa]]
    %v451 = vld [vmem:[%s424 + $0x1] sm:$0xff]
    %v452 = vld [vmem:[%s424 + $0x11] sm:$0xff]
    %v453 = vld [vmem:[%s424 + $0x21] sm:$0xff]
    %v454 = vld [vmem:[%s424 + $0x31] sm:$0xff]
    %v455 = vld [vmem:[%s424 + $0x41] sm:$0xff]
    %v456 = vld [vmem:[%s424 + $0x51] sm:$0xff]
    %v457 = vld [vmem:[%s424 + $0x61] sm:$0xff]
    %v458 = vld [vmem:[%s424 + $0x71] sm:$0xff]
    %v459 = vstv %s450
    %v460 = vmul.f32 %v459, %v451
    %v461 = vmul.f32 %v459, %v452
    %v462 = vmul.f32 %v459, %v453
    %v463 = vmul.f32 %v459, %v454
    %v464 = vmul.f32 %v459, %v455
    %v465 = vmul.f32 %v459, %v456
    %v466 = vmul.f32 %v459, %v457
    %v467 = vmul.f32 %v459, %v458
    %v468 = vadd.f32 %v442, %v460
    %v469 = vadd.f32 %v443, %v461
    %v470 = vadd.f32 %v444, %v462
    %v471 = vadd.f32 %v445, %v463
    %v472 = vadd.f32 %v446, %v464
    %v473 = vadd.f32 %v447, %v465
    %v474 = vadd.f32 %v448, %v466
    %v475 = vadd.f32 %v449, %v467
    %s476 = sld [smem:[#allocation4 + $0xb]]
    %v477 = vld [vmem:[%s424 + $0x2] sm:$0xff]
    %v478 = vld [vmem:[%s424 + $0x12] sm:$0xff]
    %v479 = vld [vmem:[%s424 + $0x22] sm:$0xff]
    %v480 = vld [vmem:[%s424 + $0x32] sm:$0xff]
    %v481 = vld [vmem:[%s424 + $0x42] sm:$0xff]
    %v482 = vld [vmem:[%s424 + $0x52] sm:$0xff]
    %v483 = vld [vmem:[%s424 + $0x62] sm:$0xff]
    %v484 = vld [vmem:[%s424 + $0x72] sm:$0xff]
    %v485 = vstv %s476
    %v486 = vmul.f32 %v485, %v477
    %v487 = vmul.f32 %v485, %v478
    %v488 = vmul.f32 %v485, %v479
    %v489 = vmul.f32 %v485, %v480
    %v490 = vmul.f32 %v485, %v481
    %v491 = vmul.f32 %v485, %v482
    %v492 = vmul.f32 %v485, %v483
    %v493 = vmul.f32 %v485, %v484
    %v494 = vadd.f32 %v468, %v486
    %v495 = vadd.f32 %v469, %v487
    %v496 = vadd.f32 %v470, %v488
    %v497 = vadd.f32 %v471, %v489
    %v498 = vadd.f32 %v472, %v490
    %v499 = vadd.f32 %v473, %v491
    %v500 = vadd.f32 %v474, %v492
    %v501 = vadd.f32 %v475, %v493
    %s502 = sld [smem:[#allocation4 + $0xc]]
    %s503 = scalar_lea.vmem %s0, 176
    %v504 = vld [vmem:[%s503] sm:$0xff]
    %v505 = vld [vmem:[%s503 + $0x10] sm:$0xff]
    %v506 = vld [vmem:[%s503 + $0x20] sm:$0xff]
    %v507 = vld [vmem:[%s503 + $0x30] sm:$0xff]
    %v508 = vld [vmem:[%s503 + $0x40] sm:$0xff]
    %v509 = vld [vmem:[%s503 + $0x50] sm:$0xff]
    %v510 = vld [vmem:[%s503 + $0x60] sm:$0xff]
    %v511 = vld [vmem:[%s503 + $0x70] sm:$0xff]
    %v512 = vstv %s502
    %v513 = vmul.f32 %v512, %v504
    %v514 = vmul.f32 %v512, %v505
    %v515 = vmul.f32 %v512, %v506
    %v516 = vmul.f32 %v512, %v507
    %v517 = vmul.f32 %v512, %v508
    %v518 = vmul.f32 %v512, %v509
    %v519 = vmul.f32 %v512, %v510
    %v520 = vmul.f32 %v512, %v511
    %v521 = vadd.f32 %v494, %v513
    %v522 = vadd.f32 %v495, %v514
    %v523 = vadd.f32 %v496, %v515
    %v524 = vadd.f32 %v497, %v516
    %v525 = vadd.f32 %v498, %v517
    %v526 = vadd.f32 %v499, %v518
    %v527 = vadd.f32 %v500, %v519
    %v528 = vadd.f32 %v501, %v520
    %s529 = sld [smem:[#allocation4 + $0xd]]
    %v530 = vld [vmem:[%s503 + $0x1] sm:$0xff]
    %v531 = vld [vmem:[%s503 + $0x11] sm:$0xff]
    %v532 = vld [vmem:[%s503 + $0x21] sm:$0xff]
    %v533 = vld [vmem:[%s503 + $0x31] sm:$0xff]
    %v534 = vld [vmem:[%s503 + $0x41] sm:$0xff]
    %v535 = vld [vmem:[%s503 + $0x51] sm:$0xff]
    %v536 = vld [vmem:[%s503 + $0x61] sm:$0xff]
    %v537 = vld [vmem:[%s503 + $0x71] sm:$0xff]
    %v538 = vstv %s529
    %v539 = vmul.f32 %v538, %v530
    %v540 = vmul.f32 %v538, %v531
    %v541 = vmul.f32 %v538, %v532
    %v542 = vmul.f32 %v538, %v533
    %v543 = vmul.f32 %v538, %v534
    %v544 = vmul.f32 %v538, %v535
    %v545 = vmul.f32 %v538, %v536
    %v546 = vmul.f32 %v538, %v537
    %v547 = vadd.f32 %v521, %v539
    %v548 = vadd.f32 %v522, %v540
    %v549 = vadd.f32 %v523, %v541
    %v550 = vadd.f32 %v524, %v542
    %v551 = vadd.f32 %v525, %v543
    %v552 = vadd.f32 %v526, %v544
    %v553 = vadd.f32 %v527, %v545
    %v554 = vadd.f32 %v528, %v546
    %s555 = sld [smem:[#allocation4 + $0xe]]
    %v556 = vld [vmem:[%s503 + $0x2] sm:$0xff]
    %v557 = vld [vmem:[%s503 + $0x12] sm:$0xff]
    %v558 = vld [vmem:[%s503 + $0x22] sm:$0xff]
    %v559 = vld [vmem:[%s503 + $0x32] sm:$0xff]
    %v560 = vld [vmem:[%s503 + $0x42] sm:$0xff]
    %v561 = vld [vmem:[%s503 + $0x52] sm:$0xff]
    %v562 = vld [vmem:[%s503 + $0x62] sm:$0xff]
    %v563 = vld [vmem:[%s503 + $0x72] sm:$0xff]
    %v564 = vstv %s555
    %v565 = vmul.f32 %v564, %v556
    %v566 = vmul.f32 %v564, %v557
    %v567 = vmul.f32 %v564, %v558
    %v568 = vmul.f32 %v564, %v559
    %v569 = vmul.f32 %v564, %v560
    %v570 = vmul.f32 %v564, %v561
    %v571 = vmul.f32 %v564, %v562
    %v572 = vmul.f32 %v564, %v563
    %v573 = vadd.f32 %v547, %v565
    %v574 = vadd.f32 %v548, %v566
    %v575 = vadd.f32 %v549, %v567
    %v576 = vadd.f32 %v550, %v568
    %v577 = vadd.f32 %v551, %v569
    %v578 = vadd.f32 %v552, %v570
    %v579 = vadd.f32 %v553, %v571
    %v580 = vadd.f32 %v554, %v572
    %s581 = sld [smem:[#allocation4 + $0xf]]
    %s582 = scalar_lea.vmem %s0, 192
    %v583 = vld [vmem:[%s582] sm:$0xff]
    %v584 = vld [vmem:[%s582 + $0x10] sm:$0xff]
    %v585 = vld [vmem:[%s582 + $0x20] sm:$0xff]
    %v586 = vld [vmem:[%s582 + $0x30] sm:$0xff]
    %v587 = vld [vmem:[%s582 + $0x40] sm:$0xff]
    %v588 = vld [vmem:[%s582 + $0x50] sm:$0xff]
    %v589 = vld [vmem:[%s582 + $0x60] sm:$0xff]
    %v590 = vld [vmem:[%s582 + $0x70] sm:$0xff]
    %v591 = vstv %s581
    %v592 = vmul.f32 %v591, %v583
    %v593 = vmul.f32 %v591, %v584
    %v594 = vmul.f32 %v591, %v585
    %v595 = vmul.f32 %v591, %v586
    %v596 = vmul.f32 %v591, %v587
    %v597 = vmul.f32 %v591, %v588
    %v598 = vmul.f32 %v591, %v589
    %v599 = vmul.f32 %v591, %v590
    %v600 = vadd.f32 %v573, %v592
    %v601 = vadd.f32 %v574, %v593
    %v602 = vadd.f32 %v575, %v594
    %v603 = vadd.f32 %v576, %v595
    %v604 = vadd.f32 %v577, %v596
    %v605 = vadd.f32 %v578, %v597
    %v606 = vadd.f32 %v579, %v598
    %v607 = vadd.f32 %v580, %v599
    %s608 = sld [smem:[#allocation4 + $0x10]]
    %v609 = vld [vmem:[%s582 + $0x1] sm:$0xff]
    %v610 = vld [vmem:[%s582 + $0x11] sm:$0xff]
    %v611 = vld [vmem:[%s582 + $0x21] sm:$0xff]
    %v612 = vld [vmem:[%s582 + $0x31] sm:$0xff]
    %v613 = vld [vmem:[%s582 + $0x41] sm:$0xff]
    %v614 = vld [vmem:[%s582 + $0x51] sm:$0xff]
    %v615 = vld [vmem:[%s582 + $0x61] sm:$0xff]
    %v616 = vld [vmem:[%s582 + $0x71] sm:$0xff]
    %v617 = vstv %s608
    %v618 = vmul.f32 %v617, %v609
    %v619 = vmul.f32 %v617, %v610
    %v620 = vmul.f32 %v617, %v611
    %v621 = vmul.f32 %v617, %v612
    %v622 = vmul.f32 %v617, %v613
    %v623 = vmul.f32 %v617, %v614
    %v624 = vmul.f32 %v617, %v615
    %v625 = vmul.f32 %v617, %v616
    %v626 = vadd.f32 %v600, %v618
    %v627 = vadd.f32 %v601, %v619
    %v628 = vadd.f32 %v602, %v620
    %v629 = vadd.f32 %v603, %v621
    %v630 = vadd.f32 %v604, %v622
    %v631 = vadd.f32 %v605, %v623
    %v632 = vadd.f32 %v606, %v624
    %v633 = vadd.f32 %v607, %v625
    %s634 = sld [smem:[#allocation4 + $0x11]]
    %v635 = vld [vmem:[%s582 + $0x2] sm:$0xff]
    %v636 = vld [vmem:[%s582 + $0x12] sm:$0xff]
    %v637 = vld [vmem:[%s582 + $0x22] sm:$0xff]
    %v638 = vld [vmem:[%s582 + $0x32] sm:$0xff]
    %v639 = vld [vmem:[%s582 + $0x42] sm:$0xff]
    %v640 = vld [vmem:[%s582 + $0x52] sm:$0xff]
    %v641 = vld [vmem:[%s582 + $0x62] sm:$0xff]
    %v642 = vld [vmem:[%s582 + $0x72] sm:$0xff]
    %v643 = vstv %s634
    %v644 = vmul.f32 %v643, %v635
    %v645 = vmul.f32 %v643, %v636
    %v646 = vmul.f32 %v643, %v637
    %v647 = vmul.f32 %v643, %v638
    %v648 = vmul.f32 %v643, %v639
    %v649 = vmul.f32 %v643, %v640
    %v650 = vmul.f32 %v643, %v641
    %v651 = vmul.f32 %v643, %v642
    %v652 = vadd.f32 %v626, %v644
    %v653 = vadd.f32 %v627, %v645
    %v654 = vadd.f32 %v628, %v646
    %v655 = vadd.f32 %v629, %v647
    %v656 = vadd.f32 %v630, %v648
    %v657 = vadd.f32 %v631, %v649
    %v658 = vadd.f32 %v632, %v650
    %v659 = vadd.f32 %v633, %v651
    %s660 = sld [smem:[#allocation6]]
    %v661 = vstv %s660
    %v662 = vadd.f32 %v652, %v661
    %v663 = vadd.f32 %v653, %v661
    %v664 = vadd.f32 %v654, %v661
    %v665 = vadd.f32 %v655, %v661
    %v666 = vadd.f32 %v656, %v661
    %v667 = vadd.f32 %v657, %v661
    %v668 = vadd.f32 %v658, %v661
    %v669 = vadd.f32 %v659, %v661
    %v670 = vmax.f32 %v662, 0.0
    %v671 = vmax.f32 %v663, 0.0
    %v672 = vmax.f32 %v664, 0.0
    %v673 = vmax.f32 %v665, 0.0
    %v674 = vmax.f32 %v666, 0.0
    %v675 = vmax.f32 %v667, 0.0
    %v676 = vmax.f32 %v668, 0.0
    %v677 = vmax.f32 %v669, 0.0
    %s678 = scalar_lea.vmem [#allocation2], 16
    %679 = vst.msk [vmem:[%s678 + $0x1] sm:$0xff] %vm87, %v670
    %680 = vst.msk [vmem:[%s678 + $0x11] sm:$0xff] %vm87, %v671
    %681 = vst.msk [vmem:[%s678 + $0x21] sm:$0xff] %vm87, %v672
    %682 = vst.msk [vmem:[%s678 + $0x31] sm:$0xff] %vm87, %v673
    %683 = vst.msk [vmem:[%s678 + $0x41] sm:$0xff] %vm87, %v674
    %684 = vst.msk [vmem:[%s678 + $0x51] sm:$0xff] %vm87, %v675
    %685 = vst.msk [vmem:[%s678 + $0x61] sm:$0xff] %vm87, %v676
    %686 = vst.msk [vmem:[%s678 + $0x71] sm:$0xff] %vm87, %v677
    %s687 = sld [smem:[#allocation4 + $0x12]]
    %v688 = vld [vmem:[%s0] sm:$0xff]
    %v689 = vld [vmem:[%s0 + $0x10] sm:$0xff]
    %v690 = vld [vmem:[%s0 + $0x20] sm:$0xff]
    %v691 = vld [vmem:[%s0 + $0x30] sm:$0xff]
    %v692 = vld [vmem:[%s0 + $0x40] sm:$0xff]
    %v693 = vld [vmem:[%s0 + $0x50] sm:$0xff]
    %v694 = vld [vmem:[%s0 + $0x60] sm:$0xff]
    %v695 = vld [vmem:[%s0 + $0x70] sm:$0xff]
    %v696 = vstv %s687
    %v697 = vmul.f32 %v696, %v688
    %v698 = vmul.f32 %v696, %v689
    %v699 = vmul.f32 %v696, %v690
    %v700 = vmul.f32 %v696, %v691
    %v701 = vmul.f32 %v696, %v692
    %v702 = vmul.f32 %v696, %v693
    %v703 = vmul.f32 %v696, %v694
    %v704 = vmul.f32 %v696, %v695
    %v705 = vadd.f32 %v697, 0.0
    %v706 = vadd.f32 %v698, 0.0
    %v707 = vadd.f32 %v699, 0.0
    %v708 = vadd.f32 %v700, 0.0
    %v709 = vadd.f32 %v701, 0.0
    %v710 = vadd.f32 %v702, 0.0
    %v711 = vadd.f32 %v703, 0.0
    %v712 = vadd.f32 %v704, 0.0
    %s713 = sld [smem:[#allocation4 + $0x13]]
    %v714 = vld [vmem:[%s0 + $0x1] sm:$0xff]
    %v715 = vld [vmem:[%s0 + $0x11] sm:$0xff]
    %v716 = vld [vmem:[%s0 + $0x21] sm:$0xff]
    %v717 = vld [vmem:[%s0 + $0x31] sm:$0xff]
    %v718 = vld [vmem:[%s0 + $0x41] sm:$0xff]
    %v719 = vld [vmem:[%s0 + $0x51] sm:$0xff]
    %v720 = vld [vmem:[%s0 + $0x61] sm:$0xff]
    %v721 = vld [vmem:[%s0 + $0x71] sm:$0xff]
    %v722 = vstv %s713
    %v723 = vmul.f32 %v722, %v714
    %v724 = vmul.f32 %v722, %v715
    %v725 = vmul.f32 %v722, %v716
    %v726 = vmul.f32 %v722, %v717
    %v727 = vmul.f32 %v722, %v718
    %v728 = vmul.f32 %v722, %v719
    %v729 = vmul.f32 %v722, %v720
    %v730 = vmul.f32 %v722, %v721
    %v731 = vadd.f32 %v705, %v723
    %v732 = vadd.f32 %v706, %v724
    %v733 = vadd.f32 %v707, %v725
    %v734 = vadd.f32 %v708, %v726
    %v735 = vadd.f32 %v709, %v727
    %v736 = vadd.f32 %v710, %v728
    %v737 = vadd.f32 %v711, %v729
    %v738 = vadd.f32 %v712, %v730
    %s739 = sld [smem:[#allocation4 + $0x14]]
    %v740 = vld [vmem:[%s0 + $0x2] sm:$0xff]
    %v741 = vld [vmem:[%s0 + $0x12] sm:$0xff]
    %v742 = vld [vmem:[%s0 + $0x22] sm:$0xff]
    %v743 = vld [vmem:[%s0 + $0x32] sm:$0xff]
    %v744 = vld [vmem:[%s0 + $0x42] sm:$0xff]
    %v745 = vld [vmem:[%s0 + $0x52] sm:$0xff]
    %v746 = vld [vmem:[%s0 + $0x62] sm:$0xff]
    %v747 = vld [vmem:[%s0 + $0x72] sm:$0xff]
    %v748 = vstv %s739
    %v749 = vmul.f32 %v748, %v740
    %v750 = vmul.f32 %v748, %v741
    %v751 = vmul.f32 %v748, %v742
    %v752 = vmul.f32 %v748, %v743
    %v753 = vmul.f32 %v748, %v744
    %v754 = vmul.f32 %v748, %v745
    %v755 = vmul.f32 %v748, %v746
    %v756 = vmul.f32 %v748, %v747
    %v757 = vadd.f32 %v731, %v749
    %v758 = vadd.f32 %v732, %v750
    %v759 = vadd.f32 %v733, %v751
    %v760 = vadd.f32 %v734, %v752
    %v761 = vadd.f32 %v735, %v753
    %v762 = vadd.f32 %v736, %v754
    %v763 = vadd.f32 %v737, %v755
    %v764 = vadd.f32 %v738, %v756
    %s765 = sld [smem:[#allocation4 + $0x15]]
    %v766 = vld [vmem:[%s266] sm:$0xff]
    %v767 = vld [vmem:[%s266 + $0x10] sm:$0xff]
    %v768 = vld [vmem:[%s266 + $0x20] sm:$0xff]
    %v769 = vld [vmem:[%s266 + $0x30] sm:$0xff]
    %v770 = vld [vmem:[%s266 + $0x40] sm:$0xff]
    %v771 = vld [vmem:[%s266 + $0x50] sm:$0xff]
    %v772 = vld [vmem:[%s266 + $0x60] sm:$0xff]
    %v773 = vld [vmem:[%s266 + $0x70] sm:$0xff]
    %v774 = vstv %s765
    %v775 = vmul.f32 %v774, %v766
    %v776 = vmul.f32 %v774, %v767
    %v777 = vmul.f32 %v774, %v768
    %v778 = vmul.f32 %v774, %v769
    %v779 = vmul.f32 %v774, %v770
    %v780 = vmul.f32 %v774, %v771
    %v781 = vmul.f32 %v774, %v772
    %v782 = vmul.f32 %v774, %v773
    %v783 = vadd.f32 %v757, %v775
    %v784 = vadd.f32 %v758, %v776
    %v785 = vadd.f32 %v759, %v777
    %v786 = vadd.f32 %v760, %v778
    %v787 = vadd.f32 %v761, %v779
    %v788 = vadd.f32 %v762, %v780
    %v789 = vadd.f32 %v763, %v781
    %v790 = vadd.f32 %v764, %v782
    %s791 = sld [smem:[#allocation4 + $0x16]]
    %v792 = vld [vmem:[%s266 + $0x1] sm:$0xff]
    %v793 = vld [vmem:[%s266 + $0x11] sm:$0xff]
    %v794 = vld [vmem:[%s266 + $0x21] sm:$0xff]
    %v795 = vld [vmem:[%s266 + $0x31] sm:$0xff]
    %v796 = vld [vmem:[%s266 + $0x41] sm:$0xff]
    %v797 = vld [vmem:[%s266 + $0x51] sm:$0xff]
    %v798 = vld [vmem:[%s266 + $0x61] sm:$0xff]
    %v799 = vld [vmem:[%s266 + $0x71] sm:$0xff]
    %v800 = vstv %s791
    %v801 = vmul.f32 %v800, %v792
    %v802 = vmul.f32 %v800, %v793
    %v803 = vmul.f32 %v800, %v794
    %v804 = vmul.f32 %v800, %v795
    %v805 = vmul.f32 %v800, %v796
    %v806 = vmul.f32 %v800, %v797
    %v807 = vmul.f32 %v800, %v798
    %v808 = vmul.f32 %v800, %v799
    %v809 = vadd.f32 %v783, %v801
    %v810 = vadd.f32 %v784, %v802
    %v811 = vadd.f32 %v785, %v803
    %v812 = vadd.f32 %v786, %v804
    %v813 = vadd.f32 %v787, %v805
    %v814 = vadd.f32 %v788, %v806
    %v815 = vadd.f32 %v789, %v807
    %v816 = vadd.f32 %v790, %v808
    %s817 = sld [smem:[#allocation4 + $0x17]]
    %v818 = vld [vmem:[%s266 + $0x2] sm:$0xff]
    %v819 = vld [vmem:[%s266 + $0x12] sm:$0xff]
    %v820 = vld [vmem:[%s266 + $0x22] sm:$0xff]
    %v821 = vld [vmem:[%s266 + $0x32] sm:$0xff]
    %v822 = vld [vmem:[%s266 + $0x42] sm:$0xff]
    %v823 = vld [vmem:[%s266 + $0x52] sm:$0xff]
    %v824 = vld [vmem:[%s266 + $0x62] sm:$0xff]
    %v825 = vld [vmem:[%s266 + $0x72] sm:$0xff]
    %v826 = vstv %s817
    %v827 = vmul.f32 %v826, %v818
    %v828 = vmul.f32 %v826, %v819
    %v829 = vmul.f32 %v826, %v820
    %v830 = vmul.f32 %v826, %v821
    %v831 = vmul.f32 %v826, %v822
    %v832 = vmul.f32 %v826, %v823
    %v833 = vmul.f32 %v826, %v824
    %v834 = vmul.f32 %v826, %v825
    %v835 = vadd.f32 %v809, %v827
    %v836 = vadd.f32 %v810, %v828
    %v837 = vadd.f32 %v811, %v829
    %v838 = vadd.f32 %v812, %v830
    %v839 = vadd.f32 %v813, %v831
    %v840 = vadd.f32 %v814, %v832
    %v841 = vadd.f32 %v815, %v833
    %v842 = vadd.f32 %v816, %v834
    %s843 = sld [smem:[#allocation4 + $0x18]]
    %v844 = vld [vmem:[%s345] sm:$0xff]
    %v845 = vld [vmem:[%s345 + $0x10] sm:$0xff]
    %v846 = vld [vmem:[%s345 + $0x20] sm:$0xff]
    %v847 = vld [vmem:[%s345 + $0x30] sm:$0xff]
    %v848 = vld [vmem:[%s345 + $0x40] sm:$0xff]
    %v849 = vld [vmem:[%s345 + $0x50] sm:$0xff]
    %v850 = vld [vmem:[%s345 + $0x60] sm:$0xff]
    %v851 = vld [vmem:[%s345 + $0x70] sm:$0xff]
    %v852 = vstv %s843
    %v853 = vmul.f32 %v852, %v844
    %v854 = vmul.f32 %v852, %v845
    %v855 = vmul.f32 %v852, %v846
    %v856 = vmul.f32 %v852, %v847
    %v857 = vmul.f32 %v852, %v848
    %v858 = vmul.f32 %v852, %v849
    %v859 = vmul.f32 %v852, %v850
    %v860 = vmul.f32 %v852, %v851
    %v861 = vadd.f32 %v835, %v853
    %v862 = vadd.f32 %v836, %v854
    %v863 = vadd.f32 %v837, %v855
    %v864 = vadd.f32 %v838, %v856
    %v865 = vadd.f32 %v839, %v857
    %v866 = vadd.f32 %v840, %v858
    %v867 = vadd.f32 %v841, %v859
    %v868 = vadd.f32 %v842, %v860
    %s869 = sld [smem:[#allocation4 + $0x19]]
    %v870 = vld [vmem:[%s345 + $0x1] sm:$0xff]
    %v871 = vld [vmem:[%s345 + $0x11] sm:$0xff]
    %v872 = vld [vmem:[%s345 + $0x21] sm:$0xff]
    %v873 = vld [vmem:[%s345 + $0x31] sm:$0xff]
    %v874 = vld [vmem:[%s345 + $0x41] sm:$0xff]
    %v875 = vld [vmem:[%s345 + $0x51] sm:$0xff]
    %v876 = vld [vmem:[%s345 + $0x61] sm:$0xff]
    %v877 = vld [vmem:[%s345 + $0x71] sm:$0xff]
    %v878 = vstv %s869
    %v879 = vmul.f32 %v878, %v870
    %v880 = vmul.f32 %v878, %v871
    %v881 = vmul.f32 %v878, %v872
    %v882 = vmul.f32 %v878, %v873
    %v883 = vmul.f32 %v878, %v874
    %v884 = vmul.f32 %v878, %v875
    %v885 = vmul.f32 %v878, %v876
    %v886 = vmul.f32 %v878, %v877
    %v887 = vadd.f32 %v861, %v879
    %v888 = vadd.f32 %v862, %v880
    %v889 = vadd.f32 %v863, %v881
    %v890 = vadd.f32 %v864, %v882
    %v891 = vadd.f32 %v865, %v883
    %v892 = vadd.f32 %v866, %v884
    %v893 = vadd.f32 %v867, %v885
    %v894 = vadd.f32 %v868, %v886
    %s895 = sld [smem:[#allocation4 + $0x1a]]
    %v896 = vld [vmem:[%s345 + $0x2] sm:$0xff]
    %v897 = vld [vmem:[%s345 + $0x12] sm:$0xff]
    %v898 = vld [vmem:[%s345 + $0x22] sm:$0xff]
    %v899 = vld [vmem:[%s345 + $0x32] sm:$0xff]
    %v900 = vld [vmem:[%s345 + $0x42] sm:$0xff]
    %v901 = vld [vmem:[%s345 + $0x52] sm:$0xff]
    %v902 = vld [vmem:[%s345 + $0x62] sm:$0xff]
    %v903 = vld [vmem:[%s345 + $0x72] sm:$0xff]
    %v904 = vstv %s895
    %v905 = vmul.f32 %v904, %v896
    %v906 = vmul.f32 %v904, %v897
    %v907 = vmul.f32 %v904, %v898
    %v908 = vmul.f32 %v904, %v899
    %v909 = vmul.f32 %v904, %v900
    %v910 = vmul.f32 %v904, %v901
    %v911 = vmul.f32 %v904, %v902
    %v912 = vmul.f32 %v904, %v903
    %v913 = vadd.f32 %v887, %v905
    %v914 = vadd.f32 %v888, %v906
    %v915 = vadd.f32 %v889, %v907
    %v916 = vadd.f32 %v890, %v908
    %v917 = vadd.f32 %v891, %v909
    %v918 = vadd.f32 %v892, %v910
    %v919 = vadd.f32 %v893, %v911
    %v920 = vadd.f32 %v894, %v912
    %s921 = sld [smem:[#allocation4 + $0x1b]]
    %v922 = vld [vmem:[%s424] sm:$0xff]
    %v923 = vld [vmem:[%s424 + $0x10] sm:$0xff]
    %v924 = vld [vmem:[%s424 + $0x20] sm:$0xff]
    %v925 = vld [vmem:[%s424 + $0x30] sm:$0xff]
    %v926 = vld [vmem:[%s424 + $0x40] sm:$0xff]
    %v927 = vld [vmem:[%s424 + $0x50] sm:$0xff]
    %v928 = vld [vmem:[%s424 + $0x60] sm:$0xff]
    %v929 = vld [vmem:[%s424 + $0x70] sm:$0xff]
    %v930 = vstv %s921
    %v931 = vmul.f32 %v930, %v922
    %v932 = vmul.f32 %v930, %v923
    %v933 = vmul.f32 %v930, %v924
    %v934 = vmul.f32 %v930, %v925
    %v935 = vmul.f32 %v930, %v926
    %v936 = vmul.f32 %v930, %v927
    %v937 = vmul.f32 %v930, %v928
    %v938 = vmul.f32 %v930, %v929
    %v939 = vadd.f32 %v913, %v931
    %v940 = vadd.f32 %v914, %v932
    %v941 = vadd.f32 %v915, %v933
    %v942 = vadd.f32 %v916, %v934
    %v943 = vadd.f32 %v917, %v935
    %v944 = vadd.f32 %v918, %v936
    %v945 = vadd.f32 %v919, %v937
    %v946 = vadd.f32 %v920, %v938
    %s947 = sld [smem:[#allocation4 + $0x1c]]
    %v948 = vld [vmem:[%s424 + $0x1] sm:$0xff]
    %v949 = vld [vmem:[%s424 + $0x11] sm:$0xff]
    %v950 = vld [vmem:[%s424 + $0x21] sm:$0xff]
    %v951 = vld [vmem:[%s424 + $0x31] sm:$0xff]
    %v952 = vld [vmem:[%s424 + $0x41] sm:$0xff]
    %v953 = vld [vmem:[%s424 + $0x51] sm:$0xff]
    %v954 = vld [vmem:[%s424 + $0x61] sm:$0xff]
    %v955 = vld [vmem:[%s424 + $0x71] sm:$0xff]
    %v956 = vstv %s947
    %v957 = vmul.f32 %v956, %v948
    %v958 = vmul.f32 %v956, %v949
    %v959 = vmul.f32 %v956, %v950
    %v960 = vmul.f32 %v956, %v951
    %v961 = vmul.f32 %v956, %v952
    %v962 = vmul.f32 %v956, %v953
    %v963 = vmul.f32 %v956, %v954
    %v964 = vmul.f32 %v956, %v955
    %v965 = vadd.f32 %v939, %v957
    %v966 = vadd.f32 %v940, %v958
    %v967 = vadd.f32 %v941, %v959
    %v968 = vadd.f32 %v942, %v960
    %v969 = vadd.f32 %v943, %v961
    %v970 = vadd.f32 %v944, %v962
    %v971 = vadd.f32 %v945, %v963
    %v972 = vadd.f32 %v946, %v964
    %s973 = sld [smem:[#allocation4 + $0x1d]]
    %v974 = vld [vmem:[%s424 + $0x2] sm:$0xff]
    %v975 = vld [vmem:[%s424 + $0x12] sm:$0xff]
    %v976 = vld [vmem:[%s424 + $0x22] sm:$0xff]
    %v977 = vld [vmem:[%s424 + $0x32] sm:$0xff]
    %v978 = vld [vmem:[%s424 + $0x42] sm:$0xff]
    %v979 = vld [vmem:[%s424 + $0x52] sm:$0xff]
    %v980 = vld [vmem:[%s424 + $0x62] sm:$0xff]
    %v981 = vld [vmem:[%s424 + $0x72] sm:$0xff]
    %v982 = vstv %s973
    %v983 = vmul.f32 %v982, %v974
    %v984 = vmul.f32 %v982, %v975
    %v985 = vmul.f32 %v982, %v976
    %v986 = vmul.f32 %v982, %v977
    %v987 = vmul.f32 %v982, %v978
    %v988 = vmul.f32 %v982, %v979
    %v989 = vmul.f32 %v982, %v980
    %v990 = vmul.f32 %v982, %v981
    %v991 = vadd.f32 %v965, %v983
    %v992 = vadd.f32 %v966, %v984
    %v993 = vadd.f32 %v967, %v985
    %v994 = vadd.f32 %v968, %v986
    %v995 = vadd.f32 %v969, %v987
    %v996 = vadd.f32 %v970, %v988
    %v997 = vadd.f32 %v971, %v989
    %v998 = vadd.f32 %v972, %v990
    %s999 = sld [smem:[#allocation4 + $0x1e]]
    %v1000 = vld [vmem:[%s503] sm:$0xff]
    %v1001 = vld [vmem:[%s503 + $0x10] sm:$0xff]
    %v1002 = vld [vmem:[%s503 + $0x20] sm:$0xff]
    %v1003 = vld [vmem:[%s503 + $0x30] sm:$0xff]
    %v1004 = vld [vmem:[%s503 + $0x40] sm:$0xff]
    %v1005 = vld [vmem:[%s503 + $0x50] sm:$0xff]
    %v1006 = vld [vmem:[%s503 + $0x60] sm:$0xff]
    %v1007 = vld [vmem:[%s503 + $0x70] sm:$0xff]
    %v1008 = vstv %s999
    %v1009 = vmul.f32 %v1008, %v1000
    %v1010 = vmul.f32 %v1008, %v1001
    %v1011 = vmul.f32 %v1008, %v1002
    %v1012 = vmul.f32 %v1008, %v1003
    %v1013 = vmul.f32 %v1008, %v1004
    %v1014 = vmul.f32 %v1008, %v1005
    %v1015 = vmul.f32 %v1008, %v1006
    %v1016 = vmul.f32 %v1008, %v1007
    %v1017 = vadd.f32 %v991, %v1009
    %v1018 = vadd.f32 %v992, %v1010
    %v1019 = vadd.f32 %v993, %v1011
    %v1020 = vadd.f32 %v994, %v1012
    %v1021 = vadd.f32 %v995, %v1013
    %v1022 = vadd.f32 %v996, %v1014
    %v1023 = vadd.f32 %v997, %v1015
    %v1024 = vadd.f32 %v998, %v1016
    %s1025 = sld [smem:[#allocation4 + $0x1f]]
    %v1026 = vld [vmem:[%s503 + $0x1] sm:$0xff]
    %v1027 = vld [vmem:[%s503 + $0x11] sm:$0xff]
    %v1028 = vld [vmem:[%s503 + $0x21] sm:$0xff]
    %v1029 = vld [vmem:[%s503 + $0x31] sm:$0xff]
    %v1030 = vld [vmem:[%s503 + $0x41] sm:$0xff]
    %v1031 = vld [vmem:[%s503 + $0x51] sm:$0xff]
    %v1032 = vld [vmem:[%s503 + $0x61] sm:$0xff]
    %v1033 = vld [vmem:[%s503 + $0x71] sm:$0xff]
    %v1034 = vstv %s1025
    %v1035 = vmul.f32 %v1034, %v1026
    %v1036 = vmul.f32 %v1034, %v1027
    %v1037 = vmul.f32 %v1034, %v1028
    %v1038 = vmul.f32 %v1034, %v1029
    %v1039 = vmul.f32 %v1034, %v1030
    %v1040 = vmul.f32 %v1034, %v1031
    %v1041 = vmul.f32 %v1034, %v1032
    %v1042 = vmul.f32 %v1034, %v1033
    %v1043 = vadd.f32 %v1017, %v1035
    %v1044 = vadd.f32 %v1018, %v1036
    %v1045 = vadd.f32 %v1019, %v1037
    %v1046 = vadd.f32 %v1020, %v1038
    %v1047 = vadd.f32 %v1021, %v1039
    %v1048 = vadd.f32 %v1022, %v1040
    %v1049 = vadd.f32 %v1023, %v1041
    %v1050 = vadd.f32 %v1024, %v1042
    %s1051 = sld [smem:[#allocation4 + $0x20]]
    %v1052 = vld [vmem:[%s503 + $0x2] sm:$0xff]
    %v1053 = vld [vmem:[%s503 + $0x12] sm:$0xff]
    %v1054 = vld [vmem:[%s503 + $0x22] sm:$0xff]
    %v1055 = vld [vmem:[%s503 + $0x32] sm:$0xff]
    %v1056 = vld [vmem:[%s503 + $0x42] sm:$0xff]
    %v1057 = vld [vmem:[%s503 + $0x52] sm:$0xff]
    %v1058 = vld [vmem:[%s503 + $0x62] sm:$0xff]
    %v1059 = vld [vmem:[%s503 + $0x72] sm:$0xff]
    %v1060 = vstv %s1051
    %v1061 = vmul.f32 %v1060, %v1052
    %v1062 = vmul.f32 %v1060, %v1053
    %v1063 = vmul.f32 %v1060, %v1054
    %v1064 = vmul.f32 %v1060, %v1055
    %v1065 = vmul.f32 %v1060, %v1056
    %v1066 = vmul.f32 %v1060, %v1057
    %v1067 = vmul.f32 %v1060, %v1058
    %v1068 = vmul.f32 %v1060, %v1059
    %v1069 = vadd.f32 %v1043, %v1061
    %v1070 = vadd.f32 %v1044, %v1062
    %v1071 = vadd.f32 %v1045, %v1063
    %v1072 = vadd.f32 %v1046, %v1064
    %v1073 = vadd.f32 %v1047, %v1065
    %v1074 = vadd.f32 %v1048, %v1066
    %v1075 = vadd.f32 %v1049, %v1067
    %v1076 = vadd.f32 %v1050, %v1068
    %s1077 = sld [smem:[#allocation4 + $0x21]]
    %v1078 = vld [vmem:[%s582] sm:$0xff]
    %v1079 = vld [vmem:[%s582 + $0x10] sm:$0xff]
    %v1080 = vld [vmem:[%s582 + $0x20] sm:$0xff]
    %v1081 = vld [vmem:[%s582 + $0x30] sm:$0xff]
    %v1082 = vld [vmem:[%s582 + $0x40] sm:$0xff]
    %v1083 = vld [vmem:[%s582 + $0x50] sm:$0xff]
    %v1084 = vld [vmem:[%s582 + $0x60] sm:$0xff]
    %v1085 = vld [vmem:[%s582 + $0x70] sm:$0xff]
    %v1086 = vstv %s1077
    %v1087 = vmul.f32 %v1086, %v1078
    %v1088 = vmul.f32 %v1086, %v1079
    %v1089 = vmul.f32 %v1086, %v1080
    %v1090 = vmul.f32 %v1086, %v1081
    %v1091 = vmul.f32 %v1086, %v1082
    %v1092 = vmul.f32 %v1086, %v1083
    %v1093 = vmul.f32 %v1086, %v1084
    %v1094 = vmul.f32 %v1086, %v1085
    %v1095 = vadd.f32 %v1069, %v1087
    %v1096 = vadd.f32 %v1070, %v1088
    %v1097 = vadd.f32 %v1071, %v1089
    %v1098 = vadd.f32 %v1072, %v1090
    %v1099 = vadd.f32 %v1073, %v1091
    %v1100 = vadd.f32 %v1074, %v1092
    %v1101 = vadd.f32 %v1075, %v1093
    %v1102 = vadd.f32 %v1076, %v1094
    %s1103 = sld [smem:[#allocation4 + $0x22]]
    %v1104 = vld [vmem:[%s582 + $0x1] sm:$0xff]
    %v1105 = vld [vmem:[%s582 + $0x11] sm:$0xff]
    %v1106 = vld [vmem:[%s582 + $0x21] sm:$0xff]
    %v1107 = vld [vmem:[%s582 + $0x31] sm:$0xff]
    %v1108 = vld [vmem:[%s582 + $0x41] sm:$0xff]
    %v1109 = vld [vmem:[%s582 + $0x51] sm:$0xff]
    %v1110 = vld [vmem:[%s582 + $0x61] sm:$0xff]
    %v1111 = vld [vmem:[%s582 + $0x71] sm:$0xff]
    %v1112 = vstv %s1103
    %v1113 = vmul.f32 %v1112, %v1104
    %v1114 = vmul.f32 %v1112, %v1105
    %v1115 = vmul.f32 %v1112, %v1106
    %v1116 = vmul.f32 %v1112, %v1107
    %v1117 = vmul.f32 %v1112, %v1108
    %v1118 = vmul.f32 %v1112, %v1109
    %v1119 = vmul.f32 %v1112, %v1110
    %v1120 = vmul.f32 %v1112, %v1111
    %v1121 = vadd.f32 %v1095, %v1113
    %v1122 = vadd.f32 %v1096, %v1114
    %v1123 = vadd.f32 %v1097, %v1115
    %v1124 = vadd.f32 %v1098, %v1116
    %v1125 = vadd.f32 %v1099, %v1117
    %v1126 = vadd.f32 %v1100, %v1118
    %v1127 = vadd.f32 %v1101, %v1119
    %v1128 = vadd.f32 %v1102, %v1120
    %s1129 = sld [smem:[#allocation4 + $0x23]]
    %v1130 = vld [vmem:[%s582 + $0x2] sm:$0xff]
    %v1131 = vld [vmem:[%s582 + $0x12] sm:$0xff]
    %v1132 = vld [vmem:[%s582 + $0x22] sm:$0xff]
    %v1133 = vld [vmem:[%s582 + $0x32] sm:$0xff]
    %v1134 = vld [vmem:[%s582 + $0x42] sm:$0xff]
    %v1135 = vld [vmem:[%s582 + $0x52] sm:$0xff]
    %v1136 = vld [vmem:[%s582 + $0x62] sm:$0xff]
    %v1137 = vld [vmem:[%s582 + $0x72] sm:$0xff]
    %v1138 = vstv %s1129
    %v1139 = vmul.f32 %v1138, %v1130
    %v1140 = vmul.f32 %v1138, %v1131
    %v1141 = vmul.f32 %v1138, %v1132
    %v1142 = vmul.f32 %v1138, %v1133
    %v1143 = vmul.f32 %v1138, %v1134
    %v1144 = vmul.f32 %v1138, %v1135
    %v1145 = vmul.f32 %v1138, %v1136
    %v1146 = vmul.f32 %v1138, %v1137
    %v1147 = vadd.f32 %v1121, %v1139
    %v1148 = vadd.f32 %v1122, %v1140
    %v1149 = vadd.f32 %v1123, %v1141
    %v1150 = vadd.f32 %v1124, %v1142
    %v1151 = vadd.f32 %v1125, %v1143
    %v1152 = vadd.f32 %v1126, %v1144
    %v1153 = vadd.f32 %v1127, %v1145
    %v1154 = vadd.f32 %v1128, %v1146
    %s1155 = sld [smem:[#allocation6 + $0x1]]
    %v1156 = vstv %s1155
    %v1157 = vadd.f32 %v1147, %v1156
    %v1158 = vadd.f32 %v1148, %v1156
    %v1159 = vadd.f32 %v1149, %v1156
    %v1160 = vadd.f32 %v1150, %v1156
    %v1161 = vadd.f32 %v1151, %v1156
    %v1162 = vadd.f32 %v1152, %v1156
    %v1163 = vadd.f32 %v1153, %v1156
    %v1164 = vadd.f32 %v1154, %v1156
    %v1165 = vmax.f32 %v1157, 0.0
    %v1166 = vmax.f32 %v1158, 0.0
    %v1167 = vmax.f32 %v1159, 0.0
    %v1168 = vmax.f32 %v1160, 0.0
    %v1169 = vmax.f32 %v1161, 0.0
    %v1170 = vmax.f32 %v1162, 0.0
    %v1171 = vmax.f32 %v1163, 0.0
    %v1172 = vmax.f32 %v1164, 0.0
    %s1173 = scalar_lea.vmem [#allocation2], 176
    %1174 = vst.msk [vmem:[%s1173 + $0x1] sm:$0xff] %vm87, %v1165
    %1175 = vst.msk [vmem:[%s1173 + $0x11] sm:$0xff] %vm87, %v1166
    %1176 = vst.msk [vmem:[%s1173 + $0x21] sm:$0xff] %vm87, %v1167
    %1177 = vst.msk [vmem:[%s1173 + $0x31] sm:$0xff] %vm87, %v1168
    %1178 = vst.msk [vmem:[%s1173 + $0x41] sm:$0xff] %vm87, %v1169
    %1179 = vst.msk [vmem:[%s1173 + $0x51] sm:$0xff] %vm87, %v1170
    %1180 = vst.msk [vmem:[%s1173 + $0x61] sm:$0xff] %vm87, %v1171
    %1181 = vst.msk [vmem:[%s1173 + $0x71] sm:$0xff] %vm87, %v1172
    %s1182 = sld [smem:[#allocation4 + $0x24]]
    %v1183 = vld [vmem:[%s0] sm:$0xff]
    %v1184 = vld [vmem:[%s0 + $0x10] sm:$0xff]
    %v1185 = vld [vmem:[%s0 + $0x20] sm:$0xff]
    %v1186 = vld [vmem:[%s0 + $0x30] sm:$0xff]
    %v1187 = vld [vmem:[%s0 + $0x40] sm:$0xff]
    %v1188 = vld [vmem:[%s0 + $0x50] sm:$0xff]
    %v1189 = vld [vmem:[%s0 + $0x60] sm:$0xff]
    %v1190 = vld [vmem:[%s0 + $0x70] sm:$0xff]
    %v1191 = vstv %s1182
    %v1192 = vmul.f32 %v1191, %v1183
    %v1193 = vmul.f32 %v1191, %v1184
    %v1194 = vmul.f32 %v1191, %v1185
    %v1195 = vmul.f32 %v1191, %v1186
    %v1196 = vmul.f32 %v1191, %v1187
    %v1197 = vmul.f32 %v1191, %v1188
    %v1198 = vmul.f32 %v1191, %v1189
    %v1199 = vmul.f32 %v1191, %v1190
    %v1200 = vadd.f32 %v1192, 0.0
    %v1201 = vadd.f32 %v1193, 0.0
    %v1202 = vadd.f32 %v1194, 0.0
    %v1203 = vadd.f32 %v1195, 0.0
    %v1204 = vadd.f32 %v1196, 0.0
    %v1205 = vadd.f32 %v1197, 0.0
    %v1206 = vadd.f32 %v1198, 0.0
    %v1207 = vadd.f32 %v1199, 0.0
    %s1208 = sld [smem:[#allocation4 + $0x25]]
    %v1209 = vld [vmem:[%s0 + $0x1] sm:$0xff]
    %v1210 = vld [vmem:[%s0 + $0x11] sm:$0xff]
    %v1211 = vld [vmem:[%s0 + $0x21] sm:$0xff]
    %v1212 = vld [vmem:[%s0 + $0x31] sm:$0xff]
    %v1213 = vld [vmem:[%s0 + $0x41] sm:$0xff]
    %v1214 = vld [vmem:[%s0 + $0x51] sm:$0xff]
    %v1215 = vld [vmem:[%s0 + $0x61] sm:$0xff]
    %v1216 = vld [vmem:[%s0 + $0x71] sm:$0xff]
    %v1217 = vstv %s1208
    %v1218 = vmul.f32 %v1217, %v1209
    %v1219 = vmul.f32 %v1217, %v1210
    %v1220 = vmul.f32 %v1217, %v1211
    %v1221 = vmul.f32 %v1217, %v1212
    %v1222 = vmul.f32 %v1217, %v1213
    %v1223 = vmul.f32 %v1217, %v1214
    %v1224 = vmul.f32 %v1217, %v1215
    %v1225 = vmul.f32 %v1217, %v1216
    %v1226 = vadd.f32 %v1200, %v1218
    %v1227 = vadd.f32 %v1201, %v1219
    %v1228 = vadd.f32 %v1202, %v1220
    %v1229 = vadd.f32 %v1203, %v1221
    %v1230 = vadd.f32 %v1204, %v1222
    %v1231 = vadd.f32 %v1205, %v1223
    %v1232 = vadd.f32 %v1206, %v1224
    %v1233 = vadd.f32 %v1207, %v1225
    %s1234 = sld [smem:[#allocation4 + $0x26]]
    %v1235 = vld [vmem:[%s0 + $0x2] sm:$0xff]
    %v1236 = vld [vmem:[%s0 + $0x12] sm:$0xff]
    %v1237 = vld [vmem:[%s0 + $0x22] sm:$0xff]
    %v1238 = vld [vmem:[%s0 + $0x32] sm:$0xff]
    %v1239 = vld [vmem:[%s0 + $0x42] sm:$0xff]
    %v1240 = vld [vmem:[%s0 + $0x52] sm:$0xff]
    %v1241 = vld [vmem:[%s0 + $0x62] sm:$0xff]
    %v1242 = vld [vmem:[%s0 + $0x72] sm:$0xff]
    %v1243 = vstv %s1234
    %v1244 = vmul.f32 %v1243, %v1235
    %v1245 = vmul.f32 %v1243, %v1236
    %v1246 = vmul.f32 %v1243, %v1237
    %v1247 = vmul.f32 %v1243, %v1238
    %v1248 = vmul.f32 %v1243, %v1239
    %v1249 = vmul.f32 %v1243, %v1240
    %v1250 = vmul.f32 %v1243, %v1241
    %v1251 = vmul.f32 %v1243, %v1242
    %v1252 = vadd.f32 %v1226, %v1244
    %v1253 = vadd.f32 %v1227, %v1245
    %v1254 = vadd.f32 %v1228, %v1246
    %v1255 = vadd.f32 %v1229, %v1247
    %v1256 = vadd.f32 %v1230, %v1248
    %v1257 = vadd.f32 %v1231, %v1249
    %v1258 = vadd.f32 %v1232, %v1250
    %v1259 = vadd.f32 %v1233, %v1251
    %s1260 = sld [smem:[#allocation4 + $0x27]]
    %v1261 = vld [vmem:[%s266] sm:$0xff]
    %v1262 = vld [vmem:[%s266 + $0x10] sm:$0xff]
    %v1263 = vld [vmem:[%s266 + $0x20] sm:$0xff]
    %v1264 = vld [vmem:[%s266 + $0x30] sm:$0xff]
    %v1265 = vld [vmem:[%s266 + $0x40] sm:$0xff]
    %v1266 = vld [vmem:[%s266 + $0x50] sm:$0xff]
    %v1267 = vld [vmem:[%s266 + $0x60] sm:$0xff]
    %v1268 = vld [vmem:[%s266 + $0x70] sm:$0xff]
    %v1269 = vstv %s1260
    %v1270 = vmul.f32 %v1269, %v1261
    %v1271 = vmul.f32 %v1269, %v1262
    %v1272 = vmul.f32 %v1269, %v1263
    %v1273 = vmul.f32 %v1269, %v1264
    %v1274 = vmul.f32 %v1269, %v1265
    %v1275 = vmul.f32 %v1269, %v1266
    %v1276 = vmul.f32 %v1269, %v1267
    %v1277 = vmul.f32 %v1269, %v1268
    %v1278 = vadd.f32 %v1252, %v1270
    %v1279 = vadd.f32 %v1253, %v1271
    %v1280 = vadd.f32 %v1254, %v1272
    %v1281 = vadd.f32 %v1255, %v1273
    %v1282 = vadd.f32 %v1256, %v1274
    %v1283 = vadd.f32 %v1257, %v1275
    %v1284 = vadd.f32 %v1258, %v1276
    %v1285 = vadd.f32 %v1259, %v1277
    %s1286 = sld [smem:[#allocation4 + $0x28]]
    %v1287 = vld [vmem:[%s266 + $0x1] sm:$0xff]
    %v1288 = vld [vmem:[%s266 + $0x11] sm:$0xff]
    %v1289 = vld [vmem:[%s266 + $0x21] sm:$0xff]
    %v1290 = vld [vmem:[%s266 + $0x31] sm:$0xff]
    %v1291 = vld [vmem:[%s266 + $0x41] sm:$0xff]
    %v1292 = vld [vmem:[%s266 + $0x51] sm:$0xff]
    %v1293 = vld [vmem:[%s266 + $0x61] sm:$0xff]
    %v1294 = vld [vmem:[%s266 + $0x71] sm:$0xff]
    %v1295 = vstv %s1286
    %v1296 = vmul.f32 %v1295, %v1287
    %v1297 = vmul.f32 %v1295, %v1288
    %v1298 = vmul.f32 %v1295, %v1289
    %v1299 = vmul.f32 %v1295, %v1290
    %v1300 = vmul.f32 %v1295, %v1291
    %v1301 = vmul.f32 %v1295, %v1292
    %v1302 = vmul.f32 %v1295, %v1293
    %v1303 = vmul.f32 %v1295, %v1294
    %v1304 = vadd.f32 %v1278, %v1296
    %v1305 = vadd.f32 %v1279, %v1297
    %v1306 = vadd.f32 %v1280, %v1298
    %v1307 = vadd.f32 %v1281, %v1299
    %v1308 = vadd.f32 %v1282, %v1300
    %v1309 = vadd.f32 %v1283, %v1301
    %v1310 = vadd.f32 %v1284, %v1302
    %v1311 = vadd.f32 %v1285, %v1303
    %s1312 = sld [smem:[#allocation4 + $0x29]]
    %v1313 = vld [vmem:[%s266 + $0x2] sm:$0xff]
    %v1314 = vld [vmem:[%s266 + $0x12] sm:$0xff]
    %v1315 = vld [vmem:[%s266 + $0x22] sm:$0xff]
    %v1316 = vld [vmem:[%s266 + $0x32] sm:$0xff]
    %v1317 = vld [vmem:[%s266 + $0x42] sm:$0xff]
    %v1318 = vld [vmem:[%s266 + $0x52] sm:$0xff]
    %v1319 = vld [vmem:[%s266 + $0x62] sm:$0xff]
    %v1320 = vld [vmem:[%s266 + $0x72] sm:$0xff]
    %v1321 = vstv %s1312
    %v1322 = vmul.f32 %v1321, %v1313
    %v1323 = vmul.f32 %v1321, %v1314
    %v1324 = vmul.f32 %v1321, %v1315
    %v1325 = vmul.f32 %v1321, %v1316
    %v1326 = vmul.f32 %v1321, %v1317
    %v1327 = vmul.f32 %v1321, %v1318
    %v1328 = vmul.f32 %v1321, %v1319
    %v1329 = vmul.f32 %v1321, %v1320
    %v1330 = vadd.f32 %v1304, %v1322
    %v1331 = vadd.f32 %v1305, %v1323
    %v1332 = vadd.f32 %v1306, %v1324
    %v1333 = vadd.f32 %v1307, %v1325
    %v1334 = vadd.f32 %v1308, %v1326
    %v1335 = vadd.f32 %v1309, %v1327
    %v1336 = vadd.f32 %v1310, %v1328
    %v1337 = vadd.f32 %v1311, %v1329
    %s1338 = sld [smem:[#allocation4 + $0x2a]]
    %v1339 = vld [vmem:[%s345] sm:$0xff]
    %v1340 = vld [vmem:[%s345 + $0x10] sm:$0xff]
    %v1341 = vld [vmem:[%s345 + $0x20] sm:$0xff]
    %v1342 = vld [vmem:[%s345 + $0x30] sm:$0xff]
    %v1343 = vld [vmem:[%s345 + $0x40] sm:$0xff]
    %v1344 = vld [vmem:[%s345 + $0x50] sm:$0xff]
    %v1345 = vld [vmem:[%s345 + $0x60] sm:$0xff]
    %v1346 = vld [vmem:[%s345 + $0x70] sm:$0xff]
    %v1347 = vstv %s1338
    %v1348 = vmul.f32 %v1347, %v1339
    %v1349 = vmul.f32 %v1347, %v1340
    %v1350 = vmul.f32 %v1347, %v1341
    %v1351 = vmul.f32 %v1347, %v1342
    %v1352 = vmul.f32 %v1347, %v1343
    %v1353 = vmul.f32 %v1347, %v1344
    %v1354 = vmul.f32 %v1347, %v1345
    %v1355 = vmul.f32 %v1347, %v1346
    %v1356 = vadd.f32 %v1330, %v1348
    %v1357 = vadd.f32 %v1331, %v1349
    %v1358 = vadd.f32 %v1332, %v1350
    %v1359 = vadd.f32 %v1333, %v1351
    %v1360 = vadd.f32 %v1334, %v1352
    %v1361 = vadd.f32 %v1335, %v1353
    %v1362 = vadd.f32 %v1336, %v1354
    %v1363 = vadd.f32 %v1337, %v1355
    %s1364 = sld [smem:[#allocation4 + $0x2b]]
    %v1365 = vld [vmem:[%s345 + $0x1] sm:$0xff]
    %v1366 = vld [vmem:[%s345 + $0x11] sm:$0xff]
    %v1367 = vld [vmem:[%s345 + $0x21] sm:$0xff]
    %v1368 = vld [vmem:[%s345 + $0x31] sm:$0xff]
    %v1369 = vld [vmem:[%s345 + $0x41] sm:$0xff]
    %v1370 = vld [vmem:[%s345 + $0x51] sm:$0xff]
    %v1371 = vld [vmem:[%s345 + $0x61] sm:$0xff]
    %v1372 = vld [vmem:[%s345 + $0x71] sm:$0xff]
    %v1373 = vstv %s1364
    %v1374 = vmul.f32 %v1373, %v1365
    %v1375 = vmul.f32 %v1373, %v1366
    %v1376 = vmul.f32 %v1373, %v1367
    %v1377 = vmul.f32 %v1373, %v1368
    %v1378 = vmul.f32 %v1373, %v1369
    %v1379 = vmul.f32 %v1373, %v1370
    %v1380 = vmul.f32 %v1373, %v1371
    %v1381 = vmul.f32 %v1373, %v1372
    %v1382 = vadd.f32 %v1356, %v1374
    %v1383 = vadd.f32 %v1357, %v1375
    %v1384 = vadd.f32 %v1358, %v1376
    %v1385 = vadd.f32 %v1359, %v1377
    %v1386 = vadd.f32 %v1360, %v1378
    %v1387 = vadd.f32 %v1361, %v1379
    %v1388 = vadd.f32 %v1362, %v1380
    %v1389 = vadd.f32 %v1363, %v1381
    %s1390 = sld [smem:[#allocation4 + $0x2c]]
    %v1391 = vld [vmem:[%s345 + $0x2] sm:$0xff]
    %v1392 = vld [vmem:[%s345 + $0x12] sm:$0xff]
    %v1393 = vld [vmem:[%s345 + $0x22] sm:$0xff]
    %v1394 = vld [vmem:[%s345 + $0x32] sm:$0xff]
    %v1395 = vld [vmem:[%s345 + $0x42] sm:$0xff]
    %v1396 = vld [vmem:[%s345 + $0x52] sm:$0xff]
    %v1397 = vld [vmem:[%s345 + $0x62] sm:$0xff]
    %v1398 = vld [vmem:[%s345 + $0x72] sm:$0xff]
    %v1399 = vstv %s1390
    %v1400 = vmul.f32 %v1399, %v1391
    %v1401 = vmul.f32 %v1399, %v1392
    %v1402 = vmul.f32 %v1399, %v1393
    %v1403 = vmul.f32 %v1399, %v1394
    %v1404 = vmul.f32 %v1399, %v1395
    %v1405 = vmul.f32 %v1399, %v1396
    %v1406 = vmul.f32 %v1399, %v1397
    %v1407 = vmul.f32 %v1399, %v1398
    %v1408 = vadd.f32 %v1382, %v1400
    %v1409 = vadd.f32 %v1383, %v1401
    %v1410 = vadd.f32 %v1384, %v1402
    %v1411 = vadd.f32 %v1385, %v1403
    %v1412 = vadd.f32 %v1386, %v1404
    %v1413 = vadd.f32 %v1387, %v1405
    %v1414 = vadd.f32 %v1388, %v1406
    %v1415 = vadd.f32 %v1389, %v1407
    %s1416 = sld [smem:[#allocation4 + $0x2d]]
    %v1417 = vld [vmem:[%s424] sm:$0xff]
    %v1418 = vld [vmem:[%s424 + $0x10] sm:$0xff]
    %v1419 = vld [vmem:[%s424 + $0x20] sm:$0xff]
    %v1420 = vld [vmem:[%s424 + $0x30] sm:$0xff]
    %v1421 = vld [vmem:[%s424 + $0x40] sm:$0xff]
    %v1422 = vld [vmem:[%s424 + $0x50] sm:$0xff]
    %v1423 = vld [vmem:[%s424 + $0x60] sm:$0xff]
    %v1424 = vld [vmem:[%s424 + $0x70] sm:$0xff]
    %v1425 = vstv %s1416
    %v1426 = vmul.f32 %v1425, %v1417
    %v1427 = vmul.f32 %v1425, %v1418
    %v1428 = vmul.f32 %v1425, %v1419
    %v1429 = vmul.f32 %v1425, %v1420
    %v1430 = vmul.f32 %v1425, %v1421
    %v1431 = vmul.f32 %v1425, %v1422
    %v1432 = vmul.f32 %v1425, %v1423
    %v1433 = vmul.f32 %v1425, %v1424
    %v1434 = vadd.f32 %v1408, %v1426
    %v1435 = vadd.f32 %v1409, %v1427
    %v1436 = vadd.f32 %v1410, %v1428
    %v1437 = vadd.f32 %v1411, %v1429
    %v1438 = vadd.f32 %v1412, %v1430
    %v1439 = vadd.f32 %v1413, %v1431
    %v1440 = vadd.f32 %v1414, %v1432
    %v1441 = vadd.f32 %v1415, %v1433
    %s1442 = sld [smem:[#allocation4 + $0x2e]]
    %v1443 = vld [vmem:[%s424 + $0x1] sm:$0xff]
    %v1444 = vld [vmem:[%s424 + $0x11] sm:$0xff]
    %v1445 = vld [vmem:[%s424 + $0x21] sm:$0xff]
    %v1446 = vld [vmem:[%s424 + $0x31] sm:$0xff]
    %v1447 = vld [vmem:[%s424 + $0x41] sm:$0xff]
    %v1448 = vld [vmem:[%s424 + $0x51] sm:$0xff]
    %v1449 = vld [vmem:[%s424 + $0x61] sm:$0xff]
    %v1450 = vld [vmem:[%s424 + $0x71] sm:$0xff]
    %v1451 = vstv %s1442
    %v1452 = vmul.f32 %v1451, %v1443
    %v1453 = vmul.f32 %v1451, %v1444
    %v1454 = vmul.f32 %v1451, %v1445
    %v1455 = vmul.f32 %v1451, %v1446
    %v1456 = vmul.f32 %v1451, %v1447
    %v1457 = vmul.f32 %v1451, %v1448
    %v1458 = vmul.f32 %v1451, %v1449
    %v1459 = vmul.f32 %v1451, %v1450
    %v1460 = vadd.f32 %v1434, %v1452
    %v1461 = vadd.f32 %v1435, %v1453
    %v1462 = vadd.f32 %v1436, %v1454
    %v1463 = vadd.f32 %v1437, %v1455
    %v1464 = vadd.f32 %v1438, %v1456
    %v1465 = vadd.f32 %v1439, %v1457
    %v1466 = vadd.f32 %v1440, %v1458
    %v1467 = vadd.f32 %v1441, %v1459
    %s1468 = sld [smem:[#allocation4 + $0x2f]]
    %v1469 = vld [vmem:[%s424 + $0x2] sm:$0xff]
    %v1470 = vld [vmem:[%s424 + $0x12] sm:$0xff]
    %v1471 = vld [vmem:[%s424 + $0x22] sm:$0xff]
    %v1472 = vld [vmem:[%s424 + $0x32] sm:$0xff]
    %v1473 = vld [vmem:[%s424 + $0x42] sm:$0xff]
    %v1474 = vld [vmem:[%s424 + $0x52] sm:$0xff]
    %v1475 = vld [vmem:[%s424 + $0x62] sm:$0xff]
    %v1476 = vld [vmem:[%s424 + $0x72] sm:$0xff]
    %v1477 = vstv %s1468
    %v1478 = vmul.f32 %v1477, %v1469
    %v1479 = vmul.f32 %v1477, %v1470
    %v1480 = vmul.f32 %v1477, %v1471
    %v1481 = vmul.f32 %v1477, %v1472
    %v1482 = vmul.f32 %v1477, %v1473
    %v1483 = vmul.f32 %v1477, %v1474
    %v1484 = vmul.f32 %v1477, %v1475
    %v1485 = vmul.f32 %v1477, %v1476
    %v1486 = vadd.f32 %v1460, %v1478
    %v1487 = vadd.f32 %v1461, %v1479
    %v1488 = vadd.f32 %v1462, %v1480
    %v1489 = vadd.f32 %v1463, %v1481
    %v1490 = vadd.f32 %v1464, %v1482
    %v1491 = vadd.f32 %v1465, %v1483
    %v1492 = vadd.f32 %v1466, %v1484
    %v1493 = vadd.f32 %v1467, %v1485
    %s1494 = sld [smem:[#allocation4 + $0x30]]
    %v1495 = vld [vmem:[%s503] sm:$0xff]
    %v1496 = vld [vmem:[%s503 + $0x10] sm:$0xff]
    %v1497 = vld [vmem:[%s503 + $0x20] sm:$0xff]
    %v1498 = vld [vmem:[%s503 + $0x30] sm:$0xff]
    %v1499 = vld [vmem:[%s503 + $0x40] sm:$0xff]
    %v1500 = vld [vmem:[%s503 + $0x50] sm:$0xff]
    %v1501 = vld [vmem:[%s503 + $0x60] sm:$0xff]
    %v1502 = vld [vmem:[%s503 + $0x70] sm:$0xff]
    %v1503 = vstv %s1494
    %v1504 = vmul.f32 %v1503, %v1495
    %v1505 = vmul.f32 %v1503, %v1496
    %v1506 = vmul.f32 %v1503, %v1497
    %v1507 = vmul.f32 %v1503, %v1498
    %v1508 = vmul.f32 %v1503, %v1499
    %v1509 = vmul.f32 %v1503, %v1500
    %v1510 = vmul.f32 %v1503, %v1501
    %v1511 = vmul.f32 %v1503, %v1502
    %v1512 = vadd.f32 %v1486, %v1504
    %v1513 = vadd.f32 %v1487, %v1505
    %v1514 = vadd.f32 %v1488, %v1506
    %v1515 = vadd.f32 %v1489, %v1507
    %v1516 = vadd.f32 %v1490, %v1508
    %v1517 = vadd.f32 %v1491, %v1509
    %v1518 = vadd.f32 %v1492, %v1510
    %v1519 = vadd.f32 %v1493, %v1511
    %s1520 = sld [smem:[#allocation4 + $0x31]]
    %v1521 = vld [vmem:[%s503 + $0x1] sm:$0xff]
    %v1522 = vld [vmem:[%s503 + $0x11] sm:$0xff]
    %v1523 = vld [vmem:[%s503 + $0x21] sm:$0xff]
    %v1524 = vld [vmem:[%s503 + $0x31] sm:$0xff]
    %v1525 = vld [vmem:[%s503 + $0x41] sm:$0xff]
    %v1526 = vld [vmem:[%s503 + $0x51] sm:$0xff]
    %v1527 = vld [vmem:[%s503 + $0x61] sm:$0xff]
    %v1528 = vld [vmem:[%s503 + $0x71] sm:$0xff]
    %v1529 = vstv %s1520
    %v1530 = vmul.f32 %v1529, %v1521
    %v1531 = vmul.f32 %v1529, %v1522
    %v1532 = vmul.f32 %v1529, %v1523
    %v1533 = vmul.f32 %v1529, %v1524
    %v1534 = vmul.f32 %v1529, %v1525
    %v1535 = vmul.f32 %v1529, %v1526
    %v1536 = vmul.f32 %v1529, %v1527
    %v1537 = vmul.f32 %v1529, %v1528
    %v1538 = vadd.f32 %v1512, %v1530
    %v1539 = vadd.f32 %v1513, %v1531
    %v1540 = vadd.f32 %v1514, %v1532
    %v1541 = vadd.f32 %v1515, %v1533
    %v1542 = vadd.f32 %v1516, %v1534
    %v1543 = vadd.f32 %v1517, %v1535
    %v1544 = vadd.f32 %v1518, %v1536
    %v1545 = vadd.f32 %v1519, %v1537
    %s1546 = sld [smem:[#allocation4 + $0x32]]
    %v1547 = vld [vmem:[%s503 + $0x2] sm:$0xff]
    %v1548 = vld [vmem:[%s503 + $0x12] sm:$0xff]
    %v1549 = vld [vmem:[%s503 + $0x22] sm:$0xff]
    %v1550 = vld [vmem:[%s503 + $0x32] sm:$0xff]
    %v1551 = vld [vmem:[%s503 + $0x42] sm:$0xff]
    %v1552 = vld [vmem:[%s503 + $0x52] sm:$0xff]
    %v1553 = vld [vmem:[%s503 + $0x62] sm:$0xff]
    %v1554 = vld [vmem:[%s503 + $0x72] sm:$0xff]
    %v1555 = vstv %s1546
    %v1556 = vmul.f32 %v1555, %v1547
    %v1557 = vmul.f32 %v1555, %v1548
    %v1558 = vmul.f32 %v1555, %v1549
    %v1559 = vmul.f32 %v1555, %v1550
    %v1560 = vmul.f32 %v1555, %v1551
    %v1561 = vmul.f32 %v1555, %v1552
    %v1562 = vmul.f32 %v1555, %v1553
    %v1563 = vmul.f32 %v1555, %v1554
    %v1564 = vadd.f32 %v1538, %v1556
    %v1565 = vadd.f32 %v1539, %v1557
    %v1566 = vadd.f32 %v1540, %v1558
    %v1567 = vadd.f32 %v1541, %v1559
    %v1568 = vadd.f32 %v1542, %v1560
    %v1569 = vadd.f32 %v1543, %v1561
    %v1570 = vadd.f32 %v1544, %v1562
    %v1571 = vadd.f32 %v1545, %v1563
    %s1572 = sld [smem:[#allocation4 + $0x33]]
    %v1573 = vld [vmem:[%s582] sm:$0xff]
    %v1574 = vld [vmem:[%s582 + $0x10] sm:$0xff]
    %v1575 = vld [vmem:[%s582 + $0x20] sm:$0xff]
    %v1576 = vld [vmem:[%s582 + $0x30] sm:$0xff]
    %v1577 = vld [vmem:[%s582 + $0x40] sm:$0xff]
    %v1578 = vld [vmem:[%s582 + $0x50] sm:$0xff]
    %v1579 = vld [vmem:[%s582 + $0x60] sm:$0xff]
    %v1580 = vld [vmem:[%s582 + $0x70] sm:$0xff]
    %v1581 = vstv %s1572
    %v1582 = vmul.f32 %v1581, %v1573
    %v1583 = vmul.f32 %v1581, %v1574
    %v1584 = vmul.f32 %v1581, %v1575
    %v1585 = vmul.f32 %v1581, %v1576
    %v1586 = vmul.f32 %v1581, %v1577
    %v1587 = vmul.f32 %v1581, %v1578
    %v1588 = vmul.f32 %v1581, %v1579
    %v1589 = vmul.f32 %v1581, %v1580
    %v1590 = vadd.f32 %v1564, %v1582
    %v1591 = vadd.f32 %v1565, %v1583
    %v1592 = vadd.f32 %v1566, %v1584
    %v1593 = vadd.f32 %v1567, %v1585
    %v1594 = vadd.f32 %v1568, %v1586
    %v1595 = vadd.f32 %v1569, %v1587
    %v1596 = vadd.f32 %v1570, %v1588
    %v1597 = vadd.f32 %v1571, %v1589
    %s1598 = sld [smem:[#allocation4 + $0x34]]
    %v1599 = vld [vmem:[%s582 + $0x1] sm:$0xff]
    %v1600 = vld [vmem:[%s582 + $0x11] sm:$0xff]
    %v1601 = vld [vmem:[%s582 + $0x21] sm:$0xff]
    %v1602 = vld [vmem:[%s582 + $0x31] sm:$0xff]
    %v1603 = vld [vmem:[%s582 + $0x41] sm:$0xff]
    %v1604 = vld [vmem:[%s582 + $0x51] sm:$0xff]
    %v1605 = vld [vmem:[%s582 + $0x61] sm:$0xff]
    %v1606 = vld [vmem:[%s582 + $0x71] sm:$0xff]
    %v1607 = vstv %s1598
    %v1608 = vmul.f32 %v1607, %v1599
    %v1609 = vmul.f32 %v1607, %v1600
    %v1610 = vmul.f32 %v1607, %v1601
    %v1611 = vmul.f32 %v1607, %v1602
    %v1612 = vmul.f32 %v1607, %v1603
    %v1613 = vmul.f32 %v1607, %v1604
    %v1614 = vmul.f32 %v1607, %v1605
    %v1615 = vmul.f32 %v1607, %v1606
    %v1616 = vadd.f32 %v1590, %v1608
    %v1617 = vadd.f32 %v1591, %v1609
    %v1618 = vadd.f32 %v1592, %v1610
    %v1619 = vadd.f32 %v1593, %v1611
    %v1620 = vadd.f32 %v1594, %v1612
    %v1621 = vadd.f32 %v1595, %v1613
    %v1622 = vadd.f32 %v1596, %v1614
    %v1623 = vadd.f32 %v1597, %v1615
    %s1624 = sld [smem:[#allocation4 + $0x35]]
    %v1625 = vld [vmem:[%s582 + $0x2] sm:$0xff]
    %v1626 = vld [vmem:[%s582 + $0x12] sm:$0xff]
    %v1627 = vld [vmem:[%s582 + $0x22] sm:$0xff]
    %v1628 = vld [vmem:[%s582 + $0x32] sm:$0xff]
    %v1629 = vld [vmem:[%s582 + $0x42] sm:$0xff]
    %v1630 = vld [vmem:[%s582 + $0x52] sm:$0xff]
    %v1631 = vld [vmem:[%s582 + $0x62] sm:$0xff]
    %v1632 = vld [vmem:[%s582 + $0x72] sm:$0xff]
    %v1633 = vstv %s1624
    %v1634 = vmul.f32 %v1633, %v1625
    %v1635 = vmul.f32 %v1633, %v1626
    %v1636 = vmul.f32 %v1633, %v1627
    %v1637 = vmul.f32 %v1633, %v1628
    %v1638 = vmul.f32 %v1633, %v1629
    %v1639 = vmul.f32 %v1633, %v1630
    %v1640 = vmul.f32 %v1633, %v1631
    %v1641 = vmul.f32 %v1633, %v1632
    %v1642 = vadd.f32 %v1616, %v1634
    %v1643 = vadd.f32 %v1617, %v1635
    %v1644 = vadd.f32 %v1618, %v1636
    %v1645 = vadd.f32 %v1619, %v1637
    %v1646 = vadd.f32 %v1620, %v1638
    %v1647 = vadd.f32 %v1621, %v1639
    %v1648 = vadd.f32 %v1622, %v1640
    %v1649 = vadd.f32 %v1623, %v1641
    %s1650 = sld [smem:[#allocation6 + $0x2]]
    %v1651 = vstv %s1650
    %v1652 = vadd.f32 %v1642, %v1651
    %v1653 = vadd.f32 %v1643, %v1651
    %v1654 = vadd.f32 %v1644, %v1651
    %v1655 = vadd.f32 %v1645, %v1651
    %v1656 = vadd.f32 %v1646, %v1651
    %v1657 = vadd.f32 %v1647, %v1651
    %v1658 = vadd.f32 %v1648, %v1651
    %v1659 = vadd.f32 %v1649, %v1651
    %v1660 = vmax.f32 %v1652, 0.0
    %v1661 = vmax.f32 %v1653, 0.0
    %v1662 = vmax.f32 %v1654, 0.0
    %v1663 = vmax.f32 %v1655, 0.0
    %v1664 = vmax.f32 %v1656, 0.0
    %v1665 = vmax.f32 %v1657, 0.0
    %v1666 = vmax.f32 %v1658, 0.0
    %v1667 = vmax.f32 %v1659, 0.0
    %s1668 = scalar_lea.vmem [#allocation2], 336
    %1669 = vst.msk [vmem:[%s1668 + $0x1] sm:$0xff] %vm87, %v1660
    %1670 = vst.msk [vmem:[%s1668 + $0x11] sm:$0xff] %vm87, %v1661
    %1671 = vst.msk [vmem:[%s1668 + $0x21] sm:$0xff] %vm87, %v1662
    %1672 = vst.msk [vmem:[%s1668 + $0x31] sm:$0xff] %vm87, %v1663
    %1673 = vst.msk [vmem:[%s1668 + $0x41] sm:$0xff] %vm87, %v1664
    %1674 = vst.msk [vmem:[%s1668 + $0x51] sm:$0xff] %vm87, %v1665
    %1675 = vst.msk [vmem:[%s1668 + $0x61] sm:$0xff] %vm87, %v1666
    %1676 = vst.msk [vmem:[%s1668 + $0x71] sm:$0xff] %vm87, %v1667
    %s1677 = sld [smem:[#allocation4 + $0x36]]
    %v1678 = vld [vmem:[%s0] sm:$0xff]
    %v1679 = vld [vmem:[%s0 + $0x10] sm:$0xff]
    %v1680 = vld [vmem:[%s0 + $0x20] sm:$0xff]
    %v1681 = vld [vmem:[%s0 + $0x30] sm:$0xff]
    %v1682 = vld [vmem:[%s0 + $0x40] sm:$0xff]
    %v1683 = vld [vmem:[%s0 + $0x50] sm:$0xff]
    %v1684 = vld [vmem:[%s0 + $0x60] sm:$0xff]
    %v1685 = vld [vmem:[%s0 + $0x70] sm:$0xff]
    %v1686 = vstv %s1677
    %v1687 = vmul.f32 %v1686, %v1678
    %v1688 = vmul.f32 %v1686, %v1679
    %v1689 = vmul.f32 %v1686, %v1680
    %v1690 = vmul.f32 %v1686, %v1681
    %v1691 = vmul.f32 %v1686, %v1682
    %v1692 = vmul.f32 %v1686, %v1683
    %v1693 = vmul.f32 %v1686, %v1684
    %v1694 = vmul.f32 %v1686, %v1685
    %v1695 = vadd.f32 %v1687, 0.0
    %v1696 = vadd.f32 %v1688, 0.0
    %v1697 = vadd.f32 %v1689, 0.0
    %v1698 = vadd.f32 %v1690, 0.0
    %v1699 = vadd.f32 %v1691, 0.0
    %v1700 = vadd.f32 %v1692, 0.0
    %v1701 = vadd.f32 %v1693, 0.0
    %v1702 = vadd.f32 %v1694, 0.0
    %s1703 = sld [smem:[#allocation4 + $0x37]]
    %v1704 = vld [vmem:[%s0 + $0x1] sm:$0xff]
    %v1705 = vld [vmem:[%s0 + $0x11] sm:$0xff]
    %v1706 = vld [vmem:[%s0 + $0x21] sm:$0xff]
    %v1707 = vld [vmem:[%s0 + $0x31] sm:$0xff]
    %v1708 = vld [vmem:[%s0 + $0x41] sm:$0xff]
    %v1709 = vld [vmem:[%s0 + $0x51] sm:$0xff]
    %v1710 = vld [vmem:[%s0 + $0x61] sm:$0xff]
    %v1711 = vld [vmem:[%s0 + $0x71] sm:$0xff]
    %v1712 = vstv %s1703
    %v1713 = vmul.f32 %v1712, %v1704
    %v1714 = vmul.f32 %v1712, %v1705
    %v1715 = vmul.f32 %v1712, %v1706
    %v1716 = vmul.f32 %v1712, %v1707
    %v1717 = vmul.f32 %v1712, %v1708
    %v1718 = vmul.f32 %v1712, %v1709
    %v1719 = vmul.f32 %v1712, %v1710
    %v1720 = vmul.f32 %v1712, %v1711
    %v1721 = vadd.f32 %v1695, %v1713
    %v1722 = vadd.f32 %v1696, %v1714
    %v1723 = vadd.f32 %v1697, %v1715
    %v1724 = vadd.f32 %v1698, %v1716
    %v1725 = vadd.f32 %v1699, %v1717
    %v1726 = vadd.f32 %v1700, %v1718
    %v1727 = vadd.f32 %v1701, %v1719
    %v1728 = vadd.f32 %v1702, %v1720
    %s1729 = sld [smem:[#allocation4 + $0x38]]
    %v1730 = vld [vmem:[%s0 + $0x2] sm:$0xff]
    %v1731 = vld [vmem:[%s0 + $0x12] sm:$0xff]
    %v1732 = vld [vmem:[%s0 + $0x22] sm:$0xff]
    %v1733 = vld [vmem:[%s0 + $0x32] sm:$0xff]
    %v1734 = vld [vmem:[%s0 + $0x42] sm:$0xff]
    %v1735 = vld [vmem:[%s0 + $0x52] sm:$0xff]
    %v1736 = vld [vmem:[%s0 + $0x62] sm:$0xff]
    %v1737 = vld [vmem:[%s0 + $0x72] sm:$0xff]
    %v1738 = vstv %s1729
    %v1739 = vmul.f32 %v1738, %v1730
    %v1740 = vmul.f32 %v1738, %v1731
    %v1741 = vmul.f32 %v1738, %v1732
    %v1742 = vmul.f32 %v1738, %v1733
    %v1743 = vmul.f32 %v1738, %v1734
    %v1744 = vmul.f32 %v1738, %v1735
    %v1745 = vmul.f32 %v1738, %v1736
    %v1746 = vmul.f32 %v1738, %v1737
    %v1747 = vadd.f32 %v1721, %v1739
    %v1748 = vadd.f32 %v1722, %v1740
    %v1749 = vadd.f32 %v1723, %v1741
    %v1750 = vadd.f32 %v1724, %v1742
    %v1751 = vadd.f32 %v1725, %v1743
    %v1752 = vadd.f32 %v1726, %v1744
    %v1753 = vadd.f32 %v1727, %v1745
    %v1754 = vadd.f32 %v1728, %v1746
    %s1755 = sld [smem:[#allocation4 + $0x39]]
    %v1756 = vld [vmem:[%s266] sm:$0xff]
    %v1757 = vld [vmem:[%s266 + $0x10] sm:$0xff]
    %v1758 = vld [vmem:[%s266 + $0x20] sm:$0xff]
    %v1759 = vld [vmem:[%s266 + $0x30] sm:$0xff]
    %v1760 = vld [vmem:[%s266 + $0x40] sm:$0xff]
    %v1761 = vld [vmem:[%s266 + $0x50] sm:$0xff]
    %v1762 = vld [vmem:[%s266 + $0x60] sm:$0xff]
    %v1763 = vld [vmem:[%s266 + $0x70] sm:$0xff]
    %v1764 = vstv %s1755
    %v1765 = vmul.f32 %v1764, %v1756
    %v1766 = vmul.f32 %v1764, %v1757
    %v1767 = vmul.f32 %v1764, %v1758
    %v1768 = vmul.f32 %v1764, %v1759
    %v1769 = vmul.f32 %v1764, %v1760
    %v1770 = vmul.f32 %v1764, %v1761
    %v1771 = vmul.f32 %v1764, %v1762
    %v1772 = vmul.f32 %v1764, %v1763
    %v1773 = vadd.f32 %v1747, %v1765
    %v1774 = vadd.f32 %v1748, %v1766
    %v1775 = vadd.f32 %v1749, %v1767
    %v1776 = vadd.f32 %v1750, %v1768
    %v1777 = vadd.f32 %v1751, %v1769
    %v1778 = vadd.f32 %v1752, %v1770
    %v1779 = vadd.f32 %v1753, %v1771
    %v1780 = vadd.f32 %v1754, %v1772
    %s1781 = sld [smem:[#allocation4 + $0x3a]]
    %v1782 = vld [vmem:[%s266 + $0x1] sm:$0xff]
    %v1783 = vld [vmem:[%s266 + $0x11] sm:$0xff]
    %v1784 = vld [vmem:[%s266 + $0x21] sm:$0xff]
    %v1785 = vld [vmem:[%s266 + $0x31] sm:$0xff]
    %v1786 = vld [vmem:[%s266 + $0x41] sm:$0xff]
    %v1787 = vld [vmem:[%s266 + $0x51] sm:$0xff]
    %v1788 = vld [vmem:[%s266 + $0x61] sm:$0xff]
    %v1789 = vld [vmem:[%s266 + $0x71] sm:$0xff]
    %v1790 = vstv %s1781
    %v1791 = vmul.f32 %v1790, %v1782
    %v1792 = vmul.f32 %v1790, %v1783
    %v1793 = vmul.f32 %v1790, %v1784
    %v1794 = vmul.f32 %v1790, %v1785
    %v1795 = vmul.f32 %v1790, %v1786
    %v1796 = vmul.f32 %v1790, %v1787
    %v1797 = vmul.f32 %v1790, %v1788
    %v1798 = vmul.f32 %v1790, %v1789
    %v1799 = vadd.f32 %v1773, %v1791
    %v1800 = vadd.f32 %v1774, %v1792
    %v1801 = vadd.f32 %v1775, %v1793
    %v1802 = vadd.f32 %v1776, %v1794
    %v1803 = vadd.f32 %v1777, %v1795
    %v1804 = vadd.f32 %v1778, %v1796
    %v1805 = vadd.f32 %v1779, %v1797
    %v1806 = vadd.f32 %v1780, %v1798
    %s1807 = sld [smem:[#allocation4 + $0x3b]]
    %v1808 = vld [vmem:[%s266 + $0x2] sm:$0xff]
    %v1809 = vld [vmem:[%s266 + $0x12] sm:$0xff]
    %v1810 = vld [vmem:[%s266 + $0x22] sm:$0xff]
    %v1811 = vld [vmem:[%s266 + $0x32] sm:$0xff]
    %v1812 = vld [vmem:[%s266 + $0x42] sm:$0xff]
    %v1813 = vld [vmem:[%s266 + $0x52] sm:$0xff]
    %v1814 = vld [vmem:[%s266 + $0x62] sm:$0xff]
    %v1815 = vld [vmem:[%s266 + $0x72] sm:$0xff]
    %v1816 = vstv %s1807
    %v1817 = vmul.f32 %v1816, %v1808
    %v1818 = vmul.f32 %v1816, %v1809
    %v1819 = vmul.f32 %v1816, %v1810
    %v1820 = vmul.f32 %v1816, %v1811
    %v1821 = vmul.f32 %v1816, %v1812
    %v1822 = vmul.f32 %v1816, %v1813
    %v1823 = vmul.f32 %v1816, %v1814
    %v1824 = vmul.f32 %v1816, %v1815
    %v1825 = vadd.f32 %v1799, %v1817
    %v1826 = vadd.f32 %v1800, %v1818
    %v1827 = vadd.f32 %v1801, %v1819
    %v1828 = vadd.f32 %v1802, %v1820
    %v1829 = vadd.f32 %v1803, %v1821
    %v1830 = vadd.f32 %v1804, %v1822
    %v1831 = vadd.f32 %v1805, %v1823
    %v1832 = vadd.f32 %v1806, %v1824
    %s1833 = sld [smem:[#allocation4 + $0x3c]]
    %v1834 = vld [vmem:[%s345] sm:$0xff]
    %v1835 = vld [vmem:[%s345 + $0x10] sm:$0xff]
    %v1836 = vld [vmem:[%s345 + $0x20] sm:$0xff]
    %v1837 = vld [vmem:[%s345 + $0x30] sm:$0xff]
    %v1838 = vld [vmem:[%s345 + $0x40] sm:$0xff]
    %v1839 = vld [vmem:[%s345 + $0x50] sm:$0xff]
    %v1840 = vld [vmem:[%s345 + $0x60] sm:$0xff]
    %v1841 = vld [vmem:[%s345 + $0x70] sm:$0xff]
    %v1842 = vstv %s1833
    %v1843 = vmul.f32 %v1842, %v1834
    %v1844 = vmul.f32 %v1842, %v1835
    %v1845 = vmul.f32 %v1842, %v1836
    %v1846 = vmul.f32 %v1842, %v1837
    %v1847 = vmul.f32 %v1842, %v1838
    %v1848 = vmul.f32 %v1842, %v1839
    %v1849 = vmul.f32 %v1842, %v1840
    %v1850 = vmul.f32 %v1842, %v1841
    %v1851 = vadd.f32 %v1825, %v1843
    %v1852 = vadd.f32 %v1826, %v1844
    %v1853 = vadd.f32 %v1827, %v1845
    %v1854 = vadd.f32 %v1828, %v1846
    %v1855 = vadd.f32 %v1829, %v1847
    %v1856 = vadd.f32 %v1830, %v1848
    %v1857 = vadd.f32 %v1831, %v1849
    %v1858 = vadd.f32 %v1832, %v1850
    %s1859 = sld [smem:[#allocation4 + $0x3d]]
    %v1860 = vld [vmem:[%s345 + $0x1] sm:$0xff]
    %v1861 = vld [vmem:[%s345 + $0x11] sm:$0xff]
    %v1862 = vld [vmem:[%s345 + $0x21] sm:$0xff]
    %v1863 = vld [vmem:[%s345 + $0x31] sm:$0xff]
    %v1864 = vld [vmem:[%s345 + $0x41] sm:$0xff]
    %v1865 = vld [vmem:[%s345 + $0x51] sm:$0xff]
    %v1866 = vld [vmem:[%s345 + $0x61] sm:$0xff]
    %v1867 = vld [vmem:[%s345 + $0x71] sm:$0xff]
    %v1868 = vstv %s1859
    %v1869 = vmul.f32 %v1868, %v1860
    %v1870 = vmul.f32 %v1868, %v1861
    %v1871 = vmul.f32 %v1868, %v1862
    %v1872 = vmul.f32 %v1868, %v1863
    %v1873 = vmul.f32 %v1868, %v1864
    %v1874 = vmul.f32 %v1868, %v1865
    %v1875 = vmul.f32 %v1868, %v1866
    %v1876 = vmul.f32 %v1868, %v1867
    %v1877 = vadd.f32 %v1851, %v1869
    %v1878 = vadd.f32 %v1852, %v1870
    %v1879 = vadd.f32 %v1853, %v1871
    %v1880 = vadd.f32 %v1854, %v1872
    %v1881 = vadd.f32 %v1855, %v1873
    %v1882 = vadd.f32 %v1856, %v1874
    %v1883 = vadd.f32 %v1857, %v1875
    %v1884 = vadd.f32 %v1858, %v1876
    %s1885 = sld [smem:[#allocation4 + $0x3e]]
    %v1886 = vld [vmem:[%s345 + $0x2] sm:$0xff]
    %v1887 = vld [vmem:[%s345 + $0x12] sm:$0xff]
    %v1888 = vld [vmem:[%s345 + $0x22] sm:$0xff]
    %v1889 = vld [vmem:[%s345 + $0x32] sm:$0xff]
    %v1890 = vld [vmem:[%s345 + $0x42] sm:$0xff]
    %v1891 = vld [vmem:[%s345 + $0x52] sm:$0xff]
    %v1892 = vld [vmem:[%s345 + $0x62] sm:$0xff]
    %v1893 = vld [vmem:[%s345 + $0x72] sm:$0xff]
    %v1894 = vstv %s1885
    %v1895 = vmul.f32 %v1894, %v1886
    %v1896 = vmul.f32 %v1894, %v1887
    %v1897 = vmul.f32 %v1894, %v1888
    %v1898 = vmul.f32 %v1894, %v1889
    %v1899 = vmul.f32 %v1894, %v1890
    %v1900 = vmul.f32 %v1894, %v1891
    %v1901 = vmul.f32 %v1894, %v1892
    %v1902 = vmul.f32 %v1894, %v1893
    %v1903 = vadd.f32 %v1877, %v1895
    %v1904 = vadd.f32 %v1878, %v1896
    %v1905 = vadd.f32 %v1879, %v1897
    %v1906 = vadd.f32 %v1880, %v1898
    %v1907 = vadd.f32 %v1881, %v1899
    %v1908 = vadd.f32 %v1882, %v1900
    %v1909 = vadd.f32 %v1883, %v1901
    %v1910 = vadd.f32 %v1884, %v1902
    %s1911 = sld [smem:[#allocation4 + $0x3f]]
    %v1912 = vld [vmem:[%s424] sm:$0xff]
    %v1913 = vld [vmem:[%s424 + $0x10] sm:$0xff]
    %v1914 = vld [vmem:[%s424 + $0x20] sm:$0xff]
    %v1915 = vld [vmem:[%s424 + $0x30] sm:$0xff]
    %v1916 = vld [vmem:[%s424 + $0x40] sm:$0xff]
    %v1917 = vld [vmem:[%s424 + $0x50] sm:$0xff]
    %v1918 = vld [vmem:[%s424 + $0x60] sm:$0xff]
    %v1919 = vld [vmem:[%s424 + $0x70] sm:$0xff]
    %v1920 = vstv %s1911
    %v1921 = vmul.f32 %v1920, %v1912
    %v1922 = vmul.f32 %v1920, %v1913
    %v1923 = vmul.f32 %v1920, %v1914
    %v1924 = vmul.f32 %v1920, %v1915
    %v1925 = vmul.f32 %v1920, %v1916
    %v1926 = vmul.f32 %v1920, %v1917
    %v1927 = vmul.f32 %v1920, %v1918
    %v1928 = vmul.f32 %v1920, %v1919
    %v1929 = vadd.f32 %v1903, %v1921
    %v1930 = vadd.f32 %v1904, %v1922
    %v1931 = vadd.f32 %v1905, %v1923
    %v1932 = vadd.f32 %v1906, %v1924
    %v1933 = vadd.f32 %v1907, %v1925
    %v1934 = vadd.f32 %v1908, %v1926
    %v1935 = vadd.f32 %v1909, %v1927
    %v1936 = vadd.f32 %v1910, %v1928
    %s1937 = sld [smem:[#allocation4 + $0x40]]
    %v1938 = vld [vmem:[%s424 + $0x1] sm:$0xff]
    %v1939 = vld [vmem:[%s424 + $0x11] sm:$0xff]
    %v1940 = vld [vmem:[%s424 + $0x21] sm:$0xff]
    %v1941 = vld [vmem:[%s424 + $0x31] sm:$0xff]
    %v1942 = vld [vmem:[%s424 + $0x41] sm:$0xff]
    %v1943 = vld [vmem:[%s424 + $0x51] sm:$0xff]
    %v1944 = vld [vmem:[%s424 + $0x61] sm:$0xff]
    %v1945 = vld [vmem:[%s424 + $0x71] sm:$0xff]
    %v1946 = vstv %s1937
    %v1947 = vmul.f32 %v1946, %v1938
    %v1948 = vmul.f32 %v1946, %v1939
    %v1949 = vmul.f32 %v1946, %v1940
    %v1950 = vmul.f32 %v1946, %v1941
    %v1951 = vmul.f32 %v1946, %v1942
    %v1952 = vmul.f32 %v1946, %v1943
    %v1953 = vmul.f32 %v1946, %v1944
    %v1954 = vmul.f32 %v1946, %v1945
    %v1955 = vadd.f32 %v1929, %v1947
    %v1956 = vadd.f32 %v1930, %v1948
    %v1957 = vadd.f32 %v1931, %v1949
    %v1958 = vadd.f32 %v1932, %v1950
    %v1959 = vadd.f32 %v1933, %v1951
    %v1960 = vadd.f32 %v1934, %v1952
    %v1961 = vadd.f32 %v1935, %v1953
    %v1962 = vadd.f32 %v1936, %v1954
    %s1963 = sld [smem:[#allocation4 + $0x41]]
    %v1964 = vld [vmem:[%s424 + $0x2] sm:$0xff]
    %v1965 = vld [vmem:[%s424 + $0x12] sm:$0xff]
    %v1966 = vld [vmem:[%s424 + $0x22] sm:$0xff]
    %v1967 = vld [vmem:[%s424 + $0x32] sm:$0xff]
    %v1968 = vld [vmem:[%s424 + $0x42] sm:$0xff]
    %v1969 = vld [vmem:[%s424 + $0x52] sm:$0xff]
    %v1970 = vld [vmem:[%s424 + $0x62] sm:$0xff]
    %v1971 = vld [vmem:[%s424 + $0x72] sm:$0xff]
    %v1972 = vstv %s1963
    %v1973 = vmul.f32 %v1972, %v1964
    %v1974 = vmul.f32 %v1972, %v1965
    %v1975 = vmul.f32 %v1972, %v1966
    %v1976 = vmul.f32 %v1972, %v1967
    %v1977 = vmul.f32 %v1972, %v1968
    %v1978 = vmul.f32 %v1972, %v1969
    %v1979 = vmul.f32 %v1972, %v1970
    %v1980 = vmul.f32 %v1972, %v1971
    %v1981 = vadd.f32 %v1955, %v1973
    %v1982 = vadd.f32 %v1956, %v1974
    %v1983 = vadd.f32 %v1957, %v1975
    %v1984 = vadd.f32 %v1958, %v1976
    %v1985 = vadd.f32 %v1959, %v1977
    %v1986 = vadd.f32 %v1960, %v1978
    %v1987 = vadd.f32 %v1961, %v1979
    %v1988 = vadd.f32 %v1962, %v1980
    %s1989 = sld [smem:[#allocation4 + $0x42]]
    %v1990 = vld [vmem:[%s503] sm:$0xff]
    %v1991 = vld [vmem:[%s503 + $0x10] sm:$0xff]
    %v1992 = vld [vmem:[%s503 + $0x20] sm:$0xff]
    %v1993 = vld [vmem:[%s503 + $0x30] sm:$0xff]
    %v1994 = vld [vmem:[%s503 + $0x40] sm:$0xff]
    %v1995 = vld [vmem:[%s503 + $0x50] sm:$0xff]
    %v1996 = vld [vmem:[%s503 + $0x60] sm:$0xff]
    %v1997 = vld [vmem:[%s503 + $0x70] sm:$0xff]
    %v1998 = vstv %s1989
    %v1999 = vmul.f32 %v1998, %v1990
    %v2000 = vmul.f32 %v1998, %v1991
    %v2001 = vmul.f32 %v1998, %v1992
    %v2002 = vmul.f32 %v1998, %v1993
    %v2003 = vmul.f32 %v1998, %v1994
    %v2004 = vmul.f32 %v1998, %v1995
    %v2005 = vmul.f32 %v1998, %v1996
    %v2006 = vmul.f32 %v1998, %v1997
    %v2007 = vadd.f32 %v1981, %v1999
    %v2008 = vadd.f32 %v1982, %v2000
    %v2009 = vadd.f32 %v1983, %v2001
    %v2010 = vadd.f32 %v1984, %v2002
    %v2011 = vadd.f32 %v1985, %v2003
    %v2012 = vadd.f32 %v1986, %v2004
    %v2013 = vadd.f32 %v1987, %v2005
    %v2014 = vadd.f32 %v1988, %v2006
    %s2015 = sld [smem:[#allocation4 + $0x43]]
    %v2016 = vld [vmem:[%s503 + $0x1] sm:$0xff]
    %v2017 = vld [vmem:[%s503 + $0x11] sm:$0xff]
    %v2018 = vld [vmem:[%s503 + $0x21] sm:$0xff]
    %v2019 = vld [vmem:[%s503 + $0x31] sm:$0xff]
    %v2020 = vld [vmem:[%s503 + $0x41] sm:$0xff]
    %v2021 = vld [vmem:[%s503 + $0x51] sm:$0xff]
    %v2022 = vld [vmem:[%s503 + $0x61] sm:$0xff]
    %v2023 = vld [vmem:[%s503 + $0x71] sm:$0xff]
    %v2024 = vstv %s2015
    %v2025 = vmul.f32 %v2024, %v2016
    %v2026 = vmul.f32 %v2024, %v2017
    %v2027 = vmul.f32 %v2024, %v2018
    %v2028 = vmul.f32 %v2024, %v2019
    %v2029 = vmul.f32 %v2024, %v2020
    %v2030 = vmul.f32 %v2024, %v2021
    %v2031 = vmul.f32 %v2024, %v2022
    %v2032 = vmul.f32 %v2024, %v2023
    %v2033 = vadd.f32 %v2007, %v2025
    %v2034 = vadd.f32 %v2008, %v2026
    %v2035 = vadd.f32 %v2009, %v2027
    %v2036 = vadd.f32 %v2010, %v2028
    %v2037 = vadd.f32 %v2011, %v2029
    %v2038 = vadd.f32 %v2012, %v2030
    %v2039 = vadd.f32 %v2013, %v2031
    %v2040 = vadd.f32 %v2014, %v2032
    %s2041 = sld [smem:[#allocation4 + $0x44]]
    %v2042 = vld [vmem:[%s503 + $0x2] sm:$0xff]
    %v2043 = vld [vmem:[%s503 + $0x12] sm:$0xff]
    %v2044 = vld [vmem:[%s503 + $0x22] sm:$0xff]
    %v2045 = vld [vmem:[%s503 + $0x32] sm:$0xff]
    %v2046 = vld [vmem:[%s503 + $0x42] sm:$0xff]
    %v2047 = vld [vmem:[%s503 + $0x52] sm:$0xff]
    %v2048 = vld [vmem:[%s503 + $0x62] sm:$0xff]
    %v2049 = vld [vmem:[%s503 + $0x72] sm:$0xff]
    %v2050 = vstv %s2041
    %v2051 = vmul.f32 %v2050, %v2042
    %v2052 = vmul.f32 %v2050, %v2043
    %v2053 = vmul.f32 %v2050, %v2044
    %v2054 = vmul.f32 %v2050, %v2045
    %v2055 = vmul.f32 %v2050, %v2046
    %v2056 = vmul.f32 %v2050, %v2047
    %v2057 = vmul.f32 %v2050, %v2048
    %v2058 = vmul.f32 %v2050, %v2049
    %v2059 = vadd.f32 %v2033, %v2051
    %v2060 = vadd.f32 %v2034, %v2052
    %v2061 = vadd.f32 %v2035, %v2053
    %v2062 = vadd.f32 %v2036, %v2054
    %v2063 = vadd.f32 %v2037, %v2055
    %v2064 = vadd.f32 %v2038, %v2056
    %v2065 = vadd.f32 %v2039, %v2057
    %v2066 = vadd.f32 %v2040, %v2058
    %s2067 = sld [smem:[#allocation4 + $0x45]]
    %v2068 = vld [vmem:[%s582] sm:$0xff]
    %v2069 = vld [vmem:[%s582 + $0x10] sm:$0xff]
    %v2070 = vld [vmem:[%s582 + $0x20] sm:$0xff]
    %v2071 = vld [vmem:[%s582 + $0x30] sm:$0xff]
    %v2072 = vld [vmem:[%s582 + $0x40] sm:$0xff]
    %v2073 = vld [vmem:[%s582 + $0x50] sm:$0xff]
    %v2074 = vld [vmem:[%s582 + $0x60] sm:$0xff]
    %v2075 = vld [vmem:[%s582 + $0x70] sm:$0xff]
    %v2076 = vstv %s2067
    %v2077 = vmul.f32 %v2076, %v2068
    %v2078 = vmul.f32 %v2076, %v2069
    %v2079 = vmul.f32 %v2076, %v2070
    %v2080 = vmul.f32 %v2076, %v2071
    %v2081 = vmul.f32 %v2076, %v2072
    %v2082 = vmul.f32 %v2076, %v2073
    %v2083 = vmul.f32 %v2076, %v2074
    %v2084 = vmul.f32 %v2076, %v2075
    %v2085 = vadd.f32 %v2059, %v2077
    %v2086 = vadd.f32 %v2060, %v2078
    %v2087 = vadd.f32 %v2061, %v2079
    %v2088 = vadd.f32 %v2062, %v2080
    %v2089 = vadd.f32 %v2063, %v2081
    %v2090 = vadd.f32 %v2064, %v2082
    %v2091 = vadd.f32 %v2065, %v2083
    %v2092 = vadd.f32 %v2066, %v2084
    %s2093 = sld [smem:[#allocation4 + $0x46]]
    %v2094 = vld [vmem:[%s582 + $0x1] sm:$0xff]
    %v2095 = vld [vmem:[%s582 + $0x11] sm:$0xff]
    %v2096 = vld [vmem:[%s582 + $0x21] sm:$0xff]
    %v2097 = vld [vmem:[%s582 + $0x31] sm:$0xff]
    %v2098 = vld [vmem:[%s582 + $0x41] sm:$0xff]
    %v2099 = vld [vmem:[%s582 + $0x51] sm:$0xff]
    %v2100 = vld [vmem:[%s582 + $0x61] sm:$0xff]
    %v2101 = vld [vmem:[%s582 + $0x71] sm:$0xff]
    %v2102 = vstv %s2093
    %v2103 = vmul.f32 %v2102, %v2094
    %v2104 = vmul.f32 %v2102, %v2095
    %v2105 = vmul.f32 %v2102, %v2096
    %v2106 = vmul.f32 %v2102, %v2097
    %v2107 = vmul.f32 %v2102, %v2098
    %v2108 = vmul.f32 %v2102, %v2099
    %v2109 = vmul.f32 %v2102, %v2100
    %v2110 = vmul.f32 %v2102, %v2101
    %v2111 = vadd.f32 %v2085, %v2103
    %v2112 = vadd.f32 %v2086, %v2104
    %v2113 = vadd.f32 %v2087, %v2105
    %v2114 = vadd.f32 %v2088, %v2106
    %v2115 = vadd.f32 %v2089, %v2107
    %v2116 = vadd.f32 %v2090, %v2108
    %v2117 = vadd.f32 %v2091, %v2109
    %v2118 = vadd.f32 %v2092, %v2110
    %s2119 = sld [smem:[#allocation4 + $0x47]]
    %v2120 = vld [vmem:[%s582 + $0x2] sm:$0xff]
    %v2121 = vld [vmem:[%s582 + $0x12] sm:$0xff]
    %v2122 = vld [vmem:[%s582 + $0x22] sm:$0xff]
    %v2123 = vld [vmem:[%s582 + $0x32] sm:$0xff]
    %v2124 = vld [vmem:[%s582 + $0x42] sm:$0xff]
    %v2125 = vld [vmem:[%s582 + $0x52] sm:$0xff]
    %v2126 = vld [vmem:[%s582 + $0x62] sm:$0xff]
    %v2127 = vld [vmem:[%s582 + $0x72] sm:$0xff]
    %v2128 = vstv %s2119
    %v2129 = vmul.f32 %v2128, %v2120
    %v2130 = vmul.f32 %v2128, %v2121
    %v2131 = vmul.f32 %v2128, %v2122
    %v2132 = vmul.f32 %v2128, %v2123
    %v2133 = vmul.f32 %v2128, %v2124
    %v2134 = vmul.f32 %v2128, %v2125
    %v2135 = vmul.f32 %v2128, %v2126
    %v2136 = vmul.f32 %v2128, %v2127
    %v2137 = vadd.f32 %v2111, %v2129
    %v2138 = vadd.f32 %v2112, %v2130
    %v2139 = vadd.f32 %v2113, %v2131
    %v2140 = vadd.f32 %v2114, %v2132
    %v2141 = vadd.f32 %v2115, %v2133
    %v2142 = vadd.f32 %v2116, %v2134
    %v2143 = vadd.f32 %v2117, %v2135
    %v2144 = vadd.f32 %v2118, %v2136
    %s2145 = sld [smem:[#allocation6 + $0x3]]
    %v2146 = vstv %s2145
    %v2147 = vadd.f32 %v2137, %v2146
    %v2148 = vadd.f32 %v2138, %v2146
    %v2149 = vadd.f32 %v2139, %v2146
    %v2150 = vadd.f32 %v2140, %v2146
    %v2151 = vadd.f32 %v2141, %v2146
    %v2152 = vadd.f32 %v2142, %v2146
    %v2153 = vadd.f32 %v2143, %v2146
    %v2154 = vadd.f32 %v2144, %v2146
    %v2155 = vmax.f32 %v2147, 0.0
    %v2156 = vmax.f32 %v2148, 0.0
    %v2157 = vmax.f32 %v2149, 0.0
    %v2158 = vmax.f32 %v2150, 0.0
    %v2159 = vmax.f32 %v2151, 0.0
    %v2160 = vmax.f32 %v2152, 0.0
    %v2161 = vmax.f32 %v2153, 0.0
    %v2162 = vmax.f32 %v2154, 0.0
    %s2163 = scalar_lea.vmem [#allocation2], 496
    %2164 = vst.msk [vmem:[%s2163 + $0x1] sm:$0xff] %vm87, %v2155
    %2165 = vst.msk [vmem:[%s2163 + $0x11] sm:$0xff] %vm87, %v2156
    %2166 = vst.msk [vmem:[%s2163 + $0x21] sm:$0xff] %vm87, %v2157
    %2167 = vst.msk [vmem:[%s2163 + $0x31] sm:$0xff] %vm87, %v2158
    %2168 = vst.msk [vmem:[%s2163 + $0x41] sm:$0xff] %vm87, %v2159
    %2169 = vst.msk [vmem:[%s2163 + $0x51] sm:$0xff] %vm87, %v2160
    %2170 = vst.msk [vmem:[%s2163 + $0x61] sm:$0xff] %vm87, %v2161
    %2171 = vst.msk [vmem:[%s2163 + $0x71] sm:$0xff] %vm87, %v2162
    %s2172 = sld [smem:[#allocation8]]
    %v2173 = vld [vmem:[#allocation2] sm:$0xff]
    %v2174 = vld [vmem:[#allocation2 + $0x10] sm:$0xff]
    %v2175 = vld [vmem:[#allocation2 + $0x20] sm:$0xff]
    %v2176 = vld [vmem:[#allocation2 + $0x30] sm:$0xff]
    %v2177 = vld [vmem:[#allocation2 + $0x40] sm:$0xff]
    %v2178 = vld [vmem:[#allocation2 + $0x50] sm:$0xff]
    %v2179 = vld [vmem:[#allocation2 + $0x60] sm:$0xff]
    %v2180 = vld [vmem:[#allocation2 + $0x70] sm:$0xff]
    %v2181 = vstv %s2172
    %v2182 = vmul.f32 %v2181, %v2173
    %v2183 = vmul.f32 %v2181, %v2174
    %v2184 = vmul.f32 %v2181, %v2175
    %v2185 = vmul.f32 %v2181, %v2176
    %v2186 = vmul.f32 %v2181, %v2177
    %v2187 = vmul.f32 %v2181, %v2178
    %v2188 = vmul.f32 %v2181, %v2179
    %v2189 = vmul.f32 %v2181, %v2180
    %v2190 = vadd.f32 %v2182, 0.0
    %v2191 = vadd.f32 %v2183, 0.0
    %v2192 = vadd.f32 %v2184, 0.0
    %v2193 = vadd.f32 %v2185, 0.0
    %v2194 = vadd.f32 %v2186, 0.0
    %v2195 = vadd.f32 %v2187, 0.0
    %v2196 = vadd.f32 %v2188, 0.0
    %v2197 = vadd.f32 %v2189, 0.0
    %s2198 = sld [smem:[#allocation8 + $0x1]]
    %v2199 = vld [vmem:[#allocation2 + $0x1] sm:$0xff]
    %v2200 = vld [vmem:[#allocation2 + $0x11] sm:$0xff]
    %v2201 = vld [vmem:[#allocation2 + $0x21] sm:$0xff]
    %v2202 = vld [vmem:[#allocation2 + $0x31] sm:$0xff]
    %v2203 = vld [vmem:[#allocation2 + $0x41] sm:$0xff]
    %v2204 = vld [vmem:[#allocation2 + $0x51] sm:$0xff]
    %v2205 = vld [vmem:[#allocation2 + $0x61] sm:$0xff]
    %v2206 = vld [vmem:[#allocation2 + $0x71] sm:$0xff]
    %v2207 = vstv %s2198
    %v2208 = vmul.f32 %v2207, %v2199
    %v2209 = vmul.f32 %v2207, %v2200
    %v2210 = vmul.f32 %v2207, %v2201
    %v2211 = vmul.f32 %v2207, %v2202
    %v2212 = vmul.f32 %v2207, %v2203
    %v2213 = vmul.f32 %v2207, %v2204
    %v2214 = vmul.f32 %v2207, %v2205
    %v2215 = vmul.f32 %v2207, %v2206
    %v2216 = vadd.f32 %v2190, %v2208
    %v2217 = vadd.f32 %v2191, %v2209
    %v2218 = vadd.f32 %v2192, %v2210
    %v2219 = vadd.f32 %v2193, %v2211
    %v2220 = vadd.f32 %v2194, %v2212
    %v2221 = vadd.f32 %v2195, %v2213
    %v2222 = vadd.f32 %v2196, %v2214
    %v2223 = vadd.f32 %v2197, %v2215
    %s2224 = sld [smem:[#allocation8 + $0x2]]
    %v2225 = vld [vmem:[#allocation2 + $0x2] sm:$0xff]
    %v2226 = vld [vmem:[#allocation2 + $0x12] sm:$0xff]
    %v2227 = vld [vmem:[#allocation2 + $0x22] sm:$0xff]
    %v2228 = vld [vmem:[#allocation2 + $0x32] sm:$0xff]
    %v2229 = vld [vmem:[#allocation2 + $0x42] sm:$0xff]
    %v2230 = vld [vmem:[#allocation2 + $0x52] sm:$0xff]
    %v2231 = vld [vmem:[#allocation2 + $0x62] sm:$0xff]
    %v2232 = vld [vmem:[#allocation2 + $0x72] sm:$0xff]
    %v2233 = vstv %s2224
    %v2234 = vmul.f32 %v2233, %v2225
    %v2235 = vmul.f32 %v2233, %v2226
    %v2236 = vmul.f32 %v2233, %v2227
    %v2237 = vmul.f32 %v2233, %v2228
    %v2238 = vmul.f32 %v2233, %v2229
    %v2239 = vmul.f32 %v2233, %v2230
    %v2240 = vmul.f32 %v2233, %v2231
    %v2241 = vmul.f32 %v2233, %v2232
    %v2242 = vadd.f32 %v2216, %v2234
    %v2243 = vadd.f32 %v2217, %v2235
    %v2244 = vadd.f32 %v2218, %v2236
    %v2245 = vadd.f32 %v2219, %v2237
    %v2246 = vadd.f32 %v2220, %v2238
    %v2247 = vadd.f32 %v2221, %v2239
    %v2248 = vadd.f32 %v2222, %v2240
    %v2249 = vadd.f32 %v2223, %v2241
    %s2250 = sld [smem:[#allocation8 + $0x3]]
    %v2251 = vld [vmem:[%s678] sm:$0xff]
    %v2252 = vld [vmem:[%s678 + $0x10] sm:$0xff]
    %v2253 = vld [vmem:[%s678 + $0x20] sm:$0xff]
    %v2254 = vld [vmem:[%s678 + $0x30] sm:$0xff]
    %v2255 = vld [vmem:[%s678 + $0x40] sm:$0xff]
    %v2256 = vld [vmem:[%s678 + $0x50] sm:$0xff]
    %v2257 = vld [vmem:[%s678 + $0x60] sm:$0xff]
    %v2258 = vld [vmem:[%s678 + $0x70] sm:$0xff]
    %v2259 = vstv %s2250
    %v2260 = vmul.f32 %v2259, %v2251
    %v2261 = vmul.f32 %v2259, %v2252
    %v2262 = vmul.f32 %v2259, %v2253
    %v2263 = vmul.f32 %v2259, %v2254
    %v2264 = vmul.f32 %v2259, %v2255
    %v2265 = vmul.f32 %v2259, %v2256
    %v2266 = vmul.f32 %v2259, %v2257
    %v2267 = vmul.f32 %v2259, %v2258
    %v2268 = vadd.f32 %v2242, %v2260
    %v2269 = vadd.f32 %v2243, %v2261
    %v2270 = vadd.f32 %v2244, %v2262
    %v2271 = vadd.f32 %v2245, %v2263
    %v2272 = vadd.f32 %v2246, %v2264
    %v2273 = vadd.f32 %v2247, %v2265
    %v2274 = vadd.f32 %v2248, %v2266
    %v2275 = vadd.f32 %v2249, %v2267
    %s2276 = sld [smem:[#allocation8 + $0x4]]
    %v2277 = vld [vmem:[%s678 + $0x1] sm:$0xff]
    %v2278 = vld [vmem:[%s678 + $0x11] sm:$0xff]
    %v2279 = vld [vmem:[%s678 + $0x21] sm:$0xff]
    %v2280 = vld [vmem:[%s678 + $0x31] sm:$0xff]
    %v2281 = vld [vmem:[%s678 + $0x41] sm:$0xff]
    %v2282 = vld [vmem:[%s678 + $0x51] sm:$0xff]
    %v2283 = vld [vmem:[%s678 + $0x61] sm:$0xff]
    %v2284 = vld [vmem:[%s678 + $0x71] sm:$0xff]
    %v2285 = vstv %s2276
    %v2286 = vmul.f32 %v2285, %v2277
    %v2287 = vmul.f32 %v2285, %v2278
    %v2288 = vmul.f32 %v2285, %v2279
    %v2289 = vmul.f32 %v2285, %v2280
    %v2290 = vmul.f32 %v2285, %v2281
    %v2291 = vmul.f32 %v2285, %v2282
    %v2292 = vmul.f32 %v2285, %v2283
    %v2293 = vmul.f32 %v2285, %v2284
    %v2294 = vadd.f32 %v2268, %v2286
    %v2295 = vadd.f32 %v2269, %v2287
    %v2296 = vadd.f32 %v2270, %v2288
    %v2297 = vadd.f32 %v2271, %v2289
    %v2298 = vadd.f32 %v2272, %v2290
    %v2299 = vadd.f32 %v2273, %v2291
    %v2300 = vadd.f32 %v2274, %v2292
    %v2301 = vadd.f32 %v2275, %v2293
    %s2302 = sld [smem:[#allocation8 + $0x5]]
    %v2303 = vld [vmem:[%s678 + $0x2] sm:$0xff]
    %v2304 = vld [vmem:[%s678 + $0x12] sm:$0xff]
    %v2305 = vld [vmem:[%s678 + $0x22] sm:$0xff]
    %v2306 = vld [vmem:[%s678 + $0x32] sm:$0xff]
    %v2307 = vld [vmem:[%s678 + $0x42] sm:$0xff]
    %v2308 = vld [vmem:[%s678 + $0x52] sm:$0xff]
    %v2309 = vld [vmem:[%s678 + $0x62] sm:$0xff]
    %v2310 = vld [vmem:[%s678 + $0x72] sm:$0xff]
    %v2311 = vstv %s2302
    %v2312 = vmul.f32 %v2311, %v2303
    %v2313 = vmul.f32 %v2311, %v2304
    %v2314 = vmul.f32 %v2311, %v2305
    %v2315 = vmul.f32 %v2311, %v2306
    %v2316 = vmul.f32 %v2311, %v2307
    %v2317 = vmul.f32 %v2311, %v2308
    %v2318 = vmul.f32 %v2311, %v2309
    %v2319 = vmul.f32 %v2311, %v2310
    %v2320 = vadd.f32 %v2294, %v2312
    %v2321 = vadd.f32 %v2295, %v2313
    %v2322 = vadd.f32 %v2296, %v2314
    %v2323 = vadd.f32 %v2297, %v2315
    %v2324 = vadd.f32 %v2298, %v2316
    %v2325 = vadd.f32 %v2299, %v2317
    %v2326 = vadd.f32 %v2300, %v2318
    %v2327 = vadd.f32 %v2301, %v2319
    %s2328 = sld [smem:[#allocation8 + $0x6]]
    %s2329 = scalar_lea.vmem [#allocation2], 32
    %v2330 = vld [vmem:[%s2329] sm:$0xff]
    %v2331 = vld [vmem:[%s2329 + $0x10] sm:$0xff]
    %v2332 = vld [vmem:[%s2329 + $0x20] sm:$0xff]
    %v2333 = vld [vmem:[%s2329 + $0x30] sm:$0xff]
    %v2334 = vld [vmem:[%s2329 + $0x40] sm:$0xff]
    %v2335 = vld [vmem:[%s2329 + $0x50] sm:$0xff]
    %v2336 = vld [vmem:[%s2329 + $0x60] sm:$0xff]
    %v2337 = vld [vmem:[%s2329 + $0x70] sm:$0xff]
    %v2338 = vstv %s2328
    %v2339 = vmul.f32 %v2338, %v2330
    %v2340 = vmul.f32 %v2338, %v2331
    %v2341 = vmul.f32 %v2338, %v2332
    %v2342 = vmul.f32 %v2338, %v2333
    %v2343 = vmul.f32 %v2338, %v2334
    %v2344 = vmul.f32 %v2338, %v2335
    %v2345 = vmul.f32 %v2338, %v2336
    %v2346 = vmul.f32 %v2338, %v2337
    %v2347 = vadd.f32 %v2320, %v2339
    %v2348 = vadd.f32 %v2321, %v2340
    %v2349 = vadd.f32 %v2322, %v2341
    %v2350 = vadd.f32 %v2323, %v2342
    %v2351 = vadd.f32 %v2324, %v2343
    %v2352 = vadd.f32 %v2325, %v2344
    %v2353 = vadd.f32 %v2326, %v2345
    %v2354 = vadd.f32 %v2327, %v2346
    %s2355 = sld [smem:[#allocation8 + $0x7]]
    %v2356 = vld [vmem:[%s2329 + $0x1] sm:$0xff]
    %v2357 = vld [vmem:[%s2329 + $0x11] sm:$0xff]
    %v2358 = vld [vmem:[%s2329 + $0x21] sm:$0xff]
    %v2359 = vld [vmem:[%s2329 + $0x31] sm:$0xff]
    %v2360 = vld [vmem:[%s2329 + $0x41] sm:$0xff]
    %v2361 = vld [vmem:[%s2329 + $0x51] sm:$0xff]
    %v2362 = vld [vmem:[%s2329 + $0x61] sm:$0xff]
    %v2363 = vld [vmem:[%s2329 + $0x71] sm:$0xff]
    %v2364 = vstv %s2355
    %v2365 = vmul.f32 %v2364, %v2356
    %v2366 = vmul.f32 %v2364, %v2357
    %v2367 = vmul.f32 %v2364, %v2358
    %v2368 = vmul.f32 %v2364, %v2359
    %v2369 = vmul.f32 %v2364, %v2360
    %v2370 = vmul.f32 %v2364, %v2361
    %v2371 = vmul.f32 %v2364, %v2362
    %v2372 = vmul.f32 %v2364, %v2363
    %v2373 = vadd.f32 %v2347, %v2365
    %v2374 = vadd.f32 %v2348, %v2366
    %v2375 = vadd.f32 %v2349, %v2367
    %v2376 = vadd.f32 %v2350, %v2368
    %v2377 = vadd.f32 %v2351, %v2369
    %v2378 = vadd.f32 %v2352, %v2370
    %v2379 = vadd.f32 %v2353, %v2371
    %v2380 = vadd.f32 %v2354, %v2372
    %s2381 = sld [smem:[#allocation8 + $0x8]]
    %v2382 = vld [vmem:[%s2329 + $0x2] sm:$0xff]
    %v2383 = vld [vmem:[%s2329 + $0x12] sm:$0xff]
    %v2384 = vld [vmem:[%s2329 + $0x22] sm:$0xff]
    %v2385 = vld [vmem:[%s2329 + $0x32] sm:$0xff]
    %v2386 = vld [vmem:[%s2329 + $0x42] sm:$0xff]
    %v2387 = vld [vmem:[%s2329 + $0x52] sm:$0xff]
    %v2388 = vld [vmem:[%s2329 + $0x62] sm:$0xff]
    %v2389 = vld [vmem:[%s2329 + $0x72] sm:$0xff]
    %v2390 = vstv %s2381
    %v2391 = vmul.f32 %v2390, %v2382
    %v2392 = vmul.f32 %v2390, %v2383
    %v2393 = vmul.f32 %v2390, %v2384
    %v2394 = vmul.f32 %v2390, %v2385
    %v2395 = vmul.f32 %v2390, %v2386
    %v2396 = vmul.f32 %v2390, %v2387
    %v2397 = vmul.f32 %v2390, %v2388
    %v2398 = vmul.f32 %v2390, %v2389
    %v2399 = vadd.f32 %v2373, %v2391
    %v2400 = vadd.f32 %v2374, %v2392
    %v2401 = vadd.f32 %v2375, %v2393
    %v2402 = vadd.f32 %v2376, %v2394
    %v2403 = vadd.f32 %v2377, %v2395
    %v2404 = vadd.f32 %v2378, %v2396
    %v2405 = vadd.f32 %v2379, %v2397
    %v2406 = vadd.f32 %v2380, %v2398
    %s2407 = sld [smem:[#allocation8 + $0x9]]
    %s2408 = scalar_lea.vmem [#allocation2], 160
    %v2409 = vld [vmem:[%s2408] sm:$0xff]
    %v2410 = vld [vmem:[%s2408 + $0x10] sm:$0xff]
    %v2411 = vld [vmem:[%s2408 + $0x20] sm:$0xff]
    %v2412 = vld [vmem:[%s2408 + $0x30] sm:$0xff]
    %v2413 = vld [vmem:[%s2408 + $0x40] sm:$0xff]
    %v2414 = vld [vmem:[%s2408 + $0x50] sm:$0xff]
    %v2415 = vld [vmem:[%s2408 + $0x60] sm:$0xff]
    %v2416 = vld [vmem:[%s2408 + $0x70] sm:$0xff]
    %v2417 = vstv %s2407
    %v2418 = vmul.f32 %v2417, %v2409
    %v2419 = vmul.f32 %v2417, %v2410
    %v2420 = vmul.f32 %v2417, %v2411
    %v2421 = vmul.f32 %v2417, %v2412
    %v2422 = vmul.f32 %v2417, %v2413
    %v2423 = vmul.f32 %v2417, %v2414
    %v2424 = vmul.f32 %v2417, %v2415
    %v2425 = vmul.f32 %v2417, %v2416
    %v2426 = vadd.f32 %v2399, %v2418
    %v2427 = vadd.f32 %v2400, %v2419
    %v2428 = vadd.f32 %v2401, %v2420
    %v2429 = vadd.f32 %v2402, %v2421
    %v2430 = vadd.f32 %v2403, %v2422
    %v2431 = vadd.f32 %v2404, %v2423
    %v2432 = vadd.f32 %v2405, %v2424
    %v2433 = vadd.f32 %v2406, %v2425
    %s2434 = sld [smem:[#allocation8 + $0xa]]
    %v2435 = vld [vmem:[%s2408 + $0x1] sm:$0xff]
    %v2436 = vld [vmem:[%s2408 + $0x11] sm:$0xff]
    %v2437 = vld [vmem:[%s2408 + $0x21] sm:$0xff]
    %v2438 = vld [vmem:[%s2408 + $0x31] sm:$0xff]
    %v2439 = vld [vmem:[%s2408 + $0x41] sm:$0xff]
    %v2440 = vld [vmem:[%s2408 + $0x51] sm:$0xff]
    %v2441 = vld [vmem:[%s2408 + $0x61] sm:$0xff]
    %v2442 = vld [vmem:[%s2408 + $0x71] sm:$0xff]
    %v2443 = vstv %s2434
    %v2444 = vmul.f32 %v2443, %v2435
    %v2445 = vmul.f32 %v2443, %v2436
    %v2446 = vmul.f32 %v2443, %v2437
    %v2447 = vmul.f32 %v2443, %v2438
    %v2448 = vmul.f32 %v2443, %v2439
    %v2449 = vmul.f32 %v2443, %v2440
    %v2450 = vmul.f32 %v2443, %v2441
    %v2451 = vmul.f32 %v2443, %v2442
    %v2452 = vadd.f32 %v2426, %v2444
    %v2453 = vadd.f32 %v2427, %v2445
    %v2454 = vadd.f32 %v2428, %v2446
    %v2455 = vadd.f32 %v2429, %v2447
    %v2456 = vadd.f32 %v2430, %v2448
    %v2457 = vadd.f32 %v2431, %v2449
    %v2458 = vadd.f32 %v2432, %v2450
    %v2459 = vadd.f32 %v2433, %v2451
    %s2460 = sld [smem:[#allocation8 + $0xb]]
    %v2461 = vld [vmem:[%s2408 + $0x2] sm:$0xff]
    %v2462 = vld [vmem:[%s2408 + $0x12] sm:$0xff]
    %v2463 = vld [vmem:[%s2408 + $0x22] sm:$0xff]
    %v2464 = vld [vmem:[%s2408 + $0x32] sm:$0xff]
    %v2465 = vld [vmem:[%s2408 + $0x42] sm:$0xff]
    %v2466 = vld [vmem:[%s2408 + $0x52] sm:$0xff]
    %v2467 = vld [vmem:[%s2408 + $0x62] sm:$0xff]
    %v2468 = vld [vmem:[%s2408 + $0x72] sm:$0xff]
    %v2469 = vstv %s2460
    %v2470 = vmul.f32 %v2469, %v2461
    %v2471 = vmul.f32 %v2469, %v2462
    %v2472 = vmul.f32 %v2469, %v2463
    %v2473 = vmul.f32 %v2469, %v2464
    %v2474 = vmul.f32 %v2469, %v2465
    %v2475 = vmul.f32 %v2469, %v2466
    %v2476 = vmul.f32 %v2469, %v2467
    %v2477 = vmul.f32 %v2469, %v2468
    %v2478 = vadd.f32 %v2452, %v2470
    %v2479 = vadd.f32 %v2453, %v2471
    %v2480 = vadd.f32 %v2454, %v2472
    %v2481 = vadd.f32 %v2455, %v2473
    %v2482 = vadd.f32 %v2456, %v2474
    %v2483 = vadd.f32 %v2457, %v2475
    %v2484 = vadd.f32 %v2458, %v2476
    %v2485 = vadd.f32 %v2459, %v2477
    %s2486 = sld [smem:[#allocation8 + $0xc]]
    %v2487 = vld [vmem:[%s1173] sm:$0xff]
    %v2488 = vld [vmem:[%s1173 + $0x10] sm:$0xff]
    %v2489 = vld [vmem:[%s1173 + $0x20] sm:$0xff]
    %v2490 = vld [vmem:[%s1173 + $0x30] sm:$0xff]
    %v2491 = vld [vmem:[%s1173 + $0x40] sm:$0xff]
    %v2492 = vld [vmem:[%s1173 + $0x50] sm:$0xff]
    %v2493 = vld [vmem:[%s1173 + $0x60] sm:$0xff]
    %v2494 = vld [vmem:[%s1173 + $0x70] sm:$0xff]
    %v2495 = vstv %s2486
    %v2496 = vmul.f32 %v2495, %v2487
    %v2497 = vmul.f32 %v2495, %v2488
    %v2498 = vmul.f32 %v2495, %v2489
    %v2499 = vmul.f32 %v2495, %v2490
    %v2500 = vmul.f32 %v2495, %v2491
    %v2501 = vmul.f32 %v2495, %v2492
    %v2502 = vmul.f32 %v2495, %v2493
    %v2503 = vmul.f32 %v2495, %v2494
    %v2504 = vadd.f32 %v2478, %v2496
    %v2505 = vadd.f32 %v2479, %v2497
    %v2506 = vadd.f32 %v2480, %v2498
    %v2507 = vadd.f32 %v2481, %v2499
    %v2508 = vadd.f32 %v2482, %v2500
    %v2509 = vadd.f32 %v2483, %v2501
    %v2510 = vadd.f32 %v2484, %v2502
    %v2511 = vadd.f32 %v2485, %v2503
    %s2512 = sld [smem:[#allocation8 + $0xd]]
    %v2513 = vld [vmem:[%s1173 + $0x1] sm:$0xff]
    %v2514 = vld [vmem:[%s1173 + $0x11] sm:$0xff]
    %v2515 = vld [vmem:[%s1173 + $0x21] sm:$0xff]
    %v2516 = vld [vmem:[%s1173 + $0x31] sm:$0xff]
    %v2517 = vld [vmem:[%s1173 + $0x41] sm:$0xff]
    %v2518 = vld [vmem:[%s1173 + $0x51] sm:$0xff]
    %v2519 = vld [vmem:[%s1173 + $0x61] sm:$0xff]
    %v2520 = vld [vmem:[%s1173 + $0x71] sm:$0xff]
    %v2521 = vstv %s2512
    %v2522 = vmul.f32 %v2521, %v2513
    %v2523 = vmul.f32 %v2521, %v2514
    %v2524 = vmul.f32 %v2521, %v2515
    %v2525 = vmul.f32 %v2521, %v2516
    %v2526 = vmul.f32 %v2521, %v2517
    %v2527 = vmul.f32 %v2521, %v2518
    %v2528 = vmul.f32 %v2521, %v2519
    %v2529 = vmul.f32 %v2521, %v2520
    %v2530 = vadd.f32 %v2504, %v2522
    %v2531 = vadd.f32 %v2505, %v2523
    %v2532 = vadd.f32 %v2506, %v2524
    %v2533 = vadd.f32 %v2507, %v2525
    %v2534 = vadd.f32 %v2508, %v2526
    %v2535 = vadd.f32 %v2509, %v2527
    %v2536 = vadd.f32 %v2510, %v2528
    %v2537 = vadd.f32 %v2511, %v2529
    %s2538 = sld [smem:[#allocation8 + $0xe]]
    %v2539 = vld [vmem:[%s1173 + $0x2] sm:$0xff]
    %v2540 = vld [vmem:[%s1173 + $0x12] sm:$0xff]
    %v2541 = vld [vmem:[%s1173 + $0x22] sm:$0xff]
    %v2542 = vld [vmem:[%s1173 + $0x32] sm:$0xff]
    %v2543 = vld [vmem:[%s1173 + $0x42] sm:$0xff]
    %v2544 = vld [vmem:[%s1173 + $0x52] sm:$0xff]
    %v2545 = vld [vmem:[%s1173 + $0x62] sm:$0xff]
    %v2546 = vld [vmem:[%s1173 + $0x72] sm:$0xff]
    %v2547 = vstv %s2538
    %v2548 = vmul.f32 %v2547, %v2539
    %v2549 = vmul.f32 %v2547, %v2540
    %v2550 = vmul.f32 %v2547, %v2541
    %v2551 = vmul.f32 %v2547, %v2542
    %v2552 = vmul.f32 %v2547, %v2543
    %v2553 = vmul.f32 %v2547, %v2544
    %v2554 = vmul.f32 %v2547, %v2545
    %v2555 = vmul.f32 %v2547, %v2546
    %v2556 = vadd.f32 %v2530, %v2548
    %v2557 = vadd.f32 %v2531, %v2549
    %v2558 = vadd.f32 %v2532, %v2550
    %v2559 = vadd.f32 %v2533, %v2551
    %v2560 = vadd.f32 %v2534, %v2552
    %v2561 = vadd.f32 %v2535, %v2553
    %v2562 = vadd.f32 %v2536, %v2554
    %v2563 = vadd.f32 %v2537, %v2555
    %s2564 = sld [smem:[#allocation8 + $0xf]]
    %s2565 = scalar_lea.vmem [#allocation2], 192
    %v2566 = vld [vmem:[%s2565] sm:$0xff]
    %v2567 = vld [vmem:[%s2565 + $0x10] sm:$0xff]
    %v2568 = vld [vmem:[%s2565 + $0x20] sm:$0xff]
    %v2569 = vld [vmem:[%s2565 + $0x30] sm:$0xff]
    %v2570 = vld [vmem:[%s2565 + $0x40] sm:$0xff]
    %v2571 = vld [vmem:[%s2565 + $0x50] sm:$0xff]
    %v2572 = vld [vmem:[%s2565 + $0x60] sm:$0xff]
    %v2573 = vld [vmem:[%s2565 + $0x70] sm:$0xff]
    %v2574 = vstv %s2564
    %v2575 = vmul.f32 %v2574, %v2566
    %v2576 = vmul.f32 %v2574, %v2567
    %v2577 = vmul.f32 %v2574, %v2568
    %v2578 = vmul.f32 %v2574, %v2569
    %v2579 = vmul.f32 %v2574, %v2570
    %v2580 = vmul.f32 %v2574, %v2571
    %v2581 = vmul.f32 %v2574, %v2572
    %v2582 = vmul.f32 %v2574, %v2573
    %v2583 = vadd.f32 %v2556, %v2575
    %v2584 = vadd.f32 %v2557, %v2576
    %v2585 = vadd.f32 %v2558, %v2577
    %v2586 = vadd.f32 %v2559, %v2578
    %v2587 = vadd.f32 %v2560, %v2579
    %v2588 = vadd.f32 %v2561, %v2580
    %v2589 = vadd.f32 %v2562, %v2581
    %v2590 = vadd.f32 %v2563, %v2582
    %s2591 = sld [smem:[#allocation8 + $0x10]]
    %v2592 = vld [vmem:[%s2565 + $0x1] sm:$0xff]
    %v2593 = vld [vmem:[%s2565 + $0x11] sm:$0xff]
    %v2594 = vld [vmem:[%s2565 + $0x21] sm:$0xff]
    %v2595 = vld [vmem:[%s2565 + $0x31] sm:$0xff]
    %v2596 = vld [vmem:[%s2565 + $0x41] sm:$0xff]
    %v2597 = vld [vmem:[%s2565 + $0x51] sm:$0xff]
    %v2598 = vld [vmem:[%s2565 + $0x61] sm:$0xff]
    %v2599 = vld [vmem:[%s2565 + $0x71] sm:$0xff]
    %v2600 = vstv %s2591
    %v2601 = vmul.f32 %v2600, %v2592
    %v2602 = vmul.f32 %v2600, %v2593
    %v2603 = vmul.f32 %v2600, %v2594
    %v2604 = vmul.f32 %v2600, %v2595
    %v2605 = vmul.f32 %v2600, %v2596
    %v2606 = vmul.f32 %v2600, %v2597
    %v2607 = vmul.f32 %v2600, %v2598
    %v2608 = vmul.f32 %v2600, %v2599
    %v2609 = vadd.f32 %v2583, %v2601
    %v2610 = vadd.f32 %v2584, %v2602
    %v2611 = vadd.f32 %v2585, %v2603
    %v2612 = vadd.f32 %v2586, %v2604
    %v2613 = vadd.f32 %v2587, %v2605
    %v2614 = vadd.f32 %v2588, %v2606
    %v2615 = vadd.f32 %v2589, %v2607
    %v2616 = vadd.f32 %v2590, %v2608
    %s2617 = sld [smem:[#allocation8 + $0x11]]
    %v2618 = vld [vmem:[%s2565 + $0x2] sm:$0xff]
    %v2619 = vld [vmem:[%s2565 + $0x12] sm:$0xff]
    %v2620 = vld [vmem:[%s2565 + $0x22] sm:$0xff]
    %v2621 = vld [vmem:[%s2565 + $0x32] sm:$0xff]
    %v2622 = vld [vmem:[%s2565 + $0x42] sm:$0xff]
    %v2623 = vld [vmem:[%s2565 + $0x52] sm:$0xff]
    %v2624 = vld [vmem:[%s2565 + $0x62] sm:$0xff]
    %v2625 = vld [vmem:[%s2565 + $0x72] sm:$0xff]
    %v2626 = vstv %s2617
    %v2627 = vmul.f32 %v2626, %v2618
    %v2628 = vmul.f32 %v2626, %v2619
    %v2629 = vmul.f32 %v2626, %v2620
    %v2630 = vmul.f32 %v2626, %v2621
    %v2631 = vmul.f32 %v2626, %v2622
    %v2632 = vmul.f32 %v2626, %v2623
    %v2633 = vmul.f32 %v2626, %v2624
    %v2634 = vmul.f32 %v2626, %v2625
    %v2635 = vadd.f32 %v2609, %v2627
    %v2636 = vadd.f32 %v2610, %v2628
    %v2637 = vadd.f32 %v2611, %v2629
    %v2638 = vadd.f32 %v2612, %v2630
    %v2639 = vadd.f32 %v2613, %v2631
    %v2640 = vadd.f32 %v2614, %v2632
    %v2641 = vadd.f32 %v2615, %v2633
    %v2642 = vadd.f32 %v2616, %v2634
    %s2643 = sld [smem:[#allocation8 + $0x12]]
    %s2644 = scalar_lea.vmem [#allocation2], 320
    %v2645 = vld [vmem:[%s2644] sm:$0xff]
    %v2646 = vld [vmem:[%s2644 + $0x10] sm:$0xff]
    %v2647 = vld [vmem:[%s2644 + $0x20] sm:$0xff]
    %v2648 = vld [vmem:[%s2644 + $0x30] sm:$0xff]
    %v2649 = vld [vmem:[%s2644 + $0x40] sm:$0xff]
    %v2650 = vld [vmem:[%s2644 + $0x50] sm:$0xff]
    %v2651 = vld [vmem:[%s2644 + $0x60] sm:$0xff]
    %v2652 = vld [vmem:[%s2644 + $0x70] sm:$0xff]
    %v2653 = vstv %s2643
    %v2654 = vmul.f32 %v2653, %v2645
    %v2655 = vmul.f32 %v2653, %v2646
    %v2656 = vmul.f32 %v2653, %v2647
    %v2657 = vmul.f32 %v2653, %v2648
    %v2658 = vmul.f32 %v2653, %v2649
    %v2659 = vmul.f32 %v2653, %v2650
    %v2660 = vmul.f32 %v2653, %v2651
    %v2661 = vmul.f32 %v2653, %v2652
    %v2662 = vadd.f32 %v2635, %v2654
    %v2663 = vadd.f32 %v2636, %v2655
    %v2664 = vadd.f32 %v2637, %v2656
    %v2665 = vadd.f32 %v2638, %v2657
    %v2666 = vadd.f32 %v2639, %v2658
    %v2667 = vadd.f32 %v2640, %v2659
    %v2668 = vadd.f32 %v2641, %v2660
    %v2669 = vadd.f32 %v2642, %v2661
    %s2670 = sld [smem:[#allocation8 + $0x13]]
    %v2671 = vld [vmem:[%s2644 + $0x1] sm:$0xff]
    %v2672 = vld [vmem:[%s2644 + $0x11] sm:$0xff]
    %v2673 = vld [vmem:[%s2644 + $0x21] sm:$0xff]
    %v2674 = vld [vmem:[%s2644 + $0x31] sm:$0xff]
    %v2675 = vld [vmem:[%s2644 + $0x41] sm:$0xff]
    %v2676 = vld [vmem:[%s2644 + $0x51] sm:$0xff]
    %v2677 = vld [vmem:[%s2644 + $0x61] sm:$0xff]
    %v2678 = vld [vmem:[%s2644 + $0x71] sm:$0xff]
    %v2679 = vstv %s2670
    %v2680 = vmul.f32 %v2679, %v2671
    %v2681 = vmul.f32 %v2679, %v2672
    %v2682 = vmul.f32 %v2679, %v2673
    %v2683 = vmul.f32 %v2679, %v2674
    %v2684 = vmul.f32 %v2679, %v2675
    %v2685 = vmul.f32 %v2679, %v2676
    %v2686 = vmul.f32 %v2679, %v2677
    %v2687 = vmul.f32 %v2679, %v2678
    %v2688 = vadd.f32 %v2662, %v2680
    %v2689 = vadd.f32 %v2663, %v2681
    %v2690 = vadd.f32 %v2664, %v2682
    %v2691 = vadd.f32 %v2665, %v2683
    %v2692 = vadd.f32 %v2666, %v2684
    %v2693 = vadd.f32 %v2667, %v2685
    %v2694 = vadd.f32 %v2668, %v2686
    %v2695 = vadd.f32 %v2669, %v2687
    %s2696 = sld [smem:[#allocation8 + $0x14]]
    %v2697 = vld [vmem:[%s2644 + $0x2] sm:$0xff]
    %v2698 = vld [vmem:[%s2644 + $0x12] sm:$0xff]
    %v2699 = vld [vmem:[%s2644 + $0x22] sm:$0xff]
    %v2700 = vld [vmem:[%s2644 + $0x32] sm:$0xff]
    %v2701 = vld [vmem:[%s2644 + $0x42] sm:$0xff]
    %v2702 = vld [vmem:[%s2644 + $0x52] sm:$0xff]
    %v2703 = vld [vmem:[%s2644 + $0x62] sm:$0xff]
    %v2704 = vld [vmem:[%s2644 + $0x72] sm:$0xff]
    %v2705 = vstv %s2696
    %v2706 = vmul.f32 %v2705, %v2697
    %v2707 = vmul.f32 %v2705, %v2698
    %v2708 = vmul.f32 %v2705, %v2699
    %v2709 = vmul.f32 %v2705, %v2700
    %v2710 = vmul.f32 %v2705, %v2701
    %v2711 = vmul.f32 %v2705, %v2702
    %v2712 = vmul.f32 %v2705, %v2703
    %v2713 = vmul.f32 %v2705, %v2704
    %v2714 = vadd.f32 %v2688, %v2706
    %v2715 = vadd.f32 %v2689, %v2707
    %v2716 = vadd.f32 %v2690, %v2708
    %v2717 = vadd.f32 %v2691, %v2709
    %v2718 = vadd.f32 %v2692, %v2710
    %v2719 = vadd.f32 %v2693, %v2711
    %v2720 = vadd.f32 %v2694, %v2712
    %v2721 = vadd.f32 %v2695, %v2713
    %s2722 = sld [smem:[#allocation8 + $0x15]]
    %v2723 = vld [vmem:[%s1668] sm:$0xff]
    %v2724 = vld [vmem:[%s1668 + $0x10] sm:$0xff]
    %v2725 = vld [vmem:[%s1668 + $0x20] sm:$0xff]
    %v2726 = vld [vmem:[%s1668 + $0x30] sm:$0xff]
    %v2727 = vld [vmem:[%s1668 + $0x40] sm:$0xff]
    %v2728 = vld [vmem:[%s1668 + $0x50] sm:$0xff]
    %v2729 = vld [vmem:[%s1668 + $0x60] sm:$0xff]
    %v2730 = vld [vmem:[%s1668 + $0x70] sm:$0xff]
    %v2731 = vstv %s2722
    %v2732 = vmul.f32 %v2731, %v2723
    %v2733 = vmul.f32 %v2731, %v2724
    %v2734 = vmul.f32 %v2731, %v2725
    %v2735 = vmul.f32 %v2731, %v2726
    %v2736 = vmul.f32 %v2731, %v2727
    %v2737 = vmul.f32 %v2731, %v2728
    %v2738 = vmul.f32 %v2731, %v2729
    %v2739 = vmul.f32 %v2731, %v2730
    %v2740 = vadd.f32 %v2714, %v2732
    %v2741 = vadd.f32 %v2715, %v2733
    %v2742 = vadd.f32 %v2716, %v2734
    %v2743 = vadd.f32 %v2717, %v2735
    %v2744 = vadd.f32 %v2718, %v2736
    %v2745 = vadd.f32 %v2719, %v2737
    %v2746 = vadd.f32 %v2720, %v2738
    %v2747 = vadd.f32 %v2721, %v2739
    %s2748 = sld [smem:[#allocation8 + $0x16]]
    %v2749 = vld [vmem:[%s1668 + $0x1] sm:$0xff]
    %v2750 = vld [vmem:[%s1668 + $0x11] sm:$0xff]
    %v2751 = vld [vmem:[%s1668 + $0x21] sm:$0xff]
    %v2752 = vld [vmem:[%s1668 + $0x31] sm:$0xff]
    %v2753 = vld [vmem:[%s1668 + $0x41] sm:$0xff]
    %v2754 = vld [vmem:[%s1668 + $0x51] sm:$0xff]
    %v2755 = vld [vmem:[%s1668 + $0x61] sm:$0xff]
    %v2756 = vld [vmem:[%s1668 + $0x71] sm:$0xff]
    %v2757 = vstv %s2748
    %v2758 = vmul.f32 %v2757, %v2749
    %v2759 = vmul.f32 %v2757, %v2750
    %v2760 = vmul.f32 %v2757, %v2751
    %v2761 = vmul.f32 %v2757, %v2752
    %v2762 = vmul.f32 %v2757, %v2753
    %v2763 = vmul.f32 %v2757, %v2754
    %v2764 = vmul.f32 %v2757, %v2755
    %v2765 = vmul.f32 %v2757, %v2756
    %v2766 = vadd.f32 %v2740, %v2758
    %v2767 = vadd.f32 %v2741, %v2759
    %v2768 = vadd.f32 %v2742, %v2760
    %v2769 = vadd.f32 %v2743, %v2761
    %v2770 = vadd.f32 %v2744, %v2762
    %v2771 = vadd.f32 %v2745, %v2763
    %v2772 = vadd.f32 %v2746, %v2764
    %v2773 = vadd.f32 %v2747, %v2765
    %s2774 = sld [smem:[#allocation8 + $0x17]]
    %v2775 = vld [vmem:[%s1668 + $0x2] sm:$0xff]
    %v2776 = vld [vmem:[%s1668 + $0x12] sm:$0xff]
    %v2777 = vld [vmem:[%s1668 + $0x22] sm:$0xff]
    %v2778 = vld [vmem:[%s1668 + $0x32] sm:$0xff]
    %v2779 = vld [vmem:[%s1668 + $0x42] sm:$0xff]
    %v2780 = vld [vmem:[%s1668 + $0x52] sm:$0xff]
    %v2781 = vld [vmem:[%s1668 + $0x62] sm:$0xff]
    %v2782 = vld [vmem:[%s1668 + $0x72] sm:$0xff]
    %v2783 = vstv %s2774
    %v2784 = vmul.f32 %v2783, %v2775
    %v2785 = vmul.f32 %v2783, %v2776
    %v2786 = vmul.f32 %v2783, %v2777
    %v2787 = vmul.f32 %v2783, %v2778
    %v2788 = vmul.f32 %v2783, %v2779
    %v2789 = vmul.f32 %v2783, %v2780
    %v2790 = vmul.f32 %v2783, %v2781
    %v2791 = vmul.f32 %v2783, %v2782
    %v2792 = vadd.f32 %v2766, %v2784
    %v2793 = vadd.f32 %v2767, %v2785
    %v2794 = vadd.f32 %v2768, %v2786
    %v2795 = vadd.f32 %v2769, %v2787
    %v2796 = vadd.f32 %v2770, %v2788
    %v2797 = vadd.f32 %v2771, %v2789
    %v2798 = vadd.f32 %v2772, %v2790
    %v2799 = vadd.f32 %v2773, %v2791
    %s2800 = sld [smem:[#allocation8 + $0x18]]
    %s2801 = scalar_lea.vmem [#allocation2], 352
    %v2802 = vld [vmem:[%s2801] sm:$0xff]
    %v2803 = vld [vmem:[%s2801 + $0x10] sm:$0xff]
    %v2804 = vld [vmem:[%s2801 + $0x20] sm:$0xff]
    %v2805 = vld [vmem:[%s2801 + $0x30] sm:$0xff]
    %v2806 = vld [vmem:[%s2801 + $0x40] sm:$0xff]
    %v2807 = vld [vmem:[%s2801 + $0x50] sm:$0xff]
    %v2808 = vld [vmem:[%s2801 + $0x60] sm:$0xff]
    %v2809 = vld [vmem:[%s2801 + $0x70] sm:$0xff]
    %v2810 = vstv %s2800
    %v2811 = vmul.f32 %v2810, %v2802
    %v2812 = vmul.f32 %v2810, %v2803
    %v2813 = vmul.f32 %v2810, %v2804
    %v2814 = vmul.f32 %v2810, %v2805
    %v2815 = vmul.f32 %v2810, %v2806
    %v2816 = vmul.f32 %v2810, %v2807
    %v2817 = vmul.f32 %v2810, %v2808
    %v2818 = vmul.f32 %v2810, %v2809
    %v2819 = vadd.f32 %v2792, %v2811
    %v2820 = vadd.f32 %v2793, %v2812
    %v2821 = vadd.f32 %v2794, %v2813
    %v2822 = vadd.f32 %v2795, %v2814
    %v2823 = vadd.f32 %v2796, %v2815
    %v2824 = vadd.f32 %v2797, %v2816
    %v2825 = vadd.f32 %v2798, %v2817
    %v2826 = vadd.f32 %v2799, %v2818
    %s2827 = sld [smem:[#allocation8 + $0x19]]
    %v2828 = vld [vmem:[%s2801 + $0x1] sm:$0xff]
    %v2829 = vld [vmem:[%s2801 + $0x11] sm:$0xff]
    %v2830 = vld [vmem:[%s2801 + $0x21] sm:$0xff]
    %v2831 = vld [vmem:[%s2801 + $0x31] sm:$0xff]
    %v2832 = vld [vmem:[%s2801 + $0x41] sm:$0xff]
    %v2833 = vld [vmem:[%s2801 + $0x51] sm:$0xff]
    %v2834 = vld [vmem:[%s2801 + $0x61] sm:$0xff]
    %v2835 = vld [vmem:[%s2801 + $0x71] sm:$0xff]
    %v2836 = vstv %s2827
    %v2837 = vmul.f32 %v2836, %v2828
    %v2838 = vmul.f32 %v2836, %v2829
    %v2839 = vmul.f32 %v2836, %v2830
    %v2840 = vmul.f32 %v2836, %v2831
    %v2841 = vmul.f32 %v2836, %v2832
    %v2842 = vmul.f32 %v2836, %v2833
    %v2843 = vmul.f32 %v2836, %v2834
    %v2844 = vmul.f32 %v2836, %v2835
    %v2845 = vadd.f32 %v2819, %v2837
    %v2846 = vadd.f32 %v2820, %v2838
    %v2847 = vadd.f32 %v2821, %v2839
    %v2848 = vadd.f32 %v2822, %v2840
    %v2849 = vadd.f32 %v2823, %v2841
    %v2850 = vadd.f32 %v2824, %v2842
    %v2851 = vadd.f32 %v2825, %v2843
    %v2852 = vadd.f32 %v2826, %v2844
    %s2853 = sld [smem:[#allocation8 + $0x1a]]
    %v2854 = vld [vmem:[%s2801 + $0x2] sm:$0xff]
    %v2855 = vld [vmem:[%s2801 + $0x12] sm:$0xff]
    %v2856 = vld [vmem:[%s2801 + $0x22] sm:$0xff]
    %v2857 = vld [vmem:[%s2801 + $0x32] sm:$0xff]
    %v2858 = vld [vmem:[%s2801 + $0x42] sm:$0xff]
    %v2859 = vld [vmem:[%s2801 + $0x52] sm:$0xff]
    %v2860 = vld [vmem:[%s2801 + $0x62] sm:$0xff]
    %v2861 = vld [vmem:[%s2801 + $0x72] sm:$0xff]
    %v2862 = vstv %s2853
    %v2863 = vmul.f32 %v2862, %v2854
    %v2864 = vmul.f32 %v2862, %v2855
    %v2865 = vmul.f32 %v2862, %v2856
    %v2866 = vmul.f32 %v2862, %v2857
    %v2867 = vmul.f32 %v2862, %v2858
    %v2868 = vmul.f32 %v2862, %v2859
    %v2869 = vmul.f32 %v2862, %v2860
    %v2870 = vmul.f32 %v2862, %v2861
    %v2871 = vadd.f32 %v2845, %v2863
    %v2872 = vadd.f32 %v2846, %v2864
    %v2873 = vadd.f32 %v2847, %v2865
    %v2874 = vadd.f32 %v2848, %v2866
    %v2875 = vadd.f32 %v2849, %v2867
    %v2876 = vadd.f32 %v2850, %v2868
    %v2877 = vadd.f32 %v2851, %v2869
    %v2878 = vadd.f32 %v2852, %v2870
    %s2879 = sld [smem:[#allocation8 + $0x1b]]
    %s2880 = scalar_lea.vmem [#allocation2], 480
    %v2881 = vld [vmem:[%s2880] sm:$0xff]
    %v2882 = vld [vmem:[%s2880 + $0x10] sm:$0xff]
    %v2883 = vld [vmem:[%s2880 + $0x20] sm:$0xff]
    %v2884 = vld [vmem:[%s2880 + $0x30] sm:$0xff]
    %v2885 = vld [vmem:[%s2880 + $0x40] sm:$0xff]
    %v2886 = vld [vmem:[%s2880 + $0x50] sm:$0xff]
    %v2887 = vld [vmem:[%s2880 + $0x60] sm:$0xff]
    %v2888 = vld [vmem:[%s2880 + $0x70] sm:$0xff]
    %v2889 = vstv %s2879
    %v2890 = vmul.f32 %v2889, %v2881
    %v2891 = vmul.f32 %v2889, %v2882
    %v2892 = vmul.f32 %v2889, %v2883
    %v2893 = vmul.f32 %v2889, %v2884
    %v2894 = vmul.f32 %v2889, %v2885
    %v2895 = vmul.f32 %v2889, %v2886
    %v2896 = vmul.f32 %v2889, %v2887
    %v2897 = vmul.f32 %v2889, %v2888
    %v2898 = vadd.f32 %v2871, %v2890
    %v2899 = vadd.f32 %v2872, %v2891
    %v2900 = vadd.f32 %v2873, %v2892
    %v2901 = vadd.f32 %v2874, %v2893
    %v2902 = vadd.f32 %v2875, %v2894
    %v2903 = vadd.f32 %v2876, %v2895
    %v2904 = vadd.f32 %v2877, %v2896
    %v2905 = vadd.f32 %v2878, %v2897
    %s2906 = sld [smem:[#allocation8 + $0x1c]]
    %v2907 = vld [vmem:[%s2880 + $0x1] sm:$0xff]
    %v2908 = vld [vmem:[%s2880 + $0x11] sm:$0xff]
    %v2909 = vld [vmem:[%s2880 + $0x21] sm:$0xff]
    %v2910 = vld [vmem:[%s2880 + $0x31] sm:$0xff]
    %v2911 = vld [vmem:[%s2880 + $0x41] sm:$0xff]
    %v2912 = vld [vmem:[%s2880 + $0x51] sm:$0xff]
    %v2913 = vld [vmem:[%s2880 + $0x61] sm:$0xff]
    %v2914 = vld [vmem:[%s2880 + $0x71] sm:$0xff]
    %v2915 = vstv %s2906
    %v2916 = vmul.f32 %v2915, %v2907
    %v2917 = vmul.f32 %v2915, %v2908
    %v2918 = vmul.f32 %v2915, %v2909
    %v2919 = vmul.f32 %v2915, %v2910
    %v2920 = vmul.f32 %v2915, %v2911
    %v2921 = vmul.f32 %v2915, %v2912
    %v2922 = vmul.f32 %v2915, %v2913
    %v2923 = vmul.f32 %v2915, %v2914
    %v2924 = vadd.f32 %v2898, %v2916
    %v2925 = vadd.f32 %v2899, %v2917
    %v2926 = vadd.f32 %v2900, %v2918
    %v2927 = vadd.f32 %v2901, %v2919
    %v2928 = vadd.f32 %v2902, %v2920
    %v2929 = vadd.f32 %v2903, %v2921
    %v2930 = vadd.f32 %v2904, %v2922
    %v2931 = vadd.f32 %v2905, %v2923
    %s2932 = sld [smem:[#allocation8 + $0x1d]]
    %v2933 = vld [vmem:[%s2880 + $0x2] sm:$0xff]
    %v2934 = vld [vmem:[%s2880 + $0x12] sm:$0xff]
    %v2935 = vld [vmem:[%s2880 + $0x22] sm:$0xff]
    %v2936 = vld [vmem:[%s2880 + $0x32] sm:$0xff]
    %v2937 = vld [vmem:[%s2880 + $0x42] sm:$0xff]
    %v2938 = vld [vmem:[%s2880 + $0x52] sm:$0xff]
    %v2939 = vld [vmem:[%s2880 + $0x62] sm:$0xff]
    %v2940 = vld [vmem:[%s2880 + $0x72] sm:$0xff]
    %v2941 = vstv %s2932
    %v2942 = vmul.f32 %v2941, %v2933
    %v2943 = vmul.f32 %v2941, %v2934
    %v2944 = vmul.f32 %v2941, %v2935
    %v2945 = vmul.f32 %v2941, %v2936
    %v2946 = vmul.f32 %v2941, %v2937
    %v2947 = vmul.f32 %v2941, %v2938
    %v2948 = vmul.f32 %v2941, %v2939
    %v2949 = vmul.f32 %v2941, %v2940
    %v2950 = vadd.f32 %v2924, %v2942
    %v2951 = vadd.f32 %v2925, %v2943
    %v2952 = vadd.f32 %v2926, %v2944
    %v2953 = vadd.f32 %v2927, %v2945
    %v2954 = vadd.f32 %v2928, %v2946
    %v2955 = vadd.f32 %v2929, %v2947
    %v2956 = vadd.f32 %v2930, %v2948
    %v2957 = vadd.f32 %v2931, %v2949
    %s2958 = sld [smem:[#allocation8 + $0x1e]]
    %v2959 = vld [vmem:[%s2163] sm:$0xff]
    %v2960 = vld [vmem:[%s2163 + $0x10] sm:$0xff]
    %v2961 = vld [vmem:[%s2163 + $0x20] sm:$0xff]
    %v2962 = vld [vmem:[%s2163 + $0x30] sm:$0xff]
    %v2963 = vld [vmem:[%s2163 + $0x40] sm:$0xff]
    %v2964 = vld [vmem:[%s2163 + $0x50] sm:$0xff]
    %v2965 = vld [vmem:[%s2163 + $0x60] sm:$0xff]
    %v2966 = vld [vmem:[%s2163 + $0x70] sm:$0xff]
    %v2967 = vstv %s2958
    %v2968 = vmul.f32 %v2967, %v2959
    %v2969 = vmul.f32 %v2967, %v2960
    %v2970 = vmul.f32 %v2967, %v2961
    %v2971 = vmul.f32 %v2967, %v2962
    %v2972 = vmul.f32 %v2967, %v2963
    %v2973 = vmul.f32 %v2967, %v2964
    %v2974 = vmul.f32 %v2967, %v2965
    %v2975 = vmul.f32 %v2967, %v2966
    %v2976 = vadd.f32 %v2950, %v2968
    %v2977 = vadd.f32 %v2951, %v2969
    %v2978 = vadd.f32 %v2952, %v2970
    %v2979 = vadd.f32 %v2953, %v2971
    %v2980 = vadd.f32 %v2954, %v2972
    %v2981 = vadd.f32 %v2955, %v2973
    %v2982 = vadd.f32 %v2956, %v2974
    %v2983 = vadd.f32 %v2957, %v2975
    %s2984 = sld [smem:[#allocation8 + $0x1f]]
    %v2985 = vld [vmem:[%s2163 + $0x1] sm:$0xff]
    %v2986 = vld [vmem:[%s2163 + $0x11] sm:$0xff]
    %v2987 = vld [vmem:[%s2163 + $0x21] sm:$0xff]
    %v2988 = vld [vmem:[%s2163 + $0x31] sm:$0xff]
    %v2989 = vld [vmem:[%s2163 + $0x41] sm:$0xff]
    %v2990 = vld [vmem:[%s2163 + $0x51] sm:$0xff]
    %v2991 = vld [vmem:[%s2163 + $0x61] sm:$0xff]
    %v2992 = vld [vmem:[%s2163 + $0x71] sm:$0xff]
    %v2993 = vstv %s2984
    %v2994 = vmul.f32 %v2993, %v2985
    %v2995 = vmul.f32 %v2993, %v2986
    %v2996 = vmul.f32 %v2993, %v2987
    %v2997 = vmul.f32 %v2993, %v2988
    %v2998 = vmul.f32 %v2993, %v2989
    %v2999 = vmul.f32 %v2993, %v2990
    %v3000 = vmul.f32 %v2993, %v2991
    %v3001 = vmul.f32 %v2993, %v2992
    %v3002 = vadd.f32 %v2976, %v2994
    %v3003 = vadd.f32 %v2977, %v2995
    %v3004 = vadd.f32 %v2978, %v2996
    %v3005 = vadd.f32 %v2979, %v2997
    %v3006 = vadd.f32 %v2980, %v2998
    %v3007 = vadd.f32 %v2981, %v2999
    %v3008 = vadd.f32 %v2982, %v3000
    %v3009 = vadd.f32 %v2983, %v3001
    %s3010 = sld [smem:[#allocation8 + $0x20]]
    %v3011 = vld [vmem:[%s2163 + $0x2] sm:$0xff]
    %v3012 = vld [vmem:[%s2163 + $0x12] sm:$0xff]
    %v3013 = vld [vmem:[%s2163 + $0x22] sm:$0xff]
    %v3014 = vld [vmem:[%s2163 + $0x32] sm:$0xff]
    %v3015 = vld [vmem:[%s2163 + $0x42] sm:$0xff]
    %v3016 = vld [vmem:[%s2163 + $0x52] sm:$0xff]
    %v3017 = vld [vmem:[%s2163 + $0x62] sm:$0xff]
    %v3018 = vld [vmem:[%s2163 + $0x72] sm:$0xff]
    %v3019 = vstv %s3010
    %v3020 = vmul.f32 %v3019, %v3011
    %v3021 = vmul.f32 %v3019, %v3012
    %v3022 = vmul.f32 %v3019, %v3013
    %v3023 = vmul.f32 %v3019, %v3014
    %v3024 = vmul.f32 %v3019, %v3015
    %v3025 = vmul.f32 %v3019, %v3016
    %v3026 = vmul.f32 %v3019, %v3017
    %v3027 = vmul.f32 %v3019, %v3018
    %v3028 = vadd.f32 %v3002, %v3020
    %v3029 = vadd.f32 %v3003, %v3021
    %v3030 = vadd.f32 %v3004, %v3022
    %v3031 = vadd.f32 %v3005, %v3023
    %v3032 = vadd.f32 %v3006, %v3024
    %v3033 = vadd.f32 %v3007, %v3025
    %v3034 = vadd.f32 %v3008, %v3026
    %v3035 = vadd.f32 %v3009, %v3027
    %s3036 = sld [smem:[#allocation8 + $0x21]]
    %s3037 = scalar_lea.vmem [#allocation2], 512
    %v3038 = vld [vmem:[%s3037] sm:$0xff]
    %v3039 = vld [vmem:[%s3037 + $0x10] sm:$0xff]
    %v3040 = vld [vmem:[%s3037 + $0x20] sm:$0xff]
    %v3041 = vld [vmem:[%s3037 + $0x30] sm:$0xff]
    %v3042 = vld [vmem:[%s3037 + $0x40] sm:$0xff]
    %v3043 = vld [vmem:[%s3037 + $0x50] sm:$0xff]
    %v3044 = vld [vmem:[%s3037 + $0x60] sm:$0xff]
    %v3045 = vld [vmem:[%s3037 + $0x70] sm:$0xff]
    %v3046 = vstv %s3036
    %v3047 = vmul.f32 %v3046, %v3038
    %v3048 = vmul.f32 %v3046, %v3039
    %v3049 = vmul.f32 %v3046, %v3040
    %v3050 = vmul.f32 %v3046, %v3041
    %v3051 = vmul.f32 %v3046, %v3042
    %v3052 = vmul.f32 %v3046, %v3043
    %v3053 = vmul.f32 %v3046, %v3044
    %v3054 = vmul.f32 %v3046, %v3045
    %v3055 = vadd.f32 %v3028, %v3047
    %v3056 = vadd.f32 %v3029, %v3048
    %v3057 = vadd.f32 %v3030, %v3049
    %v3058 = vadd.f32 %v3031, %v3050
    %v3059 = vadd.f32 %v3032, %v3051
    %v3060 = vadd.f32 %v3033, %v3052
    %v3061 = vadd.f32 %v3034, %v3053
    %v3062 = vadd.f32 %v3035, %v3054
    %s3063 = sld [smem:[#allocation8 + $0x22]]
    %v3064 = vld [vmem:[%s3037 + $0x1] sm:$0xff]
    %v3065 = vld [vmem:[%s3037 + $0x11] sm:$0xff]
    %v3066 = vld [vmem:[%s3037 + $0x21] sm:$0xff]
    %v3067 = vld [vmem:[%s3037 + $0x31] sm:$0xff]
    %v3068 = vld [vmem:[%s3037 + $0x41] sm:$0xff]
    %v3069 = vld [vmem:[%s3037 + $0x51] sm:$0xff]
    %v3070 = vld [vmem:[%s3037 + $0x61] sm:$0xff]
    %v3071 = vld [vmem:[%s3037 + $0x71] sm:$0xff]
    %v3072 = vstv %s3063
    %v3073 = vmul.f32 %v3072, %v3064
    %v3074 = vmul.f32 %v3072, %v3065
    %v3075 = vmul.f32 %v3072, %v3066
    %v3076 = vmul.f32 %v3072, %v3067
    %v3077 = vmul.f32 %v3072, %v3068
    %v3078 = vmul.f32 %v3072, %v3069
    %v3079 = vmul.f32 %v3072, %v3070
    %v3080 = vmul.f32 %v3072, %v3071
    %v3081 = vadd.f32 %v3055, %v3073
    %v3082 = vadd.f32 %v3056, %v3074
    %v3083 = vadd.f32 %v3057, %v3075
    %v3084 = vadd.f32 %v3058, %v3076
    %v3085 = vadd.f32 %v3059, %v3077
    %v3086 = vadd.f32 %v3060, %v3078
    %v3087 = vadd.f32 %v3061, %v3079
    %v3088 = vadd.f32 %v3062, %v3080
    %s3089 = sld [smem:[#allocation8 + $0x23]]
    %v3090 = vld [vmem:[%s3037 + $0x2] sm:$0xff]
    %v3091 = vld [vmem:[%s3037 + $0x12] sm:$0xff]
    %v3092 = vld [vmem:[%s3037 + $0x22] sm:$0xff]
    %v3093 = vld [vmem:[%s3037 + $0x32] sm:$0xff]
    %v3094 = vld [vmem:[%s3037 + $0x42] sm:$0xff]
    %v3095 = vld [vmem:[%s3037 + $0x52] sm:$0xff]
    %v3096 = vld [vmem:[%s3037 + $0x62] sm:$0xff]
    %v3097 = vld [vmem:[%s3037 + $0x72] sm:$0xff]
    %v3098 = vstv %s3089
    %v3099 = vmul.f32 %v3098, %v3090
    %v3100 = vmul.f32 %v3098, %v3091
    %v3101 = vmul.f32 %v3098, %v3092
    %v3102 = vmul.f32 %v3098, %v3093
    %v3103 = vmul.f32 %v3098, %v3094
    %v3104 = vmul.f32 %v3098, %v3095
    %v3105 = vmul.f32 %v3098, %v3096
    %v3106 = vmul.f32 %v3098, %v3097
    %v3107 = vadd.f32 %v3081, %v3099
    %v3108 = vadd.f32 %v3082, %v3100
    %v3109 = vadd.f32 %v3083, %v3101
    %v3110 = vadd.f32 %v3084, %v3102
    %v3111 = vadd.f32 %v3085, %v3103
    %v3112 = vadd.f32 %v3086, %v3104
    %v3113 = vadd.f32 %v3087, %v3105
    %v3114 = vadd.f32 %v3088, %v3106
    %s3115 = sld [smem:[#allocation9]]
    %v3116 = vstv %s3115
    %v3117 = vadd.f32 %v3107, %v3116
    %v3118 = vadd.f32 %v3108, %v3116
    %v3119 = vadd.f32 %v3109, %v3116
    %v3120 = vadd.f32 %v3110, %v3116
    %v3121 = vadd.f32 %v3111, %v3116
    %v3122 = vadd.f32 %v3112, %v3116
    %v3123 = vadd.f32 %v3113, %v3116
    %v3124 = vadd.f32 %v3114, %v3116
    %v3125 = vmax.f32 %v3117, 0.0
    %v3126 = vmax.f32 %v3118, 0.0
    %v3127 = vmax.f32 %v3119, 0.0
    %v3128 = vmax.f32 %v3120, 0.0
    %v3129 = vmax.f32 %v3121, 0.0
    %v3130 = vmax.f32 %v3122, 0.0
    %v3131 = vmax.f32 %v3123, 0.0
    %v3132 = vmax.f32 %v3124, 0.0
    %3133 = vst.msk [vmem:[#allocation3] sm:$0xff] %vm87, %v3125
    %3134 = vst.msk [vmem:[#allocation3 + $0x8] sm:$0xff] %vm87, %v3126
    %3135 = vst.msk [vmem:[#allocation3 + $0x10] sm:$0xff] %vm87, %v3127
    %3136 = vst.msk [vmem:[#allocation3 + $0x18] sm:$0xff] %vm87, %v3128
    %3137 = vst.msk [vmem:[#allocation3 + $0x20] sm:$0xff] %vm87, %v3129
    %3138 = vst.msk [vmem:[#allocation3 + $0x28] sm:$0xff] %vm87, %v3130
    %3139 = vst.msk [vmem:[#allocation3 + $0x30] sm:$0xff] %vm87, %v3131
    %3140 = vst.msk [vmem:[#allocation3 + $0x38] sm:$0xff] %vm87, %v3132
    %s3141 = sld [smem:[#allocation8 + $0x24]]
    %v3142 = vld [vmem:[#allocation2] sm:$0xff]
    %v3143 = vld [vmem:[#allocation2 + $0x10] sm:$0xff]
    %v3144 = vld [vmem:[#allocation2 + $0x20] sm:$0xff]
    %v3145 = vld [vmem:[#allocation2 + $0x30] sm:$0xff]
    %v3146 = vld [vmem:[#allocation2 + $0x40] sm:$0xff]
    %v3147 = vld [vmem:[#allocation2 + $0x50] sm:$0xff]
    %v3148 = vld [vmem:[#allocation2 + $0x60] sm:$0xff]
    %v3149 = vld [vmem:[#allocation2 + $0x70] sm:$0xff]
    %v3150 = vstv %s3141
    %v3151 = vmul.f32 %v3150, %v3142
    %v3152 = vmul.f32 %v3150, %v3143
    %v3153 = vmul.f32 %v3150, %v3144
    %v3154 = vmul.f32 %v3150, %v3145
    %v3155 = vmul.f32 %v3150, %v3146
    %v3156 = vmul.f32 %v3150, %v3147
    %v3157 = vmul.f32 %v3150, %v3148
    %v3158 = vmul.f32 %v3150, %v3149
    %v3159 = vadd.f32 %v3151, 0.0
    %v3160 = vadd.f32 %v3152, 0.0
    %v3161 = vadd.f32 %v3153, 0.0
    %v3162 = vadd.f32 %v3154, 0.0
    %v3163 = vadd.f32 %v3155, 0.0
    %v3164 = vadd.f32 %v3156, 0.0
    %v3165 = vadd.f32 %v3157, 0.0
    %v3166 = vadd.f32 %v3158, 0.0
    %s3167 = sld [smem:[#allocation8 + $0x25]]
    %v3168 = vld [vmem:[#allocation2 + $0x1] sm:$0xff]
    %v3169 = vld [vmem:[#allocation2 + $0x11] sm:$0xff]
    %v3170 = vld [vmem:[#allocation2 + $0x21] sm:$0xff]
    %v3171 = vld [vmem:[#allocation2 + $0x31] sm:$0xff]
    %v3172 = vld [vmem:[#allocation2 + $0x41] sm:$0xff]
    %v3173 = vld [vmem:[#allocation2 + $0x51] sm:$0xff]
    %v3174 = vld [vmem:[#allocation2 + $0x61] sm:$0xff]
    %v3175 = vld [vmem:[#allocation2 + $0x71] sm:$0xff]
    %v3176 = vstv %s3167
    %v3177 = vmul.f32 %v3176, %v3168
    %v3178 = vmul.f32 %v3176, %v3169
    %v3179 = vmul.f32 %v3176, %v3170
    %v3180 = vmul.f32 %v3176, %v3171
    %v3181 = vmul.f32 %v3176, %v3172
    %v3182 = vmul.f32 %v3176, %v3173
    %v3183 = vmul.f32 %v3176, %v3174
    %v3184 = vmul.f32 %v3176, %v3175
    %v3185 = vadd.f32 %v3159, %v3177
    %v3186 = vadd.f32 %v3160, %v3178
    %v3187 = vadd.f32 %v3161, %v3179
    %v3188 = vadd.f32 %v3162, %v3180
    %v3189 = vadd.f32 %v3163, %v3181
    %v3190 = vadd.f32 %v3164, %v3182
    %v3191 = vadd.f32 %v3165, %v3183
    %v3192 = vadd.f32 %v3166, %v3184
    %s3193 = sld [smem:[#allocation8 + $0x26]]
    %v3194 = vld [vmem:[#allocation2 + $0x2] sm:$0xff]
    %v3195 = vld [vmem:[#allocation2 + $0x12] sm:$0xff]
    %v3196 = vld [vmem:[#allocation2 + $0x22] sm:$0xff]
    %v3197 = vld [vmem:[#allocation2 + $0x32] sm:$0xff]
    %v3198 = vld [vmem:[#allocation2 + $0x42] sm:$0xff]
    %v3199 = vld [vmem:[#allocation2 + $0x52] sm:$0xff]
    %v3200 = vld [vmem:[#allocation2 + $0x62] sm:$0xff]
    %v3201 = vld [vmem:[#allocation2 + $0x72] sm:$0xff]
    %v3202 = vstv %s3193
    %v3203 = vmul.f32 %v3202, %v3194
    %v3204 = vmul.f32 %v3202, %v3195
    %v3205 = vmul.f32 %v3202, %v3196
    %v3206 = vmul.f32 %v3202, %v3197
    %v3207 = vmul.f32 %v3202, %v3198
    %v3208 = vmul.f32 %v3202, %v3199
    %v3209 = vmul.f32 %v3202, %v3200
    %v3210 = vmul.f32 %v3202, %v3201
    %v3211 = vadd.f32 %v3185, %v3203
    %v3212 = vadd.f32 %v3186, %v3204
    %v3213 = vadd.f32 %v3187, %v3205
    %v3214 = vadd.f32 %v3188, %v3206
    %v3215 = vadd.f32 %v3189, %v3207
    %v3216 = vadd.f32 %v3190, %v3208
    %v3217 = vadd.f32 %v3191, %v3209
    %v3218 = vadd.f32 %v3192, %v3210
    %s3219 = sld [smem:[#allocation8 + $0x27]]
    %v3220 = vld [vmem:[%s678] sm:$0xff]
    %v3221 = vld [vmem:[%s678 + $0x10] sm:$0xff]
    %v3222 = vld [vmem:[%s678 + $0x20] sm:$0xff]
    %v3223 = vld [vmem:[%s678 + $0x30] sm:$0xff]
    %v3224 = vld [vmem:[%s678 + $0x40] sm:$0xff]
    %v3225 = vld [vmem:[%s678 + $0x50] sm:$0xff]
    %v3226 = vld [vmem:[%s678 + $0x60] sm:$0xff]
    %v3227 = vld [vmem:[%s678 + $0x70] sm:$0xff]
    %v3228 = vstv %s3219
    %v3229 = vmul.f32 %v3228, %v3220
    %v3230 = vmul.f32 %v3228, %v3221
    %v3231 = vmul.f32 %v3228, %v3222
    %v3232 = vmul.f32 %v3228, %v3223
    %v3233 = vmul.f32 %v3228, %v3224
    %v3234 = vmul.f32 %v3228, %v3225
    %v3235 = vmul.f32 %v3228, %v3226
    %v3236 = vmul.f32 %v3228, %v3227
    %v3237 = vadd.f32 %v3211, %v3229
    %v3238 = vadd.f32 %v3212, %v3230
    %v3239 = vadd.f32 %v3213, %v3231
    %v3240 = vadd.f32 %v3214, %v3232
    %v3241 = vadd.f32 %v3215, %v3233
    %v3242 = vadd.f32 %v3216, %v3234
    %v3243 = vadd.f32 %v3217, %v3235
    %v3244 = vadd.f32 %v3218, %v3236
    %s3245 = sld [smem:[#allocation8 + $0x28]]
    %v3246 = vld [vmem:[%s678 + $0x1] sm:$0xff]
    %v3247 = vld [vmem:[%s678 + $0x11] sm:$0xff]
    %v3248 = vld [vmem:[%s678 + $0x21] sm:$0xff]
    %v3249 = vld [vmem:[%s678 + $0x31] sm:$0xff]
    %v3250 = vld [vmem:[%s678 + $0x41] sm:$0xff]
    %v3251 = vld [vmem:[%s678 + $0x51] sm:$0xff]
    %v3252 = vld [vmem:[%s678 + $0x61] sm:$0xff]
    %v3253 = vld [vmem:[%s678 + $0x71] sm:$0xff]
    %v3254 = vstv %s3245
    %v3255 = vmul.f32 %v3254, %v3246
    %v3256 = vmul.f32 %v3254, %v3247
    %v3257 = vmul.f32 %v3254, %v3248
    %v3258 = vmul.f32 %v3254, %v3249
    %v3259 = vmul.f32 %v3254, %v3250
    %v3260 = vmul.f32 %v3254, %v3251
    %v3261 = vmul.f32 %v3254, %v3252
    %v3262 = vmul.f32 %v3254, %v3253
    %v3263 = vadd.f32 %v3237, %v3255
    %v3264 = vadd.f32 %v3238, %v3256
    %v3265 = vadd.f32 %v3239, %v3257
    %v3266 = vadd.f32 %v3240, %v3258
    %v3267 = vadd.f32 %v3241, %v3259
    %v3268 = vadd.f32 %v3242, %v3260
    %v3269 = vadd.f32 %v3243, %v3261
    %v3270 = vadd.f32 %v3244, %v3262
    %s3271 = sld [smem:[#allocation8 + $0x29]]
    %v3272 = vld [vmem:[%s678 + $0x2] sm:$0xff]
    %v3273 = vld [vmem:[%s678 + $0x12] sm:$0xff]
    %v3274 = vld [vmem:[%s678 + $0x22] sm:$0xff]
    %v3275 = vld [vmem:[%s678 + $0x32] sm:$0xff]
    %v3276 = vld [vmem:[%s678 + $0x42] sm:$0xff]
    %v3277 = vld [vmem:[%s678 + $0x52] sm:$0xff]
    %v3278 = vld [vmem:[%s678 + $0x62] sm:$0xff]
    %v3279 = vld [vmem:[%s678 + $0x72] sm:$0xff]
    %v3280 = vstv %s3271
    %v3281 = vmul.f32 %v3280, %v3272
    %v3282 = vmul.f32 %v3280, %v3273
    %v3283 = vmul.f32 %v3280, %v3274
    %v3284 = vmul.f32 %v3280, %v3275
    %v3285 = vmul.f32 %v3280, %v3276
    %v3286 = vmul.f32 %v3280, %v3277
    %v3287 = vmul.f32 %v3280, %v3278
    %v3288 = vmul.f32 %v3280, %v3279
    %v3289 = vadd.f32 %v3263, %v3281
    %v3290 = vadd.f32 %v3264, %v3282
    %v3291 = vadd.f32 %v3265, %v3283
    %v3292 = vadd.f32 %v3266, %v3284
    %v3293 = vadd.f32 %v3267, %v3285
    %v3294 = vadd.f32 %v3268, %v3286
    %v3295 = vadd.f32 %v3269, %v3287
    %v3296 = vadd.f32 %v3270, %v3288
    %s3297 = sld [smem:[#allocation8 + $0x2a]]
    %v3298 = vld [vmem:[%s2329] sm:$0xff]
    %v3299 = vld [vmem:[%s2329 + $0x10] sm:$0xff]
    %v3300 = vld [vmem:[%s2329 + $0x20] sm:$0xff]
    %v3301 = vld [vmem:[%s2329 + $0x30] sm:$0xff]
    %v3302 = vld [vmem:[%s2329 + $0x40] sm:$0xff]
    %v3303 = vld [vmem:[%s2329 + $0x50] sm:$0xff]
    %v3304 = vld [vmem:[%s2329 + $0x60] sm:$0xff]
    %v3305 = vld [vmem:[%s2329 + $0x70] sm:$0xff]
    %v3306 = vstv %s3297
    %v3307 = vmul.f32 %v3306, %v3298
    %v3308 = vmul.f32 %v3306, %v3299
    %v3309 = vmul.f32 %v3306, %v3300
    %v3310 = vmul.f32 %v3306, %v3301
    %v3311 = vmul.f32 %v3306, %v3302
    %v3312 = vmul.f32 %v3306, %v3303
    %v3313 = vmul.f32 %v3306, %v3304
    %v3314 = vmul.f32 %v3306, %v3305
    %v3315 = vadd.f32 %v3289, %v3307
    %v3316 = vadd.f32 %v3290, %v3308
    %v3317 = vadd.f32 %v3291, %v3309
    %v3318 = vadd.f32 %v3292, %v3310
    %v3319 = vadd.f32 %v3293, %v3311
    %v3320 = vadd.f32 %v3294, %v3312
    %v3321 = vadd.f32 %v3295, %v3313
    %v3322 = vadd.f32 %v3296, %v3314
    %s3323 = sld [smem:[#allocation8 + $0x2b]]
    %v3324 = vld [vmem:[%s2329 + $0x1] sm:$0xff]
    %v3325 = vld [vmem:[%s2329 + $0x11] sm:$0xff]
    %v3326 = vld [vmem:[%s2329 + $0x21] sm:$0xff]
    %v3327 = vld [vmem:[%s2329 + $0x31] sm:$0xff]
    %v3328 = vld [vmem:[%s2329 + $0x41] sm:$0xff]
    %v3329 = vld [vmem:[%s2329 + $0x51] sm:$0xff]
    %v3330 = vld [vmem:[%s2329 + $0x61] sm:$0xff]
    %v3331 = vld [vmem:[%s2329 + $0x71] sm:$0xff]
    %v3332 = vstv %s3323
    %v3333 = vmul.f32 %v3332, %v3324
    %v3334 = vmul.f32 %v3332, %v3325
    %v3335 = vmul.f32 %v3332, %v3326
    %v3336 = vmul.f32 %v3332, %v3327
    %v3337 = vmul.f32 %v3332, %v3328
    %v3338 = vmul.f32 %v3332, %v3329
    %v3339 = vmul.f32 %v3332, %v3330
    %v3340 = vmul.f32 %v3332, %v3331
    %v3341 = vadd.f32 %v3315, %v3333
    %v3342 = vadd.f32 %v3316, %v3334
    %v3343 = vadd.f32 %v3317, %v3335
    %v3344 = vadd.f32 %v3318, %v3336
    %v3345 = vadd.f32 %v3319, %v3337
    %v3346 = vadd.f32 %v3320, %v3338
    %v3347 = vadd.f32 %v3321, %v3339
    %v3348 = vadd.f32 %v3322, %v3340
    %s3349 = sld [smem:[#allocation8 + $0x2c]]
    %v3350 = vld [vmem:[%s2329 + $0x2] sm:$0xff]
    %v3351 = vld [vmem:[%s2329 + $0x12] sm:$0xff]
    %v3352 = vld [vmem:[%s2329 + $0x22] sm:$0xff]
    %v3353 = vld [vmem:[%s2329 + $0x32] sm:$0xff]
    %v3354 = vld [vmem:[%s2329 + $0x42] sm:$0xff]
    %v3355 = vld [vmem:[%s2329 + $0x52] sm:$0xff]
    %v3356 = vld [vmem:[%s2329 + $0x62] sm:$0xff]
    %v3357 = vld [vmem:[%s2329 + $0x72] sm:$0xff]
    %v3358 = vstv %s3349
    %v3359 = vmul.f32 %v3358, %v3350
    %v3360 = vmul.f32 %v3358, %v3351
    %v3361 = vmul.f32 %v3358, %v3352
    %v3362 = vmul.f32 %v3358, %v3353
    %v3363 = vmul.f32 %v3358, %v3354
    %v3364 = vmul.f32 %v3358, %v3355
    %v3365 = vmul.f32 %v3358, %v3356
    %v3366 = vmul.f32 %v3358, %v3357
    %v3367 = vadd.f32 %v3341, %v3359
    %v3368 = vadd.f32 %v3342, %v3360
    %v3369 = vadd.f32 %v3343, %v3361
    %v3370 = vadd.f32 %v3344, %v3362
    %v3371 = vadd.f32 %v3345, %v3363
    %v3372 = vadd.f32 %v3346, %v3364
    %v3373 = vadd.f32 %v3347, %v3365
    %v3374 = vadd.f32 %v3348, %v3366
    %s3375 = sld [smem:[#allocation8 + $0x2d]]
    %v3376 = vld [vmem:[%s2408] sm:$0xff]
    %v3377 = vld [vmem:[%s2408 + $0x10] sm:$0xff]
    %v3378 = vld [vmem:[%s2408 + $0x20] sm:$0xff]
    %v3379 = vld [vmem:[%s2408 + $0x30] sm:$0xff]
    %v3380 = vld [vmem:[%s2408 + $0x40] sm:$0xff]
    %v3381 = vld [vmem:[%s2408 + $0x50] sm:$0xff]
    %v3382 = vld [vmem:[%s2408 + $0x60] sm:$0xff]
    %v3383 = vld [vmem:[%s2408 + $0x70] sm:$0xff]
    %v3384 = vstv %s3375
    %v3385 = vmul.f32 %v3384, %v3376
    %v3386 = vmul.f32 %v3384, %v3377
    %v3387 = vmul.f32 %v3384, %v3378
    %v3388 = vmul.f32 %v3384, %v3379
    %v3389 = vmul.f32 %v3384, %v3380
    %v3390 = vmul.f32 %v3384, %v3381
    %v3391 = vmul.f32 %v3384, %v3382
    %v3392 = vmul.f32 %v3384, %v3383
    %v3393 = vadd.f32 %v3367, %v3385
    %v3394 = vadd.f32 %v3368, %v3386
    %v3395 = vadd.f32 %v3369, %v3387
    %v3396 = vadd.f32 %v3370, %v3388
    %v3397 = vadd.f32 %v3371, %v3389
    %v3398 = vadd.f32 %v3372, %v3390
    %v3399 = vadd.f32 %v3373, %v3391
    %v3400 = vadd.f32 %v3374, %v3392
    %s3401 = sld [smem:[#allocation8 + $0x2e]]
    %v3402 = vld [vmem:[%s2408 + $0x1] sm:$0xff]
    %v3403 = vld [vmem:[%s2408 + $0x11] sm:$0xff]
    %v3404 = vld [vmem:[%s2408 + $0x21] sm:$0xff]
    %v3405 = vld [vmem:[%s2408 + $0x31] sm:$0xff]
    %v3406 = vld [vmem:[%s2408 + $0x41] sm:$0xff]
    %v3407 = vld [vmem:[%s2408 + $0x51] sm:$0xff]
    %v3408 = vld [vmem:[%s2408 + $0x61] sm:$0xff]
    %v3409 = vld [vmem:[%s2408 + $0x71] sm:$0xff]
    %v3410 = vstv %s3401
    %v3411 = vmul.f32 %v3410, %v3402
    %v3412 = vmul.f32 %v3410, %v3403
    %v3413 = vmul.f32 %v3410, %v3404
    %v3414 = vmul.f32 %v3410, %v3405
    %v3415 = vmul.f32 %v3410, %v3406
    %v3416 = vmul.f32 %v3410, %v3407
    %v3417 = vmul.f32 %v3410, %v3408
    %v3418 = vmul.f32 %v3410, %v3409
    %v3419 = vadd.f32 %v3393, %v3411
    %v3420 = vadd.f32 %v3394, %v3412
    %v3421 = vadd.f32 %v3395, %v3413
    %v3422 = vadd.f32 %v3396, %v3414
    %v3423 = vadd.f32 %v3397, %v3415
    %v3424 = vadd.f32 %v3398, %v3416
    %v3425 = vadd.f32 %v3399, %v3417
    %v3426 = vadd.f32 %v3400, %v3418
    %s3427 = sld [smem:[#allocation8 + $0x2f]]
    %v3428 = vld [vmem:[%s2408 + $0x2] sm:$0xff]
    %v3429 = vld [vmem:[%s2408 + $0x12] sm:$0xff]
    %v3430 = vld [vmem:[%s2408 + $0x22] sm:$0xff]
    %v3431 = vld [vmem:[%s2408 + $0x32] sm:$0xff]
    %v3432 = vld [vmem:[%s2408 + $0x42] sm:$0xff]
    %v3433 = vld [vmem:[%s2408 + $0x52] sm:$0xff]
    %v3434 = vld [vmem:[%s2408 + $0x62] sm:$0xff]
    %v3435 = vld [vmem:[%s2408 + $0x72] sm:$0xff]
    %v3436 = vstv %s3427
    %v3437 = vmul.f32 %v3436, %v3428
    %v3438 = vmul.f32 %v3436, %v3429
    %v3439 = vmul.f32 %v3436, %v3430
    %v3440 = vmul.f32 %v3436, %v3431
    %v3441 = vmul.f32 %v3436, %v3432
    %v3442 = vmul.f32 %v3436, %v3433
    %v3443 = vmul.f32 %v3436, %v3434
    %v3444 = vmul.f32 %v3436, %v3435
    %v3445 = vadd.f32 %v3419, %v3437
    %v3446 = vadd.f32 %v3420, %v3438
    %v3447 = vadd.f32 %v3421, %v3439
    %v3448 = vadd.f32 %v3422, %v3440
    %v3449 = vadd.f32 %v3423, %v3441
    %v3450 = vadd.f32 %v3424, %v3442
    %v3451 = vadd.f32 %v3425, %v3443
    %v3452 = vadd.f32 %v3426, %v3444
    %s3453 = sld [smem:[#allocation8 + $0x30]]
    %v3454 = vld [vmem:[%s1173] sm:$0xff]
    %v3455 = vld [vmem:[%s1173 + $0x10] sm:$0xff]
    %v3456 = vld [vmem:[%s1173 + $0x20] sm:$0xff]
    %v3457 = vld [vmem:[%s1173 + $0x30] sm:$0xff]
    %v3458 = vld [vmem:[%s1173 + $0x40] sm:$0xff]
    %v3459 = vld [vmem:[%s1173 + $0x50] sm:$0xff]
    %v3460 = vld [vmem:[%s1173 + $0x60] sm:$0xff]
    %v3461 = vld [vmem:[%s1173 + $0x70] sm:$0xff]
    %v3462 = vstv %s3453
    %v3463 = vmul.f32 %v3462, %v3454
    %v3464 = vmul.f32 %v3462, %v3455
    %v3465 = vmul.f32 %v3462, %v3456
    %v3466 = vmul.f32 %v3462, %v3457
    %v3467 = vmul.f32 %v3462, %v3458
    %v3468 = vmul.f32 %v3462, %v3459
    %v3469 = vmul.f32 %v3462, %v3460
    %v3470 = vmul.f32 %v3462, %v3461
    %v3471 = vadd.f32 %v3445, %v3463
    %v3472 = vadd.f32 %v3446, %v3464
    %v3473 = vadd.f32 %v3447, %v3465
    %v3474 = vadd.f32 %v3448, %v3466
    %v3475 = vadd.f32 %v3449, %v3467
    %v3476 = vadd.f32 %v3450, %v3468
    %v3477 = vadd.f32 %v3451, %v3469
    %v3478 = vadd.f32 %v3452, %v3470
    %s3479 = sld [smem:[#allocation8 + $0x31]]
    %v3480 = vld [vmem:[%s1173 + $0x1] sm:$0xff]
    %v3481 = vld [vmem:[%s1173 + $0x11] sm:$0xff]
    %v3482 = vld [vmem:[%s1173 + $0x21] sm:$0xff]
    %v3483 = vld [vmem:[%s1173 + $0x31] sm:$0xff]
    %v3484 = vld [vmem:[%s1173 + $0x41] sm:$0xff]
    %v3485 = vld [vmem:[%s1173 + $0x51] sm:$0xff]
    %v3486 = vld [vmem:[%s1173 + $0x61] sm:$0xff]
    %v3487 = vld [vmem:[%s1173 + $0x71] sm:$0xff]
    %v3488 = vstv %s3479
    %v3489 = vmul.f32 %v3488, %v3480
    %v3490 = vmul.f32 %v3488, %v3481
    %v3491 = vmul.f32 %v3488, %v3482
    %v3492 = vmul.f32 %v3488, %v3483
    %v3493 = vmul.f32 %v3488, %v3484
    %v3494 = vmul.f32 %v3488, %v3485
    %v3495 = vmul.f32 %v3488, %v3486
    %v3496 = vmul.f32 %v3488, %v3487
    %v3497 = vadd.f32 %v3471, %v3489
    %v3498 = vadd.f32 %v3472, %v3490
    %v3499 = vadd.f32 %v3473, %v3491
    %v3500 = vadd.f32 %v3474, %v3492
    %v3501 = vadd.f32 %v3475, %v3493
    %v3502 = vadd.f32 %v3476, %v3494
    %v3503 = vadd.f32 %v3477, %v3495
    %v3504 = vadd.f32 %v3478, %v3496
    %s3505 = sld [smem:[#allocation8 + $0x32]]
    %v3506 = vld [vmem:[%s1173 + $0x2] sm:$0xff]
    %v3507 = vld [vmem:[%s1173 + $0x12] sm:$0xff]
    %v3508 = vld [vmem:[%s1173 + $0x22] sm:$0xff]
    %v3509 = vld [vmem:[%s1173 + $0x32] sm:$0xff]
    %v3510 = vld [vmem:[%s1173 + $0x42] sm:$0xff]
    %v3511 = vld [vmem:[%s1173 + $0x52] sm:$0xff]
    %v3512 = vld [vmem:[%s1173 + $0x62] sm:$0xff]
    %v3513 = vld [vmem:[%s1173 + $0x72] sm:$0xff]
    %v3514 = vstv %s3505
    %v3515 = vmul.f32 %v3514, %v3506
    %v3516 = vmul.f32 %v3514, %v3507
    %v3517 = vmul.f32 %v3514, %v3508
    %v3518 = vmul.f32 %v3514, %v3509
    %v3519 = vmul.f32 %v3514, %v3510
    %v3520 = vmul.f32 %v3514, %v3511
    %v3521 = vmul.f32 %v3514, %v3512
    %v3522 = vmul.f32 %v3514, %v3513
    %v3523 = vadd.f32 %v3497, %v3515
    %v3524 = vadd.f32 %v3498, %v3516
    %v3525 = vadd.f32 %v3499, %v3517
    %v3526 = vadd.f32 %v3500, %v3518
    %v3527 = vadd.f32 %v3501, %v3519
    %v3528 = vadd.f32 %v3502, %v3520
    %v3529 = vadd.f32 %v3503, %v3521
    %v3530 = vadd.f32 %v3504, %v3522
    %s3531 = sld [smem:[#allocation8 + $0x33]]
    %v3532 = vld [vmem:[%s2565] sm:$0xff]
    %v3533 = vld [vmem:[%s2565 + $0x10] sm:$0xff]
    %v3534 = vld [vmem:[%s2565 + $0x20] sm:$0xff]
    %v3535 = vld [vmem:[%s2565 + $0x30] sm:$0xff]
    %v3536 = vld [vmem:[%s2565 + $0x40] sm:$0xff]
    %v3537 = vld [vmem:[%s2565 + $0x50] sm:$0xff]
    %v3538 = vld [vmem:[%s2565 + $0x60] sm:$0xff]
    %v3539 = vld [vmem:[%s2565 + $0x70] sm:$0xff]
    %v3540 = vstv %s3531
    %v3541 = vmul.f32 %v3540, %v3532
    %v3542 = vmul.f32 %v3540, %v3533
    %v3543 = vmul.f32 %v3540, %v3534
    %v3544 = vmul.f32 %v3540, %v3535
    %v3545 = vmul.f32 %v3540, %v3536
    %v3546 = vmul.f32 %v3540, %v3537
    %v3547 = vmul.f32 %v3540, %v3538
    %v3548 = vmul.f32 %v3540, %v3539
    %v3549 = vadd.f32 %v3523, %v3541
    %v3550 = vadd.f32 %v3524, %v3542
    %v3551 = vadd.f32 %v3525, %v3543
    %v3552 = vadd.f32 %v3526, %v3544
    %v3553 = vadd.f32 %v3527, %v3545
    %v3554 = vadd.f32 %v3528, %v3546
    %v3555 = vadd.f32 %v3529, %v3547
    %v3556 = vadd.f32 %v3530, %v3548
    %s3557 = sld [smem:[#allocation8 + $0x34]]
    %v3558 = vld [vmem:[%s2565 + $0x1] sm:$0xff]
    %v3559 = vld [vmem:[%s2565 + $0x11] sm:$0xff]
    %v3560 = vld [vmem:[%s2565 + $0x21] sm:$0xff]
    %v3561 = vld [vmem:[%s2565 + $0x31] sm:$0xff]
    %v3562 = vld [vmem:[%s2565 + $0x41] sm:$0xff]
    %v3563 = vld [vmem:[%s2565 + $0x51] sm:$0xff]
    %v3564 = vld [vmem:[%s2565 + $0x61] sm:$0xff]
    %v3565 = vld [vmem:[%s2565 + $0x71] sm:$0xff]
    %v3566 = vstv %s3557
    %v3567 = vmul.f32 %v3566, %v3558
    %v3568 = vmul.f32 %v3566, %v3559
    %v3569 = vmul.f32 %v3566, %v3560
    %v3570 = vmul.f32 %v3566, %v3561
    %v3571 = vmul.f32 %v3566, %v3562
    %v3572 = vmul.f32 %v3566, %v3563
    %v3573 = vmul.f32 %v3566, %v3564
    %v3574 = vmul.f32 %v3566, %v3565
    %v3575 = vadd.f32 %v3549, %v3567
    %v3576 = vadd.f32 %v3550, %v3568
    %v3577 = vadd.f32 %v3551, %v3569
    %v3578 = vadd.f32 %v3552, %v3570
    %v3579 = vadd.f32 %v3553, %v3571
    %v3580 = vadd.f32 %v3554, %v3572
    %v3581 = vadd.f32 %v3555, %v3573
    %v3582 = vadd.f32 %v3556, %v3574
    %s3583 = sld [smem:[#allocation8 + $0x35]]
    %v3584 = vld [vmem:[%s2565 + $0x2] sm:$0xff]
    %v3585 = vld [vmem:[%s2565 + $0x12] sm:$0xff]
    %v3586 = vld [vmem:[%s2565 + $0x22] sm:$0xff]
    %v3587 = vld [vmem:[%s2565 + $0x32] sm:$0xff]
    %v3588 = vld [vmem:[%s2565 + $0x42] sm:$0xff]
    %v3589 = vld [vmem:[%s2565 + $0x52] sm:$0xff]
    %v3590 = vld [vmem:[%s2565 + $0x62] sm:$0xff]
    %v3591 = vld [vmem:[%s2565 + $0x72] sm:$0xff]
    %v3592 = vstv %s3583
    %v3593 = vmul.f32 %v3592, %v3584
    %v3594 = vmul.f32 %v3592, %v3585
    %v3595 = vmul.f32 %v3592, %v3586
    %v3596 = vmul.f32 %v3592, %v3587
    %v3597 = vmul.f32 %v3592, %v3588
    %v3598 = vmul.f32 %v3592, %v3589
    %v3599 = vmul.f32 %v3592, %v3590
    %v3600 = vmul.f32 %v3592, %v3591
    %v3601 = vadd.f32 %v3575, %v3593
    %v3602 = vadd.f32 %v3576, %v3594
    %v3603 = vadd.f32 %v3577, %v3595
    %v3604 = vadd.f32 %v3578, %v3596
    %v3605 = vadd.f32 %v3579, %v3597
    %v3606 = vadd.f32 %v3580, %v3598
    %v3607 = vadd.f32 %v3581, %v3599
    %v3608 = vadd.f32 %v3582, %v3600
    %s3609 = sld [smem:[#allocation8 + $0x36]]
    %v3610 = vld [vmem:[%s2644] sm:$0xff]
    %v3611 = vld [vmem:[%s2644 + $0x10] sm:$0xff]
    %v3612 = vld [vmem:[%s2644 + $0x20] sm:$0xff]
    %v3613 = vld [vmem:[%s2644 + $0x30] sm:$0xff]
    %v3614 = vld [vmem:[%s2644 + $0x40] sm:$0xff]
    %v3615 = vld [vmem:[%s2644 + $0x50] sm:$0xff]
    %v3616 = vld [vmem:[%s2644 + $0x60] sm:$0xff]
    %v3617 = vld [vmem:[%s2644 + $0x70] sm:$0xff]
    %v3618 = vstv %s3609
    %v3619 = vmul.f32 %v3618, %v3610
    %v3620 = vmul.f32 %v3618, %v3611
    %v3621 = vmul.f32 %v3618, %v3612
    %v3622 = vmul.f32 %v3618, %v3613
    %v3623 = vmul.f32 %v3618, %v3614
    %v3624 = vmul.f32 %v3618, %v3615
    %v3625 = vmul.f32 %v3618, %v3616
    %v3626 = vmul.f32 %v3618, %v3617
    %v3627 = vadd.f32 %v3601, %v3619
    %v3628 = vadd.f32 %v3602, %v3620
    %v3629 = vadd.f32 %v3603, %v3621
    %v3630 = vadd.f32 %v3604, %v3622
    %v3631 = vadd.f32 %v3605, %v3623
    %v3632 = vadd.f32 %v3606, %v3624
    %v3633 = vadd.f32 %v3607, %v3625
    %v3634 = vadd.f32 %v3608, %v3626
    %s3635 = sld [smem:[#allocation8 + $0x37]]
    %v3636 = vld [vmem:[%s2644 + $0x1] sm:$0xff]
    %v3637 = vld [vmem:[%s2644 + $0x11] sm:$0xff]
    %v3638 = vld [vmem:[%s2644 + $0x21] sm:$0xff]
    %v3639 = vld [vmem:[%s2644 + $0x31] sm:$0xff]
    %v3640 = vld [vmem:[%s2644 + $0x41] sm:$0xff]
    %v3641 = vld [vmem:[%s2644 + $0x51] sm:$0xff]
    %v3642 = vld [vmem:[%s2644 + $0x61] sm:$0xff]
    %v3643 = vld [vmem:[%s2644 + $0x71] sm:$0xff]
    %v3644 = vstv %s3635
    %v3645 = vmul.f32 %v3644, %v3636
    %v3646 = vmul.f32 %v3644, %v3637
    %v3647 = vmul.f32 %v3644, %v3638
    %v3648 = vmul.f32 %v3644, %v3639
    %v3649 = vmul.f32 %v3644, %v3640
    %v3650 = vmul.f32 %v3644, %v3641
    %v3651 = vmul.f32 %v3644, %v3642
    %v3652 = vmul.f32 %v3644, %v3643
    %v3653 = vadd.f32 %v3627, %v3645
    %v3654 = vadd.f32 %v3628, %v3646
    %v3655 = vadd.f32 %v3629, %v3647
    %v3656 = vadd.f32 %v3630, %v3648
    %v3657 = vadd.f32 %v3631, %v3649
    %v3658 = vadd.f32 %v3632, %v3650
    %v3659 = vadd.f32 %v3633, %v3651
    %v3660 = vadd.f32 %v3634, %v3652
    %s3661 = sld [smem:[#allocation8 + $0x38]]
    %v3662 = vld [vmem:[%s2644 + $0x2] sm:$0xff]
    %v3663 = vld [vmem:[%s2644 + $0x12] sm:$0xff]
    %v3664 = vld [vmem:[%s2644 + $0x22] sm:$0xff]
    %v3665 = vld [vmem:[%s2644 + $0x32] sm:$0xff]
    %v3666 = vld [vmem:[%s2644 + $0x42] sm:$0xff]
    %v3667 = vld [vmem:[%s2644 + $0x52] sm:$0xff]
    %v3668 = vld [vmem:[%s2644 + $0x62] sm:$0xff]
    %v3669 = vld [vmem:[%s2644 + $0x72] sm:$0xff]
    %v3670 = vstv %s3661
    %v3671 = vmul.f32 %v3670, %v3662
    %v3672 = vmul.f32 %v3670, %v3663
    %v3673 = vmul.f32 %v3670, %v3664
    %v3674 = vmul.f32 %v3670, %v3665
    %v3675 = vmul.f32 %v3670, %v3666
    %v3676 = vmul.f32 %v3670, %v3667
    %v3677 = vmul.f32 %v3670, %v3668
    %v3678 = vmul.f32 %v3670, %v3669
    %v3679 = vadd.f32 %v3653, %v3671
    %v3680 = vadd.f32 %v3654, %v3672
    %v3681 = vadd.f32 %v3655, %v3673
    %v3682 = vadd.f32 %v3656, %v3674
    %v3683 = vadd.f32 %v3657, %v3675
    %v3684 = vadd.f32 %v3658, %v3676
    %v3685 = vadd.f32 %v3659, %v3677
    %v3686 = vadd.f32 %v3660, %v3678
    %s3687 = sld [smem:[#allocation8 + $0x39]]
    %v3688 = vld [vmem:[%s1668] sm:$0xff]
    %v3689 = vld [vmem:[%s1668 + $0x10] sm:$0xff]
    %v3690 = vld [vmem:[%s1668 + $0x20] sm:$0xff]
    %v3691 = vld [vmem:[%s1668 + $0x30] sm:$0xff]
    %v3692 = vld [vmem:[%s1668 + $0x40] sm:$0xff]
    %v3693 = vld [vmem:[%s1668 + $0x50] sm:$0xff]
    %v3694 = vld [vmem:[%s1668 + $0x60] sm:$0xff]
    %v3695 = vld [vmem:[%s1668 + $0x70] sm:$0xff]
    %v3696 = vstv %s3687
    %v3697 = vmul.f32 %v3696, %v3688
    %v3698 = vmul.f32 %v3696, %v3689
    %v3699 = vmul.f32 %v3696, %v3690
    %v3700 = vmul.f32 %v3696, %v3691
    %v3701 = vmul.f32 %v3696, %v3692
    %v3702 = vmul.f32 %v3696, %v3693
    %v3703 = vmul.f32 %v3696, %v3694
    %v3704 = vmul.f32 %v3696, %v3695
    %v3705 = vadd.f32 %v3679, %v3697
    %v3706 = vadd.f32 %v3680, %v3698
    %v3707 = vadd.f32 %v3681, %v3699
    %v3708 = vadd.f32 %v3682, %v3700
    %v3709 = vadd.f32 %v3683, %v3701
    %v3710 = vadd.f32 %v3684, %v3702
    %v3711 = vadd.f32 %v3685, %v3703
    %v3712 = vadd.f32 %v3686, %v3704
    %s3713 = sld [smem:[#allocation8 + $0x3a]]
    %v3714 = vld [vmem:[%s1668 + $0x1] sm:$0xff]
    %v3715 = vld [vmem:[%s1668 + $0x11] sm:$0xff]
    %v3716 = vld [vmem:[%s1668 + $0x21] sm:$0xff]
    %v3717 = vld [vmem:[%s1668 + $0x31] sm:$0xff]
    %v3718 = vld [vmem:[%s1668 + $0x41] sm:$0xff]
    %v3719 = vld [vmem:[%s1668 + $0x51] sm:$0xff]
    %v3720 = vld [vmem:[%s1668 + $0x61] sm:$0xff]
    %v3721 = vld [vmem:[%s1668 + $0x71] sm:$0xff]
    %v3722 = vstv %s3713
    %v3723 = vmul.f32 %v3722, %v3714
    %v3724 = vmul.f32 %v3722, %v3715
    %v3725 = vmul.f32 %v3722, %v3716
    %v3726 = vmul.f32 %v3722, %v3717
    %v3727 = vmul.f32 %v3722, %v3718
    %v3728 = vmul.f32 %v3722, %v3719
    %v3729 = vmul.f32 %v3722, %v3720
    %v3730 = vmul.f32 %v3722, %v3721
    %v3731 = vadd.f32 %v3705, %v3723
    %v3732 = vadd.f32 %v3706, %v3724
    %v3733 = vadd.f32 %v3707, %v3725
    %v3734 = vadd.f32 %v3708, %v3726
    %v3735 = vadd.f32 %v3709, %v3727
    %v3736 = vadd.f32 %v3710, %v3728
    %v3737 = vadd.f32 %v3711, %v3729
    %v3738 = vadd.f32 %v3712, %v3730
    %s3739 = sld [smem:[#allocation8 + $0x3b]]
    %v3740 = vld [vmem:[%s1668 + $0x2] sm:$0xff]
    %v3741 = vld [vmem:[%s1668 + $0x12] sm:$0xff]
    %v3742 = vld [vmem:[%s1668 + $0x22] sm:$0xff]
    %v3743 = vld [vmem:[%s1668 + $0x32] sm:$0xff]
    %v3744 = vld [vmem:[%s1668 + $0x42] sm:$0xff]
    %v3745 = vld [vmem:[%s1668 + $0x52] sm:$0xff]
    %v3746 = vld [vmem:[%s1668 + $0x62] sm:$0xff]
    %v3747 = vld [vmem:[%s1668 + $0x72] sm:$0xff]
    %v3748 = vstv %s3739
    %v3749 = vmul.f32 %v3748, %v3740
    %v3750 = vmul.f32 %v3748, %v3741
    %v3751 = vmul.f32 %v3748, %v3742
    %v3752 = vmul.f32 %v3748, %v3743
    %v3753 = vmul.f32 %v3748, %v3744
    %v3754 = vmul.f32 %v3748, %v3745
    %v3755 = vmul.f32 %v3748, %v3746
    %v3756 = vmul.f32 %v3748, %v3747
    %v3757 = vadd.f32 %v3731, %v3749
    %v3758 = vadd.f32 %v3732, %v3750
    %v3759 = vadd.f32 %v3733, %v3751
    %v3760 = vadd.f32 %v3734, %v3752
    %v3761 = vadd.f32 %v3735, %v3753
    %v3762 = vadd.f32 %v3736, %v3754
    %v3763 = vadd.f32 %v3737, %v3755
    %v3764 = vadd.f32 %v3738, %v3756
    %s3765 = sld [smem:[#allocation8 + $0x3c]]
    %v3766 = vld [vmem:[%s2801] sm:$0xff]
    %v3767 = vld [vmem:[%s2801 + $0x10] sm:$0xff]
    %v3768 = vld [vmem:[%s2801 + $0x20] sm:$0xff]
    %v3769 = vld [vmem:[%s2801 + $0x30] sm:$0xff]
    %v3770 = vld [vmem:[%s2801 + $0x40] sm:$0xff]
    %v3771 = vld [vmem:[%s2801 + $0x50] sm:$0xff]
    %v3772 = vld [vmem:[%s2801 + $0x60] sm:$0xff]
    %v3773 = vld [vmem:[%s2801 + $0x70] sm:$0xff]
    %v3774 = vstv %s3765
    %v3775 = vmul.f32 %v3774, %v3766
    %v3776 = vmul.f32 %v3774, %v3767
    %v3777 = vmul.f32 %v3774, %v3768
    %v3778 = vmul.f32 %v3774, %v3769
    %v3779 = vmul.f32 %v3774, %v3770
    %v3780 = vmul.f32 %v3774, %v3771
    %v3781 = vmul.f32 %v3774, %v3772
    %v3782 = vmul.f32 %v3774, %v3773
    %v3783 = vadd.f32 %v3757, %v3775
    %v3784 = vadd.f32 %v3758, %v3776
    %v3785 = vadd.f32 %v3759, %v3777
    %v3786 = vadd.f32 %v3760, %v3778
    %v3787 = vadd.f32 %v3761, %v3779
    %v3788 = vadd.f32 %v3762, %v3780
    %v3789 = vadd.f32 %v3763, %v3781
    %v3790 = vadd.f32 %v3764, %v3782
    %s3791 = sld [smem:[#allocation8 + $0x3d]]
    %v3792 = vld [vmem:[%s2801 + $0x1] sm:$0xff]
    %v3793 = vld [vmem:[%s2801 + $0x11] sm:$0xff]
    %v3794 = vld [vmem:[%s2801 + $0x21] sm:$0xff]
    %v3795 = vld [vmem:[%s2801 + $0x31] sm:$0xff]
    %v3796 = vld [vmem:[%s2801 + $0x41] sm:$0xff]
    %v3797 = vld [vmem:[%s2801 + $0x51] sm:$0xff]
    %v3798 = vld [vmem:[%s2801 + $0x61] sm:$0xff]
    %v3799 = vld [vmem:[%s2801 + $0x71] sm:$0xff]
    %v3800 = vstv %s3791
    %v3801 = vmul.f32 %v3800, %v3792
    %v3802 = vmul.f32 %v3800, %v3793
    %v3803 = vmul.f32 %v3800, %v3794
    %v3804 = vmul.f32 %v3800, %v3795
    %v3805 = vmul.f32 %v3800, %v3796
    %v3806 = vmul.f32 %v3800, %v3797
    %v3807 = vmul.f32 %v3800, %v3798
    %v3808 = vmul.f32 %v3800, %v3799
    %v3809 = vadd.f32 %v3783, %v3801
    %v3810 = vadd.f32 %v3784, %v3802
    %v3811 = vadd.f32 %v3785, %v3803
    %v3812 = vadd.f32 %v3786, %v3804
    %v3813 = vadd.f32 %v3787, %v3805
    %v3814 = vadd.f32 %v3788, %v3806
    %v3815 = vadd.f32 %v3789, %v3807
    %v3816 = vadd.f32 %v3790, %v3808
    %s3817 = sld [smem:[#allocation8 + $0x3e]]
    %v3818 = vld [vmem:[%s2801 + $0x2] sm:$0xff]
    %v3819 = vld [vmem:[%s2801 + $0x12] sm:$0xff]
    %v3820 = vld [vmem:[%s2801 + $0x22] sm:$0xff]
    %v3821 = vld [vmem:[%s2801 + $0x32] sm:$0xff]
    %v3822 = vld [vmem:[%s2801 + $0x42] sm:$0xff]
    %v3823 = vld [vmem:[%s2801 + $0x52] sm:$0xff]
    %v3824 = vld [vmem:[%s2801 + $0x62] sm:$0xff]
    %v3825 = vld [vmem:[%s2801 + $0x72] sm:$0xff]
    %v3826 = vstv %s3817
    %v3827 = vmul.f32 %v3826, %v3818
    %v3828 = vmul.f32 %v3826, %v3819
    %v3829 = vmul.f32 %v3826, %v3820
    %v3830 = vmul.f32 %v3826, %v3821
    %v3831 = vmul.f32 %v3826, %v3822
    %v3832 = vmul.f32 %v3826, %v3823
    %v3833 = vmul.f32 %v3826, %v3824
    %v3834 = vmul.f32 %v3826, %v3825
    %v3835 = vadd.f32 %v3809, %v3827
    %v3836 = vadd.f32 %v3810, %v3828
    %v3837 = vadd.f32 %v3811, %v3829
    %v3838 = vadd.f32 %v3812, %v3830
    %v3839 = vadd.f32 %v3813, %v3831
    %v3840 = vadd.f32 %v3814, %v3832
    %v3841 = vadd.f32 %v3815, %v3833
    %v3842 = vadd.f32 %v3816, %v3834
    %s3843 = sld [smem:[#allocation8 + $0x3f]]
    %v3844 = vld [vmem:[%s2880] sm:$0xff]
    %v3845 = vld [vmem:[%s2880 + $0x10] sm:$0xff]
    %v3846 = vld [vmem:[%s2880 + $0x20] sm:$0xff]
    %v3847 = vld [vmem:[%s2880 + $0x30] sm:$0xff]
    %v3848 = vld [vmem:[%s2880 + $0x40] sm:$0xff]
    %v3849 = vld [vmem:[%s2880 + $0x50] sm:$0xff]
    %v3850 = vld [vmem:[%s2880 + $0x60] sm:$0xff]
    %v3851 = vld [vmem:[%s2880 + $0x70] sm:$0xff]
    %v3852 = vstv %s3843
    %v3853 = vmul.f32 %v3852, %v3844
    %v3854 = vmul.f32 %v3852, %v3845
    %v3855 = vmul.f32 %v3852, %v3846
    %v3856 = vmul.f32 %v3852, %v3847
    %v3857 = vmul.f32 %v3852, %v3848
    %v3858 = vmul.f32 %v3852, %v3849
    %v3859 = vmul.f32 %v3852, %v3850
    %v3860 = vmul.f32 %v3852, %v3851
    %v3861 = vadd.f32 %v3835, %v3853
    %v3862 = vadd.f32 %v3836, %v3854
    %v3863 = vadd.f32 %v3837, %v3855
    %v3864 = vadd.f32 %v3838, %v3856
    %v3865 = vadd.f32 %v3839, %v3857
    %v3866 = vadd.f32 %v3840, %v3858
    %v3867 = vadd.f32 %v3841, %v3859
    %v3868 = vadd.f32 %v3842, %v3860
    %s3869 = sld [smem:[#allocation8 + $0x40]]
    %v3870 = vld [vmem:[%s2880 + $0x1] sm:$0xff]
    %v3871 = vld [vmem:[%s2880 + $0x11] sm:$0xff]
    %v3872 = vld [vmem:[%s2880 + $0x21] sm:$0xff]
    %v3873 = vld [vmem:[%s2880 + $0x31] sm:$0xff]
    %v3874 = vld [vmem:[%s2880 + $0x41] sm:$0xff]
    %v3875 = vld [vmem:[%s2880 + $0x51] sm:$0xff]
    %v3876 = vld [vmem:[%s2880 + $0x61] sm:$0xff]
    %v3877 = vld [vmem:[%s2880 + $0x71] sm:$0xff]
    %v3878 = vstv %s3869
    %v3879 = vmul.f32 %v3878, %v3870
    %v3880 = vmul.f32 %v3878, %v3871
    %v3881 = vmul.f32 %v3878, %v3872
    %v3882 = vmul.f32 %v3878, %v3873
    %v3883 = vmul.f32 %v3878, %v3874
    %v3884 = vmul.f32 %v3878, %v3875
    %v3885 = vmul.f32 %v3878, %v3876
    %v3886 = vmul.f32 %v3878, %v3877
    %v3887 = vadd.f32 %v3861, %v3879
    %v3888 = vadd.f32 %v3862, %v3880
    %v3889 = vadd.f32 %v3863, %v3881
    %v3890 = vadd.f32 %v3864, %v3882
    %v3891 = vadd.f32 %v3865, %v3883
    %v3892 = vadd.f32 %v3866, %v3884
    %v3893 = vadd.f32 %v3867, %v3885
    %v3894 = vadd.f32 %v3868, %v3886
    %s3895 = sld [smem:[#allocation8 + $0x41]]
    %v3896 = vld [vmem:[%s2880 + $0x2] sm:$0xff]
    %v3897 = vld [vmem:[%s2880 + $0x12] sm:$0xff]
    %v3898 = vld [vmem:[%s2880 + $0x22] sm:$0xff]
    %v3899 = vld [vmem:[%s2880 + $0x32] sm:$0xff]
    %v3900 = vld [vmem:[%s2880 + $0x42] sm:$0xff]
    %v3901 = vld [vmem:[%s2880 + $0x52] sm:$0xff]
    %v3902 = vld [vmem:[%s2880 + $0x62] sm:$0xff]
    %v3903 = vld [vmem:[%s2880 + $0x72] sm:$0xff]
    %v3904 = vstv %s3895
    %v3905 = vmul.f32 %v3904, %v3896
    %v3906 = vmul.f32 %v3904, %v3897
    %v3907 = vmul.f32 %v3904, %v3898
    %v3908 = vmul.f32 %v3904, %v3899
    %v3909 = vmul.f32 %v3904, %v3900
    %v3910 = vmul.f32 %v3904, %v3901
    %v3911 = vmul.f32 %v3904, %v3902
    %v3912 = vmul.f32 %v3904, %v3903
    %v3913 = vadd.f32 %v3887, %v3905
    %v3914 = vadd.f32 %v3888, %v3906
    %v3915 = vadd.f32 %v3889, %v3907
    %v3916 = vadd.f32 %v3890, %v3908
    %v3917 = vadd.f32 %v3891, %v3909
    %v3918 = vadd.f32 %v3892, %v3910
    %v3919 = vadd.f32 %v3893, %v3911
    %v3920 = vadd.f32 %v3894, %v3912
    %s3921 = sld [smem:[#allocation8 + $0x42]]
    %v3922 = vld [vmem:[%s2163] sm:$0xff]
    %v3923 = vld [vmem:[%s2163 + $0x10] sm:$0xff]
    %v3924 = vld [vmem:[%s2163 + $0x20] sm:$0xff]
    %v3925 = vld [vmem:[%s2163 + $0x30] sm:$0xff]
    %v3926 = vld [vmem:[%s2163 + $0x40] sm:$0xff]
    %v3927 = vld [vmem:[%s2163 + $0x50] sm:$0xff]
    %v3928 = vld [vmem:[%s2163 + $0x60] sm:$0xff]
    %v3929 = vld [vmem:[%s2163 + $0x70] sm:$0xff]
    %v3930 = vstv %s3921
    %v3931 = vmul.f32 %v3930, %v3922
    %v3932 = vmul.f32 %v3930, %v3923
    %v3933 = vmul.f32 %v3930, %v3924
    %v3934 = vmul.f32 %v3930, %v3925
    %v3935 = vmul.f32 %v3930, %v3926
    %v3936 = vmul.f32 %v3930, %v3927
    %v3937 = vmul.f32 %v3930, %v3928
    %v3938 = vmul.f32 %v3930, %v3929
    %v3939 = vadd.f32 %v3913, %v3931
    %v3940 = vadd.f32 %v3914, %v3932
    %v3941 = vadd.f32 %v3915, %v3933
    %v3942 = vadd.f32 %v3916, %v3934
    %v3943 = vadd.f32 %v3917, %v3935
    %v3944 = vadd.f32 %v3918, %v3936
    %v3945 = vadd.f32 %v3919, %v3937
    %v3946 = vadd.f32 %v3920, %v3938
    %s3947 = sld [smem:[#allocation8 + $0x43]]
    %v3948 = vld [vmem:[%s2163 + $0x1] sm:$0xff]
    %v3949 = vld [vmem:[%s2163 + $0x11] sm:$0xff]
    %v3950 = vld [vmem:[%s2163 + $0x21] sm:$0xff]
    %v3951 = vld [vmem:[%s2163 + $0x31] sm:$0xff]
    %v3952 = vld [vmem:[%s2163 + $0x41] sm:$0xff]
    %v3953 = vld [vmem:[%s2163 + $0x51] sm:$0xff]
    %v3954 = vld [vmem:[%s2163 + $0x61] sm:$0xff]
    %v3955 = vld [vmem:[%s2163 + $0x71] sm:$0xff]
    %v3956 = vstv %s3947
    %v3957 = vmul.f32 %v3956, %v3948
    %v3958 = vmul.f32 %v3956, %v3949
    %v3959 = vmul.f32 %v3956, %v3950
    %v3960 = vmul.f32 %v3956, %v3951
    %v3961 = vmul.f32 %v3956, %v3952
    %v3962 = vmul.f32 %v3956, %v3953
    %v3963 = vmul.f32 %v3956, %v3954
    %v3964 = vmul.f32 %v3956, %v3955
    %v3965 = vadd.f32 %v3939, %v3957
    %v3966 = vadd.f32 %v3940, %v3958
    %v3967 = vadd.f32 %v3941, %v3959
    %v3968 = vadd.f32 %v3942, %v3960
    %v3969 = vadd.f32 %v3943, %v3961
    %v3970 = vadd.f32 %v3944, %v3962
    %v3971 = vadd.f32 %v3945, %v3963
    %v3972 = vadd.f32 %v3946, %v3964
    %s3973 = sld [smem:[#allocation8 + $0x44]]
    %v3974 = vld [vmem:[%s2163 + $0x2] sm:$0xff]
    %v3975 = vld [vmem:[%s2163 + $0x12] sm:$0xff]
    %v3976 = vld [vmem:[%s2163 + $0x22] sm:$0xff]
    %v3977 = vld [vmem:[%s2163 + $0x32] sm:$0xff]
    %v3978 = vld [vmem:[%s2163 + $0x42] sm:$0xff]
    %v3979 = vld [vmem:[%s2163 + $0x52] sm:$0xff]
    %v3980 = vld [vmem:[%s2163 + $0x62] sm:$0xff]
    %v3981 = vld [vmem:[%s2163 + $0x72] sm:$0xff]
    %v3982 = vstv %s3973
    %v3983 = vmul.f32 %v3982, %v3974
    %v3984 = vmul.f32 %v3982, %v3975
    %v3985 = vmul.f32 %v3982, %v3976
    %v3986 = vmul.f32 %v3982, %v3977
    %v3987 = vmul.f32 %v3982, %v3978
    %v3988 = vmul.f32 %v3982, %v3979
    %v3989 = vmul.f32 %v3982, %v3980
    %v3990 = vmul.f32 %v3982, %v3981
    %v3991 = vadd.f32 %v3965, %v3983
    %v3992 = vadd.f32 %v3966, %v3984
    %v3993 = vadd.f32 %v3967, %v3985
    %v3994 = vadd.f32 %v3968, %v3986
    %v3995 = vadd.f32 %v3969, %v3987
    %v3996 = vadd.f32 %v3970, %v3988
    %v3997 = vadd.f32 %v3971, %v3989
    %v3998 = vadd.f32 %v3972, %v3990
    %s3999 = sld [smem:[#allocation8 + $0x45]]
    %v4000 = vld [vmem:[%s3037] sm:$0xff]
    %v4001 = vld [vmem:[%s3037 + $0x10] sm:$0xff]
    %v4002 = vld [vmem:[%s3037 + $0x20] sm:$0xff]
    %v4003 = vld [vmem:[%s3037 + $0x30] sm:$0xff]
    %v4004 = vld [vmem:[%s3037 + $0x40] sm:$0xff]
    %v4005 = vld [vmem:[%s3037 + $0x50] sm:$0xff]
    %v4006 = vld [vmem:[%s3037 + $0x60] sm:$0xff]
    %v4007 = vld [vmem:[%s3037 + $0x70] sm:$0xff]
    %v4008 = vstv %s3999
    %v4009 = vmul.f32 %v4008, %v4000
    %v4010 = vmul.f32 %v4008, %v4001
    %v4011 = vmul.f32 %v4008, %v4002
    %v4012 = vmul.f32 %v4008, %v4003
    %v4013 = vmul.f32 %v4008, %v4004
    %v4014 = vmul.f32 %v4008, %v4005
    %v4015 = vmul.f32 %v4008, %v4006
    %v4016 = vmul.f32 %v4008, %v4007
    %v4017 = vadd.f32 %v3991, %v4009
    %v4018 = vadd.f32 %v3992, %v4010
    %v4019 = vadd.f32 %v3993, %v4011
    %v4020 = vadd.f32 %v3994, %v4012
    %v4021 = vadd.f32 %v3995, %v4013
    %v4022 = vadd.f32 %v3996, %v4014
    %v4023 = vadd.f32 %v3997, %v4015
    %v4024 = vadd.f32 %v3998, %v4016
    %s4025 = sld [smem:[#allocation8 + $0x46]]
    %v4026 = vld [vmem:[%s3037 + $0x1] sm:$0xff]
    %v4027 = vld [vmem:[%s3037 + $0x11] sm:$0xff]
    %v4028 = vld [vmem:[%s3037 + $0x21] sm:$0xff]
    %v4029 = vld [vmem:[%s3037 + $0x31] sm:$0xff]
    %v4030 = vld [vmem:[%s3037 + $0x41] sm:$0xff]
    %v4031 = vld [vmem:[%s3037 + $0x51] sm:$0xff]
    %v4032 = vld [vmem:[%s3037 + $0x61] sm:$0xff]
    %v4033 = vld [vmem:[%s3037 + $0x71] sm:$0xff]
    %v4034 = vstv %s4025
    %v4035 = vmul.f32 %v4034, %v4026
    %v4036 = vmul.f32 %v4034, %v4027
    %v4037 = vmul.f32 %v4034, %v4028
    %v4038 = vmul.f32 %v4034, %v4029
    %v4039 = vmul.f32 %v4034, %v4030
    %v4040 = vmul.f32 %v4034, %v4031
    %v4041 = vmul.f32 %v4034, %v4032
    %v4042 = vmul.f32 %v4034, %v4033
    %v4043 = vadd.f32 %v4017, %v4035
    %v4044 = vadd.f32 %v4018, %v4036
    %v4045 = vadd.f32 %v4019, %v4037
    %v4046 = vadd.f32 %v4020, %v4038
    %v4047 = vadd.f32 %v4021, %v4039
    %v4048 = vadd.f32 %v4022, %v4040
    %v4049 = vadd.f32 %v4023, %v4041
    %v4050 = vadd.f32 %v4024, %v4042
    %s4051 = sld [smem:[#allocation8 + $0x47]]
    %v4052 = vld [vmem:[%s3037 + $0x2] sm:$0xff]
    %v4053 = vld [vmem:[%s3037 + $0x12] sm:$0xff]
    %v4054 = vld [vmem:[%s3037 + $0x22] sm:$0xff]
    %v4055 = vld [vmem:[%s3037 + $0x32] sm:$0xff]
    %v4056 = vld [vmem:[%s3037 + $0x42] sm:$0xff]
    %v4057 = vld [vmem:[%s3037 + $0x52] sm:$0xff]
    %v4058 = vld [vmem:[%s3037 + $0x62] sm:$0xff]
    %v4059 = vld [vmem:[%s3037 + $0x72] sm:$0xff]
    %v4060 = vstv %s4051
    %v4061 = vmul.f32 %v4060, %v4052
    %v4062 = vmul.f32 %v4060, %v4053
    %v4063 = vmul.f32 %v4060, %v4054
    %v4064 = vmul.f32 %v4060, %v4055
    %v4065 = vmul.f32 %v4060, %v4056
    %v4066 = vmul.f32 %v4060, %v4057
    %v4067 = vmul.f32 %v4060, %v4058
    %v4068 = vmul.f32 %v4060, %v4059
    %v4069 = vadd.f32 %v4043, %v4061
    %v4070 = vadd.f32 %v4044, %v4062
    %v4071 = vadd.f32 %v4045, %v4063
    %v4072 = vadd.f32 %v4046, %v4064
    %v4073 = vadd.f32 %v4047, %v4065
    %v4074 = vadd.f32 %v4048, %v4066
    %v4075 = vadd.f32 %v4049, %v4067
    %v4076 = vadd.f32 %v4050, %v4068
    %s4077 = sld [smem:[#allocation9 + $0x1]]
    %v4078 = vstv %s4077
    %v4079 = vadd.f32 %v4069, %v4078
    %v4080 = vadd.f32 %v4070, %v4078
    %v4081 = vadd.f32 %v4071, %v4078
    %v4082 = vadd.f32 %v4072, %v4078
    %v4083 = vadd.f32 %v4073, %v4078
    %v4084 = vadd.f32 %v4074, %v4078
    %v4085 = vadd.f32 %v4075, %v4078
    %v4086 = vadd.f32 %v4076, %v4078
    %v4087 = vmax.f32 %v4079, 0.0
    %v4088 = vmax.f32 %v4080, 0.0
    %v4089 = vmax.f32 %v4081, 0.0
    %v4090 = vmax.f32 %v4082, 0.0
    %v4091 = vmax.f32 %v4083, 0.0
    %v4092 = vmax.f32 %v4084, 0.0
    %v4093 = vmax.f32 %v4085, 0.0
    %v4094 = vmax.f32 %v4086, 0.0
    %4095 = vst.msk [vmem:[#allocation3 + $0x40] sm:$0xff] %vm87, %v4087
    %4096 = vst.msk [vmem:[#allocation3 + $0x48] sm:$0xff] %vm87, %v4088
    %4097 = vst.msk [vmem:[#allocation3 + $0x50] sm:$0xff] %vm87, %v4089
    %4098 = vst.msk [vmem:[#allocation3 + $0x58] sm:$0xff] %vm87, %v4090
    %4099 = vst.msk [vmem:[#allocation3 + $0x60] sm:$0xff] %vm87, %v4091
    %4100 = vst.msk [vmem:[#allocation3 + $0x68] sm:$0xff] %vm87, %v4092
    %4101 = vst.msk [vmem:[#allocation3 + $0x70] sm:$0xff] %vm87, %v4093
    %4102 = vst.msk [vmem:[#allocation3 + $0x78] sm:$0xff] %vm87, %v4094
    %s4103 = sld [smem:[#allocation8 + $0x48]]
    %v4104 = vld [vmem:[#allocation2] sm:$0xff]
    %v4105 = vld [vmem:[#allocation2 + $0x10] sm:$0xff]
    %v4106 = vld [vmem:[#allocation2 + $0x20] sm:$0xff]
    %v4107 = vld [vmem:[#allocation2 + $0x30] sm:$0xff]
    %v4108 = vld [vmem:[#allocation2 + $0x40] sm:$0xff]
    %v4109 = vld [vmem:[#allocation2 + $0x50] sm:$0xff]
    %v4110 = vld [vmem:[#allocation2 + $0x60] sm:$0xff]
    %v4111 = vld [vmem:[#allocation2 + $0x70] sm:$0xff]
    %v4112 = vstv %s4103
    %v4113 = vmul.f32 %v4112, %v4104
    %v4114 = vmul.f32 %v4112, %v4105
    %v4115 = vmul.f32 %v4112, %v4106
    %v4116 = vmul.f32 %v4112, %v4107
    %v4117 = vmul.f32 %v4112, %v4108
    %v4118 = vmul.f32 %v4112, %v4109
    %v4119 = vmul.f32 %v4112, %v4110
    %v4120 = vmul.f32 %v4112, %v4111
    %v4121 = vadd.f32 %v4113, 0.0
    %v4122 = vadd.f32 %v4114, 0.0
    %v4123 = vadd.f32 %v4115, 0.0
    %v4124 = vadd.f32 %v4116, 0.0
    %v4125 = vadd.f32 %v4117, 0.0
    %v4126 = vadd.f32 %v4118, 0.0
    %v4127 = vadd.f32 %v4119, 0.0
    %v4128 = vadd.f32 %v4120, 0.0
    %s4129 = sld [smem:[#allocation8 + $0x49]]
    %v4130 = vld [vmem:[#allocation2 + $0x1] sm:$0xff]
    %v4131 = vld [vmem:[#allocation2 + $0x11] sm:$0xff]
    %v4132 = vld [vmem:[#allocation2 + $0x21] sm:$0xff]
    %v4133 = vld [vmem:[#allocation2 + $0x31] sm:$0xff]
    %v4134 = vld [vmem:[#allocation2 + $0x41] sm:$0xff]
    %v4135 = vld [vmem:[#allocation2 + $0x51] sm:$0xff]
    %v4136 = vld [vmem:[#allocation2 + $0x61] sm:$0xff]
    %v4137 = vld [vmem:[#allocation2 + $0x71] sm:$0xff]
    %v4138 = vstv %s4129
    %v4139 = vmul.f32 %v4138, %v4130
    %v4140 = vmul.f32 %v4138, %v4131
    %v4141 = vmul.f32 %v4138, %v4132
    %v4142 = vmul.f32 %v4138, %v4133
    %v4143 = vmul.f32 %v4138, %v4134
    %v4144 = vmul.f32 %v4138, %v4135
    %v4145 = vmul.f32 %v4138, %v4136
    %v4146 = vmul.f32 %v4138, %v4137
    %v4147 = vadd.f32 %v4121, %v4139
    %v4148 = vadd.f32 %v4122, %v4140
    %v4149 = vadd.f32 %v4123, %v4141
    %v4150 = vadd.f32 %v4124, %v4142
    %v4151 = vadd.f32 %v4125, %v4143
    %v4152 = vadd.f32 %v4126, %v4144
    %v4153 = vadd.f32 %v4127, %v4145
    %v4154 = vadd.f32 %v4128, %v4146
    %s4155 = sld [smem:[#allocation8 + $0x4a]]
    %v4156 = vld [vmem:[#allocation2 + $0x2] sm:$0xff]
    %v4157 = vld [vmem:[#allocation2 + $0x12] sm:$0xff]
    %v4158 = vld [vmem:[#allocation2 + $0x22] sm:$0xff]
    %v4159 = vld [vmem:[#allocation2 + $0x32] sm:$0xff]
    %v4160 = vld [vmem:[#allocation2 + $0x42] sm:$0xff]
    %v4161 = vld [vmem:[#allocation2 + $0x52] sm:$0xff]
    %v4162 = vld [vmem:[#allocation2 + $0x62] sm:$0xff]
    %v4163 = vld [vmem:[#allocation2 + $0x72] sm:$0xff]
    %v4164 = vstv %s4155
    %v4165 = vmul.f32 %v4164, %v4156
    %v4166 = vmul.f32 %v4164, %v4157
    %v4167 = vmul.f32 %v4164, %v4158
    %v4168 = vmul.f32 %v4164, %v4159
    %v4169 = vmul.f32 %v4164, %v4160
    %v4170 = vmul.f32 %v4164, %v4161
    %v4171 = vmul.f32 %v4164, %v4162
    %v4172 = vmul.f32 %v4164, %v4163
    %v4173 = vadd.f32 %v4147, %v4165
    %v4174 = vadd.f32 %v4148, %v4166
    %v4175 = vadd.f32 %v4149, %v4167
    %v4176 = vadd.f32 %v4150, %v4168
    %v4177 = vadd.f32 %v4151, %v4169
    %v4178 = vadd.f32 %v4152, %v4170
    %v4179 = vadd.f32 %v4153, %v4171
    %v4180 = vadd.f32 %v4154, %v4172
    %s4181 = sld [smem:[#allocation8 + $0x4b]]
    %v4182 = vld [vmem:[%s678] sm:$0xff]
    %v4183 = vld [vmem:[%s678 + $0x10] sm:$0xff]
    %v4184 = vld [vmem:[%s678 + $0x20] sm:$0xff]
    %v4185 = vld [vmem:[%s678 + $0x30] sm:$0xff]
    %v4186 = vld [vmem:[%s678 + $0x40] sm:$0xff]
    %v4187 = vld [vmem:[%s678 + $0x50] sm:$0xff]
    %v4188 = vld [vmem:[%s678 + $0x60] sm:$0xff]
    %v4189 = vld [vmem:[%s678 + $0x70] sm:$0xff]
    %v4190 = vstv %s4181
    %v4191 = vmul.f32 %v4190, %v4182
    %v4192 = vmul.f32 %v4190, %v4183
    %v4193 = vmul.f32 %v4190, %v4184
    %v4194 = vmul.f32 %v4190, %v4185
    %v4195 = vmul.f32 %v4190, %v4186
    %v4196 = vmul.f32 %v4190, %v4187
    %v4197 = vmul.f32 %v4190, %v4188
    %v4198 = vmul.f32 %v4190, %v4189
    %v4199 = vadd.f32 %v4173, %v4191
    %v4200 = vadd.f32 %v4174, %v4192
    %v4201 = vadd.f32 %v4175, %v4193
    %v4202 = vadd.f32 %v4176, %v4194
    %v4203 = vadd.f32 %v4177, %v4195
    %v4204 = vadd.f32 %v4178, %v4196
    %v4205 = vadd.f32 %v4179, %v4197
    %v4206 = vadd.f32 %v4180, %v4198
    %s4207 = sld [smem:[#allocation8 + $0x4c]]
    %v4208 = vld [vmem:[%s678 + $0x1] sm:$0xff]
    %v4209 = vld [vmem:[%s678 + $0x11] sm:$0xff]
    %v4210 = vld [vmem:[%s678 + $0x21] sm:$0xff]
    %v4211 = vld [vmem:[%s678 + $0x31] sm:$0xff]
    %v4212 = vld [vmem:[%s678 + $0x41] sm:$0xff]
    %v4213 = vld [vmem:[%s678 + $0x51] sm:$0xff]
    %v4214 = vld [vmem:[%s678 + $0x61] sm:$0xff]
    %v4215 = vld [vmem:[%s678 + $0x71] sm:$0xff]
    %v4216 = vstv %s4207
    %v4217 = vmul.f32 %v4216, %v4208
    %v4218 = vmul.f32 %v4216, %v4209
    %v4219 = vmul.f32 %v4216, %v4210
    %v4220 = vmul.f32 %v4216, %v4211
    %v4221 = vmul.f32 %v4216, %v4212
    %v4222 = vmul.f32 %v4216, %v4213
    %v4223 = vmul.f32 %v4216, %v4214
    %v4224 = vmul.f32 %v4216, %v4215
    %v4225 = vadd.f32 %v4199, %v4217
    %v4226 = vadd.f32 %v4200, %v4218
    %v4227 = vadd.f32 %v4201, %v4219
    %v4228 = vadd.f32 %v4202, %v4220
    %v4229 = vadd.f32 %v4203, %v4221
    %v4230 = vadd.f32 %v4204, %v4222
    %v4231 = vadd.f32 %v4205, %v4223
    %v4232 = vadd.f32 %v4206, %v4224
    %s4233 = sld [smem:[#allocation8 + $0x4d]]
    %v4234 = vld [vmem:[%s678 + $0x2] sm:$0xff]
    %v4235 = vld [vmem:[%s678 + $0x12] sm:$0xff]
    %v4236 = vld [vmem:[%s678 + $0x22] sm:$0xff]
    %v4237 = vld [vmem:[%s678 + $0x32] sm:$0xff]
    %v4238 = vld [vmem:[%s678 + $0x42] sm:$0xff]
    %v4239 = vld [vmem:[%s678 + $0x52] sm:$0xff]
    %v4240 = vld [vmem:[%s678 + $0x62] sm:$0xff]
    %v4241 = vld [vmem:[%s678 + $0x72] sm:$0xff]
    %v4242 = vstv %s4233
    %v4243 = vmul.f32 %v4242, %v4234
    %v4244 = vmul.f32 %v4242, %v4235
    %v4245 = vmul.f32 %v4242, %v4236
    %v4246 = vmul.f32 %v4242, %v4237
    %v4247 = vmul.f32 %v4242, %v4238
    %v4248 = vmul.f32 %v4242, %v4239
    %v4249 = vmul.f32 %v4242, %v4240
    %v4250 = vmul.f32 %v4242, %v4241
    %v4251 = vadd.f32 %v4225, %v4243
    %v4252 = vadd.f32 %v4226, %v4244
    %v4253 = vadd.f32 %v4227, %v4245
    %v4254 = vadd.f32 %v4228, %v4246
    %v4255 = vadd.f32 %v4229, %v4247
    %v4256 = vadd.f32 %v4230, %v4248
    %v4257 = vadd.f32 %v4231, %v4249
    %v4258 = vadd.f32 %v4232, %v4250
    %s4259 = sld [smem:[#allocation8 + $0x4e]]
    %v4260 = vld [vmem:[%s2329] sm:$0xff]
    %v4261 = vld [vmem:[%s2329 + $0x10] sm:$0xff]
    %v4262 = vld [vmem:[%s2329 + $0x20] sm:$0xff]
    %v4263 = vld [vmem:[%s2329 + $0x30] sm:$0xff]
    %v4264 = vld [vmem:[%s2329 + $0x40] sm:$0xff]
    %v4265 = vld [vmem:[%s2329 + $0x50] sm:$0xff]
    %v4266 = vld [vmem:[%s2329 + $0x60] sm:$0xff]
    %v4267 = vld [vmem:[%s2329 + $0x70] sm:$0xff]
    %v4268 = vstv %s4259
    %v4269 = vmul.f32 %v4268, %v4260
    %v4270 = vmul.f32 %v4268, %v4261
    %v4271 = vmul.f32 %v4268, %v4262
    %v4272 = vmul.f32 %v4268, %v4263
    %v4273 = vmul.f32 %v4268, %v4264
    %v4274 = vmul.f32 %v4268, %v4265
    %v4275 = vmul.f32 %v4268, %v4266
    %v4276 = vmul.f32 %v4268, %v4267
    %v4277 = vadd.f32 %v4251, %v4269
    %v4278 = vadd.f32 %v4252, %v4270
    %v4279 = vadd.f32 %v4253, %v4271
    %v4280 = vadd.f32 %v4254, %v4272
    %v4281 = vadd.f32 %v4255, %v4273
    %v4282 = vadd.f32 %v4256, %v4274
    %v4283 = vadd.f32 %v4257, %v4275
    %v4284 = vadd.f32 %v4258, %v4276
    %s4285 = sld [smem:[#allocation8 + $0x4f]]
    %v4286 = vld [vmem:[%s2329 + $0x1] sm:$0xff]
    %v4287 = vld [vmem:[%s2329 + $0x11] sm:$0xff]
    %v4288 = vld [vmem:[%s2329 + $0x21] sm:$0xff]
    %v4289 = vld [vmem:[%s2329 + $0x31] sm:$0xff]
    %v4290 = vld [vmem:[%s2329 + $0x41] sm:$0xff]
    %v4291 = vld [vmem:[%s2329 + $0x51] sm:$0xff]
    %v4292 = vld [vmem:[%s2329 + $0x61] sm:$0xff]
    %v4293 = vld [vmem:[%s2329 + $0x71] sm:$0xff]
    %v4294 = vstv %s4285
    %v4295 = vmul.f32 %v4294, %v4286
    %v4296 = vmul.f32 %v4294, %v4287
    %v4297 = vmul.f32 %v4294, %v4288
    %v4298 = vmul.f32 %v4294, %v4289
    %v4299 = vmul.f32 %v4294, %v4290
    %v4300 = vmul.f32 %v4294, %v4291
    %v4301 = vmul.f32 %v4294, %v4292
    %v4302 = vmul.f32 %v4294, %v4293
    %v4303 = vadd.f32 %v4277, %v4295
    %v4304 = vadd.f32 %v4278, %v4296
    %v4305 = vadd.f32 %v4279, %v4297
    %v4306 = vadd.f32 %v4280, %v4298
    %v4307 = vadd.f32 %v4281, %v4299
    %v4308 = vadd.f32 %v4282, %v4300
    %v4309 = vadd.f32 %v4283, %v4301
    %v4310 = vadd.f32 %v4284, %v4302
    %s4311 = sld [smem:[#allocation8 + $0x50]]
    %v4312 = vld [vmem:[%s2329 + $0x2] sm:$0xff]
    %v4313 = vld [vmem:[%s2329 + $0x12] sm:$0xff]
    %v4314 = vld [vmem:[%s2329 + $0x22] sm:$0xff]
    %v4315 = vld [vmem:[%s2329 + $0x32] sm:$0xff]
    %v4316 = vld [vmem:[%s2329 + $0x42] sm:$0xff]
    %v4317 = vld [vmem:[%s2329 + $0x52] sm:$0xff]
    %v4318 = vld [vmem:[%s2329 + $0x62] sm:$0xff]
    %v4319 = vld [vmem:[%s2329 + $0x72] sm:$0xff]
    %v4320 = vstv %s4311
    %v4321 = vmul.f32 %v4320, %v4312
    %v4322 = vmul.f32 %v4320, %v4313
    %v4323 = vmul.f32 %v4320, %v4314
    %v4324 = vmul.f32 %v4320, %v4315
    %v4325 = vmul.f32 %v4320, %v4316
    %v4326 = vmul.f32 %v4320, %v4317
    %v4327 = vmul.f32 %v4320, %v4318
    %v4328 = vmul.f32 %v4320, %v4319
    %v4329 = vadd.f32 %v4303, %v4321
    %v4330 = vadd.f32 %v4304, %v4322
    %v4331 = vadd.f32 %v4305, %v4323
    %v4332 = vadd.f32 %v4306, %v4324
    %v4333 = vadd.f32 %v4307, %v4325
    %v4334 = vadd.f32 %v4308, %v4326
    %v4335 = vadd.f32 %v4309, %v4327
    %v4336 = vadd.f32 %v4310, %v4328
    %s4337 = sld [smem:[#allocation8 + $0x51]]
    %v4338 = vld [vmem:[%s2408] sm:$0xff]
    %v4339 = vld [vmem:[%s2408 + $0x10] sm:$0xff]
    %v4340 = vld [vmem:[%s2408 + $0x20] sm:$0xff]
    %v4341 = vld [vmem:[%s2408 + $0x30] sm:$0xff]
    %v4342 = vld [vmem:[%s2408 + $0x40] sm:$0xff]
    %v4343 = vld [vmem:[%s2408 + $0x50] sm:$0xff]
    %v4344 = vld [vmem:[%s2408 + $0x60] sm:$0xff]
    %v4345 = vld [vmem:[%s2408 + $0x70] sm:$0xff]
    %v4346 = vstv %s4337
    %v4347 = vmul.f32 %v4346, %v4338
    %v4348 = vmul.f32 %v4346, %v4339
    %v4349 = vmul.f32 %v4346, %v4340
    %v4350 = vmul.f32 %v4346, %v4341
    %v4351 = vmul.f32 %v4346, %v4342
    %v4352 = vmul.f32 %v4346, %v4343
    %v4353 = vmul.f32 %v4346, %v4344
    %v4354 = vmul.f32 %v4346, %v4345
    %v4355 = vadd.f32 %v4329, %v4347
    %v4356 = vadd.f32 %v4330, %v4348
    %v4357 = vadd.f32 %v4331, %v4349
    %v4358 = vadd.f32 %v4332, %v4350
    %v4359 = vadd.f32 %v4333, %v4351
    %v4360 = vadd.f32 %v4334, %v4352
    %v4361 = vadd.f32 %v4335, %v4353
    %v4362 = vadd.f32 %v4336, %v4354
    %s4363 = sld [smem:[#allocation8 + $0x52]]
    %v4364 = vld [vmem:[%s2408 + $0x1] sm:$0xff]
    %v4365 = vld [vmem:[%s2408 + $0x11] sm:$0xff]
    %v4366 = vld [vmem:[%s2408 + $0x21] sm:$0xff]
    %v4367 = vld [vmem:[%s2408 + $0x31] sm:$0xff]
    %v4368 = vld [vmem:[%s2408 + $0x41] sm:$0xff]
    %v4369 = vld [vmem:[%s2408 + $0x51] sm:$0xff]
    %v4370 = vld [vmem:[%s2408 + $0x61] sm:$0xff]
    %v4371 = vld [vmem:[%s2408 + $0x71] sm:$0xff]
    %v4372 = vstv %s4363
    %v4373 = vmul.f32 %v4372, %v4364
    %v4374 = vmul.f32 %v4372, %v4365
    %v4375 = vmul.f32 %v4372, %v4366
    %v4376 = vmul.f32 %v4372, %v4367
    %v4377 = vmul.f32 %v4372, %v4368
    %v4378 = vmul.f32 %v4372, %v4369
    %v4379 = vmul.f32 %v4372, %v4370
    %v4380 = vmul.f32 %v4372, %v4371
    %v4381 = vadd.f32 %v4355, %v4373
    %v4382 = vadd.f32 %v4356, %v4374
    %v4383 = vadd.f32 %v4357, %v4375
    %v4384 = vadd.f32 %v4358, %v4376
    %v4385 = vadd.f32 %v4359, %v4377
    %v4386 = vadd.f32 %v4360, %v4378
    %v4387 = vadd.f32 %v4361, %v4379
    %v4388 = vadd.f32 %v4362, %v4380
    %s4389 = sld [smem:[#allocation8 + $0x53]]
    %v4390 = vld [vmem:[%s2408 + $0x2] sm:$0xff]
    %v4391 = vld [vmem:[%s2408 + $0x12] sm:$0xff]
    %v4392 = vld [vmem:[%s2408 + $0x22] sm:$0xff]
    %v4393 = vld [vmem:[%s2408 + $0x32] sm:$0xff]
    %v4394 = vld [vmem:[%s2408 + $0x42] sm:$0xff]
    %v4395 = vld [vmem:[%s2408 + $0x52] sm:$0xff]
    %v4396 = vld [vmem:[%s2408 + $0x62] sm:$0xff]
    %v4397 = vld [vmem:[%s2408 + $0x72] sm:$0xff]
    %v4398 = vstv %s4389
    %v4399 = vmul.f32 %v4398, %v4390
    %v4400 = vmul.f32 %v4398, %v4391
    %v4401 = vmul.f32 %v4398, %v4392
    %v4402 = vmul.f32 %v4398, %v4393
    %v4403 = vmul.f32 %v4398, %v4394
    %v4404 = vmul.f32 %v4398, %v4395
    %v4405 = vmul.f32 %v4398, %v4396
    %v4406 = vmul.f32 %v4398, %v4397
    %v4407 = vadd.f32 %v4381, %v4399
    %v4408 = vadd.f32 %v4382, %v4400
    %v4409 = vadd.f32 %v4383, %v4401
    %v4410 = vadd.f32 %v4384, %v4402
    %v4411 = vadd.f32 %v4385, %v4403
    %v4412 = vadd.f32 %v4386, %v4404
    %v4413 = vadd.f32 %v4387, %v4405
    %v4414 = vadd.f32 %v4388, %v4406
    %s4415 = sld [smem:[#allocation8 + $0x54]]
    %v4416 = vld [vmem:[%s1173] sm:$0xff]
    %v4417 = vld [vmem:[%s1173 + $0x10] sm:$0xff]
    %v4418 = vld [vmem:[%s1173 + $0x20] sm:$0xff]
    %v4419 = vld [vmem:[%s1173 + $0x30] sm:$0xff]
    %v4420 = vld [vmem:[%s1173 + $0x40] sm:$0xff]
    %v4421 = vld [vmem:[%s1173 + $0x50] sm:$0xff]
    %v4422 = vld [vmem:[%s1173 + $0x60] sm:$0xff]
    %v4423 = vld [vmem:[%s1173 + $0x70] sm:$0xff]
    %v4424 = vstv %s4415
    %v4425 = vmul.f32 %v4424, %v4416
    %v4426 = vmul.f32 %v4424, %v4417
    %v4427 = vmul.f32 %v4424, %v4418
    %v4428 = vmul.f32 %v4424, %v4419
    %v4429 = vmul.f32 %v4424, %v4420
    %v4430 = vmul.f32 %v4424, %v4421
    %v4431 = vmul.f32 %v4424, %v4422
    %v4432 = vmul.f32 %v4424, %v4423
    %v4433 = vadd.f32 %v4407, %v4425
    %v4434 = vadd.f32 %v4408, %v4426
    %v4435 = vadd.f32 %v4409, %v4427
    %v4436 = vadd.f32 %v4410, %v4428
    %v4437 = vadd.f32 %v4411, %v4429
    %v4438 = vadd.f32 %v4412, %v4430
    %v4439 = vadd.f32 %v4413, %v4431
    %v4440 = vadd.f32 %v4414, %v4432
    %s4441 = sld [smem:[#allocation8 + $0x55]]
    %v4442 = vld [vmem:[%s1173 + $0x1] sm:$0xff]
    %v4443 = vld [vmem:[%s1173 + $0x11] sm:$0xff]
    %v4444 = vld [vmem:[%s1173 + $0x21] sm:$0xff]
    %v4445 = vld [vmem:[%s1173 + $0x31] sm:$0xff]
    %v4446 = vld [vmem:[%s1173 + $0x41] sm:$0xff]
    %v4447 = vld [vmem:[%s1173 + $0x51] sm:$0xff]
    %v4448 = vld [vmem:[%s1173 + $0x61] sm:$0xff]
    %v4449 = vld [vmem:[%s1173 + $0x71] sm:$0xff]
    %v4450 = vstv %s4441
    %v4451 = vmul.f32 %v4450, %v4442
    %v4452 = vmul.f32 %v4450, %v4443
    %v4453 = vmul.f32 %v4450, %v4444
    %v4454 = vmul.f32 %v4450, %v4445
    %v4455 = vmul.f32 %v4450, %v4446
    %v4456 = vmul.f32 %v4450, %v4447
    %v4457 = vmul.f32 %v4450, %v4448
    %v4458 = vmul.f32 %v4450, %v4449
    %v4459 = vadd.f32 %v4433, %v4451
    %v4460 = vadd.f32 %v4434, %v4452
    %v4461 = vadd.f32 %v4435, %v4453
    %v4462 = vadd.f32 %v4436, %v4454
    %v4463 = vadd.f32 %v4437, %v4455
    %v4464 = vadd.f32 %v4438, %v4456
    %v4465 = vadd.f32 %v4439, %v4457
    %v4466 = vadd.f32 %v4440, %v4458
    %s4467 = sld [smem:[#allocation8 + $0x56]]
    %v4468 = vld [vmem:[%s1173 + $0x2] sm:$0xff]
    %v4469 = vld [vmem:[%s1173 + $0x12] sm:$0xff]
    %v4470 = vld [vmem:[%s1173 + $0x22] sm:$0xff]
    %v4471 = vld [vmem:[%s1173 + $0x32] sm:$0xff]
    %v4472 = vld [vmem:[%s1173 + $0x42] sm:$0xff]
    %v4473 = vld [vmem:[%s1173 + $0x52] sm:$0xff]
    %v4474 = vld [vmem:[%s1173 + $0x62] sm:$0xff]
    %v4475 = vld [vmem:[%s1173 + $0x72] sm:$0xff]
    %v4476 = vstv %s4467
    %v4477 = vmul.f32 %v4476, %v4468
    %v4478 = vmul.f32 %v4476, %v4469
    %v4479 = vmul.f32 %v4476, %v4470
    %v4480 = vmul.f32 %v4476, %v4471
    %v4481 = vmul.f32 %v4476, %v4472
    %v4482 = vmul.f32 %v4476, %v4473
    %v4483 = vmul.f32 %v4476, %v4474
    %v4484 = vmul.f32 %v4476, %v4475
    %v4485 = vadd.f32 %v4459, %v4477
    %v4486 = vadd.f32 %v4460, %v4478
    %v4487 = vadd.f32 %v4461, %v4479
    %v4488 = vadd.f32 %v4462, %v4480
    %v4489 = vadd.f32 %v4463, %v4481
    %v4490 = vadd.f32 %v4464, %v4482
    %v4491 = vadd.f32 %v4465, %v4483
    %v4492 = vadd.f32 %v4466, %v4484
    %s4493 = sld [smem:[#allocation8 + $0x57]]
    %v4494 = vld [vmem:[%s2565] sm:$0xff]
    %v4495 = vld [vmem:[%s2565 + $0x10] sm:$0xff]
    %v4496 = vld [vmem:[%s2565 + $0x20] sm:$0xff]
    %v4497 = vld [vmem:[%s2565 + $0x30] sm:$0xff]
    %v4498 = vld [vmem:[%s2565 + $0x40] sm:$0xff]
    %v4499 = vld [vmem:[%s2565 + $0x50] sm:$0xff]
    %v4500 = vld [vmem:[%s2565 + $0x60] sm:$0xff]
    %v4501 = vld [vmem:[%s2565 + $0x70] sm:$0xff]
    %v4502 = vstv %s4493
    %v4503 = vmul.f32 %v4502, %v4494
    %v4504 = vmul.f32 %v4502, %v4495
    %v4505 = vmul.f32 %v4502, %v4496
    %v4506 = vmul.f32 %v4502, %v4497
    %v4507 = vmul.f32 %v4502, %v4498
    %v4508 = vmul.f32 %v4502, %v4499
    %v4509 = vmul.f32 %v4502, %v4500
    %v4510 = vmul.f32 %v4502, %v4501
    %v4511 = vadd.f32 %v4485, %v4503
    %v4512 = vadd.f32 %v4486, %v4504
    %v4513 = vadd.f32 %v4487, %v4505
    %v4514 = vadd.f32 %v4488, %v4506
    %v4515 = vadd.f32 %v4489, %v4507
    %v4516 = vadd.f32 %v4490, %v4508
    %v4517 = vadd.f32 %v4491, %v4509
    %v4518 = vadd.f32 %v4492, %v4510
    %s4519 = sld [smem:[#allocation8 + $0x58]]
    %v4520 = vld [vmem:[%s2565 + $0x1] sm:$0xff]
    %v4521 = vld [vmem:[%s2565 + $0x11] sm:$0xff]
    %v4522 = vld [vmem:[%s2565 + $0x21] sm:$0xff]
    %v4523 = vld [vmem:[%s2565 + $0x31] sm:$0xff]
    %v4524 = vld [vmem:[%s2565 + $0x41] sm:$0xff]
    %v4525 = vld [vmem:[%s2565 + $0x51] sm:$0xff]
    %v4526 = vld [vmem:[%s2565 + $0x61] sm:$0xff]
    %v4527 = vld [vmem:[%s2565 + $0x71] sm:$0xff]
    %v4528 = vstv %s4519
    %v4529 = vmul.f32 %v4528, %v4520
    %v4530 = vmul.f32 %v4528, %v4521
    %v4531 = vmul.f32 %v4528, %v4522
    %v4532 = vmul.f32 %v4528, %v4523
    %v4533 = vmul.f32 %v4528, %v4524
    %v4534 = vmul.f32 %v4528, %v4525
    %v4535 = vmul.f32 %v4528, %v4526
    %v4536 = vmul.f32 %v4528, %v4527
    %v4537 = vadd.f32 %v4511, %v4529
    %v4538 = vadd.f32 %v4512, %v4530
    %v4539 = vadd.f32 %v4513, %v4531
    %v4540 = vadd.f32 %v4514, %v4532
    %v4541 = vadd.f32 %v4515, %v4533
    %v4542 = vadd.f32 %v4516, %v4534
    %v4543 = vadd.f32 %v4517, %v4535
    %v4544 = vadd.f32 %v4518, %v4536
    %s4545 = sld [smem:[#allocation8 + $0x59]]
    %v4546 = vld [vmem:[%s2565 + $0x2] sm:$0xff]
    %v4547 = vld [vmem:[%s2565 + $0x12] sm:$0xff]
    %v4548 = vld [vmem:[%s2565 + $0x22] sm:$0xff]
    %v4549 = vld [vmem:[%s2565 + $0x32] sm:$0xff]
    %v4550 = vld [vmem:[%s2565 + $0x42] sm:$0xff]
    %v4551 = vld [vmem:[%s2565 + $0x52] sm:$0xff]
    %v4552 = vld [vmem:[%s2565 + $0x62] sm:$0xff]
    %v4553 = vld [vmem:[%s2565 + $0x72] sm:$0xff]
    %v4554 = vstv %s4545
    %v4555 = vmul.f32 %v4554, %v4546
    %v4556 = vmul.f32 %v4554, %v4547
    %v4557 = vmul.f32 %v4554, %v4548
    %v4558 = vmul.f32 %v4554, %v4549
    %v4559 = vmul.f32 %v4554, %v4550
    %v4560 = vmul.f32 %v4554, %v4551
    %v4561 = vmul.f32 %v4554, %v4552
    %v4562 = vmul.f32 %v4554, %v4553
    %v4563 = vadd.f32 %v4537, %v4555
    %v4564 = vadd.f32 %v4538, %v4556
    %v4565 = vadd.f32 %v4539, %v4557
    %v4566 = vadd.f32 %v4540, %v4558
    %v4567 = vadd.f32 %v4541, %v4559
    %v4568 = vadd.f32 %v4542, %v4560
    %v4569 = vadd.f32 %v4543, %v4561
    %v4570 = vadd.f32 %v4544, %v4562
    %s4571 = sld [smem:[#allocation8 + $0x5a]]
    %v4572 = vld [vmem:[%s2644] sm:$0xff]
    %v4573 = vld [vmem:[%s2644 + $0x10] sm:$0xff]
    %v4574 = vld [vmem:[%s2644 + $0x20] sm:$0xff]
    %v4575 = vld [vmem:[%s2644 + $0x30] sm:$0xff]
    %v4576 = vld [vmem:[%s2644 + $0x40] sm:$0xff]
    %v4577 = vld [vmem:[%s2644 + $0x50] sm:$0xff]
    %v4578 = vld [vmem:[%s2644 + $0x60] sm:$0xff]
    %v4579 = vld [vmem:[%s2644 + $0x70] sm:$0xff]
    %v4580 = vstv %s4571
    %v4581 = vmul.f32 %v4580, %v4572
    %v4582 = vmul.f32 %v4580, %v4573
    %v4583 = vmul.f32 %v4580, %v4574
    %v4584 = vmul.f32 %v4580, %v4575
    %v4585 = vmul.f32 %v4580, %v4576
    %v4586 = vmul.f32 %v4580, %v4577
    %v4587 = vmul.f32 %v4580, %v4578
    %v4588 = vmul.f32 %v4580, %v4579
    %v4589 = vadd.f32 %v4563, %v4581
    %v4590 = vadd.f32 %v4564, %v4582
    %v4591 = vadd.f32 %v4565, %v4583
    %v4592 = vadd.f32 %v4566, %v4584
    %v4593 = vadd.f32 %v4567, %v4585
    %v4594 = vadd.f32 %v4568, %v4586
    %v4595 = vadd.f32 %v4569, %v4587
    %v4596 = vadd.f32 %v4570, %v4588
    %s4597 = sld [smem:[#allocation8 + $0x5b]]
    %v4598 = vld [vmem:[%s2644 + $0x1] sm:$0xff]
    %v4599 = vld [vmem:[%s2644 + $0x11] sm:$0xff]
    %v4600 = vld [vmem:[%s2644 + $0x21] sm:$0xff]
    %v4601 = vld [vmem:[%s2644 + $0x31] sm:$0xff]
    %v4602 = vld [vmem:[%s2644 + $0x41] sm:$0xff]
    %v4603 = vld [vmem:[%s2644 + $0x51] sm:$0xff]
    %v4604 = vld [vmem:[%s2644 + $0x61] sm:$0xff]
    %v4605 = vld [vmem:[%s2644 + $0x71] sm:$0xff]
    %v4606 = vstv %s4597
    %v4607 = vmul.f32 %v4606, %v4598
    %v4608 = vmul.f32 %v4606, %v4599
    %v4609 = vmul.f32 %v4606, %v4600
    %v4610 = vmul.f32 %v4606, %v4601
    %v4611 = vmul.f32 %v4606, %v4602
    %v4612 = vmul.f32 %v4606, %v4603
    %v4613 = vmul.f32 %v4606, %v4604
    %v4614 = vmul.f32 %v4606, %v4605
    %v4615 = vadd.f32 %v4589, %v4607
    %v4616 = vadd.f32 %v4590, %v4608
    %v4617 = vadd.f32 %v4591, %v4609
    %v4618 = vadd.f32 %v4592, %v4610
    %v4619 = vadd.f32 %v4593, %v4611
    %v4620 = vadd.f32 %v4594, %v4612
    %v4621 = vadd.f32 %v4595, %v4613
    %v4622 = vadd.f32 %v4596, %v4614
    %s4623 = sld [smem:[#allocation8 + $0x5c]]
    %v4624 = vld [vmem:[%s2644 + $0x2] sm:$0xff]
    %v4625 = vld [vmem:[%s2644 + $0x12] sm:$0xff]
    %v4626 = vld [vmem:[%s2644 + $0x22] sm:$0xff]
    %v4627 = vld [vmem:[%s2644 + $0x32] sm:$0xff]
    %v4628 = vld [vmem:[%s2644 + $0x42] sm:$0xff]
    %v4629 = vld [vmem:[%s2644 + $0x52] sm:$0xff]
    %v4630 = vld [vmem:[%s2644 + $0x62] sm:$0xff]
    %v4631 = vld [vmem:[%s2644 + $0x72] sm:$0xff]
    %v4632 = vstv %s4623
    %v4633 = vmul.f32 %v4632, %v4624
    %v4634 = vmul.f32 %v4632, %v4625
    %v4635 = vmul.f32 %v4632, %v4626
    %v4636 = vmul.f32 %v4632, %v4627
    %v4637 = vmul.f32 %v4632, %v4628
    %v4638 = vmul.f32 %v4632, %v4629
    %v4639 = vmul.f32 %v4632, %v4630
    %v4640 = vmul.f32 %v4632, %v4631
    %v4641 = vadd.f32 %v4615, %v4633
    %v4642 = vadd.f32 %v4616, %v4634
    %v4643 = vadd.f32 %v4617, %v4635
    %v4644 = vadd.f32 %v4618, %v4636
    %v4645 = vadd.f32 %v4619, %v4637
    %v4646 = vadd.f32 %v4620, %v4638
    %v4647 = vadd.f32 %v4621, %v4639
    %v4648 = vadd.f32 %v4622, %v4640
    %s4649 = sld [smem:[#allocation8 + $0x5d]]
    %v4650 = vld [vmem:[%s1668] sm:$0xff]
    %v4651 = vld [vmem:[%s1668 + $0x10] sm:$0xff]
    %v4652 = vld [vmem:[%s1668 + $0x20] sm:$0xff]
    %v4653 = vld [vmem:[%s1668 + $0x30] sm:$0xff]
    %v4654 = vld [vmem:[%s1668 + $0x40] sm:$0xff]
    %v4655 = vld [vmem:[%s1668 + $0x50] sm:$0xff]
    %v4656 = vld [vmem:[%s1668 + $0x60] sm:$0xff]
    %v4657 = vld [vmem:[%s1668 + $0x70] sm:$0xff]
    %v4658 = vstv %s4649
    %v4659 = vmul.f32 %v4658, %v4650
    %v4660 = vmul.f32 %v4658, %v4651
    %v4661 = vmul.f32 %v4658, %v4652
    %v4662 = vmul.f32 %v4658, %v4653
    %v4663 = vmul.f32 %v4658, %v4654
    %v4664 = vmul.f32 %v4658, %v4655
    %v4665 = vmul.f32 %v4658, %v4656
    %v4666 = vmul.f32 %v4658, %v4657
    %v4667 = vadd.f32 %v4641, %v4659
    %v4668 = vadd.f32 %v4642, %v4660
    %v4669 = vadd.f32 %v4643, %v4661
    %v4670 = vadd.f32 %v4644, %v4662
    %v4671 = vadd.f32 %v4645, %v4663
    %v4672 = vadd.f32 %v4646, %v4664
    %v4673 = vadd.f32 %v4647, %v4665
    %v4674 = vadd.f32 %v4648, %v4666
    %s4675 = sld [smem:[#allocation8 + $0x5e]]
    %v4676 = vld [vmem:[%s1668 + $0x1] sm:$0xff]
    %v4677 = vld [vmem:[%s1668 + $0x11] sm:$0xff]
    %v4678 = vld [vmem:[%s1668 + $0x21] sm:$0xff]
    %v4679 = vld [vmem:[%s1668 + $0x31] sm:$0xff]
    %v4680 = vld [vmem:[%s1668 + $0x41] sm:$0xff]
    %v4681 = vld [vmem:[%s1668 + $0x51] sm:$0xff]
    %v4682 = vld [vmem:[%s1668 + $0x61] sm:$0xff]
    %v4683 = vld [vmem:[%s1668 + $0x71] sm:$0xff]
    %v4684 = vstv %s4675
    %v4685 = vmul.f32 %v4684, %v4676
    %v4686 = vmul.f32 %v4684, %v4677
    %v4687 = vmul.f32 %v4684, %v4678
    %v4688 = vmul.f32 %v4684, %v4679
    %v4689 = vmul.f32 %v4684, %v4680
    %v4690 = vmul.f32 %v4684, %v4681
    %v4691 = vmul.f32 %v4684, %v4682
    %v4692 = vmul.f32 %v4684, %v4683
    %v4693 = vadd.f32 %v4667, %v4685
    %v4694 = vadd.f32 %v4668, %v4686
    %v4695 = vadd.f32 %v4669, %v4687
    %v4696 = vadd.f32 %v4670, %v4688
    %v4697 = vadd.f32 %v4671, %v4689
    %v4698 = vadd.f32 %v4672, %v4690
    %v4699 = vadd.f32 %v4673, %v4691
    %v4700 = vadd.f32 %v4674, %v4692
    %s4701 = sld [smem:[#allocation8 + $0x5f]]
    %v4702 = vld [vmem:[%s1668 + $0x2] sm:$0xff]
    %v4703 = vld [vmem:[%s1668 + $0x12] sm:$0xff]
    %v4704 = vld [vmem:[%s1668 + $0x22] sm:$0xff]
    %v4705 = vld [vmem:[%s1668 + $0x32] sm:$0xff]
    %v4706 = vld [vmem:[%s1668 + $0x42] sm:$0xff]
    %v4707 = vld [vmem:[%s1668 + $0x52] sm:$0xff]
    %v4708 = vld [vmem:[%s1668 + $0x62] sm:$0xff]
    %v4709 = vld [vmem:[%s1668 + $0x72] sm:$0xff]
    %v4710 = vstv %s4701
    %v4711 = vmul.f32 %v4710, %v4702
    %v4712 = vmul.f32 %v4710, %v4703
    %v4713 = vmul.f32 %v4710, %v4704
    %v4714 = vmul.f32 %v4710, %v4705
    %v4715 = vmul.f32 %v4710, %v4706
    %v4716 = vmul.f32 %v4710, %v4707
    %v4717 = vmul.f32 %v4710, %v4708
    %v4718 = vmul.f32 %v4710, %v4709
    %v4719 = vadd.f32 %v4693, %v4711
    %v4720 = vadd.f32 %v4694, %v4712
    %v4721 = vadd.f32 %v4695, %v4713
    %v4722 = vadd.f32 %v4696, %v4714
    %v4723 = vadd.f32 %v4697, %v4715
    %v4724 = vadd.f32 %v4698, %v4716
    %v4725 = vadd.f32 %v4699, %v4717
    %v4726 = vadd.f32 %v4700, %v4718
    %s4727 = sld [smem:[#allocation8 + $0x60]]
    %v4728 = vld [vmem:[%s2801] sm:$0xff]
    %v4729 = vld [vmem:[%s2801 + $0x10] sm:$0xff]
    %v4730 = vld [vmem:[%s2801 + $0x20] sm:$0xff]
    %v4731 = vld [vmem:[%s2801 + $0x30] sm:$0xff]
    %v4732 = vld [vmem:[%s2801 + $0x40] sm:$0xff]
    %v4733 = vld [vmem:[%s2801 + $0x50] sm:$0xff]
    %v4734 = vld [vmem:[%s2801 + $0x60] sm:$0xff]
    %v4735 = vld [vmem:[%s2801 + $0x70] sm:$0xff]
    %v4736 = vstv %s4727
    %v4737 = vmul.f32 %v4736, %v4728
    %v4738 = vmul.f32 %v4736, %v4729
    %v4739 = vmul.f32 %v4736, %v4730
    %v4740 = vmul.f32 %v4736, %v4731
    %v4741 = vmul.f32 %v4736, %v4732
    %v4742 = vmul.f32 %v4736, %v4733
    %v4743 = vmul.f32 %v4736, %v4734
    %v4744 = vmul.f32 %v4736, %v4735
    %v4745 = vadd.f32 %v4719, %v4737
    %v4746 = vadd.f32 %v4720, %v4738
    %v4747 = vadd.f32 %v4721, %v4739
    %v4748 = vadd.f32 %v4722, %v4740
    %v4749 = vadd.f32 %v4723, %v4741
    %v4750 = vadd.f32 %v4724, %v4742
    %v4751 = vadd.f32 %v4725, %v4743
    %v4752 = vadd.f32 %v4726, %v4744
    %s4753 = sld [smem:[#allocation8 + $0x61]]
    %v4754 = vld [vmem:[%s2801 + $0x1] sm:$0xff]
    %v4755 = vld [vmem:[%s2801 + $0x11] sm:$0xff]
    %v4756 = vld [vmem:[%s2801 + $0x21] sm:$0xff]
    %v4757 = vld [vmem:[%s2801 + $0x31] sm:$0xff]
    %v4758 = vld [vmem:[%s2801 + $0x41] sm:$0xff]
    %v4759 = vld [vmem:[%s2801 + $0x51] sm:$0xff]
    %v4760 = vld [vmem:[%s2801 + $0x61] sm:$0xff]
    %v4761 = vld [vmem:[%s2801 + $0x71] sm:$0xff]
    %v4762 = vstv %s4753
    %v4763 = vmul.f32 %v4762, %v4754
    %v4764 = vmul.f32 %v4762, %v4755
    %v4765 = vmul.f32 %v4762, %v4756
    %v4766 = vmul.f32 %v4762, %v4757
    %v4767 = vmul.f32 %v4762, %v4758
    %v4768 = vmul.f32 %v4762, %v4759
    %v4769 = vmul.f32 %v4762, %v4760
    %v4770 = vmul.f32 %v4762, %v4761
    %v4771 = vadd.f32 %v4745, %v4763
    %v4772 = vadd.f32 %v4746, %v4764
    %v4773 = vadd.f32 %v4747, %v4765
    %v4774 = vadd.f32 %v4748, %v4766
    %v4775 = vadd.f32 %v4749, %v4767
    %v4776 = vadd.f32 %v4750, %v4768
    %v4777 = vadd.f32 %v4751, %v4769
    %v4778 = vadd.f32 %v4752, %v4770
    %s4779 = sld [smem:[#allocation8 + $0x62]]
    %v4780 = vld [vmem:[%s2801 + $0x2] sm:$0xff]
    %v4781 = vld [vmem:[%s2801 + $0x12] sm:$0xff]
    %v4782 = vld [vmem:[%s2801 + $0x22] sm:$0xff]
    %v4783 = vld [vmem:[%s2801 + $0x32] sm:$0xff]
    %v4784 = vld [vmem:[%s2801 + $0x42] sm:$0xff]
    %v4785 = vld [vmem:[%s2801 + $0x52] sm:$0xff]
    %v4786 = vld [vmem:[%s2801 + $0x62] sm:$0xff]
    %v4787 = vld [vmem:[%s2801 + $0x72] sm:$0xff]
    %v4788 = vstv %s4779
    %v4789 = vmul.f32 %v4788, %v4780
    %v4790 = vmul.f32 %v4788, %v4781
    %v4791 = vmul.f32 %v4788, %v4782
    %v4792 = vmul.f32 %v4788, %v4783
    %v4793 = vmul.f32 %v4788, %v4784
    %v4794 = vmul.f32 %v4788, %v4785
    %v4795 = vmul.f32 %v4788, %v4786
    %v4796 = vmul.f32 %v4788, %v4787
    %v4797 = vadd.f32 %v4771, %v4789
    %v4798 = vadd.f32 %v4772, %v4790
    %v4799 = vadd.f32 %v4773, %v4791
    %v4800 = vadd.f32 %v4774, %v4792
    %v4801 = vadd.f32 %v4775, %v4793
    %v4802 = vadd.f32 %v4776, %v4794
    %v4803 = vadd.f32 %v4777, %v4795
    %v4804 = vadd.f32 %v4778, %v4796
    %s4805 = sld [smem:[#allocation8 + $0x63]]
    %v4806 = vld [vmem:[%s2880] sm:$0xff]
    %v4807 = vld [vmem:[%s2880 + $0x10] sm:$0xff]
    %v4808 = vld [vmem:[%s2880 + $0x20] sm:$0xff]
    %v4809 = vld [vmem:[%s2880 + $0x30] sm:$0xff]
    %v4810 = vld [vmem:[%s2880 + $0x40] sm:$0xff]
    %v4811 = vld [vmem:[%s2880 + $0x50] sm:$0xff]
    %v4812 = vld [vmem:[%s2880 + $0x60] sm:$0xff]
    %v4813 = vld [vmem:[%s2880 + $0x70] sm:$0xff]
    %v4814 = vstv %s4805
    %v4815 = vmul.f32 %v4814, %v4806
    %v4816 = vmul.f32 %v4814, %v4807
    %v4817 = vmul.f32 %v4814, %v4808
    %v4818 = vmul.f32 %v4814, %v4809
    %v4819 = vmul.f32 %v4814, %v4810
    %v4820 = vmul.f32 %v4814, %v4811
    %v4821 = vmul.f32 %v4814, %v4812
    %v4822 = vmul.f32 %v4814, %v4813
    %v4823 = vadd.f32 %v4797, %v4815
    %v4824 = vadd.f32 %v4798, %v4816
    %v4825 = vadd.f32 %v4799, %v4817
    %v4826 = vadd.f32 %v4800, %v4818
    %v4827 = vadd.f32 %v4801, %v4819
    %v4828 = vadd.f32 %v4802, %v4820
    %v4829 = vadd.f32 %v4803, %v4821
    %v4830 = vadd.f32 %v4804, %v4822
    %s4831 = sld [smem:[#allocation8 + $0x64]]
    %v4832 = vld [vmem:[%s2880 + $0x1] sm:$0xff]
    %v4833 = vld [vmem:[%s2880 + $0x11] sm:$0xff]
    %v4834 = vld [vmem:[%s2880 + $0x21] sm:$0xff]
    %v4835 = vld [vmem:[%s2880 + $0x31] sm:$0xff]
    %v4836 = vld [vmem:[%s2880 + $0x41] sm:$0xff]
    %v4837 = vld [vmem:[%s2880 + $0x51] sm:$0xff]
    %v4838 = vld [vmem:[%s2880 + $0x61] sm:$0xff]
    %v4839 = vld [vmem:[%s2880 + $0x71] sm:$0xff]
    %v4840 = vstv %s4831
    %v4841 = vmul.f32 %v4840, %v4832
    %v4842 = vmul.f32 %v4840, %v4833
    %v4843 = vmul.f32 %v4840, %v4834
    %v4844 = vmul.f32 %v4840, %v4835
    %v4845 = vmul.f32 %v4840, %v4836
    %v4846 = vmul.f32 %v4840, %v4837
    %v4847 = vmul.f32 %v4840, %v4838
    %v4848 = vmul.f32 %v4840, %v4839
    %v4849 = vadd.f32 %v4823, %v4841
    %v4850 = vadd.f32 %v4824, %v4842
    %v4851 = vadd.f32 %v4825, %v4843
    %v4852 = vadd.f32 %v4826, %v4844
    %v4853 = vadd.f32 %v4827, %v4845
    %v4854 = vadd.f32 %v4828, %v4846
    %v4855 = vadd.f32 %v4829, %v4847
    %v4856 = vadd.f32 %v4830, %v4848
    %s4857 = sld [smem:[#allocation8 + $0x65]]
    %v4858 = vld [vmem:[%s2880 + $0x2] sm:$0xff]
    %v4859 = vld [vmem:[%s2880 + $0x12] sm:$0xff]
    %v4860 = vld [vmem:[%s2880 + $0x22] sm:$0xff]
    %v4861 = vld [vmem:[%s2880 + $0x32] sm:$0xff]
    %v4862 = vld [vmem:[%s2880 + $0x42] sm:$0xff]
    %v4863 = vld [vmem:[%s2880 + $0x52] sm:$0xff]
    %v4864 = vld [vmem:[%s2880 + $0x62] sm:$0xff]
    %v4865 = vld [vmem:[%s2880 + $0x72] sm:$0xff]
    %v4866 = vstv %s4857
    %v4867 = vmul.f32 %v4866, %v4858
    %v4868 = vmul.f32 %v4866, %v4859
    %v4869 = vmul.f32 %v4866, %v4860
    %v4870 = vmul.f32 %v4866, %v4861
    %v4871 = vmul.f32 %v4866, %v4862
    %v4872 = vmul.f32 %v4866, %v4863
    %v4873 = vmul.f32 %v4866, %v4864
    %v4874 = vmul.f32 %v4866, %v4865
    %v4875 = vadd.f32 %v4849, %v4867
    %v4876 = vadd.f32 %v4850, %v4868
    %v4877 = vadd.f32 %v4851, %v4869
    %v4878 = vadd.f32 %v4852, %v4870
    %v4879 = vadd.f32 %v4853, %v4871
    %v4880 = vadd.f32 %v4854, %v4872
    %v4881 = vadd.f32 %v4855, %v4873
    %v4882 = vadd.f32 %v4856, %v4874
    %s4883 = sld [smem:[#allocation8 + $0x66]]
    %v4884 = vld [vmem:[%s2163] sm:$0xff]
    %v4885 = vld [vmem:[%s2163 + $0x10] sm:$0xff]
    %v4886 = vld [vmem:[%s2163 + $0x20] sm:$0xff]
    %v4887 = vld [vmem:[%s2163 + $0x30] sm:$0xff]
    %v4888 = vld [vmem:[%s2163 + $0x40] sm:$0xff]
    %v4889 = vld [vmem:[%s2163 + $0x50] sm:$0xff]
    %v4890 = vld [vmem:[%s2163 + $0x60] sm:$0xff]
    %v4891 = vld [vmem:[%s2163 + $0x70] sm:$0xff]
    %v4892 = vstv %s4883
    %v4893 = vmul.f32 %v4892, %v4884
    %v4894 = vmul.f32 %v4892, %v4885
    %v4895 = vmul.f32 %v4892, %v4886
    %v4896 = vmul.f32 %v4892, %v4887
    %v4897 = vmul.f32 %v4892, %v4888
    %v4898 = vmul.f32 %v4892, %v4889
    %v4899 = vmul.f32 %v4892, %v4890
    %v4900 = vmul.f32 %v4892, %v4891
    %v4901 = vadd.f32 %v4875, %v4893
    %v4902 = vadd.f32 %v4876, %v4894
    %v4903 = vadd.f32 %v4877, %v4895
    %v4904 = vadd.f32 %v4878, %v4896
    %v4905 = vadd.f32 %v4879, %v4897
    %v4906 = vadd.f32 %v4880, %v4898
    %v4907 = vadd.f32 %v4881, %v4899
    %v4908 = vadd.f32 %v4882, %v4900
    %s4909 = sld [smem:[#allocation8 + $0x67]]
    %v4910 = vld [vmem:[%s2163 + $0x1] sm:$0xff]
    %v4911 = vld [vmem:[%s2163 + $0x11] sm:$0xff]
    %v4912 = vld [vmem:[%s2163 + $0x21] sm:$0xff]
    %v4913 = vld [vmem:[%s2163 + $0x31] sm:$0xff]
    %v4914 = vld [vmem:[%s2163 + $0x41] sm:$0xff]
    %v4915 = vld [vmem:[%s2163 + $0x51] sm:$0xff]
    %v4916 = vld [vmem:[%s2163 + $0x61] sm:$0xff]
    %v4917 = vld [vmem:[%s2163 + $0x71] sm:$0xff]
    %v4918 = vstv %s4909
    %v4919 = vmul.f32 %v4918, %v4910
    %v4920 = vmul.f32 %v4918, %v4911
    %v4921 = vmul.f32 %v4918, %v4912
    %v4922 = vmul.f32 %v4918, %v4913
    %v4923 = vmul.f32 %v4918, %v4914
    %v4924 = vmul.f32 %v4918, %v4915
    %v4925 = vmul.f32 %v4918, %v4916
    %v4926 = vmul.f32 %v4918, %v4917
    %v4927 = vadd.f32 %v4901, %v4919
    %v4928 = vadd.f32 %v4902, %v4920
    %v4929 = vadd.f32 %v4903, %v4921
    %v4930 = vadd.f32 %v4904, %v4922
    %v4931 = vadd.f32 %v4905, %v4923
    %v4932 = vadd.f32 %v4906, %v4924
    %v4933 = vadd.f32 %v4907, %v4925
    %v4934 = vadd.f32 %v4908, %v4926
    %s4935 = sld [smem:[#allocation8 + $0x68]]
    %v4936 = vld [vmem:[%s2163 + $0x2] sm:$0xff]
    %v4937 = vld [vmem:[%s2163 + $0x12] sm:$0xff]
    %v4938 = vld [vmem:[%s2163 + $0x22] sm:$0xff]
    %v4939 = vld [vmem:[%s2163 + $0x32] sm:$0xff]
    %v4940 = vld [vmem:[%s2163 + $0x42] sm:$0xff]
    %v4941 = vld [vmem:[%s2163 + $0x52] sm:$0xff]
    %v4942 = vld [vmem:[%s2163 + $0x62] sm:$0xff]
    %v4943 = vld [vmem:[%s2163 + $0x72] sm:$0xff]
    %v4944 = vstv %s4935
    %v4945 = vmul.f32 %v4944, %v4936
    %v4946 = vmul.f32 %v4944, %v4937
    %v4947 = vmul.f32 %v4944, %v4938
    %v4948 = vmul.f32 %v4944, %v4939
    %v4949 = vmul.f32 %v4944, %v4940
    %v4950 = vmul.f32 %v4944, %v4941
    %v4951 = vmul.f32 %v4944, %v4942
    %v4952 = vmul.f32 %v4944, %v4943
    %v4953 = vadd.f32 %v4927, %v4945
    %v4954 = vadd.f32 %v4928, %v4946
    %v4955 = vadd.f32 %v4929, %v4947
    %v4956 = vadd.f32 %v4930, %v4948
    %v4957 = vadd.f32 %v4931, %v4949
    %v4958 = vadd.f32 %v4932, %v4950
    %v4959 = vadd.f32 %v4933, %v4951
    %v4960 = vadd.f32 %v4934, %v4952
    %s4961 = sld [smem:[#allocation8 + $0x69]]
    %v4962 = vld [vmem:[%s3037] sm:$0xff]
    %v4963 = vld [vmem:[%s3037 + $0x10] sm:$0xff]
    %v4964 = vld [vmem:[%s3037 + $0x20] sm:$0xff]
    %v4965 = vld [vmem:[%s3037 + $0x30] sm:$0xff]
    %v4966 = vld [vmem:[%s3037 + $0x40] sm:$0xff]
    %v4967 = vld [vmem:[%s3037 + $0x50] sm:$0xff]
    %v4968 = vld [vmem:[%s3037 + $0x60] sm:$0xff]
    %v4969 = vld [vmem:[%s3037 + $0x70] sm:$0xff]
    %v4970 = vstv %s4961
    %v4971 = vmul.f32 %v4970, %v4962
    %v4972 = vmul.f32 %v4970, %v4963
    %v4973 = vmul.f32 %v4970, %v4964
    %v4974 = vmul.f32 %v4970, %v4965
    %v4975 = vmul.f32 %v4970, %v4966
    %v4976 = vmul.f32 %v4970, %v4967
    %v4977 = vmul.f32 %v4970, %v4968
    %v4978 = vmul.f32 %v4970, %v4969
    %v4979 = vadd.f32 %v4953, %v4971
    %v4980 = vadd.f32 %v4954, %v4972
    %v4981 = vadd.f32 %v4955, %v4973
    %v4982 = vadd.f32 %v4956, %v4974
    %v4983 = vadd.f32 %v4957, %v4975
    %v4984 = vadd.f32 %v4958, %v4976
    %v4985 = vadd.f32 %v4959, %v4977
    %v4986 = vadd.f32 %v4960, %v4978
    %s4987 = sld [smem:[#allocation8 + $0x6a]]
    %v4988 = vld [vmem:[%s3037 + $0x1] sm:$0xff]
    %v4989 = vld [vmem:[%s3037 + $0x11] sm:$0xff]
    %v4990 = vld [vmem:[%s3037 + $0x21] sm:$0xff]
    %v4991 = vld [vmem:[%s3037 + $0x31] sm:$0xff]
    %v4992 = vld [vmem:[%s3037 + $0x41] sm:$0xff]
    %v4993 = vld [vmem:[%s3037 + $0x51] sm:$0xff]
    %v4994 = vld [vmem:[%s3037 + $0x61] sm:$0xff]
    %v4995 = vld [vmem:[%s3037 + $0x71] sm:$0xff]
    %v4996 = vstv %s4987
    %v4997 = vmul.f32 %v4996, %v4988
    %v4998 = vmul.f32 %v4996, %v4989
    %v4999 = vmul.f32 %v4996, %v4990
    %v5000 = vmul.f32 %v4996, %v4991
    %v5001 = vmul.f32 %v4996, %v4992
    %v5002 = vmul.f32 %v4996, %v4993
    %v5003 = vmul.f32 %v4996, %v4994
    %v5004 = vmul.f32 %v4996, %v4995
    %v5005 = vadd.f32 %v4979, %v4997
    %v5006 = vadd.f32 %v4980, %v4998
    %v5007 = vadd.f32 %v4981, %v4999
    %v5008 = vadd.f32 %v4982, %v5000
    %v5009 = vadd.f32 %v4983, %v5001
    %v5010 = vadd.f32 %v4984, %v5002
    %v5011 = vadd.f32 %v4985, %v5003
    %v5012 = vadd.f32 %v4986, %v5004
    %s5013 = sld [smem:[#allocation8 + $0x6b]]
    %v5014 = vld [vmem:[%s3037 + $0x2] sm:$0xff]
    %v5015 = vld [vmem:[%s3037 + $0x12] sm:$0xff]
    %v5016 = vld [vmem:[%s3037 + $0x22] sm:$0xff]
    %v5017 = vld [vmem:[%s3037 + $0x32] sm:$0xff]
    %v5018 = vld [vmem:[%s3037 + $0x42] sm:$0xff]
    %v5019 = vld [vmem:[%s3037 + $0x52] sm:$0xff]
    %v5020 = vld [vmem:[%s3037 + $0x62] sm:$0xff]
    %v5021 = vld [vmem:[%s3037 + $0x72] sm:$0xff]
    %v5022 = vstv %s5013
    %v5023 = vmul.f32 %v5022, %v5014
    %v5024 = vmul.f32 %v5022, %v5015
    %v5025 = vmul.f32 %v5022, %v5016
    %v5026 = vmul.f32 %v5022, %v5017
    %v5027 = vmul.f32 %v5022, %v5018
    %v5028 = vmul.f32 %v5022, %v5019
    %v5029 = vmul.f32 %v5022, %v5020
    %v5030 = vmul.f32 %v5022, %v5021
    %v5031 = vadd.f32 %v5005, %v5023
    %v5032 = vadd.f32 %v5006, %v5024
    %v5033 = vadd.f32 %v5007, %v5025
    %v5034 = vadd.f32 %v5008, %v5026
    %v5035 = vadd.f32 %v5009, %v5027
    %v5036 = vadd.f32 %v5010, %v5028
    %v5037 = vadd.f32 %v5011, %v5029
    %v5038 = vadd.f32 %v5012, %v5030
    %s5039 = sld [smem:[#allocation9 + $0x2]]
    %v5040 = vstv %s5039
    %v5041 = vadd.f32 %v5031, %v5040
    %v5042 = vadd.f32 %v5032, %v5040
    %v5043 = vadd.f32 %v5033, %v5040
    %v5044 = vadd.f32 %v5034, %v5040
    %v5045 = vadd.f32 %v5035, %v5040
    %v5046 = vadd.f32 %v5036, %v5040
    %v5047 = vadd.f32 %v5037, %v5040
    %v5048 = vadd.f32 %v5038, %v5040
    %v5049 = vmax.f32 %v5041, 0.0
    %v5050 = vmax.f32 %v5042, 0.0
    %v5051 = vmax.f32 %v5043, 0.0
    %v5052 = vmax.f32 %v5044, 0.0
    %v5053 = vmax.f32 %v5045, 0.0
    %v5054 = vmax.f32 %v5046, 0.0
    %v5055 = vmax.f32 %v5047, 0.0
    %v5056 = vmax.f32 %v5048, 0.0
    %5057 = vst.msk [vmem:[#allocation3 + $0x80] sm:$0xff] %vm87, %v5049
    %5058 = vst.msk [vmem:[#allocation3 + $0x88] sm:$0xff] %vm87, %v5050
    %5059 = vst.msk [vmem:[#allocation3 + $0x90] sm:$0xff] %vm87, %v5051
    %5060 = vst.msk [vmem:[#allocation3 + $0x98] sm:$0xff] %vm87, %v5052
    %5061 = vst.msk [vmem:[#allocation3 + $0xa0] sm:$0xff] %vm87, %v5053
    %5062 = vst.msk [vmem:[#allocation3 + $0xa8] sm:$0xff] %vm87, %v5054
    %5063 = vst.msk [vmem:[#allocation3 + $0xb0] sm:$0xff] %vm87, %v5055
    %5064 = vst.msk [vmem:[#allocation3 + $0xb8] sm:$0xff] %vm87, %v5056
    %s5065 = sld [smem:[#allocation8 + $0x6c]]
    %v5066 = vld [vmem:[#allocation2] sm:$0xff]
    %v5067 = vld [vmem:[#allocation2 + $0x10] sm:$0xff]
    %v5068 = vld [vmem:[#allocation2 + $0x20] sm:$0xff]
    %v5069 = vld [vmem:[#allocation2 + $0x30] sm:$0xff]
    %v5070 = vld [vmem:[#allocation2 + $0x40] sm:$0xff]
    %v5071 = vld [vmem:[#allocation2 + $0x50] sm:$0xff]
    %v5072 = vld [vmem:[#allocation2 + $0x60] sm:$0xff]
    %v5073 = vld [vmem:[#allocation2 + $0x70] sm:$0xff]
    %v5074 = vstv %s5065
    %v5075 = vmul.f32 %v5074, %v5066
    %v5076 = vmul.f32 %v5074, %v5067
    %v5077 = vmul.f32 %v5074, %v5068
    %v5078 = vmul.f32 %v5074, %v5069
    %v5079 = vmul.f32 %v5074, %v5070
    %v5080 = vmul.f32 %v5074, %v5071
    %v5081 = vmul.f32 %v5074, %v5072
    %v5082 = vmul.f32 %v5074, %v5073
    %v5083 = vadd.f32 %v5075, 0.0
    %v5084 = vadd.f32 %v5076, 0.0
    %v5085 = vadd.f32 %v5077, 0.0
    %v5086 = vadd.f32 %v5078, 0.0
    %v5087 = vadd.f32 %v5079, 0.0
    %v5088 = vadd.f32 %v5080, 0.0
    %v5089 = vadd.f32 %v5081, 0.0
    %v5090 = vadd.f32 %v5082, 0.0
    %s5091 = sld [smem:[#allocation8 + $0x6d]]
    %v5092 = vld [vmem:[#allocation2 + $0x1] sm:$0xff]
    %v5093 = vld [vmem:[#allocation2 + $0x11] sm:$0xff]
    %v5094 = vld [vmem:[#allocation2 + $0x21] sm:$0xff]
    %v5095 = vld [vmem:[#allocation2 + $0x31] sm:$0xff]
    %v5096 = vld [vmem:[#allocation2 + $0x41] sm:$0xff]
    %v5097 = vld [vmem:[#allocation2 + $0x51] sm:$0xff]
    %v5098 = vld [vmem:[#allocation2 + $0x61] sm:$0xff]
    %v5099 = vld [vmem:[#allocation2 + $0x71] sm:$0xff]
    %v5100 = vstv %s5091
    %v5101 = vmul.f32 %v5100, %v5092
    %v5102 = vmul.f32 %v5100, %v5093
    %v5103 = vmul.f32 %v5100, %v5094
    %v5104 = vmul.f32 %v5100, %v5095
    %v5105 = vmul.f32 %v5100, %v5096
    %v5106 = vmul.f32 %v5100, %v5097
    %v5107 = vmul.f32 %v5100, %v5098
    %v5108 = vmul.f32 %v5100, %v5099
    %v5109 = vadd.f32 %v5083, %v5101
    %v5110 = vadd.f32 %v5084, %v5102
    %v5111 = vadd.f32 %v5085, %v5103
    %v5112 = vadd.f32 %v5086, %v5104
    %v5113 = vadd.f32 %v5087, %v5105
    %v5114 = vadd.f32 %v5088, %v5106
    %v5115 = vadd.f32 %v5089, %v5107
    %v5116 = vadd.f32 %v5090, %v5108
    %s5117 = sld [smem:[#allocation8 + $0x6e]]
    %v5118 = vld [vmem:[#allocation2 + $0x2] sm:$0xff]
    %v5119 = vld [vmem:[#allocation2 + $0x12] sm:$0xff]
    %v5120 = vld [vmem:[#allocation2 + $0x22] sm:$0xff]
    %v5121 = vld [vmem:[#allocation2 + $0x32] sm:$0xff]
    %v5122 = vld [vmem:[#allocation2 + $0x42] sm:$0xff]
    %v5123 = vld [vmem:[#allocation2 + $0x52] sm:$0xff]
    %v5124 = vld [vmem:[#allocation2 + $0x62] sm:$0xff]
    %v5125 = vld [vmem:[#allocation2 + $0x72] sm:$0xff]
    %v5126 = vstv %s5117
    %v5127 = vmul.f32 %v5126, %v5118
    %v5128 = vmul.f32 %v5126, %v5119
    %v5129 = vmul.f32 %v5126, %v5120
    %v5130 = vmul.f32 %v5126, %v5121
    %v5131 = vmul.f32 %v5126, %v5122
    %v5132 = vmul.f32 %v5126, %v5123
    %v5133 = vmul.f32 %v5126, %v5124
    %v5134 = vmul.f32 %v5126, %v5125
    %v5135 = vadd.f32 %v5109, %v5127
    %v5136 = vadd.f32 %v5110, %v5128
    %v5137 = vadd.f32 %v5111, %v5129
    %v5138 = vadd.f32 %v5112, %v5130
    %v5139 = vadd.f32 %v5113, %v5131
    %v5140 = vadd.f32 %v5114, %v5132
    %v5141 = vadd.f32 %v5115, %v5133
    %v5142 = vadd.f32 %v5116, %v5134
    %s5143 = sld [smem:[#allocation8 + $0x6f]]
    %v5144 = vld [vmem:[%s678] sm:$0xff]
    %v5145 = vld [vmem:[%s678 + $0x10] sm:$0xff]
    %v5146 = vld [vmem:[%s678 + $0x20] sm:$0xff]
    %v5147 = vld [vmem:[%s678 + $0x30] sm:$0xff]
    %v5148 = vld [vmem:[%s678 + $0x40] sm:$0xff]
    %v5149 = vld [vmem:[%s678 + $0x50] sm:$0xff]
    %v5150 = vld [vmem:[%s678 + $0x60] sm:$0xff]
    %v5151 = vld [vmem:[%s678 + $0x70] sm:$0xff]
    %v5152 = vstv %s5143
    %v5153 = vmul.f32 %v5152, %v5144
    %v5154 = vmul.f32 %v5152, %v5145
    %v5155 = vmul.f32 %v5152, %v5146
    %v5156 = vmul.f32 %v5152, %v5147
    %v5157 = vmul.f32 %v5152, %v5148
    %v5158 = vmul.f32 %v5152, %v5149
    %v5159 = vmul.f32 %v5152, %v5150
    %v5160 = vmul.f32 %v5152, %v5151
    %v5161 = vadd.f32 %v5135, %v5153
    %v5162 = vadd.f32 %v5136, %v5154
    %v5163 = vadd.f32 %v5137, %v5155
    %v5164 = vadd.f32 %v5138, %v5156
    %v5165 = vadd.f32 %v5139, %v5157
    %v5166 = vadd.f32 %v5140, %v5158
    %v5167 = vadd.f32 %v5141, %v5159
    %v5168 = vadd.f32 %v5142, %v5160
    %s5169 = sld [smem:[#allocation8 + $0x70]]
    %v5170 = vld [vmem:[%s678 + $0x1] sm:$0xff]
    %v5171 = vld [vmem:[%s678 + $0x11] sm:$0xff]
    %v5172 = vld [vmem:[%s678 + $0x21] sm:$0xff]
    %v5173 = vld [vmem:[%s678 + $0x31] sm:$0xff]
    %v5174 = vld [vmem:[%s678 + $0x41] sm:$0xff]
    %v5175 = vld [vmem:[%s678 + $0x51] sm:$0xff]
    %v5176 = vld [vmem:[%s678 + $0x61] sm:$0xff]
    %v5177 = vld [vmem:[%s678 + $0x71] sm:$0xff]
    %v5178 = vstv %s5169
    %v5179 = vmul.f32 %v5178, %v5170
    %v5180 = vmul.f32 %v5178, %v5171
    %v5181 = vmul.f32 %v5178, %v5172
    %v5182 = vmul.f32 %v5178, %v5173
    %v5183 = vmul.f32 %v5178, %v5174
    %v5184 = vmul.f32 %v5178, %v5175
    %v5185 = vmul.f32 %v5178, %v5176
    %v5186 = vmul.f32 %v5178, %v5177
    %v5187 = vadd.f32 %v5161, %v5179
    %v5188 = vadd.f32 %v5162, %v5180
    %v5189 = vadd.f32 %v5163, %v5181
    %v5190 = vadd.f32 %v5164, %v5182
    %v5191 = vadd.f32 %v5165, %v5183
    %v5192 = vadd.f32 %v5166, %v5184
    %v5193 = vadd.f32 %v5167, %v5185
    %v5194 = vadd.f32 %v5168, %v5186
    %s5195 = sld [smem:[#allocation8 + $0x71]]
    %v5196 = vld [vmem:[%s678 + $0x2] sm:$0xff]
    %v5197 = vld [vmem:[%s678 + $0x12] sm:$0xff]
    %v5198 = vld [vmem:[%s678 + $0x22] sm:$0xff]
    %v5199 = vld [vmem:[%s678 + $0x32] sm:$0xff]
    %v5200 = vld [vmem:[%s678 + $0x42] sm:$0xff]
    %v5201 = vld [vmem:[%s678 + $0x52] sm:$0xff]
    %v5202 = vld [vmem:[%s678 + $0x62] sm:$0xff]
    %v5203 = vld [vmem:[%s678 + $0x72] sm:$0xff]
    %v5204 = vstv %s5195
    %v5205 = vmul.f32 %v5204, %v5196
    %v5206 = vmul.f32 %v5204, %v5197
    %v5207 = vmul.f32 %v5204, %v5198
    %v5208 = vmul.f32 %v5204, %v5199
    %v5209 = vmul.f32 %v5204, %v5200
    %v5210 = vmul.f32 %v5204, %v5201
    %v5211 = vmul.f32 %v5204, %v5202
    %v5212 = vmul.f32 %v5204, %v5203
    %v5213 = vadd.f32 %v5187, %v5205
    %v5214 = vadd.f32 %v5188, %v5206
    %v5215 = vadd.f32 %v5189, %v5207
    %v5216 = vadd.f32 %v5190, %v5208
    %v5217 = vadd.f32 %v5191, %v5209
    %v5218 = vadd.f32 %v5192, %v5210
    %v5219 = vadd.f32 %v5193, %v5211
    %v5220 = vadd.f32 %v5194, %v5212
    %s5221 = sld [smem:[#allocation8 + $0x72]]
    %v5222 = vld [vmem:[%s2329] sm:$0xff]
    %v5223 = vld [vmem:[%s2329 + $0x10] sm:$0xff]
    %v5224 = vld [vmem:[%s2329 + $0x20] sm:$0xff]
    %v5225 = vld [vmem:[%s2329 + $0x30] sm:$0xff]
    %v5226 = vld [vmem:[%s2329 + $0x40] sm:$0xff]
    %v5227 = vld [vmem:[%s2329 + $0x50] sm:$0xff]
    %v5228 = vld [vmem:[%s2329 + $0x60] sm:$0xff]
    %v5229 = vld [vmem:[%s2329 + $0x70] sm:$0xff]
    %v5230 = vstv %s5221
    %v5231 = vmul.f32 %v5230, %v5222
    %v5232 = vmul.f32 %v5230, %v5223
    %v5233 = vmul.f32 %v5230, %v5224
    %v5234 = vmul.f32 %v5230, %v5225
    %v5235 = vmul.f32 %v5230, %v5226
    %v5236 = vmul.f32 %v5230, %v5227
    %v5237 = vmul.f32 %v5230, %v5228
    %v5238 = vmul.f32 %v5230, %v5229
    %v5239 = vadd.f32 %v5213, %v5231
    %v5240 = vadd.f32 %v5214, %v5232
    %v5241 = vadd.f32 %v5215, %v5233
    %v5242 = vadd.f32 %v5216, %v5234
    %v5243 = vadd.f32 %v5217, %v5235
    %v5244 = vadd.f32 %v5218, %v5236
    %v5245 = vadd.f32 %v5219, %v5237
    %v5246 = vadd.f32 %v5220, %v5238
    %s5247 = sld [smem:[#allocation8 + $0x73]]
    %v5248 = vld [vmem:[%s2329 + $0x1] sm:$0xff]
    %v5249 = vld [vmem:[%s2329 + $0x11] sm:$0xff]
    %v5250 = vld [vmem:[%s2329 + $0x21] sm:$0xff]
    %v5251 = vld [vmem:[%s2329 + $0x31] sm:$0xff]
    %v5252 = vld [vmem:[%s2329 + $0x41] sm:$0xff]
    %v5253 = vld [vmem:[%s2329 + $0x51] sm:$0xff]
    %v5254 = vld [vmem:[%s2329 + $0x61] sm:$0xff]
    %v5255 = vld [vmem:[%s2329 + $0x71] sm:$0xff]
    %v5256 = vstv %s5247
    %v5257 = vmul.f32 %v5256, %v5248
    %v5258 = vmul.f32 %v5256, %v5249
    %v5259 = vmul.f32 %v5256, %v5250
    %v5260 = vmul.f32 %v5256, %v5251
    %v5261 = vmul.f32 %v5256, %v5252
    %v5262 = vmul.f32 %v5256, %v5253
    %v5263 = vmul.f32 %v5256, %v5254
    %v5264 = vmul.f32 %v5256, %v5255
    %v5265 = vadd.f32 %v5239, %v5257
    %v5266 = vadd.f32 %v5240, %v5258
    %v5267 = vadd.f32 %v5241, %v5259
    %v5268 = vadd.f32 %v5242, %v5260
    %v5269 = vadd.f32 %v5243, %v5261
    %v5270 = vadd.f32 %v5244, %v5262
    %v5271 = vadd.f32 %v5245, %v5263
    %v5272 = vadd.f32 %v5246, %v5264
    %s5273 = sld [smem:[#allocation8 + $0x74]]
    %v5274 = vld [vmem:[%s2329 + $0x2] sm:$0xff]
    %v5275 = vld [vmem:[%s2329 + $0x12] sm:$0xff]
    %v5276 = vld [vmem:[%s2329 + $0x22] sm:$0xff]
    %v5277 = vld [vmem:[%s2329 + $0x32] sm:$0xff]
    %v5278 = vld [vmem:[%s2329 + $0x42] sm:$0xff]
    %v5279 = vld [vmem:[%s2329 + $0x52] sm:$0xff]
    %v5280 = vld [vmem:[%s2329 + $0x62] sm:$0xff]
    %v5281 = vld [vmem:[%s2329 + $0x72] sm:$0xff]
    %v5282 = vstv %s5273
    %v5283 = vmul.f32 %v5282, %v5274
    %v5284 = vmul.f32 %v5282, %v5275
    %v5285 = vmul.f32 %v5282, %v5276
    %v5286 = vmul.f32 %v5282, %v5277
    %v5287 = vmul.f32 %v5282, %v5278
    %v5288 = vmul.f32 %v5282, %v5279
    %v5289 = vmul.f32 %v5282, %v5280
    %v5290 = vmul.f32 %v5282, %v5281
    %v5291 = vadd.f32 %v5265, %v5283
    %v5292 = vadd.f32 %v5266, %v5284
    %v5293 = vadd.f32 %v5267, %v5285
    %v5294 = vadd.f32 %v5268, %v5286
    %v5295 = vadd.f32 %v5269, %v5287
    %v5296 = vadd.f32 %v5270, %v5288
    %v5297 = vadd.f32 %v5271, %v5289
    %v5298 = vadd.f32 %v5272, %v5290
    %s5299 = sld [smem:[#allocation8 + $0x75]]
    %v5300 = vld [vmem:[%s2408] sm:$0xff]
    %v5301 = vld [vmem:[%s2408 + $0x10] sm:$0xff]
    %v5302 = vld [vmem:[%s2408 + $0x20] sm:$0xff]
    %v5303 = vld [vmem:[%s2408 + $0x30] sm:$0xff]
    %v5304 = vld [vmem:[%s2408 + $0x40] sm:$0xff]
    %v5305 = vld [vmem:[%s2408 + $0x50] sm:$0xff]
    %v5306 = vld [vmem:[%s2408 + $0x60] sm:$0xff]
    %v5307 = vld [vmem:[%s2408 + $0x70] sm:$0xff]
    %v5308 = vstv %s5299
    %v5309 = vmul.f32 %v5308, %v5300
    %v5310 = vmul.f32 %v5308, %v5301
    %v5311 = vmul.f32 %v5308, %v5302
    %v5312 = vmul.f32 %v5308, %v5303
    %v5313 = vmul.f32 %v5308, %v5304
    %v5314 = vmul.f32 %v5308, %v5305
    %v5315 = vmul.f32 %v5308, %v5306
    %v5316 = vmul.f32 %v5308, %v5307
    %v5317 = vadd.f32 %v5291, %v5309
    %v5318 = vadd.f32 %v5292, %v5310
    %v5319 = vadd.f32 %v5293, %v5311
    %v5320 = vadd.f32 %v5294, %v5312
    %v5321 = vadd.f32 %v5295, %v5313
    %v5322 = vadd.f32 %v5296, %v5314
    %v5323 = vadd.f32 %v5297, %v5315
    %v5324 = vadd.f32 %v5298, %v5316
    %s5325 = sld [smem:[#allocation8 + $0x76]]
    %v5326 = vld [vmem:[%s2408 + $0x1] sm:$0xff]
    %v5327 = vld [vmem:[%s2408 + $0x11] sm:$0xff]
    %v5328 = vld [vmem:[%s2408 + $0x21] sm:$0xff]
    %v5329 = vld [vmem:[%s2408 + $0x31] sm:$0xff]
    %v5330 = vld [vmem:[%s2408 + $0x41] sm:$0xff]
    %v5331 = vld [vmem:[%s2408 + $0x51] sm:$0xff]
    %v5332 = vld [vmem:[%s2408 + $0x61] sm:$0xff]
    %v5333 = vld [vmem:[%s2408 + $0x71] sm:$0xff]
    %v5334 = vstv %s5325
    %v5335 = vmul.f32 %v5334, %v5326
    %v5336 = vmul.f32 %v5334, %v5327
    %v5337 = vmul.f32 %v5334, %v5328
    %v5338 = vmul.f32 %v5334, %v5329
    %v5339 = vmul.f32 %v5334, %v5330
    %v5340 = vmul.f32 %v5334, %v5331
    %v5341 = vmul.f32 %v5334, %v5332
    %v5342 = vmul.f32 %v5334, %v5333
    %v5343 = vadd.f32 %v5317, %v5335
    %v5344 = vadd.f32 %v5318, %v5336
    %v5345 = vadd.f32 %v5319, %v5337
    %v5346 = vadd.f32 %v5320, %v5338
    %v5347 = vadd.f32 %v5321, %v5339
    %v5348 = vadd.f32 %v5322, %v5340
    %v5349 = vadd.f32 %v5323, %v5341
    %v5350 = vadd.f32 %v5324, %v5342
    %s5351 = sld [smem:[#allocation8 + $0x77]]
    %v5352 = vld [vmem:[%s2408 + $0x2] sm:$0xff]
    %v5353 = vld [vmem:[%s2408 + $0x12] sm:$0xff]
    %v5354 = vld [vmem:[%s2408 + $0x22] sm:$0xff]
    %v5355 = vld [vmem:[%s2408 + $0x32] sm:$0xff]
    %v5356 = vld [vmem:[%s2408 + $0x42] sm:$0xff]
    %v5357 = vld [vmem:[%s2408 + $0x52] sm:$0xff]
    %v5358 = vld [vmem:[%s2408 + $0x62] sm:$0xff]
    %v5359 = vld [vmem:[%s2408 + $0x72] sm:$0xff]
    %v5360 = vstv %s5351
    %v5361 = vmul.f32 %v5360, %v5352
    %v5362 = vmul.f32 %v5360, %v5353
    %v5363 = vmul.f32 %v5360, %v5354
    %v5364 = vmul.f32 %v5360, %v5355
    %v5365 = vmul.f32 %v5360, %v5356
    %v5366 = vmul.f32 %v5360, %v5357
    %v5367 = vmul.f32 %v5360, %v5358
    %v5368 = vmul.f32 %v5360, %v5359
    %v5369 = vadd.f32 %v5343, %v5361
    %v5370 = vadd.f32 %v5344, %v5362
    %v5371 = vadd.f32 %v5345, %v5363
    %v5372 = vadd.f32 %v5346, %v5364
    %v5373 = vadd.f32 %v5347, %v5365
    %v5374 = vadd.f32 %v5348, %v5366
    %v5375 = vadd.f32 %v5349, %v5367
    %v5376 = vadd.f32 %v5350, %v5368
    %s5377 = sld [smem:[#allocation8 + $0x78]]
    %v5378 = vld [vmem:[%s1173] sm:$0xff]
    %v5379 = vld [vmem:[%s1173 + $0x10] sm:$0xff]
    %v5380 = vld [vmem:[%s1173 + $0x20] sm:$0xff]
    %v5381 = vld [vmem:[%s1173 + $0x30] sm:$0xff]
    %v5382 = vld [vmem:[%s1173 + $0x40] sm:$0xff]
    %v5383 = vld [vmem:[%s1173 + $0x50] sm:$0xff]
    %v5384 = vld [vmem:[%s1173 + $0x60] sm:$0xff]
    %v5385 = vld [vmem:[%s1173 + $0x70] sm:$0xff]
    %v5386 = vstv %s5377
    %v5387 = vmul.f32 %v5386, %v5378
    %v5388 = vmul.f32 %v5386, %v5379
    %v5389 = vmul.f32 %v5386, %v5380
    %v5390 = vmul.f32 %v5386, %v5381
    %v5391 = vmul.f32 %v5386, %v5382
    %v5392 = vmul.f32 %v5386, %v5383
    %v5393 = vmul.f32 %v5386, %v5384
    %v5394 = vmul.f32 %v5386, %v5385
    %v5395 = vadd.f32 %v5369, %v5387
    %v5396 = vadd.f32 %v5370, %v5388
    %v5397 = vadd.f32 %v5371, %v5389
    %v5398 = vadd.f32 %v5372, %v5390
    %v5399 = vadd.f32 %v5373, %v5391
    %v5400 = vadd.f32 %v5374, %v5392
    %v5401 = vadd.f32 %v5375, %v5393
    %v5402 = vadd.f32 %v5376, %v5394
    %s5403 = sld [smem:[#allocation8 + $0x79]]
    %v5404 = vld [vmem:[%s1173 + $0x1] sm:$0xff]
    %v5405 = vld [vmem:[%s1173 + $0x11] sm:$0xff]
    %v5406 = vld [vmem:[%s1173 + $0x21] sm:$0xff]
    %v5407 = vld [vmem:[%s1173 + $0x31] sm:$0xff]
    %v5408 = vld [vmem:[%s1173 + $0x41] sm:$0xff]
    %v5409 = vld [vmem:[%s1173 + $0x51] sm:$0xff]
    %v5410 = vld [vmem:[%s1173 + $0x61] sm:$0xff]
    %v5411 = vld [vmem:[%s1173 + $0x71] sm:$0xff]
    %v5412 = vstv %s5403
    %v5413 = vmul.f32 %v5412, %v5404
    %v5414 = vmul.f32 %v5412, %v5405
    %v5415 = vmul.f32 %v5412, %v5406
    %v5416 = vmul.f32 %v5412, %v5407
    %v5417 = vmul.f32 %v5412, %v5408
    %v5418 = vmul.f32 %v5412, %v5409
    %v5419 = vmul.f32 %v5412, %v5410
    %v5420 = vmul.f32 %v5412, %v5411
    %v5421 = vadd.f32 %v5395, %v5413
    %v5422 = vadd.f32 %v5396, %v5414
    %v5423 = vadd.f32 %v5397, %v5415
    %v5424 = vadd.f32 %v5398, %v5416
    %v5425 = vadd.f32 %v5399, %v5417
    %v5426 = vadd.f32 %v5400, %v5418
    %v5427 = vadd.f32 %v5401, %v5419
    %v5428 = vadd.f32 %v5402, %v5420
    %s5429 = sld [smem:[#allocation8 + $0x7a]]
    %v5430 = vld [vmem:[%s1173 + $0x2] sm:$0xff]
    %v5431 = vld [vmem:[%s1173 + $0x12] sm:$0xff]
    %v5432 = vld [vmem:[%s1173 + $0x22] sm:$0xff]
    %v5433 = vld [vmem:[%s1173 + $0x32] sm:$0xff]
    %v5434 = vld [vmem:[%s1173 + $0x42] sm:$0xff]
    %v5435 = vld [vmem:[%s1173 + $0x52] sm:$0xff]
    %v5436 = vld [vmem:[%s1173 + $0x62] sm:$0xff]
    %v5437 = vld [vmem:[%s1173 + $0x72] sm:$0xff]
    %v5438 = vstv %s5429
    %v5439 = vmul.f32 %v5438, %v5430
    %v5440 = vmul.f32 %v5438, %v5431
    %v5441 = vmul.f32 %v5438, %v5432
    %v5442 = vmul.f32 %v5438, %v5433
    %v5443 = vmul.f32 %v5438, %v5434
    %v5444 = vmul.f32 %v5438, %v5435
    %v5445 = vmul.f32 %v5438, %v5436
    %v5446 = vmul.f32 %v5438, %v5437
    %v5447 = vadd.f32 %v5421, %v5439
    %v5448 = vadd.f32 %v5422, %v5440
    %v5449 = vadd.f32 %v5423, %v5441
    %v5450 = vadd.f32 %v5424, %v5442
    %v5451 = vadd.f32 %v5425, %v5443
    %v5452 = vadd.f32 %v5426, %v5444
    %v5453 = vadd.f32 %v5427, %v5445
    %v5454 = vadd.f32 %v5428, %v5446
    %s5455 = sld [smem:[#allocation8 + $0x7b]]
    %v5456 = vld [vmem:[%s2565] sm:$0xff]
    %v5457 = vld [vmem:[%s2565 + $0x10] sm:$0xff]
    %v5458 = vld [vmem:[%s2565 + $0x20] sm:$0xff]
    %v5459 = vld [vmem:[%s2565 + $0x30] sm:$0xff]
    %v5460 = vld [vmem:[%s2565 + $0x40] sm:$0xff]
    %v5461 = vld [vmem:[%s2565 + $0x50] sm:$0xff]
    %v5462 = vld [vmem:[%s2565 + $0x60] sm:$0xff]
    %v5463 = vld [vmem:[%s2565 + $0x70] sm:$0xff]
    %v5464 = vstv %s5455
    %v5465 = vmul.f32 %v5464, %v5456
    %v5466 = vmul.f32 %v5464, %v5457
    %v5467 = vmul.f32 %v5464, %v5458
    %v5468 = vmul.f32 %v5464, %v5459
    %v5469 = vmul.f32 %v5464, %v5460
    %v5470 = vmul.f32 %v5464, %v5461
    %v5471 = vmul.f32 %v5464, %v5462
    %v5472 = vmul.f32 %v5464, %v5463
    %v5473 = vadd.f32 %v5447, %v5465
    %v5474 = vadd.f32 %v5448, %v5466
    %v5475 = vadd.f32 %v5449, %v5467
    %v5476 = vadd.f32 %v5450, %v5468
    %v5477 = vadd.f32 %v5451, %v5469
    %v5478 = vadd.f32 %v5452, %v5470
    %v5479 = vadd.f32 %v5453, %v5471
    %v5480 = vadd.f32 %v5454, %v5472
    %s5481 = sld [smem:[#allocation8 + $0x7c]]
    %v5482 = vld [vmem:[%s2565 + $0x1] sm:$0xff]
    %v5483 = vld [vmem:[%s2565 + $0x11] sm:$0xff]
    %v5484 = vld [vmem:[%s2565 + $0x21] sm:$0xff]
    %v5485 = vld [vmem:[%s2565 + $0x31] sm:$0xff]
    %v5486 = vld [vmem:[%s2565 + $0x41] sm:$0xff]
    %v5487 = vld [vmem:[%s2565 + $0x51] sm:$0xff]
    %v5488 = vld [vmem:[%s2565 + $0x61] sm:$0xff]
    %v5489 = vld [vmem:[%s2565 + $0x71] sm:$0xff]
    %v5490 = vstv %s5481
    %v5491 = vmul.f32 %v5490, %v5482
    %v5492 = vmul.f32 %v5490, %v5483
    %v5493 = vmul.f32 %v5490, %v5484
    %v5494 = vmul.f32 %v5490, %v5485
    %v5495 = vmul.f32 %v5490, %v5486
    %v5496 = vmul.f32 %v5490, %v5487
    %v5497 = vmul.f32 %v5490, %v5488
    %v5498 = vmul.f32 %v5490, %v5489
    %v5499 = vadd.f32 %v5473, %v5491
    %v5500 = vadd.f32 %v5474, %v5492
    %v5501 = vadd.f32 %v5475, %v5493
    %v5502 = vadd.f32 %v5476, %v5494
    %v5503 = vadd.f32 %v5477, %v5495
    %v5504 = vadd.f32 %v5478, %v5496
    %v5505 = vadd.f32 %v5479, %v5497
    %v5506 = vadd.f32 %v5480, %v5498
    %s5507 = sld [smem:[#allocation8 + $0x7d]]
    %v5508 = vld [vmem:[%s2565 + $0x2] sm:$0xff]
    %v5509 = vld [vmem:[%s2565 + $0x12] sm:$0xff]
    %v5510 = vld [vmem:[%s2565 + $0x22] sm:$0xff]
    %v5511 = vld [vmem:[%s2565 + $0x32] sm:$0xff]
    %v5512 = vld [vmem:[%s2565 + $0x42] sm:$0xff]
    %v5513 = vld [vmem:[%s2565 + $0x52] sm:$0xff]
    %v5514 = vld [vmem:[%s2565 + $0x62] sm:$0xff]
    %v5515 = vld [vmem:[%s2565 + $0x72] sm:$0xff]
    %v5516 = vstv %s5507
    %v5517 = vmul.f32 %v5516, %v5508
    %v5518 = vmul.f32 %v5516, %v5509
    %v5519 = vmul.f32 %v5516, %v5510
    %v5520 = vmul.f32 %v5516, %v5511
    %v5521 = vmul.f32 %v5516, %v5512
    %v5522 = vmul.f32 %v5516, %v5513
    %v5523 = vmul.f32 %v5516, %v5514
    %v5524 = vmul.f32 %v5516, %v5515
    %v5525 = vadd.f32 %v5499, %v5517
    %v5526 = vadd.f32 %v5500, %v5518
    %v5527 = vadd.f32 %v5501, %v5519
    %v5528 = vadd.f32 %v5502, %v5520
    %v5529 = vadd.f32 %v5503, %v5521
    %v5530 = vadd.f32 %v5504, %v5522
    %v5531 = vadd.f32 %v5505, %v5523
    %v5532 = vadd.f32 %v5506, %v5524
    %s5533 = sld [smem:[#allocation8 + $0x7e]]
    %v5534 = vld [vmem:[%s2644] sm:$0xff]
    %v5535 = vld [vmem:[%s2644 + $0x10] sm:$0xff]
    %v5536 = vld [vmem:[%s2644 + $0x20] sm:$0xff]
    %v5537 = vld [vmem:[%s2644 + $0x30] sm:$0xff]
    %v5538 = vld [vmem:[%s2644 + $0x40] sm:$0xff]
    %v5539 = vld [vmem:[%s2644 + $0x50] sm:$0xff]
    %v5540 = vld [vmem:[%s2644 + $0x60] sm:$0xff]
    %v5541 = vld [vmem:[%s2644 + $0x70] sm:$0xff]
    %v5542 = vstv %s5533
    %v5543 = vmul.f32 %v5542, %v5534
    %v5544 = vmul.f32 %v5542, %v5535
    %v5545 = vmul.f32 %v5542, %v5536
    %v5546 = vmul.f32 %v5542, %v5537
    %v5547 = vmul.f32 %v5542, %v5538
    %v5548 = vmul.f32 %v5542, %v5539
    %v5549 = vmul.f32 %v5542, %v5540
    %v5550 = vmul.f32 %v5542, %v5541
    %v5551 = vadd.f32 %v5525, %v5543
    %v5552 = vadd.f32 %v5526, %v5544
    %v5553 = vadd.f32 %v5527, %v5545
    %v5554 = vadd.f32 %v5528, %v5546
    %v5555 = vadd.f32 %v5529, %v5547
    %v5556 = vadd.f32 %v5530, %v5548
    %v5557 = vadd.f32 %v5531, %v5549
    %v5558 = vadd.f32 %v5532, %v5550
    %s5559 = sld [smem:[#allocation8 + $0x7f]]
    %v5560 = vld [vmem:[%s2644 + $0x1] sm:$0xff]
    %v5561 = vld [vmem:[%s2644 + $0x11] sm:$0xff]
    %v5562 = vld [vmem:[%s2644 + $0x21] sm:$0xff]
    %v5563 = vld [vmem:[%s2644 + $0x31] sm:$0xff]
    %v5564 = vld [vmem:[%s2644 + $0x41] sm:$0xff]
    %v5565 = vld [vmem:[%s2644 + $0x51] sm:$0xff]
    %v5566 = vld [vmem:[%s2644 + $0x61] sm:$0xff]
    %v5567 = vld [vmem:[%s2644 + $0x71] sm:$0xff]
    %v5568 = vstv %s5559
    %v5569 = vmul.f32 %v5568, %v5560
    %v5570 = vmul.f32 %v5568, %v5561
    %v5571 = vmul.f32 %v5568, %v5562
    %v5572 = vmul.f32 %v5568, %v5563
    %v5573 = vmul.f32 %v5568, %v5564
    %v5574 = vmul.f32 %v5568, %v5565
    %v5575 = vmul.f32 %v5568, %v5566
    %v5576 = vmul.f32 %v5568, %v5567
    %v5577 = vadd.f32 %v5551, %v5569
    %v5578 = vadd.f32 %v5552, %v5570
    %v5579 = vadd.f32 %v5553, %v5571
    %v5580 = vadd.f32 %v5554, %v5572
    %v5581 = vadd.f32 %v5555, %v5573
    %v5582 = vadd.f32 %v5556, %v5574
    %v5583 = vadd.f32 %v5557, %v5575
    %v5584 = vadd.f32 %v5558, %v5576
    %s5585 = sld [smem:[#allocation8 + $0x80]]
    %v5586 = vld [vmem:[%s2644 + $0x2] sm:$0xff]
    %v5587 = vld [vmem:[%s2644 + $0x12] sm:$0xff]
    %v5588 = vld [vmem:[%s2644 + $0x22] sm:$0xff]
    %v5589 = vld [vmem:[%s2644 + $0x32] sm:$0xff]
    %v5590 = vld [vmem:[%s2644 + $0x42] sm:$0xff]
    %v5591 = vld [vmem:[%s2644 + $0x52] sm:$0xff]
    %v5592 = vld [vmem:[%s2644 + $0x62] sm:$0xff]
    %v5593 = vld [vmem:[%s2644 + $0x72] sm:$0xff]
    %v5594 = vstv %s5585
    %v5595 = vmul.f32 %v5594, %v5586
    %v5596 = vmul.f32 %v5594, %v5587
    %v5597 = vmul.f32 %v5594, %v5588
    %v5598 = vmul.f32 %v5594, %v5589
    %v5599 = vmul.f32 %v5594, %v5590
    %v5600 = vmul.f32 %v5594, %v5591
    %v5601 = vmul.f32 %v5594, %v5592
    %v5602 = vmul.f32 %v5594, %v5593
    %v5603 = vadd.f32 %v5577, %v5595
    %v5604 = vadd.f32 %v5578, %v5596
    %v5605 = vadd.f32 %v5579, %v5597
    %v5606 = vadd.f32 %v5580, %v5598
    %v5607 = vadd.f32 %v5581, %v5599
    %v5608 = vadd.f32 %v5582, %v5600
    %v5609 = vadd.f32 %v5583, %v5601
    %v5610 = vadd.f32 %v5584, %v5602
    %s5611 = sld [smem:[#allocation8 + $0x81]]
    %v5612 = vld [vmem:[%s1668] sm:$0xff]
    %v5613 = vld [vmem:[%s1668 + $0x10] sm:$0xff]
    %v5614 = vld [vmem:[%s1668 + $0x20] sm:$0xff]
    %v5615 = vld [vmem:[%s1668 + $0x30] sm:$0xff]
    %v5616 = vld [vmem:[%s1668 + $0x40] sm:$0xff]
    %v5617 = vld [vmem:[%s1668 + $0x50] sm:$0xff]
    %v5618 = vld [vmem:[%s1668 + $0x60] sm:$0xff]
    %v5619 = vld [vmem:[%s1668 + $0x70] sm:$0xff]
    %v5620 = vstv %s5611
    %v5621 = vmul.f32 %v5620, %v5612
    %v5622 = vmul.f32 %v5620, %v5613
    %v5623 = vmul.f32 %v5620, %v5614
    %v5624 = vmul.f32 %v5620, %v5615
    %v5625 = vmul.f32 %v5620, %v5616
    %v5626 = vmul.f32 %v5620, %v5617
    %v5627 = vmul.f32 %v5620, %v5618
    %v5628 = vmul.f32 %v5620, %v5619
    %v5629 = vadd.f32 %v5603, %v5621
    %v5630 = vadd.f32 %v5604, %v5622
    %v5631 = vadd.f32 %v5605, %v5623
    %v5632 = vadd.f32 %v5606, %v5624
    %v5633 = vadd.f32 %v5607, %v5625
    %v5634 = vadd.f32 %v5608, %v5626
    %v5635 = vadd.f32 %v5609, %v5627
    %v5636 = vadd.f32 %v5610, %v5628
    %s5637 = sld [smem:[#allocation8 + $0x82]]
    %v5638 = vld [vmem:[%s1668 + $0x1] sm:$0xff]
    %v5639 = vld [vmem:[%s1668 + $0x11] sm:$0xff]
    %v5640 = vld [vmem:[%s1668 + $0x21] sm:$0xff]
    %v5641 = vld [vmem:[%s1668 + $0x31] sm:$0xff]
    %v5642 = vld [vmem:[%s1668 + $0x41] sm:$0xff]
    %v5643 = vld [vmem:[%s1668 + $0x51] sm:$0xff]
    %v5644 = vld [vmem:[%s1668 + $0x61] sm:$0xff]
    %v5645 = vld [vmem:[%s1668 + $0x71] sm:$0xff]
    %v5646 = vstv %s5637
    %v5647 = vmul.f32 %v5646, %v5638
    %v5648 = vmul.f32 %v5646, %v5639
    %v5649 = vmul.f32 %v5646, %v5640
    %v5650 = vmul.f32 %v5646, %v5641
    %v5651 = vmul.f32 %v5646, %v5642
    %v5652 = vmul.f32 %v5646, %v5643
    %v5653 = vmul.f32 %v5646, %v5644
    %v5654 = vmul.f32 %v5646, %v5645
    %v5655 = vadd.f32 %v5629, %v5647
    %v5656 = vadd.f32 %v5630, %v5648
    %v5657 = vadd.f32 %v5631, %v5649
    %v5658 = vadd.f32 %v5632, %v5650
    %v5659 = vadd.f32 %v5633, %v5651
    %v5660 = vadd.f32 %v5634, %v5652
    %v5661 = vadd.f32 %v5635, %v5653
    %v5662 = vadd.f32 %v5636, %v5654
    %s5663 = sld [smem:[#allocation8 + $0x83]]
    %v5664 = vld [vmem:[%s1668 + $0x2] sm:$0xff]
    %v5665 = vld [vmem:[%s1668 + $0x12] sm:$0xff]
    %v5666 = vld [vmem:[%s1668 + $0x22] sm:$0xff]
    %v5667 = vld [vmem:[%s1668 + $0x32] sm:$0xff]
    %v5668 = vld [vmem:[%s1668 + $0x42] sm:$0xff]
    %v5669 = vld [vmem:[%s1668 + $0x52] sm:$0xff]
    %v5670 = vld [vmem:[%s1668 + $0x62] sm:$0xff]
    %v5671 = vld [vmem:[%s1668 + $0x72] sm:$0xff]
    %v5672 = vstv %s5663
    %v5673 = vmul.f32 %v5672, %v5664
    %v5674 = vmul.f32 %v5672, %v5665
    %v5675 = vmul.f32 %v5672, %v5666
    %v5676 = vmul.f32 %v5672, %v5667
    %v5677 = vmul.f32 %v5672, %v5668
    %v5678 = vmul.f32 %v5672, %v5669
    %v5679 = vmul.f32 %v5672, %v5670
    %v5680 = vmul.f32 %v5672, %v5671
    %v5681 = vadd.f32 %v5655, %v5673
    %v5682 = vadd.f32 %v5656, %v5674
    %v5683 = vadd.f32 %v5657, %v5675
    %v5684 = vadd.f32 %v5658, %v5676
    %v5685 = vadd.f32 %v5659, %v5677
    %v5686 = vadd.f32 %v5660, %v5678
    %v5687 = vadd.f32 %v5661, %v5679
    %v5688 = vadd.f32 %v5662, %v5680
    %s5689 = sld [smem:[#allocation8 + $0x84]]
    %v5690 = vld [vmem:[%s2801] sm:$0xff]
    %v5691 = vld [vmem:[%s2801 + $0x10] sm:$0xff]
    %v5692 = vld [vmem:[%s2801 + $0x20] sm:$0xff]
    %v5693 = vld [vmem:[%s2801 + $0x30] sm:$0xff]
    %v5694 = vld [vmem:[%s2801 + $0x40] sm:$0xff]
    %v5695 = vld [vmem:[%s2801 + $0x50] sm:$0xff]
    %v5696 = vld [vmem:[%s2801 + $0x60] sm:$0xff]
    %v5697 = vld [vmem:[%s2801 + $0x70] sm:$0xff]
    %v5698 = vstv %s5689
    %v5699 = vmul.f32 %v5698, %v5690
    %v5700 = vmul.f32 %v5698, %v5691
    %v5701 = vmul.f32 %v5698, %v5692
    %v5702 = vmul.f32 %v5698, %v5693
    %v5703 = vmul.f32 %v5698, %v5694
    %v5704 = vmul.f32 %v5698, %v5695
    %v5705 = vmul.f32 %v5698, %v5696
    %v5706 = vmul.f32 %v5698, %v5697
    %v5707 = vadd.f32 %v5681, %v5699
    %v5708 = vadd.f32 %v5682, %v5700
    %v5709 = vadd.f32 %v5683, %v5701
    %v5710 = vadd.f32 %v5684, %v5702
    %v5711 = vadd.f32 %v5685, %v5703
    %v5712 = vadd.f32 %v5686, %v5704
    %v5713 = vadd.f32 %v5687, %v5705
    %v5714 = vadd.f32 %v5688, %v5706
    %s5715 = sld [smem:[#allocation8 + $0x85]]
    %v5716 = vld [vmem:[%s2801 + $0x1] sm:$0xff]
    %v5717 = vld [vmem:[%s2801 + $0x11] sm:$0xff]
    %v5718 = vld [vmem:[%s2801 + $0x21] sm:$0xff]
    %v5719 = vld [vmem:[%s2801 + $0x31] sm:$0xff]
    %v5720 = vld [vmem:[%s2801 + $0x41] sm:$0xff]
    %v5721 = vld [vmem:[%s2801 + $0x51] sm:$0xff]
    %v5722 = vld [vmem:[%s2801 + $0x61] sm:$0xff]
    %v5723 = vld [vmem:[%s2801 + $0x71] sm:$0xff]
    %v5724 = vstv %s5715
    %v5725 = vmul.f32 %v5724, %v5716
    %v5726 = vmul.f32 %v5724, %v5717
    %v5727 = vmul.f32 %v5724, %v5718
    %v5728 = vmul.f32 %v5724, %v5719
    %v5729 = vmul.f32 %v5724, %v5720
    %v5730 = vmul.f32 %v5724, %v5721
    %v5731 = vmul.f32 %v5724, %v5722
    %v5732 = vmul.f32 %v5724, %v5723
    %v5733 = vadd.f32 %v5707, %v5725
    %v5734 = vadd.f32 %v5708, %v5726
    %v5735 = vadd.f32 %v5709, %v5727
    %v5736 = vadd.f32 %v5710, %v5728
    %v5737 = vadd.f32 %v5711, %v5729
    %v5738 = vadd.f32 %v5712, %v5730
    %v5739 = vadd.f32 %v5713, %v5731
    %v5740 = vadd.f32 %v5714, %v5732
    %s5741 = sld [smem:[#allocation8 + $0x86]]
    %v5742 = vld [vmem:[%s2801 + $0x2] sm:$0xff]
    %v5743 = vld [vmem:[%s2801 + $0x12] sm:$0xff]
    %v5744 = vld [vmem:[%s2801 + $0x22] sm:$0xff]
    %v5745 = vld [vmem:[%s2801 + $0x32] sm:$0xff]
    %v5746 = vld [vmem:[%s2801 + $0x42] sm:$0xff]
    %v5747 = vld [vmem:[%s2801 + $0x52] sm:$0xff]
    %v5748 = vld [vmem:[%s2801 + $0x62] sm:$0xff]
    %v5749 = vld [vmem:[%s2801 + $0x72] sm:$0xff]
    %v5750 = vstv %s5741
    %v5751 = vmul.f32 %v5750, %v5742
    %v5752 = vmul.f32 %v5750, %v5743
    %v5753 = vmul.f32 %v5750, %v5744
    %v5754 = vmul.f32 %v5750, %v5745
    %v5755 = vmul.f32 %v5750, %v5746
    %v5756 = vmul.f32 %v5750, %v5747
    %v5757 = vmul.f32 %v5750, %v5748
    %v5758 = vmul.f32 %v5750, %v5749
    %v5759 = vadd.f32 %v5733, %v5751
    %v5760 = vadd.f32 %v5734, %v5752
    %v5761 = vadd.f32 %v5735, %v5753
    %v5762 = vadd.f32 %v5736, %v5754
    %v5763 = vadd.f32 %v5737, %v5755
    %v5764 = vadd.f32 %v5738, %v5756
    %v5765 = vadd.f32 %v5739, %v5757
    %v5766 = vadd.f32 %v5740, %v5758
    %s5767 = sld [smem:[#allocation8 + $0x87]]
    %v5768 = vld [vmem:[%s2880] sm:$0xff]
    %v5769 = vld [vmem:[%s2880 + $0x10] sm:$0xff]
    %v5770 = vld [vmem:[%s2880 + $0x20] sm:$0xff]
    %v5771 = vld [vmem:[%s2880 + $0x30] sm:$0xff]
    %v5772 = vld [vmem:[%s2880 + $0x40] sm:$0xff]
    %v5773 = vld [vmem:[%s2880 + $0x50] sm:$0xff]
    %v5774 = vld [vmem:[%s2880 + $0x60] sm:$0xff]
    %v5775 = vld [vmem:[%s2880 + $0x70] sm:$0xff]
    %v5776 = vstv %s5767
    %v5777 = vmul.f32 %v5776, %v5768
    %v5778 = vmul.f32 %v5776, %v5769
    %v5779 = vmul.f32 %v5776, %v5770
    %v5780 = vmul.f32 %v5776, %v5771
    %v5781 = vmul.f32 %v5776, %v5772
    %v5782 = vmul.f32 %v5776, %v5773
    %v5783 = vmul.f32 %v5776, %v5774
    %v5784 = vmul.f32 %v5776, %v5775
    %v5785 = vadd.f32 %v5759, %v5777
    %v5786 = vadd.f32 %v5760, %v5778
    %v5787 = vadd.f32 %v5761, %v5779
    %v5788 = vadd.f32 %v5762, %v5780
    %v5789 = vadd.f32 %v5763, %v5781
    %v5790 = vadd.f32 %v5764, %v5782
    %v5791 = vadd.f32 %v5765, %v5783
    %v5792 = vadd.f32 %v5766, %v5784
    %s5793 = sld [smem:[#allocation8 + $0x88]]
    %v5794 = vld [vmem:[%s2880 + $0x1] sm:$0xff]
    %v5795 = vld [vmem:[%s2880 + $0x11] sm:$0xff]
    %v5796 = vld [vmem:[%s2880 + $0x21] sm:$0xff]
    %v5797 = vld [vmem:[%s2880 + $0x31] sm:$0xff]
    %v5798 = vld [vmem:[%s2880 + $0x41] sm:$0xff]
    %v5799 = vld [vmem:[%s2880 + $0x51] sm:$0xff]
    %v5800 = vld [vmem:[%s2880 + $0x61] sm:$0xff]
    %v5801 = vld [vmem:[%s2880 + $0x71] sm:$0xff]
    %v5802 = vstv %s5793
    %v5803 = vmul.f32 %v5802, %v5794
    %v5804 = vmul.f32 %v5802, %v5795
    %v5805 = vmul.f32 %v5802, %v5796
    %v5806 = vmul.f32 %v5802, %v5797
    %v5807 = vmul.f32 %v5802, %v5798
    %v5808 = vmul.f32 %v5802, %v5799
    %v5809 = vmul.f32 %v5802, %v5800
    %v5810 = vmul.f32 %v5802, %v5801
    %v5811 = vadd.f32 %v5785, %v5803
    %v5812 = vadd.f32 %v5786, %v5804
    %v5813 = vadd.f32 %v5787, %v5805
    %v5814 = vadd.f32 %v5788, %v5806
    %v5815 = vadd.f32 %v5789, %v5807
    %v5816 = vadd.f32 %v5790, %v5808
    %v5817 = vadd.f32 %v5791, %v5809
    %v5818 = vadd.f32 %v5792, %v5810
    %s5819 = sld [smem:[#allocation8 + $0x89]]
    %v5820 = vld [vmem:[%s2880 + $0x2] sm:$0xff]
    %v5821 = vld [vmem:[%s2880 + $0x12] sm:$0xff]
    %v5822 = vld [vmem:[%s2880 + $0x22] sm:$0xff]
    %v5823 = vld [vmem:[%s2880 + $0x32] sm:$0xff]
    %v5824 = vld [vmem:[%s2880 + $0x42] sm:$0xff]
    %v5825 = vld [vmem:[%s2880 + $0x52] sm:$0xff]
    %v5826 = vld [vmem:[%s2880 + $0x62] sm:$0xff]
    %v5827 = vld [vmem:[%s2880 + $0x72] sm:$0xff]
    %v5828 = vstv %s5819
    %v5829 = vmul.f32 %v5828, %v5820
    %v5830 = vmul.f32 %v5828, %v5821
    %v5831 = vmul.f32 %v5828, %v5822
    %v5832 = vmul.f32 %v5828, %v5823
    %v5833 = vmul.f32 %v5828, %v5824
    %v5834 = vmul.f32 %v5828, %v5825
    %v5835 = vmul.f32 %v5828, %v5826
    %v5836 = vmul.f32 %v5828, %v5827
    %v5837 = vadd.f32 %v5811, %v5829
    %v5838 = vadd.f32 %v5812, %v5830
    %v5839 = vadd.f32 %v5813, %v5831
    %v5840 = vadd.f32 %v5814, %v5832
    %v5841 = vadd.f32 %v5815, %v5833
    %v5842 = vadd.f32 %v5816, %v5834
    %v5843 = vadd.f32 %v5817, %v5835
    %v5844 = vadd.f32 %v5818, %v5836
    %s5845 = sld [smem:[#allocation8 + $0x8a]]
    %v5846 = vld [vmem:[%s2163] sm:$0xff]
    %v5847 = vld [vmem:[%s2163 + $0x10] sm:$0xff]
    %v5848 = vld [vmem:[%s2163 + $0x20] sm:$0xff]
    %v5849 = vld [vmem:[%s2163 + $0x30] sm:$0xff]
    %v5850 = vld [vmem:[%s2163 + $0x40] sm:$0xff]
    %v5851 = vld [vmem:[%s2163 + $0x50] sm:$0xff]
    %v5852 = vld [vmem:[%s2163 + $0x60] sm:$0xff]
    %v5853 = vld [vmem:[%s2163 + $0x70] sm:$0xff]
    %v5854 = vstv %s5845
    %v5855 = vmul.f32 %v5854, %v5846
    %v5856 = vmul.f32 %v5854, %v5847
    %v5857 = vmul.f32 %v5854, %v5848
    %v5858 = vmul.f32 %v5854, %v5849
    %v5859 = vmul.f32 %v5854, %v5850
    %v5860 = vmul.f32 %v5854, %v5851
    %v5861 = vmul.f32 %v5854, %v5852
    %v5862 = vmul.f32 %v5854, %v5853
    %v5863 = vadd.f32 %v5837, %v5855
    %v5864 = vadd.f32 %v5838, %v5856
    %v5865 = vadd.f32 %v5839, %v5857
    %v5866 = vadd.f32 %v5840, %v5858
    %v5867 = vadd.f32 %v5841, %v5859
    %v5868 = vadd.f32 %v5842, %v5860
    %v5869 = vadd.f32 %v5843, %v5861
    %v5870 = vadd.f32 %v5844, %v5862
    %s5871 = sld [smem:[#allocation8 + $0x8b]]
    %v5872 = vld [vmem:[%s2163 + $0x1] sm:$0xff]
    %v5873 = vld [vmem:[%s2163 + $0x11] sm:$0xff]
    %v5874 = vld [vmem:[%s2163 + $0x21] sm:$0xff]
    %v5875 = vld [vmem:[%s2163 + $0x31] sm:$0xff]
    %v5876 = vld [vmem:[%s2163 + $0x41] sm:$0xff]
    %v5877 = vld [vmem:[%s2163 + $0x51] sm:$0xff]
    %v5878 = vld [vmem:[%s2163 + $0x61] sm:$0xff]
    %v5879 = vld [vmem:[%s2163 + $0x71] sm:$0xff]
    %v5880 = vstv %s5871
    %v5881 = vmul.f32 %v5880, %v5872
    %v5882 = vmul.f32 %v5880, %v5873
    %v5883 = vmul.f32 %v5880, %v5874
    %v5884 = vmul.f32 %v5880, %v5875
    %v5885 = vmul.f32 %v5880, %v5876
    %v5886 = vmul.f32 %v5880, %v5877
    %v5887 = vmul.f32 %v5880, %v5878
    %v5888 = vmul.f32 %v5880, %v5879
    %v5889 = vadd.f32 %v5863, %v5881
    %v5890 = vadd.f32 %v5864, %v5882
    %v5891 = vadd.f32 %v5865, %v5883
    %v5892 = vadd.f32 %v5866, %v5884
    %v5893 = vadd.f32 %v5867, %v5885
    %v5894 = vadd.f32 %v5868, %v5886
    %v5895 = vadd.f32 %v5869, %v5887
    %v5896 = vadd.f32 %v5870, %v5888
    %s5897 = sld [smem:[#allocation8 + $0x8c]]
    %v5898 = vld [vmem:[%s2163 + $0x2] sm:$0xff]
    %v5899 = vld [vmem:[%s2163 + $0x12] sm:$0xff]
    %v5900 = vld [vmem:[%s2163 + $0x22] sm:$0xff]
    %v5901 = vld [vmem:[%s2163 + $0x32] sm:$0xff]
    %v5902 = vld [vmem:[%s2163 + $0x42] sm:$0xff]
    %v5903 = vld [vmem:[%s2163 + $0x52] sm:$0xff]
    %v5904 = vld [vmem:[%s2163 + $0x62] sm:$0xff]
    %v5905 = vld [vmem:[%s2163 + $0x72] sm:$0xff]
    %v5906 = vstv %s5897
    %v5907 = vmul.f32 %v5906, %v5898
    %v5908 = vmul.f32 %v5906, %v5899
    %v5909 = vmul.f32 %v5906, %v5900
    %v5910 = vmul.f32 %v5906, %v5901
    %v5911 = vmul.f32 %v5906, %v5902
    %v5912 = vmul.f32 %v5906, %v5903
    %v5913 = vmul.f32 %v5906, %v5904
    %v5914 = vmul.f32 %v5906, %v5905
    %v5915 = vadd.f32 %v5889, %v5907
    %v5916 = vadd.f32 %v5890, %v5908
    %v5917 = vadd.f32 %v5891, %v5909
    %v5918 = vadd.f32 %v5892, %v5910
    %v5919 = vadd.f32 %v5893, %v5911
    %v5920 = vadd.f32 %v5894, %v5912
    %v5921 = vadd.f32 %v5895, %v5913
    %v5922 = vadd.f32 %v5896, %v5914
    %s5923 = sld [smem:[#allocation8 + $0x8d]]
    %v5924 = vld [vmem:[%s3037] sm:$0xff]
    %v5925 = vld [vmem:[%s3037 + $0x10] sm:$0xff]
    %v5926 = vld [vmem:[%s3037 + $0x20] sm:$0xff]
    %v5927 = vld [vmem:[%s3037 + $0x30] sm:$0xff]
    %v5928 = vld [vmem:[%s3037 + $0x40] sm:$0xff]
    %v5929 = vld [vmem:[%s3037 + $0x50] sm:$0xff]
    %v5930 = vld [vmem:[%s3037 + $0x60] sm:$0xff]
    %v5931 = vld [vmem:[%s3037 + $0x70] sm:$0xff]
    %v5932 = vstv %s5923
    %v5933 = vmul.f32 %v5932, %v5924
    %v5934 = vmul.f32 %v5932, %v5925
    %v5935 = vmul.f32 %v5932, %v5926
    %v5936 = vmul.f32 %v5932, %v5927
    %v5937 = vmul.f32 %v5932, %v5928
    %v5938 = vmul.f32 %v5932, %v5929
    %v5939 = vmul.f32 %v5932, %v5930
    %v5940 = vmul.f32 %v5932, %v5931
    %v5941 = vadd.f32 %v5915, %v5933
    %v5942 = vadd.f32 %v5916, %v5934
    %v5943 = vadd.f32 %v5917, %v5935
    %v5944 = vadd.f32 %v5918, %v5936
    %v5945 = vadd.f32 %v5919, %v5937
    %v5946 = vadd.f32 %v5920, %v5938
    %v5947 = vadd.f32 %v5921, %v5939
    %v5948 = vadd.f32 %v5922, %v5940
    %s5949 = sld [smem:[#allocation8 + $0x8e]]
    %v5950 = vld [vmem:[%s3037 + $0x1] sm:$0xff]
    %v5951 = vld [vmem:[%s3037 + $0x11] sm:$0xff]
    %v5952 = vld [vmem:[%s3037 + $0x21] sm:$0xff]
    %v5953 = vld [vmem:[%s3037 + $0x31] sm:$0xff]
    %v5954 = vld [vmem:[%s3037 + $0x41] sm:$0xff]
    %v5955 = vld [vmem:[%s3037 + $0x51] sm:$0xff]
    %v5956 = vld [vmem:[%s3037 + $0x61] sm:$0xff]
    %v5957 = vld [vmem:[%s3037 + $0x71] sm:$0xff]
    %v5958 = vstv %s5949
    %v5959 = vmul.f32 %v5958, %v5950
    %v5960 = vmul.f32 %v5958, %v5951
    %v5961 = vmul.f32 %v5958, %v5952
    %v5962 = vmul.f32 %v5958, %v5953
    %v5963 = vmul.f32 %v5958, %v5954
    %v5964 = vmul.f32 %v5958, %v5955
    %v5965 = vmul.f32 %v5958, %v5956
    %v5966 = vmul.f32 %v5958, %v5957
    %v5967 = vadd.f32 %v5941, %v5959
    %v5968 = vadd.f32 %v5942, %v5960
    %v5969 = vadd.f32 %v5943, %v5961
    %v5970 = vadd.f32 %v5944, %v5962
    %v5971 = vadd.f32 %v5945, %v5963
    %v5972 = vadd.f32 %v5946, %v5964
    %v5973 = vadd.f32 %v5947, %v5965
    %v5974 = vadd.f32 %v5948, %v5966
    %s5975 = sld [smem:[#allocation8 + $0x8f]]
    %v5976 = vld [vmem:[%s3037 + $0x2] sm:$0xff]
    %v5977 = vld [vmem:[%s3037 + $0x12] sm:$0xff]
    %v5978 = vld [vmem:[%s3037 + $0x22] sm:$0xff]
    %v5979 = vld [vmem:[%s3037 + $0x32] sm:$0xff]
    %v5980 = vld [vmem:[%s3037 + $0x42] sm:$0xff]
    %v5981 = vld [vmem:[%s3037 + $0x52] sm:$0xff]
    %v5982 = vld [vmem:[%s3037 + $0x62] sm:$0xff]
    %v5983 = vld [vmem:[%s3037 + $0x72] sm:$0xff]
    %v5984 = vstv %s5975
    %v5985 = vmul.f32 %v5984, %v5976
    %v5986 = vmul.f32 %v5984, %v5977
    %v5987 = vmul.f32 %v5984, %v5978
    %v5988 = vmul.f32 %v5984, %v5979
    %v5989 = vmul.f32 %v5984, %v5980
    %v5990 = vmul.f32 %v5984, %v5981
    %v5991 = vmul.f32 %v5984, %v5982
    %v5992 = vmul.f32 %v5984, %v5983
    %v5993 = vadd.f32 %v5967, %v5985
    %v5994 = vadd.f32 %v5968, %v5986
    %v5995 = vadd.f32 %v5969, %v5987
    %v5996 = vadd.f32 %v5970, %v5988
    %v5997 = vadd.f32 %v5971, %v5989
    %v5998 = vadd.f32 %v5972, %v5990
    %v5999 = vadd.f32 %v5973, %v5991
    %v6000 = vadd.f32 %v5974, %v5992
    %s6001 = sld [smem:[#allocation9 + $0x3]]
    %v6002 = vstv %s6001
    %v6003 = vadd.f32 %v5993, %v6002
    %v6004 = vadd.f32 %v5994, %v6002
    %v6005 = vadd.f32 %v5995, %v6002
    %v6006 = vadd.f32 %v5996, %v6002
    %v6007 = vadd.f32 %v5997, %v6002
    %v6008 = vadd.f32 %v5998, %v6002
    %v6009 = vadd.f32 %v5999, %v6002
    %v6010 = vadd.f32 %v6000, %v6002
    %v6011 = vmax.f32 %v6003, 0.0
    %v6012 = vmax.f32 %v6004, 0.0
    %v6013 = vmax.f32 %v6005, 0.0
    %v6014 = vmax.f32 %v6006, 0.0
    %v6015 = vmax.f32 %v6007, 0.0
    %v6016 = vmax.f32 %v6008, 0.0
    %v6017 = vmax.f32 %v6009, 0.0
    %v6018 = vmax.f32 %v6010, 0.0
    %6019 = vst.msk [vmem:[#allocation3 + $0xc0] sm:$0xff] %vm87, %v6011
    %6020 = vst.msk [vmem:[#allocation3 + $0xc8] sm:$0xff] %vm87, %v6012
    %6021 = vst.msk [vmem:[#allocation3 + $0xd0] sm:$0xff] %vm87, %v6013
    %6022 = vst.msk [vmem:[#allocation3 + $0xd8] sm:$0xff] %vm87, %v6014
    %6023 = vst.msk [vmem:[#allocation3 + $0xe0] sm:$0xff] %vm87, %v6015
    %6024 = vst.msk [vmem:[#allocation3 + $0xe8] sm:$0xff] %vm87, %v6016
    %6025 = vst.msk [vmem:[#allocation3 + $0xf0] sm:$0xff] %vm87, %v6017
    %6026 = vst.msk [vmem:[#allocation3 + $0xf8] sm:$0xff] %vm87, %v6018
    %v6027 = vld [vmem:[#allocation3] sm:$0xff]
    %v6028 = vld [vmem:[#allocation3 + $0x8] sm:$0xff]
    %v6029 = vld [vmem:[#allocation3 + $0x10] sm:$0xff]
    %v6030 = vld [vmem:[#allocation3 + $0x18] sm:$0xff]
    %v6031 = vld [vmem:[#allocation3 + $0x20] sm:$0xff]
    %v6032 = vld [vmem:[#allocation3 + $0x28] sm:$0xff]
    %v6033 = vld [vmem:[#allocation3 + $0x30] sm:$0xff]
    %v6034 = vld [vmem:[#allocation3 + $0x38] sm:$0xff]
    %v6035 = vld [vmem:[#allocation3 + $0x40] sm:$0xff]
    %v6036 = vld [vmem:[#allocation3 + $0x48] sm:$0xff]
    %v6037 = vld [vmem:[#allocation3 + $0x50] sm:$0xff]
    %v6038 = vld [vmem:[#allocation3 + $0x58] sm:$0xff]
    %v6039 = vld [vmem:[#allocation3 + $0x60] sm:$0xff]
    %v6040 = vld [vmem:[#allocation3 + $0x68] sm:$0xff]
    %v6041 = vld [vmem:[#allocation3 + $0x70] sm:$0xff]
    %v6042 = vld [vmem:[#allocation3 + $0x78] sm:$0xff]
    %v6043 = vld [vmem:[#allocation3 + $0x80] sm:$0xff]
    %v6044 = vld [vmem:[#allocation3 + $0x88] sm:$0xff]
    %v6045 = vld [vmem:[#allocation3 + $0x90] sm:$0xff]
    %v6046 = vld [vmem:[#allocation3 + $0x98] sm:$0xff]
    %v6047 = vld [vmem:[#allocation3 + $0xa0] sm:$0xff]
    %v6048 = vld [vmem:[#allocation3 + $0xa8] sm:$0xff]
    %v6049 = vld [vmem:[#allocation3 + $0xb0] sm:$0xff]
    %v6050 = vld [vmem:[#allocation3 + $0xb8] sm:$0xff]
    %v6051 = vld [vmem:[#allocation3 + $0xc0] sm:$0xff]
    %v6052 = vld [vmem:[#allocation3 + $0xc8] sm:$0xff]
    %v6053 = vld [vmem:[#allocation3 + $0xd0] sm:$0xff]
    %v6054 = vld [vmem:[#allocation3 + $0xd8] sm:$0xff]
    %v6055 = vld [vmem:[#allocation3 + $0xe0] sm:$0xff]
    %v6056 = vld [vmem:[#allocation3 + $0xe8] sm:$0xff]
    %v6057 = vld [vmem:[#allocation3 + $0xf0] sm:$0xff]
    %v6058 = vld [vmem:[#allocation3 + $0xf8] sm:$0xff]
    %v6059 = vpack.c.bf16 %v6028, %v6027
    %v6060 = vpack.c.bf16 %v6030, %v6029
    %v6061 = vpack.c.bf16 %v6032, %v6031
    %v6062 = vpack.c.bf16 %v6034, %v6033
    %v6063 = vpack.c.bf16 %v6036, %v6035
    %v6064 = vpack.c.bf16 %v6038, %v6037
    %v6065 = vpack.c.bf16 %v6040, %v6039
    %v6066 = vpack.c.bf16 %v6042, %v6041
    %v6067 = vpack.c.bf16 %v6044, %v6043
    %v6068 = vpack.c.bf16 %v6046, %v6045
    %v6069 = vpack.c.bf16 %v6048, %v6047
    %v6070 = vpack.c.bf16 %v6050, %v6049
    %v6071 = vpack.c.bf16 %v6052, %v6051
    %v6072 = vpack.c.bf16 %v6054, %v6053
    %v6073 = vpack.c.bf16 %v6056, %v6055
    %v6074 = vpack.c.bf16 %v6058, %v6057
    %v6075 = vld [vmem:[%s5] sm:$0xff]
    %v6076 = vld [vmem:[%s5 + $0x8] sm:$0xff]
    %v6077 = vld [vmem:[%s5 + $0x10] sm:$0xff]
    %v6078 = vld [vmem:[%s5 + $0x18] sm:$0xff]
    %v6079 = vld [vmem:[%s5 + $0x20] sm:$0xff]
    %v6080 = vld [vmem:[%s5 + $0x28] sm:$0xff]
    %v6081 = vld [vmem:[%s5 + $0x30] sm:$0xff]
    %v6082 = vld [vmem:[%s5 + $0x38] sm:$0xff]
    %v6083 = vld [vmem:[%s5 + $0x40] sm:$0xff]
    %v6084 = vld [vmem:[%s5 + $0x48] sm:$0xff]
    %v6085 = vld [vmem:[%s5 + $0x50] sm:$0xff]
    %v6086 = vld [vmem:[%s5 + $0x58] sm:$0xff]
    %v6087 = vld [vmem:[%s5 + $0x60] sm:$0xff]
    %v6088 = vld [vmem:[%s5 + $0x68] sm:$0xff]
    %v6089 = vld [vmem:[%s5 + $0x70] sm:$0xff]
    %v6090 = vld [vmem:[%s5 + $0x78] sm:$0xff]
    %v6091 = vld [vmem:[%s5 + $0x80] sm:$0xff]
    %v6092 = vld [vmem:[%s5 + $0x88] sm:$0xff]
    %v6093 = vld [vmem:[%s5 + $0x90] sm:$0xff]
    %v6094 = vld [vmem:[%s5 + $0x98] sm:$0xff]
    %v6095 = vld [vmem:[%s5 + $0xa0] sm:$0xff]
    %v6096 = vld [vmem:[%s5 + $0xa8] sm:$0xff]
    %v6097 = vld [vmem:[%s5 + $0xb0] sm:$0xff]
    %v6098 = vld [vmem:[%s5 + $0xb8] sm:$0xff]
    %v6099 = vld [vmem:[%s5 + $0xc0] sm:$0xff]
    %v6100 = vld [vmem:[%s5 + $0xc8] sm:$0xff]
    %v6101 = vld [vmem:[%s5 + $0xd0] sm:$0xff]
    %v6102 = vld [vmem:[%s5 + $0xd8] sm:$0xff]
    %v6103 = vld [vmem:[%s5 + $0xe0] sm:$0xff]
    %v6104 = vld [vmem:[%s5 + $0xe8] sm:$0xff]
    %v6105 = vld [vmem:[%s5 + $0xf0] sm:$0xff]
    %v6106 = vld [vmem:[%s5 + $0xf8] sm:$0xff]
    %v6107 = vld [vmem:[%s6] sm:$0xff]
    %v6108 = vld [vmem:[%s6 + $0x8] sm:$0xff]
    %v6109 = vld [vmem:[%s6 + $0x10] sm:$0xff]
    %v6110 = vld [vmem:[%s6 + $0x18] sm:$0xff]
    %v6111 = vld [vmem:[%s6 + $0x20] sm:$0xff]
    %v6112 = vld [vmem:[%s6 + $0x28] sm:$0xff]
    %v6113 = vld [vmem:[%s6 + $0x30] sm:$0xff]
    %v6114 = vld [vmem:[%s6 + $0x38] sm:$0xff]
    %v6115 = vld [vmem:[%s6 + $0x40] sm:$0xff]
    %v6116 = vld [vmem:[%s6 + $0x48] sm:$0xff]
    %v6117 = vld [vmem:[%s6 + $0x50] sm:$0xff]
    %v6118 = vld [vmem:[%s6 + $0x58] sm:$0xff]
    %v6119 = vld [vmem:[%s6 + $0x60] sm:$0xff]
    %v6120 = vld [vmem:[%s6 + $0x68] sm:$0xff]
    %v6121 = vld [vmem:[%s6 + $0x70] sm:$0xff]
    %v6122 = vld [vmem:[%s6 + $0x78] sm:$0xff]
    %v6123 = vld [vmem:[%s6 + $0x80] sm:$0xff]
    %v6124 = vld [vmem:[%s6 + $0x88] sm:$0xff]
    %v6125 = vld [vmem:[%s6 + $0x90] sm:$0xff]
    %v6126 = vld [vmem:[%s6 + $0x98] sm:$0xff]
    %v6127 = vld [vmem:[%s6 + $0xa0] sm:$0xff]
    %v6128 = vld [vmem:[%s6 + $0xa8] sm:$0xff]
    %v6129 = vld [vmem:[%s6 + $0xb0] sm:$0xff]
    %v6130 = vld [vmem:[%s6 + $0xb8] sm:$0xff]
    %v6131 = vld [vmem:[%s6 + $0xc0] sm:$0xff]
    %v6132 = vld [vmem:[%s6 + $0xc8] sm:$0xff]
    %v6133 = vld [vmem:[%s6 + $0xd0] sm:$0xff]
    %v6134 = vld [vmem:[%s6 + $0xd8] sm:$0xff]
    %v6135 = vld [vmem:[%s6 + $0xe0] sm:$0xff]
    %v6136 = vld [vmem:[%s6 + $0xe8] sm:$0xff]
    %v6137 = vld [vmem:[%s6 + $0xf0] sm:$0xff]
    %v6138 = vld [vmem:[%s6 + $0xf8] sm:$0xff]
    %6140 = vset.pattern.permute.xlu0 0
    %6141 = vperm.xlu0 %6140, %v6107
    %v6142 = vpop.permute.xlu0 %6141
    %6145 = vset.pattern.permute.xlu0 0
    %6146 = vperm.xlu0 %6145, %v6108
    %v6147 = vpop.permute.xlu0 %6146
    %6150 = vset.pattern.permute.xlu0 0
    %6151 = vperm.xlu0 %6150, %v6109
    %v6152 = vpop.permute.xlu0 %6151
    %6155 = vset.pattern.permute.xlu0 0
    %6156 = vperm.xlu0 %6155, %v6110
    %v6157 = vpop.permute.xlu0 %6156
    %6160 = vset.pattern.permute.xlu0 0
    %6161 = vperm.xlu0 %6160, %v6111
    %v6162 = vpop.permute.xlu0 %6161
    %6165 = vset.pattern.permute.xlu0 0
    %6166 = vperm.xlu0 %6165, %v6112
    %v6167 = vpop.permute.xlu0 %6166
    %6170 = vset.pattern.permute.xlu0 0
    %6171 = vperm.xlu0 %6170, %v6113
    %v6172 = vpop.permute.xlu0 %6171
    %6175 = vset.pattern.permute.xlu0 0
    %6176 = vperm.xlu0 %6175, %v6114
    %v6177 = vpop.permute.xlu0 %6176
    %6180 = vset.pattern.permute.xlu0 0
    %6181 = vperm.xlu0 %6180, %v6115
    %v6182 = vpop.permute.xlu0 %6181
    %6185 = vset.pattern.permute.xlu0 0
    %6186 = vperm.xlu0 %6185, %v6116
    %v6187 = vpop.permute.xlu0 %6186
    %6190 = vset.pattern.permute.xlu0 0
    %6191 = vperm.xlu0 %6190, %v6117
    %v6192 = vpop.permute.xlu0 %6191
    %6195 = vset.pattern.permute.xlu0 0
    %6196 = vperm.xlu0 %6195, %v6118
    %v6197 = vpop.permute.xlu0 %6196
    %6200 = vset.pattern.permute.xlu0 0
    %6201 = vperm.xlu0 %6200, %v6119
    %v6202 = vpop.permute.xlu0 %6201
    %6205 = vset.pattern.permute.xlu0 0
    %6206 = vperm.xlu0 %6205, %v6120
    %v6207 = vpop.permute.xlu0 %6206
    %6210 = vset.pattern.permute.xlu0 0
    %6211 = vperm.xlu0 %6210, %v6121
    %v6212 = vpop.permute.xlu0 %6211
    %6215 = vset.pattern.permute.xlu0 0
    %6216 = vperm.xlu0 %6215, %v6122
    %v6217 = vpop.permute.xlu0 %6216
    %6220 = vset.pattern.permute.xlu0 0
    %6221 = vperm.xlu0 %6220, %v6123
    %v6222 = vpop.permute.xlu0 %6221
    %6225 = vset.pattern.permute.xlu0 0
    %6226 = vperm.xlu0 %6225, %v6124
    %v6227 = vpop.permute.xlu0 %6226
    %6230 = vset.pattern.permute.xlu0 0
    %6231 = vperm.xlu0 %6230, %v6125
    %v6232 = vpop.permute.xlu0 %6231
    %6235 = vset.pattern.permute.xlu0 0
    %6236 = vperm.xlu0 %6235, %v6126
    %v6237 = vpop.permute.xlu0 %6236
    %6240 = vset.pattern.permute.xlu0 0
    %6241 = vperm.xlu0 %6240, %v6127
    %v6242 = vpop.permute.xlu0 %6241
    %6245 = vset.pattern.permute.xlu0 0
    %6246 = vperm.xlu0 %6245, %v6128
    %v6247 = vpop.permute.xlu0 %6246
    %6250 = vset.pattern.permute.xlu0 0
    %6251 = vperm.xlu0 %6250, %v6129
    %v6252 = vpop.permute.xlu0 %6251
    %6255 = vset.pattern.permute.xlu0 0
    %6256 = vperm.xlu0 %6255, %v6130
    %v6257 = vpop.permute.xlu0 %6256
    %6260 = vset.pattern.permute.xlu0 0
    %6261 = vperm.xlu0 %6260, %v6131
    %v6262 = vpop.permute.xlu0 %6261
    %6265 = vset.pattern.permute.xlu0 0
    %6266 = vperm.xlu0 %6265, %v6132
    %v6267 = vpop.permute.xlu0 %6266
    %6270 = vset.pattern.permute.xlu0 0
    %6271 = vperm.xlu0 %6270, %v6133
    %v6272 = vpop.permute.xlu0 %6271
    %6275 = vset.pattern.permute.xlu0 0
    %6276 = vperm.xlu0 %6275, %v6134
    %v6277 = vpop.permute.xlu0 %6276
    %6280 = vset.pattern.permute.xlu0 0
    %6281 = vperm.xlu0 %6280, %v6135
    %v6282 = vpop.permute.xlu0 %6281
    %6285 = vset.pattern.permute.xlu0 0
    %6286 = vperm.xlu0 %6285, %v6136
    %v6287 = vpop.permute.xlu0 %6286
    %6290 = vset.pattern.permute.xlu0 0
    %6291 = vperm.xlu0 %6290, %v6137
    %v6292 = vpop.permute.xlu0 %6291
    %6295 = vset.pattern.permute.xlu0 0
    %6296 = vperm.xlu0 %6295, %v6138
    %v6297 = vpop.permute.xlu0 %6296
    %v6331 = vunpack.c.l.b16 %v6075
    %v6332 = vunpack.c.h.b16 %v6075
    %v6333 = vunpack.c.l.b16 %v6076
    %v6334 = vunpack.c.h.b16 %v6076
    %v6335 = vunpack.c.l.b16 %v6077
    %v6336 = vunpack.c.h.b16 %v6077
    %v6337 = vunpack.c.l.b16 %v6078
    %v6338 = vunpack.c.h.b16 %v6078
    %v6339 = vunpack.c.l.b16 %v6079
    %v6340 = vunpack.c.h.b16 %v6079
    %v6341 = vunpack.c.l.b16 %v6080
    %v6342 = vunpack.c.h.b16 %v6080
    %v6343 = vunpack.c.l.b16 %v6081
    %v6344 = vunpack.c.h.b16 %v6081
    %v6345 = vunpack.c.l.b16 %v6082
    %v6346 = vunpack.c.h.b16 %v6082
    %v6347 = vunpack.c.l.b16 %v6083
    %v6348 = vunpack.c.h.b16 %v6083
    %v6349 = vunpack.c.l.b16 %v6084
    %v6350 = vunpack.c.h.b16 %v6084
    %v6351 = vunpack.c.l.b16 %v6085
    %v6352 = vunpack.c.h.b16 %v6085
    %v6353 = vunpack.c.l.b16 %v6086
    %v6354 = vunpack.c.h.b16 %v6086
    %v6355 = vunpack.c.l.b16 %v6087
    %v6356 = vunpack.c.h.b16 %v6087
    %v6357 = vunpack.c.l.b16 %v6088
    %v6358 = vunpack.c.h.b16 %v6088
    %v6359 = vunpack.c.l.b16 %v6089
    %v6360 = vunpack.c.h.b16 %v6089
    %v6361 = vunpack.c.l.b16 %v6090
    %v6362 = vunpack.c.h.b16 %v6090
    %v6363 = vunpack.c.l.b16 %v6091
    %v6364 = vunpack.c.h.b16 %v6091
    %v6365 = vunpack.c.l.b16 %v6092
    %v6366 = vunpack.c.h.b16 %v6092
    %v6367 = vunpack.c.l.b16 %v6093
    %v6368 = vunpack.c.h.b16 %v6093
    %v6369 = vunpack.c.l.b16 %v6094
    %v6370 = vunpack.c.h.b16 %v6094
    %v6371 = vunpack.c.l.b16 %v6095
    %v6372 = vunpack.c.h.b16 %v6095
    %v6373 = vunpack.c.l.b16 %v6096
    %v6374 = vunpack.c.h.b16 %v6096
    %v6375 = vunpack.c.l.b16 %v6097
    %v6376 = vunpack.c.h.b16 %v6097
    %v6377 = vunpack.c.l.b16 %v6098
    %v6378 = vunpack.c.h.b16 %v6098
    %v6379 = vunpack.c.l.b16 %v6099
    %v6380 = vunpack.c.h.b16 %v6099
    %v6381 = vunpack.c.l.b16 %v6100
    %v6382 = vunpack.c.h.b16 %v6100
    %v6383 = vunpack.c.l.b16 %v6101
    %v6384 = vunpack.c.h.b16 %v6101
    %v6385 = vunpack.c.l.b16 %v6102
    %v6386 = vunpack.c.h.b16 %v6102
    %v6387 = vunpack.c.l.b16 %v6103
    %v6388 = vunpack.c.h.b16 %v6103
    %v6389 = vunpack.c.l.b16 %v6104
    %v6390 = vunpack.c.h.b16 %v6104
    %v6391 = vunpack.c.l.b16 %v6105
    %v6392 = vunpack.c.h.b16 %v6105
    %v6393 = vunpack.c.l.b16 %v6106
    %v6394 = vunpack.c.h.b16 %v6106
    %v6395 = vpack.c.b16 %v6333, %v6331
    %v6396 = vpack.c.b16 %v6334, %v6332
    %v6397 = vpack.c.b16 %v6337, %v6335
    %v6398 = vpack.c.b16 %v6338, %v6336
    %v6399 = vpack.c.b16 %v6341, %v6339
    %v6400 = vpack.c.b16 %v6342, %v6340
    %v6401 = vpack.c.b16 %v6345, %v6343
    %v6402 = vpack.c.b16 %v6346, %v6344
    %v6403 = vpack.c.b16 %v6349, %v6347
    %v6404 = vpack.c.b16 %v6350, %v6348
    %v6405 = vpack.c.b16 %v6353, %v6351
    %v6406 = vpack.c.b16 %v6354, %v6352
    %v6407 = vpack.c.b16 %v6357, %v6355
    %v6408 = vpack.c.b16 %v6358, %v6356
    %v6409 = vpack.c.b16 %v6361, %v6359
    %v6410 = vpack.c.b16 %v6362, %v6360
    %v6411 = vpack.c.b16 %v6365, %v6363
    %v6412 = vpack.c.b16 %v6366, %v6364
    %v6413 = vpack.c.b16 %v6369, %v6367
    %v6414 = vpack.c.b16 %v6370, %v6368
    %v6415 = vpack.c.b16 %v6373, %v6371
    %v6416 = vpack.c.b16 %v6374, %v6372
    %v6417 = vpack.c.b16 %v6377, %v6375
    %v6418 = vpack.c.b16 %v6378, %v6376
    %v6419 = vpack.c.b16 %v6381, %v6379
    %v6420 = vpack.c.b16 %v6382, %v6380
    %v6421 = vpack.c.b16 %v6385, %v6383
    %v6422 = vpack.c.b16 %v6386, %v6384
    %v6423 = vpack.c.b16 %v6389, %v6387
    %v6424 = vpack.c.b16 %v6390, %v6388
    %v6425 = vpack.c.b16 %v6393, %v6391
    %v6426 = vpack.c.b16 %v6394, %v6392
    %6459 = vmatprep.subr.bf16.mxu0 0
    %6460 = vmatpush1.bf16.msra.mxu0 %v6059
    %6461 = vmatprep.subr.bf16.mxu0 0
    %6462 = vmatpush1.bf16.msra.mxu0 %v6060
    %6463 = vmatprep.subr.bf16.mxu0 0
    %6464 = vmatpush1.bf16.msra.mxu0 %v6061
    %6465 = vmatprep.subr.bf16.mxu0 0
    %6466 = vmatpush1.bf16.msra.mxu0 %v6062
    %6467 = vmatprep.subr.bf16.mxu0 0
    %6468 = vmatpush1.bf16.msra.mxu0 %v6063
    %6469 = vmatprep.subr.bf16.mxu0 0
    %6470 = vmatpush1.bf16.msra.mxu0 %v6064
    %6471 = vmatprep.subr.bf16.mxu0 0
    %6472 = vmatpush1.bf16.msra.mxu0 %v6065
    %6473 = vmatprep.subr.bf16.mxu0 0
    %6474 = vmatpush1.bf16.msra.mxu0 %v6066
    %6475 = vmatprep.subr.bf16.mxu0 0
    %6476 = vmatpush1.bf16.msra.mxu0 %v6067
    %6477 = vmatprep.subr.bf16.mxu0 0
    %6478 = vmatpush1.bf16.msra.mxu0 %v6068
    %6479 = vmatprep.subr.bf16.mxu0 0
    %6480 = vmatpush1.bf16.msra.mxu0 %v6069
    %6481 = vmatprep.subr.bf16.mxu0 0
    %6482 = vmatpush1.bf16.msra.mxu0 %v6070
    %6483 = vmatprep.subr.bf16.mxu0 0
    %6484 = vmatpush1.bf16.msra.mxu0 %v6071
    %6485 = vmatprep.subr.bf16.mxu0 0
    %6486 = vmatpush1.bf16.msra.mxu0 %v6072
    %6487 = vmatprep.subr.bf16.mxu0 0
    %6488 = vmatpush1.bf16.msra.mxu0 %v6073
    %6489 = vmatprep.subr.bf16.mxu0 0
    %6490 = vmatpush1.bf16.msra.mxu0 %v6074
    %6491 = vmatprep.mubr.bf16.mxu0 %v6396
    %6492 = vmatmul.mubr.bf16.gmra.mrb[0].mxu0 %v6395
    %v6493 = vpop.f32.mrb[0].mxu0
    %v6494 = vadd.f32 %v6142, %v6493
    %v6495 = vpop.f32.mrb[0].mxu0
    %v6496 = vpop.f32.mrb[0].mxu0
    %v6497 = vadd.f32 %v6147, %v6496
    %v6498 = vpop.f32.mrb[0].mxu0
    %6499 = vmatprep.mubr.bf16.mxu0 %v6398
    %6500 = vmatmul.mubr.bf16.gmra.mrb[0].mxu0 %v6397
    %v6501 = vpop.f32.mrb[0].mxu0
    %v6502 = vadd.f32 %v6152, %v6501
    %v6503 = vpop.f32.mrb[0].mxu0
    %v6504 = vpop.f32.mrb[0].mxu0
    %v6505 = vadd.f32 %v6157, %v6504
    %v6506 = vpop.f32.mrb[0].mxu0
    %6507 = vmatprep.mubr.bf16.mxu0 %v6400
    %6508 = vmatmul.mubr.bf16.gmra.mrb[0].mxu0 %v6399
    %v6509 = vpop.f32.mrb[0].mxu0
    %v6510 = vadd.f32 %v6162, %v6509
    %v6511 = vpop.f32.mrb[0].mxu0
    %v6512 = vpop.f32.mrb[0].mxu0
    %v6513 = vadd.f32 %v6167, %v6512
    %v6514 = vpop.f32.mrb[0].mxu0
    %6515 = vmatprep.mubr.bf16.mxu0 %v6402
    %6516 = vmatmul.mubr.bf16.gmra.mrb[0].mxu0 %v6401
    %v6517 = vpop.f32.mrb[0].mxu0
    %v6518 = vadd.f32 %v6172, %v6517
    %v6519 = vpop.f32.mrb[0].mxu0
    %v6520 = vpop.f32.mrb[0].mxu0
    %v6521 = vadd.f32 %v6177, %v6520
    %v6522 = vpop.f32.mrb[0].mxu0
    %6523 = vmatprep.mubr.bf16.mxu0 %v6404
    %6524 = vmatmul.mubr.bf16.gmra.mrb[0].mxu0 %v6403
    %v6525 = vpop.f32.mrb[0].mxu0
    %v6526 = vadd.f32 %v6182, %v6525
    %v6527 = vpop.f32.mrb[0].mxu0
    %v6528 = vpop.f32.mrb[0].mxu0
    %v6529 = vadd.f32 %v6187, %v6528
    %v6530 = vpop.f32.mrb[0].mxu0
    %6531 = vmatprep.mubr.bf16.mxu0 %v6406
    %6532 = vmatmul.mubr.bf16.gmra.mrb[0].mxu0 %v6405
    %v6533 = vpop.f32.mrb[0].mxu0
    %v6534 = vadd.f32 %v6192, %v6533
    %v6535 = vpop.f32.mrb[0].mxu0
    %v6536 = vpop.f32.mrb[0].mxu0
    %v6537 = vadd.f32 %v6197, %v6536
    %v6538 = vpop.f32.mrb[0].mxu0
    %6539 = vmatprep.mubr.bf16.mxu0 %v6408
    %6540 = vmatmul.mubr.bf16.gmra.mrb[0].mxu0 %v6407
    %v6541 = vpop.f32.mrb[0].mxu0
    %v6542 = vadd.f32 %v6202, %v6541
    %v6543 = vpop.f32.mrb[0].mxu0
    %v6544 = vpop.f32.mrb[0].mxu0
    %v6545 = vadd.f32 %v6207, %v6544
    %v6546 = vpop.f32.mrb[0].mxu0
    %6547 = vmatprep.mubr.bf16.mxu0 %v6410
    %6548 = vmatmul.mubr.bf16.gmra.mrb[0].mxu0 %v6409
    %v6549 = vpop.f32.mrb[0].mxu0
    %v6550 = vadd.f32 %v6212, %v6549
    %v6551 = vpop.f32.mrb[0].mxu0
    %v6552 = vpop.f32.mrb[0].mxu0
    %v6553 = vadd.f32 %v6217, %v6552
    %v6554 = vpop.f32.mrb[0].mxu0
    %6555 = vmatprep.mubr.bf16.mxu0 %v6412
    %6556 = vmatmul.mubr.bf16.gmra.mrb[0].mxu0 %v6411
    %v6557 = vpop.f32.mrb[0].mxu0
    %v6558 = vadd.f32 %v6222, %v6557
    %v6559 = vpop.f32.mrb[0].mxu0
    %v6560 = vpop.f32.mrb[0].mxu0
    %v6561 = vadd.f32 %v6227, %v6560
    %v6562 = vpop.f32.mrb[0].mxu0
    %6563 = vmatprep.mubr.bf16.mxu0 %v6414
    %6564 = vmatmul.mubr.bf16.gmra.mrb[0].mxu0 %v6413
    %v6565 = vpop.f32.mrb[0].mxu0
    %v6566 = vadd.f32 %v6232, %v6565
    %v6567 = vpop.f32.mrb[0].mxu0
    %v6568 = vpop.f32.mrb[0].mxu0
    %v6569 = vadd.f32 %v6237, %v6568
    %v6570 = vpop.f32.mrb[0].mxu0
    %6571 = vmatprep.mubr.bf16.mxu0 %v6416
    %6572 = vmatmul.mubr.bf16.gmra.mrb[0].mxu0 %v6415
    %v6573 = vpop.f32.mrb[0].mxu0
    %v6574 = vadd.f32 %v6242, %v6573
    %v6575 = vpop.f32.mrb[0].mxu0
    %v6576 = vpop.f32.mrb[0].mxu0
    %v6577 = vadd.f32 %v6247, %v6576
    %v6578 = vpop.f32.mrb[0].mxu0
    %6579 = vmatprep.mubr.bf16.mxu0 %v6418
    %6580 = vmatmul.mubr.bf16.gmra.mrb[0].mxu0 %v6417
    %v6581 = vpop.f32.mrb[0].mxu0
    %v6582 = vadd.f32 %v6252, %v6581
    %v6583 = vpop.f32.mrb[0].mxu0
    %v6584 = vpop.f32.mrb[0].mxu0
    %v6585 = vadd.f32 %v6257, %v6584
    %v6586 = vpop.f32.mrb[0].mxu0
    %6587 = vmatprep.mubr.bf16.mxu0 %v6420
    %6588 = vmatmul.mubr.bf16.gmra.mrb[0].mxu0 %v6419
    %v6589 = vpop.f32.mrb[0].mxu0
    %v6590 = vadd.f32 %v6262, %v6589
    %v6591 = vpop.f32.mrb[0].mxu0
    %v6592 = vpop.f32.mrb[0].mxu0
    %v6593 = vadd.f32 %v6267, %v6592
    %v6594 = vpop.f32.mrb[0].mxu0
    %6595 = vmatprep.mubr.bf16.mxu0 %v6422
    %6596 = vmatmul.mubr.bf16.gmra.mrb[0].mxu0 %v6421
    %v6597 = vpop.f32.mrb[0].mxu0
    %v6598 = vadd.f32 %v6272, %v6597
    %v6599 = vpop.f32.mrb[0].mxu0
    %v6600 = vpop.f32.mrb[0].mxu0
    %v6601 = vadd.f32 %v6277, %v6600
    %v6602 = vpop.f32.mrb[0].mxu0
    %6603 = vmatprep.mubr.bf16.mxu0 %v6424
    %6604 = vmatmul.mubr.bf16.gmra.mrb[0].mxu0 %v6423
    %v6605 = vpop.f32.mrb[0].mxu0
    %v6606 = vadd.f32 %v6282, %v6605
    %v6607 = vpop.f32.mrb[0].mxu0
    %v6608 = vpop.f32.mrb[0].mxu0
    %v6609 = vadd.f32 %v6287, %v6608
    %v6610 = vpop.f32.mrb[0].mxu0
    %6611 = vmatprep.mubr.bf16.mxu0 %v6426
    %6612 = vmatmul.mubr.bf16.gmra.mrb[0].mxu0 %v6425
    %v6613 = vpop.f32.mrb[0].mxu0
    %v6614 = vadd.f32 %v6292, %v6613
    %v6615 = vpop.f32.mrb[0].mxu0
    %v6616 = vpop.f32.mrb[0].mxu0
    %v6617 = vadd.f32 %v6297, %v6616
    %v6618 = vpop.f32.mrb[0].mxu0
    %6619 = vdwg.mxu0
    %v6620 = vmax.f32 %v6494, 0.0
    %v6621 = vmax.f32 %v6497, 0.0
    %v6622 = vmax.f32 %v6502, 0.0
    %v6623 = vmax.f32 %v6505, 0.0
    %v6624 = vmax.f32 %v6510, 0.0
    %v6625 = vmax.f32 %v6513, 0.0
    %v6626 = vmax.f32 %v6518, 0.0
    %v6627 = vmax.f32 %v6521, 0.0
    %v6628 = vmax.f32 %v6526, 0.0
    %v6629 = vmax.f32 %v6529, 0.0
    %v6630 = vmax.f32 %v6534, 0.0
    %v6631 = vmax.f32 %v6537, 0.0
    %v6632 = vmax.f32 %v6542, 0.0
    %v6633 = vmax.f32 %v6545, 0.0
    %v6634 = vmax.f32 %v6550, 0.0
    %v6635 = vmax.f32 %v6553, 0.0
    %v6636 = vmax.f32 %v6558, 0.0
    %v6637 = vmax.f32 %v6561, 0.0
    %v6638 = vmax.f32 %v6566, 0.0
    %v6639 = vmax.f32 %v6569, 0.0
    %v6640 = vmax.f32 %v6574, 0.0
    %v6641 = vmax.f32 %v6577, 0.0
    %v6642 = vmax.f32 %v6582, 0.0
    %v6643 = vmax.f32 %v6585, 0.0
    %v6644 = vmax.f32 %v6590, 0.0
    %v6645 = vmax.f32 %v6593, 0.0
    %v6646 = vmax.f32 %v6598, 0.0
    %v6647 = vmax.f32 %v6601, 0.0
    %v6648 = vmax.f32 %v6606, 0.0
    %v6649 = vmax.f32 %v6609, 0.0
    %v6650 = vmax.f32 %v6614, 0.0
    %v6651 = vmax.f32 %v6617, 0.0
    %v6652 = vpack.c.bf16 %v6621, %v6620
    %v6653 = vpack.c.bf16 %v6623, %v6622
    %v6654 = vpack.c.bf16 %v6625, %v6624
    %v6655 = vpack.c.bf16 %v6627, %v6626
    %v6656 = vpack.c.bf16 %v6629, %v6628
    %v6657 = vpack.c.bf16 %v6631, %v6630
    %v6658 = vpack.c.bf16 %v6633, %v6632
    %v6659 = vpack.c.bf16 %v6635, %v6634
    %v6660 = vpack.c.bf16 %v6637, %v6636
    %v6661 = vpack.c.bf16 %v6639, %v6638
    %v6662 = vpack.c.bf16 %v6641, %v6640
    %v6663 = vpack.c.bf16 %v6643, %v6642
    %v6664 = vpack.c.bf16 %v6645, %v6644
    %v6665 = vpack.c.bf16 %v6647, %v6646
    %v6666 = vpack.c.bf16 %v6649, %v6648
    %v6667 = vpack.c.bf16 %v6651, %v6650
    %v6668 = vld [vmem:[%s7] sm:$0xff]
    %v6669 = vld [vmem:[%s7 + $0x8] sm:$0xff]
    %v6670 = vld [vmem:[%s7 + $0x10] sm:$0xff]
    %v6671 = vld [vmem:[%s7 + $0x18] sm:$0xff]
    %v6672 = vld [vmem:[%s7 + $0x20] sm:$0xff]
    %v6673 = vld [vmem:[%s7 + $0x28] sm:$0xff]
    %v6674 = vld [vmem:[%s7 + $0x30] sm:$0xff]
    %v6675 = vld [vmem:[%s7 + $0x38] sm:$0xff]
    %v6676 = vld [vmem:[%s7 + $0x40] sm:$0xff]
    %v6677 = vld [vmem:[%s7 + $0x48] sm:$0xff]
    %v6678 = vld [vmem:[%s7 + $0x50] sm:$0xff]
    %v6679 = vld [vmem:[%s7 + $0x58] sm:$0xff]
    %v6680 = vld [vmem:[%s7 + $0x60] sm:$0xff]
    %v6681 = vld [vmem:[%s7 + $0x68] sm:$0xff]
    %v6682 = vld [vmem:[%s7 + $0x70] sm:$0xff]
    %v6683 = vld [vmem:[%s7 + $0x78] sm:$0xff]
    %v6684 = vld [vmem:[%s7 + $0x80] sm:$0xff]
    %v6685 = vld [vmem:[%s7 + $0x88] sm:$0xff]
    %v6686 = vld [vmem:[%s7 + $0x90] sm:$0xff]
    %v6687 = vld [vmem:[%s7 + $0x98] sm:$0xff]
    %v6688 = vld [vmem:[%s7 + $0xa0] sm:$0xff]
    %v6689 = vld [vmem:[%s7 + $0xa8] sm:$0xff]
    %v6690 = vld [vmem:[%s7 + $0xb0] sm:$0xff]
    %v6691 = vld [vmem:[%s7 + $0xb8] sm:$0xff]
    %v6692 = vld [vmem:[%s7 + $0xc0] sm:$0xff]
    %v6693 = vld [vmem:[%s7 + $0xc8] sm:$0xff]
    %v6694 = vld [vmem:[%s7 + $0xd0] sm:$0xff]
    %v6695 = vld [vmem:[%s7 + $0xd8] sm:$0xff]
    %v6696 = vld [vmem:[%s7 + $0xe0] sm:$0xff]
    %v6697 = vld [vmem:[%s7 + $0xe8] sm:$0xff]
    %v6698 = vld [vmem:[%s7 + $0xf0] sm:$0xff]
    %v6699 = vld [vmem:[%s7 + $0xf8] sm:$0xff]
    %v6700 = vld [vmem:[%s8] sm:$0xff]
    %v6701 = vld [vmem:[%s8 + $0x8] sm:$0xff]
    %v6702 = vld [vmem:[%s8 + $0x10] sm:$0xff]
    %v6703 = vld [vmem:[%s8 + $0x18] sm:$0xff]
    %v6704 = vld [vmem:[%s8 + $0x20] sm:$0xff]
    %v6705 = vld [vmem:[%s8 + $0x28] sm:$0xff]
    %v6706 = vld [vmem:[%s8 + $0x30] sm:$0xff]
    %v6707 = vld [vmem:[%s8 + $0x38] sm:$0xff]
    %v6708 = vld [vmem:[%s8 + $0x40] sm:$0xff]
    %v6709 = vld [vmem:[%s8 + $0x48] sm:$0xff]
    %v6710 = vld [vmem:[%s8 + $0x50] sm:$0xff]
    %v6711 = vld [vmem:[%s8 + $0x58] sm:$0xff]
    %v6712 = vld [vmem:[%s8 + $0x60] sm:$0xff]
    %v6713 = vld [vmem:[%s8 + $0x68] sm:$0xff]
    %v6714 = vld [vmem:[%s8 + $0x70] sm:$0xff]
    %v6715 = vld [vmem:[%s8 + $0x78] sm:$0xff]
    %v6716 = vld [vmem:[%s8 + $0x80] sm:$0xff]
    %v6717 = vld [vmem:[%s8 + $0x88] sm:$0xff]
    %v6718 = vld [vmem:[%s8 + $0x90] sm:$0xff]
    %v6719 = vld [vmem:[%s8 + $0x98] sm:$0xff]
    %v6720 = vld [vmem:[%s8 + $0xa0] sm:$0xff]
    %v6721 = vld [vmem:[%s8 + $0xa8] sm:$0xff]
    %v6722 = vld [vmem:[%s8 + $0xb0] sm:$0xff]
    %v6723 = vld [vmem:[%s8 + $0xb8] sm:$0xff]
    %v6724 = vld [vmem:[%s8 + $0xc0] sm:$0xff]
    %v6725 = vld [vmem:[%s8 + $0xc8] sm:$0xff]
    %v6726 = vld [vmem:[%s8 + $0xd0] sm:$0xff]
    %v6727 = vld [vmem:[%s8 + $0xd8] sm:$0xff]
    %v6728 = vld [vmem:[%s8 + $0xe0] sm:$0xff]
    %v6729 = vld [vmem:[%s8 + $0xe8] sm:$0xff]
    %v6730 = vld [vmem:[%s8 + $0xf0] sm:$0xff]
    %v6731 = vld [vmem:[%s8 + $0xf8] sm:$0xff]
    %6733 = vset.pattern.permute.xlu0 0
    %6734 = vperm.xlu0 %6733, %v6700
    %v6735 = vpop.permute.xlu0 %6734
    %6738 = vset.pattern.permute.xlu0 0
    %6739 = vperm.xlu0 %6738, %v6701
    %v6740 = vpop.permute.xlu0 %6739
    %6743 = vset.pattern.permute.xlu0 0
    %6744 = vperm.xlu0 %6743, %v6702
    %v6745 = vpop.permute.xlu0 %6744
    %6748 = vset.pattern.permute.xlu0 0
    %6749 = vperm.xlu0 %6748, %v6703
    %v6750 = vpop.permute.xlu0 %6749
    %6753 = vset.pattern.permute.xlu0 0
    %6754 = vperm.xlu0 %6753, %v6704
    %v6755 = vpop.permute.xlu0 %6754
    %6758 = vset.pattern.permute.xlu0 0
    %6759 = vperm.xlu0 %6758, %v6705
    %v6760 = vpop.permute.xlu0 %6759
    %6763 = vset.pattern.permute.xlu0 0
    %6764 = vperm.xlu0 %6763, %v6706
    %v6765 = vpop.permute.xlu0 %6764
    %6768 = vset.pattern.permute.xlu0 0
    %6769 = vperm.xlu0 %6768, %v6707
    %v6770 = vpop.permute.xlu0 %6769
    %6773 = vset.pattern.permute.xlu0 0
    %6774 = vperm.xlu0 %6773, %v6708
    %v6775 = vpop.permute.xlu0 %6774
    %6778 = vset.pattern.permute.xlu0 0
    %6779 = vperm.xlu0 %6778, %v6709
    %v6780 = vpop.permute.xlu0 %6779
    %6783 = vset.pattern.permute.xlu0 0
    %6784 = vperm.xlu0 %6783, %v6710
    %v6785 = vpop.permute.xlu0 %6784
    %6788 = vset.pattern.permute.xlu0 0
    %6789 = vperm.xlu0 %6788, %v6711
    %v6790 = vpop.permute.xlu0 %6789
    %6793 = vset.pattern.permute.xlu0 0
    %6794 = vperm.xlu0 %6793, %v6712
    %v6795 = vpop.permute.xlu0 %6794
    %6798 = vset.pattern.permute.xlu0 0
    %6799 = vperm.xlu0 %6798, %v6713
    %v6800 = vpop.permute.xlu0 %6799
    %6803 = vset.pattern.permute.xlu0 0
    %6804 = vperm.xlu0 %6803, %v6714
    %v6805 = vpop.permute.xlu0 %6804
    %6808 = vset.pattern.permute.xlu0 0
    %6809 = vperm.xlu0 %6808, %v6715
    %v6810 = vpop.permute.xlu0 %6809
    %6813 = vset.pattern.permute.xlu0 0
    %6814 = vperm.xlu0 %6813, %v6716
    %v6815 = vpop.permute.xlu0 %6814
    %6818 = vset.pattern.permute.xlu0 0
    %6819 = vperm.xlu0 %6818, %v6717
    %v6820 = vpop.permute.xlu0 %6819
    %6823 = vset.pattern.permute.xlu0 0
    %6824 = vperm.xlu0 %6823, %v6718
    %v6825 = vpop.permute.xlu0 %6824
    %6828 = vset.pattern.permute.xlu0 0
    %6829 = vperm.xlu0 %6828, %v6719
    %v6830 = vpop.permute.xlu0 %6829
    %6833 = vset.pattern.permute.xlu0 0
    %6834 = vperm.xlu0 %6833, %v6720
    %v6835 = vpop.permute.xlu0 %6834
    %6838 = vset.pattern.permute.xlu0 0
    %6839 = vperm.xlu0 %6838, %v6721
    %v6840 = vpop.permute.xlu0 %6839
    %6843 = vset.pattern.permute.xlu0 0
    %6844 = vperm.xlu0 %6843, %v6722
    %v6845 = vpop.permute.xlu0 %6844
    %6848 = vset.pattern.permute.xlu0 0
    %6849 = vperm.xlu0 %6848, %v6723
    %v6850 = vpop.permute.xlu0 %6849
    %6853 = vset.pattern.permute.xlu0 0
    %6854 = vperm.xlu0 %6853, %v6724
    %v6855 = vpop.permute.xlu0 %6854
    %6858 = vset.pattern.permute.xlu0 0
    %6859 = vperm.xlu0 %6858, %v6725
    %v6860 = vpop.permute.xlu0 %6859
    %6863 = vset.pattern.permute.xlu0 0
    %6864 = vperm.xlu0 %6863, %v6726
    %v6865 = vpop.permute.xlu0 %6864
    %6868 = vset.pattern.permute.xlu0 0
    %6869 = vperm.xlu0 %6868, %v6727
    %v6870 = vpop.permute.xlu0 %6869
    %6873 = vset.pattern.permute.xlu0 0
    %6874 = vperm.xlu0 %6873, %v6728
    %v6875 = vpop.permute.xlu0 %6874
    %6878 = vset.pattern.permute.xlu0 0
    %6879 = vperm.xlu0 %6878, %v6729
    %v6880 = vpop.permute.xlu0 %6879
    %6883 = vset.pattern.permute.xlu0 0
    %6884 = vperm.xlu0 %6883, %v6730
    %v6885 = vpop.permute.xlu0 %6884
    %6888 = vset.pattern.permute.xlu0 0
    %6889 = vperm.xlu0 %6888, %v6731
    %v6890 = vpop.permute.xlu0 %6889
    %v6924 = vunpack.c.l.b16 %v6668
    %v6925 = vunpack.c.h.b16 %v6668
    %v6926 = vunpack.c.l.b16 %v6669
    %v6927 = vunpack.c.h.b16 %v6669
    %v6928 = vunpack.c.l.b16 %v6670
    %v6929 = vunpack.c.h.b16 %v6670
    %v6930 = vunpack.c.l.b16 %v6671
    %v6931 = vunpack.c.h.b16 %v6671
    %v6932 = vunpack.c.l.b16 %v6672
    %v6933 = vunpack.c.h.b16 %v6672
    %v6934 = vunpack.c.l.b16 %v6673
    %v6935 = vunpack.c.h.b16 %v6673
    %v6936 = vunpack.c.l.b16 %v6674
    %v6937 = vunpack.c.h.b16 %v6674
    %v6938 = vunpack.c.l.b16 %v6675
    %v6939 = vunpack.c.h.b16 %v6675
    %v6940 = vunpack.c.l.b16 %v6676
    %v6941 = vunpack.c.h.b16 %v6676
    %v6942 = vunpack.c.l.b16 %v6677
    %v6943 = vunpack.c.h.b16 %v6677
    %v6944 = vunpack.c.l.b16 %v6678
    %v6945 = vunpack.c.h.b16 %v6678
    %v6946 = vunpack.c.l.b16 %v6679
    %v6947 = vunpack.c.h.b16 %v6679
    %v6948 = vunpack.c.l.b16 %v6680
    %v6949 = vunpack.c.h.b16 %v6680
    %v6950 = vunpack.c.l.b16 %v6681
    %v6951 = vunpack.c.h.b16 %v6681
    %v6952 = vunpack.c.l.b16 %v6682
    %v6953 = vunpack.c.h.b16 %v6682
    %v6954 = vunpack.c.l.b16 %v6683
    %v6955 = vunpack.c.h.b16 %v6683
    %v6956 = vunpack.c.l.b16 %v6684
    %v6957 = vunpack.c.h.b16 %v6684
    %v6958 = vunpack.c.l.b16 %v6685
    %v6959 = vunpack.c.h.b16 %v6685
    %v6960 = vunpack.c.l.b16 %v6686
    %v6961 = vunpack.c.h.b16 %v6686
    %v6962 = vunpack.c.l.b16 %v6687
    %v6963 = vunpack.c.h.b16 %v6687
    %v6964 = vunpack.c.l.b16 %v6688
    %v6965 = vunpack.c.h.b16 %v6688
    %v6966 = vunpack.c.l.b16 %v6689
    %v6967 = vunpack.c.h.b16 %v6689
    %v6968 = vunpack.c.l.b16 %v6690
    %v6969 = vunpack.c.h.b16 %v6690
    %v6970 = vunpack.c.l.b16 %v6691
    %v6971 = vunpack.c.h.b16 %v6691
    %v6972 = vunpack.c.l.b16 %v6692
    %v6973 = vunpack.c.h.b16 %v6692
    %v6974 = vunpack.c.l.b16 %v6693
    %v6975 = vunpack.c.h.b16 %v6693
    %v6976 = vunpack.c.l.b16 %v6694
    %v6977 = vunpack.c.h.b16 %v6694
    %v6978 = vunpack.c.l.b16 %v6695
    %v6979 = vunpack.c.h.b16 %v6695
    %v6980 = vunpack.c.l.b16 %v6696
    %v6981 = vunpack.c.h.b16 %v6696
    %v6982 = vunpack.c.l.b16 %v6697
    %v6983 = vunpack.c.h.b16 %v6697
    %v6984 = vunpack.c.l.b16 %v6698
    %v6985 = vunpack.c.h.b16 %v6698
    %v6986 = vunpack.c.l.b16 %v6699
    %v6987 = vunpack.c.h.b16 %v6699
    %v6988 = vpack.c.b16 %v6926, %v6924
    %v6989 = vpack.c.b16 %v6927, %v6925
    %v6990 = vpack.c.b16 %v6930, %v6928
    %v6991 = vpack.c.b16 %v6931, %v6929
    %v6992 = vpack.c.b16 %v6934, %v6932
    %v6993 = vpack.c.b16 %v6935, %v6933
    %v6994 = vpack.c.b16 %v6938, %v6936
    %v6995 = vpack.c.b16 %v6939, %v6937
    %v6996 = vpack.c.b16 %v6942, %v6940
    %v6997 = vpack.c.b16 %v6943, %v6941
    %v6998 = vpack.c.b16 %v6946, %v6944
    %v6999 = vpack.c.b16 %v6947, %v6945
    %v7000 = vpack.c.b16 %v6950, %v6948
    %v7001 = vpack.c.b16 %v6951, %v6949
    %v7002 = vpack.c.b16 %v6954, %v6952
    %v7003 = vpack.c.b16 %v6955, %v6953
    %v7004 = vpack.c.b16 %v6958, %v6956
    %v7005 = vpack.c.b16 %v6959, %v6957
    %v7006 = vpack.c.b16 %v6962, %v6960
    %v7007 = vpack.c.b16 %v6963, %v6961
    %v7008 = vpack.c.b16 %v6966, %v6964
    %v7009 = vpack.c.b16 %v6967, %v6965
    %v7010 = vpack.c.b16 %v6970, %v6968
    %v7011 = vpack.c.b16 %v6971, %v6969
    %v7012 = vpack.c.b16 %v6974, %v6972
    %v7013 = vpack.c.b16 %v6975, %v6973
    %v7014 = vpack.c.b16 %v6978, %v6976
    %v7015 = vpack.c.b16 %v6979, %v6977
    %v7016 = vpack.c.b16 %v6982, %v6980
    %v7017 = vpack.c.b16 %v6983, %v6981
    %v7018 = vpack.c.b16 %v6986, %v6984
    %v7019 = vpack.c.b16 %v6987, %v6985
    %7052 = vmatprep.subr.bf16.mxu0 0
    %7053 = vmatpush1.bf16.msra.mxu0 %v6652
    %7054 = vmatprep.subr.bf16.mxu0 0
    %7055 = vmatpush1.bf16.msra.mxu0 %v6653
    %7056 = vmatprep.subr.bf16.mxu0 0
    %7057 = vmatpush1.bf16.msra.mxu0 %v6654
    %7058 = vmatprep.subr.bf16.mxu0 0
    %7059 = vmatpush1.bf16.msra.mxu0 %v6655
    %7060 = vmatprep.subr.bf16.mxu0 0
    %7061 = vmatpush1.bf16.msra.mxu0 %v6656
    %7062 = vmatprep.subr.bf16.mxu0 0
    %7063 = vmatpush1.bf16.msra.mxu0 %v6657
    %7064 = vmatprep.subr.bf16.mxu0 0
    %7065 = vmatpush1.bf16.msra.mxu0 %v6658
    %7066 = vmatprep.subr.bf16.mxu0 0
    %7067 = vmatpush1.bf16.msra.mxu0 %v6659
    %7068 = vmatprep.subr.bf16.mxu0 0
    %7069 = vmatpush1.bf16.msra.mxu0 %v6660
    %7070 = vmatprep.subr.bf16.mxu0 0
    %7071 = vmatpush1.bf16.msra.mxu0 %v6661
    %7072 = vmatprep.subr.bf16.mxu0 0
    %7073 = vmatpush1.bf16.msra.mxu0 %v6662
    %7074 = vmatprep.subr.bf16.mxu0 0
    %7075 = vmatpush1.bf16.msra.mxu0 %v6663
    %7076 = vmatprep.subr.bf16.mxu0 0
    %7077 = vmatpush1.bf16.msra.mxu0 %v6664
    %7078 = vmatprep.subr.bf16.mxu0 0
    %7079 = vmatpush1.bf16.msra.mxu0 %v6665
    %7080 = vmatprep.subr.bf16.mxu0 0
    %7081 = vmatpush1.bf16.msra.mxu0 %v6666
    %7082 = vmatprep.subr.bf16.mxu0 0
    %7083 = vmatpush1.bf16.msra.mxu0 %v6667
    %7084 = vmatprep.mubr.bf16.mxu0 %v6989
    %7085 = vmatmul.mubr.bf16.gmra.mrb[0].mxu0 %v6988
    %v7086 = vpop.f32.mrb[0].mxu0
    %v7087 = vadd.f32 %v6735, %v7086
    %v7088 = vpop.f32.mrb[0].mxu0
    %v7089 = vpop.f32.mrb[0].mxu0
    %v7090 = vadd.f32 %v6740, %v7089
    %v7091 = vpop.f32.mrb[0].mxu0
    %7092 = vmatprep.mubr.bf16.mxu0 %v6991
    %7093 = vmatmul.mubr.bf16.gmra.mrb[0].mxu0 %v6990
    %v7094 = vpop.f32.mrb[0].mxu0
    %v7095 = vadd.f32 %v6745, %v7094
    %v7096 = vpop.f32.mrb[0].mxu0
    %v7097 = vpop.f32.mrb[0].mxu0
    %v7098 = vadd.f32 %v6750, %v7097
    %v7099 = vpop.f32.mrb[0].mxu0
    %7100 = vmatprep.mubr.bf16.mxu0 %v6993
    %7101 = vmatmul.mubr.bf16.gmra.mrb[0].mxu0 %v6992
    %v7102 = vpop.f32.mrb[0].mxu0
    %v7103 = vadd.f32 %v6755, %v7102
    %v7104 = vpop.f32.mrb[0].mxu0
    %v7105 = vpop.f32.mrb[0].mxu0
    %v7106 = vadd.f32 %v6760, %v7105
    %v7107 = vpop.f32.mrb[0].mxu0
    %7108 = vmatprep.mubr.bf16.mxu0 %v6995
    %7109 = vmatmul.mubr.bf16.gmra.mrb[0].mxu0 %v6994
    %v7110 = vpop.f32.mrb[0].mxu0
    %v7111 = vadd.f32 %v6765, %v7110
    %v7112 = vpop.f32.mrb[0].mxu0
    %v7113 = vpop.f32.mrb[0].mxu0
    %v7114 = vadd.f32 %v6770, %v7113
    %v7115 = vpop.f32.mrb[0].mxu0
    %7116 = vmatprep.mubr.bf16.mxu0 %v6997
    %7117 = vmatmul.mubr.bf16.gmra.mrb[0].mxu0 %v6996
    %v7118 = vpop.f32.mrb[0].mxu0
    %v7119 = vadd.f32 %v6775, %v7118
    %v7120 = vpop.f32.mrb[0].mxu0
    %v7121 = vpop.f32.mrb[0].mxu0
    %v7122 = vadd.f32 %v6780, %v7121
    %v7123 = vpop.f32.mrb[0].mxu0
    %7124 = vmatprep.mubr.bf16.mxu0 %v6999
    %7125 = vmatmul.mubr.bf16.gmra.mrb[0].mxu0 %v6998
    %v7126 = vpop.f32.mrb[0].mxu0
    %v7127 = vadd.f32 %v6785, %v7126
    %v7128 = vpop.f32.mrb[0].mxu0
    %v7129 = vpop.f32.mrb[0].mxu0
    %v7130 = vadd.f32 %v6790, %v7129
    %v7131 = vpop.f32.mrb[0].mxu0
    %7132 = vmatprep.mubr.bf16.mxu0 %v7001
    %7133 = vmatmul.mubr.bf16.gmra.mrb[0].mxu0 %v7000
    %v7134 = vpop.f32.mrb[0].mxu0
    %v7135 = vadd.f32 %v6795, %v7134
    %v7136 = vpop.f32.mrb[0].mxu0
    %v7137 = vpop.f32.mrb[0].mxu0
    %v7138 = vadd.f32 %v6800, %v7137
    %v7139 = vpop.f32.mrb[0].mxu0
    %7140 = vmatprep.mubr.bf16.mxu0 %v7003
    %7141 = vmatmul.mubr.bf16.gmra.mrb[0].mxu0 %v7002
    %v7142 = vpop.f32.mrb[0].mxu0
    %v7143 = vadd.f32 %v6805, %v7142
    %v7144 = vpop.f32.mrb[0].mxu0
    %v7145 = vpop.f32.mrb[0].mxu0
    %v7146 = vadd.f32 %v6810, %v7145
    %v7147 = vpop.f32.mrb[0].mxu0
    %7148 = vmatprep.mubr.bf16.mxu0 %v7005
    %7149 = vmatmul.mubr.bf16.gmra.mrb[0].mxu0 %v7004
    %v7150 = vpop.f32.mrb[0].mxu0
    %v7151 = vadd.f32 %v6815, %v7150
    %v7152 = vpop.f32.mrb[0].mxu0
    %v7153 = vpop.f32.mrb[0].mxu0
    %v7154 = vadd.f32 %v6820, %v7153
    %v7155 = vpop.f32.mrb[0].mxu0
    %7156 = vmatprep.mubr.bf16.mxu0 %v7007
    %7157 = vmatmul.mubr.bf16.gmra.mrb[0].mxu0 %v7006
    %v7158 = vpop.f32.mrb[0].mxu0
    %v7159 = vadd.f32 %v6825, %v7158
    %v7160 = vpop.f32.mrb[0].mxu0
    %v7161 = vpop.f32.mrb[0].mxu0
    %v7162 = vadd.f32 %v6830, %v7161
    %v7163 = vpop.f32.mrb[0].mxu0
    %7164 = vmatprep.mubr.bf16.mxu0 %v7009
    %7165 = vmatmul.mubr.bf16.gmra.mrb[0].mxu0 %v7008
    %v7166 = vpop.f32.mrb[0].mxu0
    %v7167 = vadd.f32 %v6835, %v7166
    %v7168 = vpop.f32.mrb[0].mxu0
    %v7169 = vpop.f32.mrb[0].mxu0
    %v7170 = vadd.f32 %v6840, %v7169
    %v7171 = vpop.f32.mrb[0].mxu0
    %7172 = vmatprep.mubr.bf16.mxu0 %v7011
    %7173 = vmatmul.mubr.bf16.gmra.mrb[0].mxu0 %v7010
    %v7174 = vpop.f32.mrb[0].mxu0
    %v7175 = vadd.f32 %v6845, %v7174
    %v7176 = vpop.f32.mrb[0].mxu0
    %v7177 = vpop.f32.mrb[0].mxu0
    %v7178 = vadd.f32 %v6850, %v7177
    %v7179 = vpop.f32.mrb[0].mxu0
    %7180 = vmatprep.mubr.bf16.mxu0 %v7013
    %7181 = vmatmul.mubr.bf16.gmra.mrb[0].mxu0 %v7012
    %v7182 = vpop.f32.mrb[0].mxu0
    %v7183 = vadd.f32 %v6855, %v7182
    %v7184 = vpop.f32.mrb[0].mxu0
    %v7185 = vpop.f32.mrb[0].mxu0
    %v7186 = vadd.f32 %v6860, %v7185
    %v7187 = vpop.f32.mrb[0].mxu0
    %7188 = vmatprep.mubr.bf16.mxu0 %v7015
    %7189 = vmatmul.mubr.bf16.gmra.mrb[0].mxu0 %v7014
    %v7190 = vpop.f32.mrb[0].mxu0
    %v7191 = vadd.f32 %v6865, %v7190
    %v7192 = vpop.f32.mrb[0].mxu0
    %v7193 = vpop.f32.mrb[0].mxu0
    %v7194 = vadd.f32 %v6870, %v7193
    %v7195 = vpop.f32.mrb[0].mxu0
    %7196 = vmatprep.mubr.bf16.mxu0 %v7017
    %7197 = vmatmul.mubr.bf16.gmra.mrb[0].mxu0 %v7016
    %v7198 = vpop.f32.mrb[0].mxu0
    %v7199 = vadd.f32 %v6875, %v7198
    %v7200 = vpop.f32.mrb[0].mxu0
    %v7201 = vpop.f32.mrb[0].mxu0
    %v7202 = vadd.f32 %v6880, %v7201
    %v7203 = vpop.f32.mrb[0].mxu0
    %7204 = vmatprep.mubr.bf16.mxu0 %v7019
    %7205 = vmatmul.mubr.bf16.gmra.mrb[0].mxu0 %v7018
    %v7206 = vpop.f32.mrb[0].mxu0
    %v7207 = vadd.f32 %v6885, %v7206
    %v7208 = vpop.f32.mrb[0].mxu0
    %v7209 = vpop.f32.mrb[0].mxu0
    %v7210 = vadd.f32 %v6890, %v7209
    %v7211 = vpop.f32.mrb[0].mxu0
    %7212 = vdwg.mxu0
    %v7213 = vmax.f32 %v7087, 0.0
    %v7214 = vmax.f32 %v7090, 0.0
    %v7215 = vmax.f32 %v7095, 0.0
    %v7216 = vmax.f32 %v7098, 0.0
    %v7217 = vmax.f32 %v7103, 0.0
    %v7218 = vmax.f32 %v7106, 0.0
    %v7219 = vmax.f32 %v7111, 0.0
    %v7220 = vmax.f32 %v7114, 0.0
    %v7221 = vmax.f32 %v7119, 0.0
    %v7222 = vmax.f32 %v7122, 0.0
    %v7223 = vmax.f32 %v7127, 0.0
    %v7224 = vmax.f32 %v7130, 0.0
    %v7225 = vmax.f32 %v7135, 0.0
    %v7226 = vmax.f32 %v7138, 0.0
    %v7227 = vmax.f32 %v7143, 0.0
    %v7228 = vmax.f32 %v7146, 0.0
    %v7229 = vmax.f32 %v7151, 0.0
    %v7230 = vmax.f32 %v7154, 0.0
    %v7231 = vmax.f32 %v7159, 0.0
    %v7232 = vmax.f32 %v7162, 0.0
    %v7233 = vmax.f32 %v7167, 0.0
    %v7234 = vmax.f32 %v7170, 0.0
    %v7235 = vmax.f32 %v7175, 0.0
    %v7236 = vmax.f32 %v7178, 0.0
    %v7237 = vmax.f32 %v7183, 0.0
    %v7238 = vmax.f32 %v7186, 0.0
    %v7239 = vmax.f32 %v7191, 0.0
    %v7240 = vmax.f32 %v7194, 0.0
    %v7241 = vmax.f32 %v7199, 0.0
    %v7242 = vmax.f32 %v7202, 0.0
    %v7243 = vmax.f32 %v7207, 0.0
    %v7244 = vmax.f32 %v7210, 0.0
    %v7245 = vpack.c.bf16 %v7214, %v7213
    %v7246 = vpack.c.bf16 %v7216, %v7215
    %v7247 = vpack.c.bf16 %v7218, %v7217
    %v7248 = vpack.c.bf16 %v7220, %v7219
    %v7249 = vpack.c.bf16 %v7222, %v7221
    %v7250 = vpack.c.bf16 %v7224, %v7223
    %v7251 = vpack.c.bf16 %v7226, %v7225
    %v7252 = vpack.c.bf16 %v7228, %v7227
    %v7253 = vpack.c.bf16 %v7230, %v7229
    %v7254 = vpack.c.bf16 %v7232, %v7231
    %v7255 = vpack.c.bf16 %v7234, %v7233
    %v7256 = vpack.c.bf16 %v7236, %v7235
    %v7257 = vpack.c.bf16 %v7238, %v7237
    %v7258 = vpack.c.bf16 %v7240, %v7239
    %v7259 = vpack.c.bf16 %v7242, %v7241
    %v7260 = vpack.c.bf16 %v7244, %v7243
    %v7261 = vld [vmem:[%s9] sm:$0xff]
    %v7262 = vld [vmem:[%s9 + $0x8] sm:$0xff]
    %v7263 = vld [vmem:[%s9 + $0x10] sm:$0xff]
    %v7264 = vld [vmem:[%s9 + $0x18] sm:$0xff]
    %v7265 = vld [vmem:[%s9 + $0x20] sm:$0xff]
    %v7266 = vld [vmem:[%s9 + $0x28] sm:$0xff]
    %v7267 = vld [vmem:[%s9 + $0x30] sm:$0xff]
    %v7268 = vld [vmem:[%s9 + $0x38] sm:$0xff]
    %v7269 = vld [vmem:[%s10] sm:$0xff]
    %v7270 = vld [vmem:[%s10 + $0x8] sm:$0xff]
    %v7271 = vld [vmem:[%s10 + $0x10] sm:$0xff]
    %v7272 = vld [vmem:[%s10 + $0x18] sm:$0xff]
    %v7273 = vld [vmem:[%s10 + $0x20] sm:$0xff]
    %v7274 = vld [vmem:[%s10 + $0x28] sm:$0xff]
    %v7275 = vld [vmem:[%s10 + $0x30] sm:$0xff]
    %v7276 = vld [vmem:[%s10 + $0x38] sm:$0xff]
    %7278 = vset.pattern.permute.xlu0 0
    %7279 = vperm.xlu0 %7278, %v7269
    %v7280 = vpop.permute.xlu0 %7279
    %7283 = vset.pattern.permute.xlu0 0
    %7284 = vperm.xlu0 %7283, %v7270
    %v7285 = vpop.permute.xlu0 %7284
    %7288 = vset.pattern.permute.xlu0 0
    %7289 = vperm.xlu0 %7288, %v7271
    %v7290 = vpop.permute.xlu0 %7289
    %7293 = vset.pattern.permute.xlu0 0
    %7294 = vperm.xlu0 %7293, %v7272
    %v7295 = vpop.permute.xlu0 %7294
    %7298 = vset.pattern.permute.xlu0 0
    %7299 = vperm.xlu0 %7298, %v7273
    %v7300 = vpop.permute.xlu0 %7299
    %7303 = vset.pattern.permute.xlu0 0
    %7304 = vperm.xlu0 %7303, %v7274
    %v7305 = vpop.permute.xlu0 %7304
    %7308 = vset.pattern.permute.xlu0 0
    %7309 = vperm.xlu0 %7308, %v7275
    %v7310 = vpop.permute.xlu0 %7309
    %7313 = vset.pattern.permute.xlu0 0
    %7314 = vperm.xlu0 %7313, %v7276
    %v7315 = vpop.permute.xlu0 %7314
    %v7325 = vunpack.c.l.b16 %v7261
    %v7326 = vunpack.c.h.b16 %v7261
    %v7327 = vunpack.c.l.b16 %v7262
    %v7328 = vunpack.c.h.b16 %v7262
    %v7329 = vunpack.c.l.b16 %v7263
    %v7330 = vunpack.c.h.b16 %v7263
    %v7331 = vunpack.c.l.b16 %v7264
    %v7332 = vunpack.c.h.b16 %v7264
    %v7333 = vunpack.c.l.b16 %v7265
    %v7334 = vunpack.c.h.b16 %v7265
    %v7335 = vunpack.c.l.b16 %v7266
    %v7336 = vunpack.c.h.b16 %v7266
    %v7337 = vunpack.c.l.b16 %v7267
    %v7338 = vunpack.c.h.b16 %v7267
    %v7339 = vunpack.c.l.b16 %v7268
    %v7340 = vunpack.c.h.b16 %v7268
    %v7341 = vpack.c.b16 %v7327, %v7325
    %v7342 = vpack.c.b16 %v7328, %v7326
    %v7343 = vpack.c.b16 %v7331, %v7329
    %v7344 = vpack.c.b16 %v7332, %v7330
    %v7345 = vpack.c.b16 %v7335, %v7333
    %v7346 = vpack.c.b16 %v7336, %v7334
    %v7347 = vpack.c.b16 %v7339, %v7337
    %v7348 = vpack.c.b16 %v7340, %v7338
    %7357 = vmatprep.subr.bf16.mxu0 0
    %7358 = vmatpush1.bf16.msra.mxu0 %v7245
    %7359 = vmatprep.subr.bf16.mxu0 0
    %7360 = vmatpush1.bf16.msra.mxu0 %v7246
    %7361 = vmatprep.subr.bf16.mxu0 0
    %7362 = vmatpush1.bf16.msra.mxu0 %v7247
    %7363 = vmatprep.subr.bf16.mxu0 0
    %7364 = vmatpush1.bf16.msra.mxu0 %v7248
    %7365 = vmatprep.subr.bf16.mxu0 0
    %7366 = vmatpush1.bf16.msra.mxu0 %v7249
    %7367 = vmatprep.subr.bf16.mxu0 0
    %7368 = vmatpush1.bf16.msra.mxu0 %v7250
    %7369 = vmatprep.subr.bf16.mxu0 0
    %7370 = vmatpush1.bf16.msra.mxu0 %v7251
    %7371 = vmatprep.subr.bf16.mxu0 0
    %7372 = vmatpush1.bf16.msra.mxu0 %v7252
    %7373 = vmatprep.subr.bf16.mxu0 0
    %7374 = vmatpush1.bf16.msra.mxu0 %v7253
    %7375 = vmatprep.subr.bf16.mxu0 0
    %7376 = vmatpush1.bf16.msra.mxu0 %v7254
    %7377 = vmatprep.subr.bf16.mxu0 0
    %7378 = vmatpush1.bf16.msra.mxu0 %v7255
    %7379 = vmatprep.subr.bf16.mxu0 0
    %7380 = vmatpush1.bf16.msra.mxu0 %v7256
    %7381 = vmatprep.subr.bf16.mxu0 0
    %7382 = vmatpush1.bf16.msra.mxu0 %v7257
    %7383 = vmatprep.subr.bf16.mxu0 0
    %7384 = vmatpush1.bf16.msra.mxu0 %v7258
    %7385 = vmatprep.subr.bf16.mxu0 0
    %7386 = vmatpush1.bf16.msra.mxu0 %v7259
    %7387 = vmatprep.subr.bf16.mxu0 0
    %7388 = vmatpush1.bf16.msra.mxu0 %v7260
    %7389 = vmatprep.mubr.bf16.mxu0 %v7342
    %7390 = vmatmul.mubr.bf16.gmra.mrb[0].mxu0 %v7341
    %v7391 = vpop.f32.mrb[0].mxu0
    %v7392 = vadd.f32 %v7280, %v7391
    %v7393 = vpop.f32.mrb[0].mxu0
    %v7394 = vpop.f32.mrb[0].mxu0
    %v7395 = vadd.f32 %v7285, %v7394
    %v7396 = vpop.f32.mrb[0].mxu0
    %7397 = vmatprep.mubr.bf16.mxu0 %v7344
    %7398 = vmatmul.mubr.bf16.gmra.mrb[0].mxu0 %v7343
    %v7399 = vpop.f32.mrb[0].mxu0
    %v7400 = vadd.f32 %v7290, %v7399
    %v7401 = vpop.f32.mrb[0].mxu0
    %v7402 = vpop.f32.mrb[0].mxu0
    %v7403 = vadd.f32 %v7295, %v7402
    %v7404 = vpop.f32.mrb[0].mxu0
    %7405 = vmatprep.mubr.bf16.mxu0 %v7346
    %7406 = vmatmul.mubr.bf16.gmra.mrb[0].mxu0 %v7345
    %v7407 = vpop.f32.mrb[0].mxu0
    %v7408 = vadd.f32 %v7300, %v7407
    %v7409 = vpop.f32.mrb[0].mxu0
    %v7410 = vpop.f32.mrb[0].mxu0
    %v7411 = vadd.f32 %v7305, %v7410
    %v7412 = vpop.f32.mrb[0].mxu0
    %7413 = vmatprep.mubr.bf16.mxu0 %v7348
    %7414 = vmatmul.mubr.bf16.gmra.mrb[0].mxu0 %v7347
    %v7415 = vpop.f32.mrb[0].mxu0
    %v7416 = vadd.f32 %v7310, %v7415
    %v7417 = vpop.f32.mrb[0].mxu0
    %v7418 = vpop.f32.mrb[0].mxu0
    %v7419 = vadd.f32 %v7315, %v7418
    %v7420 = vpop.f32.mrb[0].mxu0
    %7421 = vdwg.mxu0
    %7422 = vst.msk [vmem:[%s11] sm:$0xff] %vm87, %v7392
    %7423 = vst.msk [vmem:[%s11 + $0x8] sm:$0xff] %vm87, %v7395
    %7424 = vst.msk [vmem:[%s11 + $0x10] sm:$0xff] %vm87, %v7400
    %7425 = vst.msk [vmem:[%s11 + $0x18] sm:$0xff] %vm87, %v7403
    %7426 = vst.msk [vmem:[%s11 + $0x20] sm:$0xff] %vm87, %v7408
    %7427 = vst.msk [vmem:[%s11 + $0x28] sm:$0xff] %vm87, %v7411
    %7428 = vst.msk [vmem:[%s11 + $0x30] sm:$0xff] %vm87, %v7416
    %7429 = vst.msk [vmem:[%s11 + $0x38] sm:$0xff] %vm87, %v7419
    // Predicated region
    $region62: #{cnn_forward.1} parent=1 // pred_check
      _
    $region63: #{cnn_forward.1} parent=1 // pred_check_branch
      %7431 = sbr.rel (0) target = $region65
    $region64: #{cnn_forward.1} parent=1 // pred_region
      _
    $region65: #{cnn_forward.1} parent=1 // pred_fallthru
      _
    // Predicated region
    $region66: #{cnn_forward.1} parent=1 // pred_check
      _
    $region67: #{cnn_forward.1} parent=1 // pred_check_branch
      %7433 = sbr.rel (0) target = $region69
    $region68: #{cnn_forward.1} parent=1 // pred_region
      _
    $region69: #{cnn_forward.1} parent=1 // pred_fallthru
      _
    %7434 = vsyncpa [#allocation5], 1
    %7435 = vsyncpa [#allocation7], 1
    %7436 = vsyncpa [#allocation10], 1

</llo_original>
